<compile_context>
chip_gen: v7x
topology: tpu7x:2x2x1
jax: 0.10.0
libtpu: 0.0.40
codegen_flags: <defaults>
</compile_context>

<pallas_src>
import math
import functools

import jax
import jax.numpy as jnp
from jax import lax
from jax.experimental import pallas as pl
from jax.experimental.pallas import tpu as pltpu

NEG_INF = -1e9  # finite stand-in for float('-inf') used by generate_square_subsequent_mask


# ------------------------------------------------------------------ fused kernel

def _decoder_kernel(tgt_ref, mem_ref, bias_ref,
                    sa_wqkv_ref, sa_bqkv_ref, sa_wo_ref, sa_bo_ref,
                    ca_wq_ref, ca_bq_ref, ca_wkv_ref, ca_bkv_ref,
                    ca_wo_ref, ca_bo_ref,
                    ff_w1_ref, ff_b1_ref, ff_w2_ref, ff_b2_ref,
                    ln1_g_ref, ln1_b_ref, ln2_g_ref, ln2_b_ref,
                    ln3_g_ref, ln3_b_ref,
                    out_w_ref, out_b_ref,
                    o_ref, *, num_heads, num_layers, eps):
    """Whole decoder stack for one batch element (grid axis = batch)."""
    D = tgt_ref.shape[-1]
    Dh = D // num_heads
    scale = 1.0 / math.sqrt(Dh)

    x = tgt_ref[0]       # (L, D)   target embeddings (+ abs. pos. enc.)
    mem = mem_ref[0]     # (S, D)   encoder memory   (+ abs. pos. enc.)
    bias = bias_ref[0]   # (L, L)   causal + key-padding additive bias

    def mha(q, k, v, b):
        # Pre-scale Q once instead of scaling every per-head score matrix.
        q = q * scale
        # Heads split via static in-kernel slicing (no HBM transposes).
        outs = []
        for h in range(num_heads):
            sl = slice(h * Dh, (h + 1) * Dh)
            s = jnp.einsum('qd,kd->qk', q[:, sl], k[:, sl],
                           preferred_element_type=jnp.float32)
            if b is not None:
                s = s + b
            m = jnp.max(s, axis=-1, keepdims=True)
            p = jnp.exp(s - m)
            # exact reciprocal keeps bit-closeness to the f32 reference; the
            # approx=True EUP fast path is available for production sizes.
            p = p * pl.reciprocal(jnp.sum(p, axis=-1, keepdims=True), approx=False)
            outs.append(jnp.dot(p, v[:, sl], preferred_element_type=jnp.float32))
        return jnp.concatenate(outs, axis=-1)           # (Lq, D)

    def layernorm(y, g, b2):
        mu = jnp.mean(y, axis=-1, keepdims=True)
        var = jnp.mean(jnp.square(y - mu), axis=-1, keepdims=True)
        return (y - mu) * lax.rsqrt(var + eps) * g + b2

    for l in range(num_layers):   # static unroll; stacked weights stay VMEM-resident
        # ---- self attention: fused (D, 3D) QKV projection ----
        qkv = jnp.dot(x, sa_wqkv_ref[l], preferred_element_type=jnp.float32) + sa_bqkv_ref[l]
        a = mha(qkv[:, :D], qkv[:, D:2 * D], qkv[:, 2 * D:], bias)
        a = jnp.dot(a, sa_wo_ref[l], preferred_element_type=jnp.float32) + sa_bo_ref[l]
        x = layernorm(x + a, ln1_g_ref[l], ln1_b_ref[l])

        # ---- cross attention: bias-free, fused (D, 2D) K|V projection of memory ----
        q = jnp.dot(x, ca_wq_ref[l], preferred_element_type=jnp.float32) + ca_bq_ref[l]
        kv = jnp.dot(mem, ca_wkv_ref[l], preferred_element_type=jnp.float32) + ca_bkv_ref[l]
        a = mha(q, kv[:, :D], kv[:, D:], None)
        a = jnp.dot(a, ca_wo_ref[l], preferred_element_type=jnp.float32) + ca_bo_ref[l]
        x = layernorm(x + a, ln2_g_ref[l], ln2_b_ref[l])

        # ---- feed forward (ReLU) ----
        h = jnp.dot(x, ff_w1_ref[l], preferred_element_type=jnp.float32) + ff_b1_ref[l]
        h = jnp.maximum(h, 0.0)
        h = jnp.dot(h, ff_w2_ref[l], preferred_element_type=jnp.float32) + ff_b2_ref[l]
        x = layernorm(x + h, ln3_g_ref[l], ln3_b_ref[l])

    # Final vocab projection, padded to a lane-dense multiple of 128 (unmasked vst).
    o_ref[0] = (jnp.dot(x, out_w_ref[...], preferred_element_type=jnp.float32)
                + out_b_ref[...]).astype(o_ref.dtype)


# ------------------------------------------------------------------ glue (plain JAX)

def _prepare_inputs(params, protein_encoder_out, target_input, pad_idx):
    """create_mask + nn.Embedding gather + absolute positional encoding (glue)."""
    # TODO(synk): embedding gather + mask construction stay in plain JAX (no clean
    # Pallas gather worth it at this size); nn.Dropout layers are identity (eval).
    B, L = target_input.shape
    S = protein_encoder_out.shape[1]
    pos_enc = params['pos_enc']

    idx = jnp.arange(L)
    causal = jnp.where(idx[None, :] <= idx[:, None], 0.0, NEG_INF)          # (L, L)
    pad_bias = jnp.where(target_input == pad_idx, NEG_INF, 0.0)             # (B, L)
    self_bias = (causal[None, :, :] + pad_bias[:, None, :]).astype(jnp.float32)

    tgt_emb = params['embedding'][target_input] + pos_enc[None, :L, :]      # (B, L, D)
    memory = protein_encoder_out + pos_enc[None, :S, :]                     # (B, S, D)
    return tgt_emb, memory, self_bias


def decoder_forward_pallas(params, protein_encoder_out, molecule_encoder_out,
                           target_input, *, num_heads, pad_idx):
    del molecule_encoder_out  # molecule_encoder.enable == False
    tgt_emb, memory, self_bias = _prepare_inputs(params, protein_encoder_out,
                                                 target_input, pad_idx)
    B, L, D = tgt_emb.shape
    S = memory.shape[1]
    NL = params['sa_wqkv'].shape[0]
    FF = params['ff_w1'].shape[2]
    V = params['out_w'].shape[1]
    VP = ((V + 127) // 128) * 128      # lane-dense padded vocab width

    out_w_pad = jnp.zeros((D, VP), jnp.float32).at[:, :V].set(params['out_w'])
    out_b_pad = jnp.zeros((1, VP), jnp.float32).at[:, :V].set(params['out_b'])

    def full(shape):   # whole-array block, identical for every grid step (DMA'd once)
        return pl.BlockSpec(shape, lambda b, _n=len(shape): (0,) * _n)

    def perb(shape):   # one batch element per grid step
        return pl.BlockSpec((1,) + shape, lambda b, _n=len(shape): (b,) + (0,) * _n)

    kernel = functools.partial(_decoder_kernel, num_heads=num_heads,
                               num_layers=NL, eps=1e-5)

    logits_pad = pl.pallas_call(
        kernel,
        out_shape=jax.ShapeDtypeStruct((B, L, VP), jnp.float32),
        grid=(B,),
        in_specs=[
            perb((L, D)),                 # tgt_emb
            perb((S, D)),                 # memory
            perb((L, L)),                 # self_bias
            full((NL, D, 3 * D)),         # sa_wqkv
            full((NL, 1, 3 * D)),         # sa_bqkv
            full((NL, D, D)),             # sa_wo
            full((NL, 1, D)),             # sa_bo
            full((NL, D, D)),             # ca_wq
            full((NL, 1, D)),             # ca_bq
            full((NL, D, 2 * D)),         # ca_wkv
            full((NL, 1, 2 * D)),         # ca_bkv
            full((NL, D, D)),             # ca_wo
            full((NL, 1, D)),             # ca_bo
            full((NL, D, FF)),            # ff_w1
            full((NL, 1, FF)),            # ff_b1
            full((NL, FF, D)),            # ff_w2
            full((NL, 1, D)),             # ff_b2
            full((NL, 1, D)),             # ln1_g
            full((NL, 1, D)),             # ln1_b
            full((NL, 1, D)),             # ln2_g
            full((NL, 1, D)),             # ln2_b
            full((NL, 1, D)),             # ln3_g
            full((NL, 1, D)),             # ln3_b
            full((D, VP)),                # out_w (padded)
            full((1, VP)),                # out_b (padded)
        ],
        out_specs=perb((L, VP)),
        compiler_params=pltpu.CompilerParams(
            dimension_semantics=("parallel",)),   # batch across TCs on v7x megacore
    )(tgt_emb, memory, self_bias,
      params['sa_wqkv'], params['sa_bqkv'], params['sa_wo'], params['sa_bo'],
      params['ca_wq'], params['ca_bq'], params['ca_wkv'], params['ca_bkv'],
      params['ca_wo'], params['ca_bo'],
      params['ff_w1'], params['ff_b1'], params['ff_w2'], params['ff_b2'],
      params['ln1_g'], params['ln1_b'], params['ln2_g'], params['ln2_b'],
      params['ln3_g'], params['ln3_b'],
      out_w_pad, out_b_pad)

    return logits_pad[:, :, :V]


# ------------------------------------------------------------------ jnp reference

def decoder_forward_reference(params, protein_encoder_out, molecule_encoder_out,
                              target_input, *, num_heads, pad_idx):
    del molecule_encoder_out
    tgt_emb, memory, self_bias = _prepare_inputs(params, protein_encoder_out,
                                                 target_input, pad_idx)
    D = tgt_emb.shape[-1]
    H = num_heads
    Dh = D // H
    scale = 1.0 / math.sqrt(Dh)
    NL = params['sa_wqkv'].shape[0]

    def mha(q, k, v, bias):
        B, Lq, _ = q.shape
        Lk = k.shape[1]
        qh = q.reshape(B, Lq, H, Dh).transpose(0, 2, 1, 3)
        kh = k.reshape(B, Lk, H, Dh).transpose(0, 2, 1, 3)
        vh = v.reshape(B, Lk, H, Dh).transpose(0, 2, 1, 3)
        s = jnp.einsum('bhqd,bhkd->bhqk', qh, kh) * scale
        if bias is not None:
            s = s + bias[:, None]
        p = jax.nn.softmax(s, axis=-1)
        o = jnp.einsum('bhqk,bhkd->bhqd', p, vh)
        return o.transpose(0, 2, 1, 3).reshape(B, Lq, D)

    def ln(y, g, b):
        mu = jnp.mean(y, axis=-1, keepdims=True)
        var = jnp.mean(jnp.square(y - mu), axis=-1, keepdims=True)
        return (y - mu) * lax.rsqrt(var + 1e-5) * g + b

    x = tgt_emb
    for l in range(NL):
        qkv = x @ params['sa_wqkv'][l] + params['sa_bqkv'][l]
        q, k, v = jnp.split(qkv, 3, axis=-1)
        a = mha(q, k, v, self_bias) @ params['sa_wo'][l] + params['sa_bo'][l]
        x = ln(x + a, params['ln1_g'][l], params['ln1_b'][l])
        qc = x @ params['ca_wq'][l] + params['ca_bq'][l]
        kv = memory @ params['ca_wkv'][l] + params['ca_bkv'][l]
        kc, vc = jnp.split(kv, 2, axis=-1)
        a = mha(qc, kc, vc, None) @ params['ca_wo'][l] + params['ca_bo'][l]
        x = ln(x + a, params['ln2_g'][l], params['ln2_b'][l])
        h = jnp.maximum(x @ params['ff_w1'][l] + params['ff_b1'][l], 0.0)
        h = h @ params['ff_w2'][l] + params['ff_b2'][l]
        x = ln(x + h, params['ln3_g'][l], params['ln3_b'][l])
    return x @ params['out_w'] + params['out_b']


# ------------------------------------------------------------------ parameters

def make_pos_enc(max_len, d_model):
    position = jnp.arange(max_len, dtype=jnp.float32)[:, None]
    div_term = jnp.exp(jnp.arange(0, d_model, 2, dtype=jnp.float32)
                       * -(math.log(10000.0) / d_model))
    pe = jnp.zeros((max_len, d_model), jnp.float32)
    pe = pe.at[:, 0::2].set(jnp.sin(position * div_term))
    pe = pe.at[:, 1::2].set(jnp.cos(position * div_term))
    return pe


def init_params(key, vocab_size, dim, num_layers, dim_ff, max_pe_len):
    ks = iter(jax.random.split(key, 32))
    w = lambda shape: 0.10 * jax.random.normal(next(ks), shape, jnp.float32)
    b = lambda shape: 0.05 * jax.random.normal(next(ks), shape, jnp.float32)
    NL = num_layers

    emb = 0.02 * jax.random.normal(next(ks), (vocab_size, dim), jnp.float32)
    emb = emb.at[0].set(0.0)  # padding_idx = 0

    return dict(
        embedding=emb,
        pos_enc=make_pos_enc(max_pe_len, dim),
        # self-attention: fused QKV weights, stacked over layers
        sa_wqkv=w((NL, dim, 3 * dim)), sa_bqkv=b((NL, 1, 3 * dim)),
        sa_wo=w((NL, dim, dim)),       sa_bo=b((NL, 1, dim)),
        # cross-attention: Q separate, fused K|V
        ca_wq=w((NL, dim, dim)),       ca_bq=b((NL, 1, dim)),
        ca_wkv=w((NL, dim, 2 * dim)),  ca_bkv=b((NL, 1, 2 * dim)),
        ca_wo=w((NL, dim, dim)),       ca_bo=b((NL, 1, dim)),
        # feed-forward
        ff_w1=w((NL, dim, dim_ff)),    ff_b1=b((NL, 1, dim_ff)),
        ff_w2=w((NL, dim_ff, dim)),    ff_b2=b((NL, 1, dim)),
        # layer norms
        ln1_g=1.0 + b((NL, 1, dim)), ln1_b=b((NL, 1, dim)),
        ln2_g=1.0 + b((NL, 1, dim)), ln2_b=b((NL, 1, dim)),
        ln3_g=1.0 + b((NL, 1, dim)), ln3_b=b((NL, 1, dim)),
        # output projection
        out_w=w((dim, vocab_size)),    out_b=b((1, vocab_size)),
    )


# ------------------------------------------------------------------ main

if __name__ == "__main__":
    vocab_size, dim, num_heads, num_layers, dim_ff = 48, 32, 4, 2, 64
    pad_idx = 0
    B, L_tgt, S_prot = 2, 8, 16
    max_pe_len = 64  # max(protein max_len, molecule max_len, decoder max_len)

    key = jax.random.PRNGKey(0)
    k_par, k_prot, k_tgt = jax.random.split(key, 3)

    params = init_params(k_par, vocab_size, dim, num_layers, dim_ff, max_pe_len)
    protein_encoder_out = jax.random.normal(k_prot, (B, S_prot, dim), jnp.float32)
    molecule_encoder_out = jnp.zeros((B, 4, dim), jnp.float32)  # unused (enable=False)
    target_input = jax.random.randint(k_tgt, (B, L_tgt), 1, vocab_size, dtype=jnp.int32)
    target_input = target_input.at[:, -2:].set(pad_idx)  # exercise the key-padding mask

    fwd = jax.jit(functools.partial(decoder_forward_pallas,
                                    num_heads=num_heads, pad_idx=pad_idx))
    ref_fwd = jax.jit(functools.partial(decoder_forward_reference,
                                        num_heads=num_heads, pad_idx=pad_idx))

    out = fwd(params, protein_encoder_out, molecule_encoder_out, target_input)
    out = jax.block_until_ready(out)

    ref = ref_fwd(params, protein_encoder_out, molecule_encoder_out, target_input)
    ref = jax.block_until_ready(ref)

    assert out.shape == (B, L_tgt, vocab_size), out.shape
    max_diff = float(jnp.max(jnp.abs(out - ref)))
    assert max_diff < 5e-3, f"Pallas vs jnp mismatch: {max_diff}"

    print("KERNEL_OK")
</pallas_src>

<mosaic_0001>
module attributes {stable_mosaic.version = 11 : i64} {
  func.func @_decoder_kernel(%arg0: i32, %arg1: memref<1x8x32xf32, #tpu.memory_space<vmem>>, %arg2: memref<1x16x32xf32, #tpu.memory_space<vmem>>, %arg3: memref<1x8x8xf32, #tpu.memory_space<vmem>>, %arg4: memref<2x32x96xf32, #tpu.memory_space<vmem>>, %arg5: memref<2x1x96xf32, #tpu.memory_space<vmem>>, %arg6: memref<2x32x32xf32, #tpu.memory_space<vmem>>, %arg7: memref<2x1x32xf32, #tpu.memory_space<vmem>>, %arg8: memref<2x32x32xf32, #tpu.memory_space<vmem>>, %arg9: memref<2x1x32xf32, #tpu.memory_space<vmem>>, %arg10: memref<2x32x64xf32, #tpu.memory_space<vmem>>, %arg11: memref<2x1x64xf32, #tpu.memory_space<vmem>>, %arg12: memref<2x32x32xf32, #tpu.memory_space<vmem>>, %arg13: memref<2x1x32xf32, #tpu.memory_space<vmem>>, %arg14: memref<2x32x64xf32, #tpu.memory_space<vmem>>, %arg15: memref<2x1x64xf32, #tpu.memory_space<vmem>>, %arg16: memref<2x64x32xf32, #tpu.memory_space<vmem>>, %arg17: memref<2x1x32xf32, #tpu.memory_space<vmem>>, %arg18: memref<2x1x32xf32, #tpu.memory_space<vmem>>, %arg19: memref<2x1x32xf32, #tpu.memory_space<vmem>>, %arg20: memref<2x1x32xf32, #tpu.memory_space<vmem>>, %arg21: memref<2x1x32xf32, #tpu.memory_space<vmem>>, %arg22: memref<2x1x32xf32, #tpu.memory_space<vmem>>, %arg23: memref<2x1x32xf32, #tpu.memory_space<vmem>>, %arg24: memref<32x128xf32, #tpu.memory_space<vmem>>, %arg25: memref<1x128xf32, #tpu.memory_space<vmem>>, %arg26: memref<1x8x128xf32, #tpu.memory_space<vmem>>) attributes {dimension_semantics = [#tpu.dimension_semantics<parallel>], iteration_bounds = array<i64: 2>, scalar_prefetch = 0 : i64, scratch_operands = 0 : i64, tpu.core_type = #tpu.core_type<tc>, window_params = [{transform_indices = @transform_0, window_bounds = array<i64: 1, 8, 32>}, {transform_indices = @transform_1, window_bounds = array<i64: 1, 16, 32>}, {transform_indices = @transform_2, window_bounds = array<i64: 1, 8, 8>}, {pipeline_mode = #tpu.pipeline_mode<synchronous>, transform_indices = @transform_3, window_bounds = array<i64: 2, 32, 96>}, {pipeline_mode = #tpu.pipeline_mode<synchronous>, transform_indices = @transform_4, window_bounds = array<i64: 2, 1, 96>}, {pipeline_mode = #tpu.pipeline_mode<synchronous>, transform_indices = @transform_5, window_bounds = array<i64: 2, 32, 32>}, {pipeline_mode = #tpu.pipeline_mode<synchronous>, transform_indices = @transform_6, window_bounds = array<i64: 2, 1, 32>}, {pipeline_mode = #tpu.pipeline_mode<synchronous>, transform_indices = @transform_7, window_bounds = array<i64: 2, 32, 32>}, {pipeline_mode = #tpu.pipeline_mode<synchronous>, transform_indices = @transform_8, window_bounds = array<i64: 2, 1, 32>}, {pipeline_mode = #tpu.pipeline_mode<synchronous>, transform_indices = @transform_9, window_bounds = array<i64: 2, 32, 64>}, {pipeline_mode = #tpu.pipeline_mode<synchronous>, transform_indices = @transform_10, window_bounds = array<i64: 2, 1, 64>}, {pipeline_mode = #tpu.pipeline_mode<synchronous>, transform_indices = @transform_11, window_bounds = array<i64: 2, 32, 32>}, {pipeline_mode = #tpu.pipeline_mode<synchronous>, transform_indices = @transform_12, window_bounds = array<i64: 2, 1, 32>}, {pipeline_mode = #tpu.pipeline_mode<synchronous>, transform_indices = @transform_13, window_bounds = array<i64: 2, 32, 64>}, {pipeline_mode = #tpu.pipeline_mode<synchronous>, transform_indices = @transform_14, window_bounds = array<i64: 2, 1, 64>}, {pipeline_mode = #tpu.pipeline_mode<synchronous>, transform_indices = @transform_15, window_bounds = array<i64: 2, 64, 32>}, {pipeline_mode = #tpu.pipeline_mode<synchronous>, transform_indices = @transform_16, window_bounds = array<i64: 2, 1, 32>}, {pipeline_mode = #tpu.pipeline_mode<synchronous>, transform_indices = @transform_17, window_bounds = array<i64: 2, 1, 32>}, {pipeline_mode = #tpu.pipeline_mode<synchronous>, transform_indices = @transform_18, window_bounds = array<i64: 2, 1, 32>}, {pipeline_mode = #tpu.pipeline_mode<synchronous>, transform_indices = @transform_19, window_bounds = array<i64: 2, 1, 32>}, {pipeline_mode = #tpu.pipeline_mode<synchronous>, transform_indices = @transform_20, window_bounds = array<i64: 2, 1, 32>}, {pipeline_mode = #tpu.pipeline_mode<synchronous>, transform_indices = @transform_21, window_bounds = array<i64: 2, 1, 32>}, {pipeline_mode = #tpu.pipeline_mode<synchronous>, transform_indices = @transform_22, window_bounds = array<i64: 2, 1, 32>}, {pipeline_mode = #tpu.pipeline_mode<synchronous>, transform_indices = @transform_23, window_bounds = array<i64: 32, 128>}, {pipeline_mode = #tpu.pipeline_mode<synchronous>, transform_indices = @transform_24, window_bounds = array<i64: 1, 128>}, {transform_indices = @transform_25, window_bounds = array<i64: 1, 8, 128>}]} {
    %c0 = arith.constant 0 : index
    %c0_0 = arith.constant 0 : index
    %c0_1 = arith.constant 0 : index
    %0 = vector.load %arg1[%c0, %c0_0, %c0_1] : memref<1x8x32xf32, #tpu.memory_space<vmem>>, vector<1x8x32xf32>
    %1 = vector.shape_cast %0 : vector<1x8x32xf32> to vector<8x32xf32>
    %c0_2 = arith.constant 0 : index
    %c0_3 = arith.constant 0 : index
    %c0_4 = arith.constant 0 : index
    %2 = vector.load %arg2[%c0_2, %c0_3, %c0_4] : memref<1x16x32xf32, #tpu.memory_space<vmem>>, vector<1x16x32xf32>
    %3 = vector.shape_cast %2 : vector<1x16x32xf32> to vector<16x32xf32>
    %c0_5 = arith.constant 0 : index
    %c0_6 = arith.constant 0 : index
    %c0_7 = arith.constant 0 : index
    %4 = vector.load %arg3[%c0_5, %c0_6, %c0_7] : memref<1x8x8xf32, #tpu.memory_space<vmem>>, vector<1x8x8xf32>
    %5 = vector.shape_cast %4 : vector<1x8x8xf32> to vector<8x8xf32>
    %c0_8 = arith.constant 0 : index
    %c0_9 = arith.constant 0 : index
    %c0_10 = arith.constant 0 : index
    %6 = vector.load %arg4[%c0_8, %c0_9, %c0_10] : memref<2x32x96xf32, #tpu.memory_space<vmem>>, vector<1x32x96xf32>
    %7 = vector.shape_cast %6 : vector<1x32x96xf32> to vector<32x96xf32>
    %cst = arith.constant dense<0.000000e+00> : vector<8x96xf32>
    %8 = tpu.matmul %1, %7, %cst {dimension_numbers = #tpu.dot_dimension_numbers<[1], [0], [0], [1], [0, 0, 1, 1], [], []>} : vector<8x32xf32>, vector<32x96xf32>, vector<8x96xf32> -> vector<8x96xf32>
    %c0_11 = arith.constant 0 : index
    %c0_12 = arith.constant 0 : index
    %c0_13 = arith.constant 0 : index
    %9 = vector.load %arg5[%c0_11, %c0_12, %c0_13] : memref<2x1x96xf32, #tpu.memory_space<vmem>>, vector<1x1x96xf32>
    %10 = vector.shape_cast %9 : vector<1x1x96xf32> to vector<1x96xf32>
    %11 = vector.broadcast %10 : vector<1x96xf32> to vector<8x96xf32>
    %12 = arith.addf %8, %11 : vector<8x96xf32>
    %13 = vector.extract_strided_slice %12 {offsets = [0, 0], sizes = [8, 32], strides = [1, 1]} : vector<8x96xf32> to vector<8x32xf32>
    %14 = vector.extract_strided_slice %12 {offsets = [0, 32], sizes = [8, 32], strides = [1, 1]} : vector<8x96xf32> to vector<8x32xf32>
    %15 = vector.extract_strided_slice %12 {offsets = [0, 64], sizes = [8, 32], strides = [1, 1]} : vector<8x96xf32> to vector<8x32xf32>
    %cst_14 = arith.constant 0.353553385 : f32
    %16 = vector.broadcast %cst_14 : f32 to vector<8x32xf32>
    %17 = arith.mulf %13, %16 : vector<8x32xf32>
    %18 = vector.extract_strided_slice %17 {offsets = [0, 0], sizes = [8, 8], strides = [1, 1]} : vector<8x32xf32> to vector<8x8xf32>
    %19 = vector.extract_strided_slice %14 {offsets = [0, 0], sizes = [8, 8], strides = [1, 1]} : vector<8x32xf32> to vector<8x8xf32>
    "tpu.trace_start"() <{level = 10 : i32, message = "qd,kd->qk"}> : () -> ()
    %cst_15 = arith.constant dense<0.000000e+00> : vector<8x8xf32>
    %20 = tpu.matmul %18, %19, %cst_15 {dimension_numbers = #tpu.dot_dimension_numbers<[1], [1], [0], [0], [0, 0, 1, 0], [], []>} : vector<8x8xf32>, vector<8x8xf32>, vector<8x8xf32> -> vector<8x8xf32>
    "tpu.trace_stop"() : () -> ()
    %21 = arith.addf %20, %5 : vector<8x8xf32>
    %cst_16 = arith.constant dense<0xFF800000> : vector<8xf32>
    %22 = vector.multi_reduction <maximumf>, %21, %cst_16 [1] : vector<8x8xf32> to vector<8xf32>
    %23 = vector.shape_cast %22 : vector<8xf32> to vector<8x1xf32>
    %24 = vector.broadcast %23 : vector<8x1xf32> to vector<8x8xf32>
    %25 = arith.subf %21, %24 : vector<8x8xf32>
    %26 = math.exp %25 : vector<8x8xf32>
    %cst_17 = arith.constant dense<0.000000e+00> : vector<8xf32>
    %27 = vector.multi_reduction <add>, %26, %cst_17 [1] : vector<8x8xf32> to vector<8xf32>
    %28 = vector.shape_cast %27 : vector<8xf32> to vector<8x1xf32>
    %29 = tpu.reciprocal %28 : vector<8x1xf32> -> vector<8x1xf32>
    %30 = vector.broadcast %29 : vector<8x1xf32> to vector<8x8xf32>
    %31 = arith.mulf %26, %30 : vector<8x8xf32>
    %32 = vector.extract_strided_slice %15 {offsets = [0, 0], sizes = [8, 8], strides = [1, 1]} : vector<8x32xf32> to vector<8x8xf32>
    %cst_18 = arith.constant dense<0.000000e+00> : vector<8x8xf32>
    %33 = tpu.matmul %31, %32, %cst_18 {dimension_numbers = #tpu.dot_dimension_numbers<[1], [0], [0], [1], [0, 0, 1, 1], [], []>} : vector<8x8xf32>, vector<8x8xf32>, vector<8x8xf32> -> vector<8x8xf32>
    %34 = vector.extract_strided_slice %17 {offsets = [0, 8], sizes = [8, 8], strides = [1, 1]} : vector<8x32xf32> to vector<8x8xf32>
    %35 = vector.extract_strided_slice %14 {offsets = [0, 8], sizes = [8, 8], strides = [1, 1]} : vector<8x32xf32> to vector<8x8xf32>
    "tpu.trace_start"() <{level = 10 : i32, message = "qd,kd->qk"}> : () -> ()
    %cst_19 = arith.constant dense<0.000000e+00> : vector<8x8xf32>
    %36 = tpu.matmul %34, %35, %cst_19 {dimension_numbers = #tpu.dot_dimension_numbers<[1], [1], [0], [0], [0, 0, 1, 0], [], []>} : vector<8x8xf32>, vector<8x8xf32>, vector<8x8xf32> -> vector<8x8xf32>
    "tpu.trace_stop"() : () -> ()
    %37 = arith.addf %36, %5 : vector<8x8xf32>
    %cst_20 = arith.constant dense<0xFF800000> : vector<8xf32>
    %38 = vector.multi_reduction <maximumf>, %37, %cst_20 [1] : vector<8x8xf32> to vector<8xf32>
    %39 = vector.shape_cast %38 : vector<8xf32> to vector<8x1xf32>
    %40 = vector.broadcast %39 : vector<8x1xf32> to vector<8x8xf32>
    %41 = arith.subf %37, %40 : vector<8x8xf32>
    %42 = math.exp %41 : vector<8x8xf32>
    %cst_21 = arith.constant dense<0.000000e+00> : vector<8xf32>
    %43 = vector.multi_reduction <add>, %42, %cst_21 [1] : vector<8x8xf32> to vector<8xf32>
    %44 = vector.shape_cast %43 : vector<8xf32> to vector<8x1xf32>
    %45 = tpu.reciprocal %44 : vector<8x1xf32> -> vector<8x1xf32>
    %46 = vector.broadcast %45 : vector<8x1xf32> to vector<8x8xf32>
    %47 = arith.mulf %42, %46 : vector<8x8xf32>
    %48 = vector.extract_strided_slice %15 {offsets = [0, 8], sizes = [8, 8], strides = [1, 1]} : vector<8x32xf32> to vector<8x8xf32>
    %cst_22 = arith.constant dense<0.000000e+00> : vector<8x8xf32>
    %49 = tpu.matmul %47, %48, %cst_22 {dimension_numbers = #tpu.dot_dimension_numbers<[1], [0], [0], [1], [0, 0, 1, 1], [], []>} : vector<8x8xf32>, vector<8x8xf32>, vector<8x8xf32> -> vector<8x8xf32>
    %50 = vector.extract_strided_slice %17 {offsets = [0, 16], sizes = [8, 8], strides = [1, 1]} : vector<8x32xf32> to vector<8x8xf32>
    %51 = vector.extract_strided_slice %14 {offsets = [0, 16], sizes = [8, 8], strides = [1, 1]} : vector<8x32xf32> to vector<8x8xf32>
    "tpu.trace_start"() <{level = 10 : i32, message = "qd,kd->qk"}> : () -> ()
    %cst_23 = arith.constant dense<0.000000e+00> : vector<8x8xf32>
    %52 = tpu.matmul %50, %51, %cst_23 {dimension_numbers = #tpu.dot_dimension_numbers<[1], [1], [0], [0], [0, 0, 1, 0], [], []>} : vector<8x8xf32>, vector<8x8xf32>, vector<8x8xf32> -> vector<8x8xf32>
    "tpu.trace_stop"() : () -> ()
    %53 = arith.addf %52, %5 : vector<8x8xf32>
    %cst_24 = arith.constant dense<0xFF800000> : vector<8xf32>
    %54 = vector.multi_reduction <maximumf>, %53, %cst_24 [1] : vector<8x8xf32> to vector<8xf32>
    %55 = vector.shape_cast %54 : vector<8xf32> to vector<8x1xf32>
    %56 = vector.broadcast %55 : vector<8x1xf32> to vector<8x8xf32>
    %57 = arith.subf %53, %56 : vector<8x8xf32>
    %58 = math.exp %57 : vector<8x8xf32>
    %cst_25 = arith.constant dense<0.000000e+00> : vector<8xf32>
    %59 = vector.multi_reduction <add>, %58, %cst_25 [1] : vector<8x8xf32> to vector<8xf32>
    %60 = vector.shape_cast %59 : vector<8xf32> to vector<8x1xf32>
    %61 = tpu.reciprocal %60 : vector<8x1xf32> -> vector<8x1xf32>
    %62 = vector.broadcast %61 : vector<8x1xf32> to vector<8x8xf32>
    %63 = arith.mulf %58, %62 : vector<8x8xf32>
    %64 = vector.extract_strided_slice %15 {offsets = [0, 16], sizes = [8, 8], strides = [1, 1]} : vector<8x32xf32> to vector<8x8xf32>
    %cst_26 = arith.constant dense<0.000000e+00> : vector<8x8xf32>
    %65 = tpu.matmul %63, %64, %cst_26 {dimension_numbers = #tpu.dot_dimension_numbers<[1], [0], [0], [1], [0, 0, 1, 1], [], []>} : vector<8x8xf32>, vector<8x8xf32>, vector<8x8xf32> -> vector<8x8xf32>
    %66 = vector.extract_strided_slice %17 {offsets = [0, 24], sizes = [8, 8], strides = [1, 1]} : vector<8x32xf32> to vector<8x8xf32>
    %67 = vector.extract_strided_slice %14 {offsets = [0, 24], sizes = [8, 8], strides = [1, 1]} : vector<8x32xf32> to vector<8x8xf32>
    "tpu.trace_start"() <{level = 10 : i32, message = "qd,kd->qk"}> : () -> ()
    %cst_27 = arith.constant dense<0.000000e+00> : vector<8x8xf32>
    %68 = tpu.matmul %66, %67, %cst_27 {dimension_numbers = #tpu.dot_dimension_numbers<[1], [1], [0], [0], [0, 0, 1, 0], [], []>} : vector<8x8xf32>, vector<8x8xf32>, vector<8x8xf32> -> vector<8x8xf32>
    "tpu.trace_stop"() : () -> ()
    %69 = arith.addf %68, %5 : vector<8x8xf32>
    %cst_28 = arith.constant dense<0xFF800000> : vector<8xf32>
    %70 = vector.multi_reduction <maximumf>, %69, %cst_28 [1] : vector<8x8xf32> to vector<8xf32>
    %71 = vector.shape_cast %70 : vector<8xf32> to vector<8x1xf32>
    %72 = vector.broadcast %71 : vector<8x1xf32> to vector<8x8xf32>
    %73 = arith.subf %69, %72 : vector<8x8xf32>
    %74 = math.exp %73 : vector<8x8xf32>
    %cst_29 = arith.constant dense<0.000000e+00> : vector<8xf32>
    %75 = vector.multi_reduction <add>, %74, %cst_29 [1] : vector<8x8xf32> to vector<8xf32>
    %76 = vector.shape_cast %75 : vector<8xf32> to vector<8x1xf32>
    %77 = tpu.reciprocal %76 : vector<8x1xf32> -> vector<8x1xf32>
    %78 = vector.broadcast %77 : vector<8x1xf32> to vector<8x8xf32>
    %79 = arith.mulf %74, %78 : vector<8x8xf32>
    %80 = vector.extract_strided_slice %15 {offsets = [0, 24], sizes = [8, 8], strides = [1, 1]} : vector<8x32xf32> to vector<8x8xf32>
    %cst_30 = arith.constant dense<0.000000e+00> : vector<8x8xf32>
    %81 = tpu.matmul %79, %80, %cst_30 {dimension_numbers = #tpu.dot_dimension_numbers<[1], [0], [0], [1], [0, 0, 1, 1], [], []>} : vector<8x8xf32>, vector<8x8xf32>, vector<8x8xf32> -> vector<8x8xf32>
    %82 = tpu.concatenate %33, %49, %65, %81 in 1 : vector<8x8xf32>, vector<8x8xf32>, vector<8x8xf32>, vector<8x8xf32> -> vector<8x32xf32>
    %c0_31 = arith.constant 0 : index
    %c0_32 = arith.constant 0 : index
    %c0_33 = arith.constant 0 : index
    %83 = vector.load %arg6[%c0_31, %c0_32, %c0_33] : memref<2x32x32xf32, #tpu.memory_space<vmem>>, vector<1x32x32xf32>
    %84 = vector.shape_cast %83 : vector<1x32x32xf32> to vector<32x32xf32>
    %cst_34 = arith.constant dense<0.000000e+00> : vector<8x32xf32>
    %85 = tpu.matmul %82, %84, %cst_34 {dimension_numbers = #tpu.dot_dimension_numbers<[1], [0], [0], [1], [0, 0, 1, 1], [], []>} : vector<8x32xf32>, vector<32x32xf32>, vector<8x32xf32> -> vector<8x32xf32>
    %c0_35 = arith.constant 0 : index
    %c0_36 = arith.constant 0 : index
    %c0_37 = arith.constant 0 : index
    %86 = vector.load %arg7[%c0_35, %c0_36, %c0_37] : memref<2x1x32xf32, #tpu.memory_space<vmem>>, vector<1x1x32xf32>
    %87 = vector.shape_cast %86 : vector<1x1x32xf32> to vector<1x32xf32>
    %88 = vector.broadcast %87 : vector<1x32xf32> to vector<8x32xf32>
    %89 = arith.addf %85, %88 : vector<8x32xf32>
    %90 = arith.addf %1, %89 : vector<8x32xf32>
    %c0_38 = arith.constant 0 : index
    %c0_39 = arith.constant 0 : index
    %c0_40 = arith.constant 0 : index
    %91 = vector.load %arg18[%c0_38, %c0_39, %c0_40] : memref<2x1x32xf32, #tpu.memory_space<vmem>>, vector<1x1x32xf32>
    %92 = vector.shape_cast %91 : vector<1x1x32xf32> to vector<1x32xf32>
    %c0_41 = arith.constant 0 : index
    %c0_42 = arith.constant 0 : index
    %c0_43 = arith.constant 0 : index
    %93 = vector.load %arg19[%c0_41, %c0_42, %c0_43] : memref<2x1x32xf32, #tpu.memory_space<vmem>>, vector<1x1x32xf32>
    %94 = vector.shape_cast %93 : vector<1x1x32xf32> to vector<1x32xf32>
    %cst_44 = arith.constant dense<0.000000e+00> : vector<8xf32>
    %95 = vector.multi_reduction <add>, %90, %cst_44 [1] : vector<8x32xf32> to vector<8xf32>
    %96 = vector.shape_cast %95 : vector<8xf32> to vector<8x1xf32>
    %cst_45 = arith.constant 3.200000e+01 : f32
    %97 = vector.broadcast %cst_45 : f32 to vector<8x1xf32>
    %98 = arith.divf %96, %97 : vector<8x1xf32>
    %99 = vector.broadcast %98 : vector<8x1xf32> to vector<8x32xf32>
    %100 = arith.subf %90, %99 : vector<8x32xf32>
    %101 = arith.mulf %100, %100 : vector<8x32xf32>
    %cst_46 = arith.constant dense<0.000000e+00> : vector<8xf32>
    %102 = vector.multi_reduction <add>, %101, %cst_46 [1] : vector<8x32xf32> to vector<8xf32>
    %103 = vector.shape_cast %102 : vector<8xf32> to vector<8x1xf32>
    %cst_47 = arith.constant 3.200000e+01 : f32
    %104 = vector.broadcast %cst_47 : f32 to vector<8x1xf32>
    %105 = arith.divf %103, %104 : vector<8x1xf32>
    %106 = vector.broadcast %98 : vector<8x1xf32> to vector<8x32xf32>
    %107 = arith.subf %90, %106 : vector<8x32xf32>
    %cst_48 = arith.constant 9.99999974E-6 : f32
    %108 = vector.broadcast %cst_48 : f32 to vector<8x1xf32>
    %109 = arith.addf %105, %108 : vector<8x1xf32>
    %110 = math.rsqrt %109 : vector<8x1xf32>
    %111 = vector.broadcast %110 : vector<8x1xf32> to vector<8x32xf32>
    %112 = arith.mulf %107, %111 : vector<8x32xf32>
    %113 = vector.broadcast %92 : vector<1x32xf32> to vector<8x32xf32>
    %114 = arith.mulf %112, %113 : vector<8x32xf32>
    %115 = vector.broadcast %94 : vector<1x32xf32> to vector<8x32xf32>
    %116 = arith.addf %114, %115 : vector<8x32xf32>
    %c0_49 = arith.constant 0 : index
    %c0_50 = arith.constant 0 : index
    %c0_51 = arith.constant 0 : index
    %117 = vector.load %arg8[%c0_49, %c0_50, %c0_51] : memref<2x32x32xf32, #tpu.memory_space<vmem>>, vector<1x32x32xf32>
    %118 = vector.shape_cast %117 : vector<1x32x32xf32> to vector<32x32xf32>
    %cst_52 = arith.constant dense<0.000000e+00> : vector<8x32xf32>
    %119 = tpu.matmul %116, %118, %cst_52 {dimension_numbers = #tpu.dot_dimension_numbers<[1], [0], [0], [1], [0, 0, 1, 1], [], []>} : vector<8x32xf32>, vector<32x32xf32>, vector<8x32xf32> -> vector<8x32xf32>
    %c0_53 = arith.constant 0 : index
    %c0_54 = arith.constant 0 : index
    %c0_55 = arith.constant 0 : index
    %120 = vector.load %arg9[%c0_53, %c0_54, %c0_55] : memref<2x1x32xf32, #tpu.memory_space<vmem>>, vector<1x1x32xf32>
    %121 = vector.shape_cast %120 : vector<1x1x32xf32> to vector<1x32xf32>
    %122 = vector.broadcast %121 : vector<1x32xf32> to vector<8x32xf32>
    %123 = arith.addf %119, %122 : vector<8x32xf32>
    %c0_56 = arith.constant 0 : index
    %c0_57 = arith.constant 0 : index
    %c0_58 = arith.constant 0 : index
    %124 = vector.load %arg10[%c0_56, %c0_57, %c0_58] : memref<2x32x64xf32, #tpu.memory_space<vmem>>, vector<1x32x64xf32>
    %125 = vector.shape_cast %124 : vector<1x32x64xf32> to vector<32x64xf32>
    %cst_59 = arith.constant dense<0.000000e+00> : vector<16x64xf32>
    %126 = tpu.matmul %3, %125, %cst_59 {dimension_numbers = #tpu.dot_dimension_numbers<[1], [0], [0], [1], [0, 0, 1, 1], [], []>} : vector<16x32xf32>, vector<32x64xf32>, vector<16x64xf32> -> vector<16x64xf32>
    %c0_60 = arith.constant 0 : index
    %c0_61 = arith.constant 0 : index
    %c0_62 = arith.constant 0 : index
    %127 = vector.load %arg11[%c0_60, %c0_61, %c0_62] : memref<2x1x64xf32, #tpu.memory_space<vmem>>, vector<1x1x64xf32>
    %128 = vector.shape_cast %127 : vector<1x1x64xf32> to vector<1x64xf32>
    %129 = vector.broadcast %128 : vector<1x64xf32> to vector<16x64xf32>
    %130 = arith.addf %126, %129 : vector<16x64xf32>
    %131 = vector.extract_strided_slice %130 {offsets = [0, 0], sizes = [16, 32], strides = [1, 1]} : vector<16x64xf32> to vector<16x32xf32>
    %132 = vector.extract_strided_slice %130 {offsets = [0, 32], sizes = [16, 32], strides = [1, 1]} : vector<16x64xf32> to vector<16x32xf32>
    %cst_63 = arith.constant 0.353553385 : f32
    %133 = vector.broadcast %cst_63 : f32 to vector<8x32xf32>
    %134 = arith.mulf %123, %133 : vector<8x32xf32>
    %135 = vector.extract_strided_slice %134 {offsets = [0, 0], sizes = [8, 8], strides = [1, 1]} : vector<8x32xf32> to vector<8x8xf32>
    %136 = vector.extract_strided_slice %131 {offsets = [0, 0], sizes = [16, 8], strides = [1, 1]} : vector<16x32xf32> to vector<16x8xf32>
    "tpu.trace_start"() <{level = 10 : i32, message = "qd,kd->qk"}> : () -> ()
    %cst_64 = arith.constant dense<0.000000e+00> : vector<8x16xf32>
    %137 = tpu.matmul %135, %136, %cst_64 {dimension_numbers = #tpu.dot_dimension_numbers<[1], [1], [0], [0], [0, 0, 1, 0], [], []>} : vector<8x8xf32>, vector<16x8xf32>, vector<8x16xf32> -> vector<8x16xf32>
    "tpu.trace_stop"() : () -> ()
    %cst_65 = arith.constant dense<0xFF800000> : vector<8xf32>
    %138 = vector.multi_reduction <maximumf>, %137, %cst_65 [1] : vector<8x16xf32> to vector<8xf32>
    %139 = vector.shape_cast %138 : vector<8xf32> to vector<8x1xf32>
    %140 = vector.broadcast %139 : vector<8x1xf32> to vector<8x16xf32>
    %141 = arith.subf %137, %140 : vector<8x16xf32>
    %142 = math.exp %141 : vector<8x16xf32>
    %cst_66 = arith.constant dense<0.000000e+00> : vector<8xf32>
    %143 = vector.multi_reduction <add>, %142, %cst_66 [1] : vector<8x16xf32> to vector<8xf32>
    %144 = vector.shape_cast %143 : vector<8xf32> to vector<8x1xf32>
    %145 = tpu.reciprocal %144 : vector<8x1xf32> -> vector<8x1xf32>
    %146 = vector.broadcast %145 : vector<8x1xf32> to vector<8x16xf32>
    %147 = arith.mulf %142, %146 : vector<8x16xf32>
    %148 = vector.extract_strided_slice %132 {offsets = [0, 0], sizes = [16, 8], strides = [1, 1]} : vector<16x32xf32> to vector<16x8xf32>
    %cst_67 = arith.constant dense<0.000000e+00> : vector<8x8xf32>
    %149 = tpu.matmul %147, %148, %cst_67 {dimension_numbers = #tpu.dot_dimension_numbers<[1], [0], [0], [1], [0, 0, 1, 1], [], []>} : vector<8x16xf32>, vector<16x8xf32>, vector<8x8xf32> -> vector<8x8xf32>
    %150 = vector.extract_strided_slice %134 {offsets = [0, 8], sizes = [8, 8], strides = [1, 1]} : vector<8x32xf32> to vector<8x8xf32>
    %151 = vector.extract_strided_slice %131 {offsets = [0, 8], sizes = [16, 8], strides = [1, 1]} : vector<16x32xf32> to vector<16x8xf32>
    "tpu.trace_start"() <{level = 10 : i32, message = "qd,kd->qk"}> : () -> ()
    %cst_68 = arith.constant dense<0.000000e+00> : vector<8x16xf32>
    %152 = tpu.matmul %150, %151, %cst_68 {dimension_numbers = #tpu.dot_dimension_numbers<[1], [1], [0], [0], [0, 0, 1, 0], [], []>} : vector<8x8xf32>, vector<16x8xf32>, vector<8x16xf32> -> vector<8x16xf32>
    "tpu.trace_stop"() : () -> ()
    %cst_69 = arith.constant dense<0xFF800000> : vector<8xf32>
    %153 = vector.multi_reduction <maximumf>, %152, %cst_69 [1] : vector<8x16xf32> to vector<8xf32>
    %154 = vector.shape_cast %153 : vector<8xf32> to vector<8x1xf32>
    %155 = vector.broadcast %154 : vector<8x1xf32> to vector<8x16xf32>
    %156 = arith.subf %152, %155 : vector<8x16xf32>
    %157 = math.exp %156 : vector<8x16xf32>
    %cst_70 = arith.constant dense<0.000000e+00> : vector<8xf32>
    %158 = vector.multi_reduction <add>, %157, %cst_70 [1] : vector<8x16xf32> to vector<8xf32>
    %159 = vector.shape_cast %158 : vector<8xf32> to vector<8x1xf32>
    %160 = tpu.reciprocal %159 : vector<8x1xf32> -> vector<8x1xf32>
    %161 = vector.broadcast %160 : vector<8x1xf32> to vector<8x16xf32>
    %162 = arith.mulf %157, %161 : vector<8x16xf32>
    %163 = vector.extract_strided_slice %132 {offsets = [0, 8], sizes = [16, 8], strides = [1, 1]} : vector<16x32xf32> to vector<16x8xf32>
    %cst_71 = arith.constant dense<0.000000e+00> : vector<8x8xf32>
    %164 = tpu.matmul %162, %163, %cst_71 {dimension_numbers = #tpu.dot_dimension_numbers<[1], [0], [0], [1], [0, 0, 1, 1], [], []>} : vector<8x16xf32>, vector<16x8xf32>, vector<8x8xf32> -> vector<8x8xf32>
    %165 = vector.extract_strided_slice %134 {offsets = [0, 16], sizes = [8, 8], strides = [1, 1]} : vector<8x32xf32> to vector<8x8xf32>
    %166 = vector.extract_strided_slice %131 {offsets = [0, 16], sizes = [16, 8], strides = [1, 1]} : vector<16x32xf32> to vector<16x8xf32>
    "tpu.trace_start"() <{level = 10 : i32, message = "qd,kd->qk"}> : () -> ()
    %cst_72 = arith.constant dense<0.000000e+00> : vector<8x16xf32>
    %167 = tpu.matmul %165, %166, %cst_72 {dimension_numbers = #tpu.dot_dimension_numbers<[1], [1], [0], [0], [0, 0, 1, 0], [], []>} : vector<8x8xf32>, vector<16x8xf32>, vector<8x16xf32> -> vector<8x16xf32>
    "tpu.trace_stop"() : () -> ()
    %cst_73 = arith.constant dense<0xFF800000> : vector<8xf32>
    %168 = vector.multi_reduction <maximumf>, %167, %cst_73 [1] : vector<8x16xf32> to vector<8xf32>
    %169 = vector.shape_cast %168 : vector<8xf32> to vector<8x1xf32>
    %170 = vector.broadcast %169 : vector<8x1xf32> to vector<8x16xf32>
    %171 = arith.subf %167, %170 : vector<8x16xf32>
    %172 = math.exp %171 : vector<8x16xf32>
    %cst_74 = arith.constant dense<0.000000e+00> : vector<8xf32>
    %173 = vector.multi_reduction <add>, %172, %cst_74 [1] : vector<8x16xf32> to vector<8xf32>
    %174 = vector.shape_cast %173 : vector<8xf32> to vector<8x1xf32>
    %175 = tpu.reciprocal %174 : vector<8x1xf32> -> vector<8x1xf32>
    %176 = vector.broadcast %175 : vector<8x1xf32> to vector<8x16xf32>
    %177 = arith.mulf %172, %176 : vector<8x16xf32>
    %178 = vector.extract_strided_slice %132 {offsets = [0, 16], sizes = [16, 8], strides = [1, 1]} : vector<16x32xf32> to vector<16x8xf32>
    %cst_75 = arith.constant dense<0.000000e+00> : vector<8x8xf32>
    %179 = tpu.matmul %177, %178, %cst_75 {dimension_numbers = #tpu.dot_dimension_numbers<[1], [0], [0], [1], [0, 0, 1, 1], [], []>} : vector<8x16xf32>, vector<16x8xf32>, vector<8x8xf32> -> vector<8x8xf32>
    %180 = vector.extract_strided_slice %134 {offsets = [0, 24], sizes = [8, 8], strides = [1, 1]} : vector<8x32xf32> to vector<8x8xf32>
    %181 = vector.extract_strided_slice %131 {offsets = [0, 24], sizes = [16, 8], strides = [1, 1]} : vector<16x32xf32> to vector<16x8xf32>
    "tpu.trace_start"() <{level = 10 : i32, message = "qd,kd->qk"}> : () -> ()
    %cst_76 = arith.constant dense<0.000000e+00> : vector<8x16xf32>
    %182 = tpu.matmul %180, %181, %cst_76 {dimension_numbers = #tpu.dot_dimension_numbers<[1], [1], [0], [0], [0, 0, 1, 0], [], []>} : vector<8x8xf32>, vector<16x8xf32>, vector<8x16xf32> -> vector<8x16xf32>
    "tpu.trace_stop"() : () -> ()
    %cst_77 = arith.constant dense<0xFF800000> : vector<8xf32>
    %183 = vector.multi_reduction <maximumf>, %182, %cst_77 [1] : vector<8x16xf32> to vector<8xf32>
    %184 = vector.shape_cast %183 : vector<8xf32> to vector<8x1xf32>
    %185 = vector.broadcast %184 : vector<8x1xf32> to vector<8x16xf32>
    %186 = arith.subf %182, %185 : vector<8x16xf32>
    %187 = math.exp %186 : vector<8x16xf32>
    %cst_78 = arith.constant dense<0.000000e+00> : vector<8xf32>
    %188 = vector.multi_reduction <add>, %187, %cst_78 [1] : vector<8x16xf32> to vector<8xf32>
    %189 = vector.shape_cast %188 : vector<8xf32> to vector<8x1xf32>
    %190 = tpu.reciprocal %189 : vector<8x1xf32> -> vector<8x1xf32>
    %191 = vector.broadcast %190 : vector<8x1xf32> to vector<8x16xf32>
    %192 = arith.mulf %187, %191 : vector<8x16xf32>
    %193 = vector.extract_strided_slice %132 {offsets = [0, 24], sizes = [16, 8], strides = [1, 1]} : vector<16x32xf32> to vector<16x8xf32>
    %cst_79 = arith.constant dense<0.000000e+00> : vector<8x8xf32>
    %194 = tpu.matmul %192, %193, %cst_79 {dimension_numbers = #tpu.dot_dimension_numbers<[1], [0], [0], [1], [0, 0, 1, 1], [], []>} : vector<8x16xf32>, vector<16x8xf32>, vector<8x8xf32> -> vector<8x8xf32>
    %195 = tpu.concatenate %149, %164, %179, %194 in 1 : vector<8x8xf32>, vector<8x8xf32>, vector<8x8xf32>, vector<8x8xf32> -> vector<8x32xf32>
    %c0_80 = arith.constant 0 : index
    %c0_81 = arith.constant 0 : index
    %c0_82 = arith.constant 0 : index
    %196 = vector.load %arg12[%c0_80, %c0_81, %c0_82] : memref<2x32x32xf32, #tpu.memory_space<vmem>>, vector<1x32x32xf32>
    %197 = vector.shape_cast %196 : vector<1x32x32xf32> to vector<32x32xf32>
    %cst_83 = arith.constant dense<0.000000e+00> : vector<8x32xf32>
    %198 = tpu.matmul %195, %197, %cst_83 {dimension_numbers = #tpu.dot_dimension_numbers<[1], [0], [0], [1], [0, 0, 1, 1], [], []>} : vector<8x32xf32>, vector<32x32xf32>, vector<8x32xf32> -> vector<8x32xf32>
    %c0_84 = arith.constant 0 : index
    %c0_85 = arith.constant 0 : index
    %c0_86 = arith.constant 0 : index
    %199 = vector.load %arg13[%c0_84, %c0_85, %c0_86] : memref<2x1x32xf32, #tpu.memory_space<vmem>>, vector<1x1x32xf32>
    %200 = vector.shape_cast %199 : vector<1x1x32xf32> to vector<1x32xf32>
    %201 = vector.broadcast %200 : vector<1x32xf32> to vector<8x32xf32>
    %202 = arith.addf %198, %201 : vector<8x32xf32>
    %203 = arith.addf %116, %202 : vector<8x32xf32>
    %c0_87 = arith.constant 0 : index
    %c0_88 = arith.constant 0 : index
    %c0_89 = arith.constant 0 : index
    %204 = vector.load %arg20[%c0_87, %c0_88, %c0_89] : memref<2x1x32xf32, #tpu.memory_space<vmem>>, vector<1x1x32xf32>
    %205 = vector.shape_cast %204 : vector<1x1x32xf32> to vector<1x32xf32>
    %c0_90 = arith.constant 0 : index
    %c0_91 = arith.constant 0 : index
    %c0_92 = arith.constant 0 : index
    %206 = vector.load %arg21[%c0_90, %c0_91, %c0_92] : memref<2x1x32xf32, #tpu.memory_space<vmem>>, vector<1x1x32xf32>
    %207 = vector.shape_cast %206 : vector<1x1x32xf32> to vector<1x32xf32>
    %cst_93 = arith.constant dense<0.000000e+00> : vector<8xf32>
    %208 = vector.multi_reduction <add>, %203, %cst_93 [1] : vector<8x32xf32> to vector<8xf32>
    %209 = vector.shape_cast %208 : vector<8xf32> to vector<8x1xf32>
    %cst_94 = arith.constant 3.200000e+01 : f32
    %210 = vector.broadcast %cst_94 : f32 to vector<8x1xf32>
    %211 = arith.divf %209, %210 : vector<8x1xf32>
    %212 = vector.broadcast %211 : vector<8x1xf32> to vector<8x32xf32>
    %213 = arith.subf %203, %212 : vector<8x32xf32>
    %214 = arith.mulf %213, %213 : vector<8x32xf32>
    %cst_95 = arith.constant dense<0.000000e+00> : vector<8xf32>
    %215 = vector.multi_reduction <add>, %214, %cst_95 [1] : vector<8x32xf32> to vector<8xf32>
    %216 = vector.shape_cast %215 : vector<8xf32> to vector<8x1xf32>
    %cst_96 = arith.constant 3.200000e+01 : f32
    %217 = vector.broadcast %cst_96 : f32 to vector<8x1xf32>
    %218 = arith.divf %216, %217 : vector<8x1xf32>
    %219 = vector.broadcast %211 : vector<8x1xf32> to vector<8x32xf32>
    %220 = arith.subf %203, %219 : vector<8x32xf32>
    %cst_97 = arith.constant 9.99999974E-6 : f32
    %221 = vector.broadcast %cst_97 : f32 to vector<8x1xf32>
    %222 = arith.addf %218, %221 : vector<8x1xf32>
    %223 = math.rsqrt %222 : vector<8x1xf32>
    %224 = vector.broadcast %223 : vector<8x1xf32> to vector<8x32xf32>
    %225 = arith.mulf %220, %224 : vector<8x32xf32>
    %226 = vector.broadcast %205 : vector<1x32xf32> to vector<8x32xf32>
    %227 = arith.mulf %225, %226 : vector<8x32xf32>
    %228 = vector.broadcast %207 : vector<1x32xf32> to vector<8x32xf32>
    %229 = arith.addf %227, %228 : vector<8x32xf32>
    %c0_98 = arith.constant 0 : index
    %c0_99 = arith.constant 0 : index
    %c0_100 = arith.constant 0 : index
    %230 = vector.load %arg14[%c0_98, %c0_99, %c0_100] : memref<2x32x64xf32, #tpu.memory_space<vmem>>, vector<1x32x64xf32>
    %231 = vector.shape_cast %230 : vector<1x32x64xf32> to vector<32x64xf32>
    %cst_101 = arith.constant dense<0.000000e+00> : vector<8x64xf32>
    %232 = tpu.matmul %229, %231, %cst_101 {dimension_numbers = #tpu.dot_dimension_numbers<[1], [0], [0], [1], [0, 0, 1, 1], [], []>} : vector<8x32xf32>, vector<32x64xf32>, vector<8x64xf32> -> vector<8x64xf32>
    %c0_102 = arith.constant 0 : index
    %c0_103 = arith.constant 0 : index
    %c0_104 = arith.constant 0 : index
    %233 = vector.load %arg15[%c0_102, %c0_103, %c0_104] : memref<2x1x64xf32, #tpu.memory_space<vmem>>, vector<1x1x64xf32>
    %234 = vector.shape_cast %233 : vector<1x1x64xf32> to vector<1x64xf32>
    %235 = vector.broadcast %234 : vector<1x64xf32> to vector<8x64xf32>
    %236 = arith.addf %232, %235 : vector<8x64xf32>
    %cst_105 = arith.constant 0.000000e+00 : f32
    %237 = vector.broadcast %cst_105 : f32 to vector<8x64xf32>
    %238 = arith.maximumf %236, %237 : vector<8x64xf32>
    %c0_106 = arith.constant 0 : index
    %c0_107 = arith.constant 0 : index
    %c0_108 = arith.constant 0 : index
    %239 = vector.load %arg16[%c0_106, %c0_107, %c0_108] : memref<2x64x32xf32, #tpu.memory_space<vmem>>, vector<1x64x32xf32>
    %240 = vector.shape_cast %239 : vector<1x64x32xf32> to vector<64x32xf32>
    %cst_109 = arith.constant dense<0.000000e+00> : vector<8x32xf32>
    %241 = tpu.matmul %238, %240, %cst_109 {dimension_numbers = #tpu.dot_dimension_numbers<[1], [0], [0], [1], [0, 0, 1, 1], [], []>} : vector<8x64xf32>, vector<64x32xf32>, vector<8x32xf32> -> vector<8x32xf32>
    %c0_110 = arith.constant 0 : index
    %c0_111 = arith.constant 0 : index
    %c0_112 = arith.constant 0 : index
    %242 = vector.load %arg17[%c0_110, %c0_111, %c0_112] : memref<2x1x32xf32, #tpu.memory_space<vmem>>, vector<1x1x32xf32>
    %243 = vector.shape_cast %242 : vector<1x1x32xf32> to vector<1x32xf32>
    %244 = vector.broadcast %243 : vector<1x32xf32> to vector<8x32xf32>
    %245 = arith.addf %241, %244 : vector<8x32xf32>
    %246 = arith.addf %229, %245 : vector<8x32xf32>
    %c0_113 = arith.constant 0 : index
    %c0_114 = arith.constant 0 : index
    %c0_115 = arith.constant 0 : index
    %247 = vector.load %arg22[%c0_113, %c0_114, %c0_115] : memref<2x1x32xf32, #tpu.memory_space<vmem>>, vector<1x1x32xf32>
    %248 = vector.shape_cast %247 : vector<1x1x32xf32> to vector<1x32xf32>
    %c0_116 = arith.constant 0 : index
    %c0_117 = arith.constant 0 : index
    %c0_118 = arith.constant 0 : index
    %249 = vector.load %arg23[%c0_116, %c0_117, %c0_118] : memref<2x1x32xf32, #tpu.memory_space<vmem>>, vector<1x1x32xf32>
    %250 = vector.shape_cast %249 : vector<1x1x32xf32> to vector<1x32xf32>
    %cst_119 = arith.constant dense<0.000000e+00> : vector<8xf32>
    %251 = vector.multi_reduction <add>, %246, %cst_119 [1] : vector<8x32xf32> to vector<8xf32>
    %252 = vector.shape_cast %251 : vector<8xf32> to vector<8x1xf32>
    %cst_120 = arith.constant 3.200000e+01 : f32
    %253 = vector.broadcast %cst_120 : f32 to vector<8x1xf32>
    %254 = arith.divf %252, %253 : vector<8x1xf32>
    %255 = vector.broadcast %254 : vector<8x1xf32> to vector<8x32xf32>
    %256 = arith.subf %246, %255 : vector<8x32xf32>
    %257 = arith.mulf %256, %256 : vector<8x32xf32>
    %cst_121 = arith.constant dense<0.000000e+00> : vector<8xf32>
    %258 = vector.multi_reduction <add>, %257, %cst_121 [1] : vector<8x32xf32> to vector<8xf32>
    %259 = vector.shape_cast %258 : vector<8xf32> to vector<8x1xf32>
    %cst_122 = arith.constant 3.200000e+01 : f32
    %260 = vector.broadcast %cst_122 : f32 to vector<8x1xf32>
    %261 = arith.divf %259, %260 : vector<8x1xf32>
    %262 = vector.broadcast %254 : vector<8x1xf32> to vector<8x32xf32>
    %263 = arith.subf %246, %262 : vector<8x32xf32>
    %cst_123 = arith.constant 9.99999974E-6 : f32
    %264 = vector.broadcast %cst_123 : f32 to vector<8x1xf32>
    %265 = arith.addf %261, %264 : vector<8x1xf32>
    %266 = math.rsqrt %265 : vector<8x1xf32>
    %267 = vector.broadcast %266 : vector<8x1xf32> to vector<8x32xf32>
    %268 = arith.mulf %263, %267 : vector<8x32xf32>
    %269 = vector.broadcast %248 : vector<1x32xf32> to vector<8x32xf32>
    %270 = arith.mulf %268, %269 : vector<8x32xf32>
    %271 = vector.broadcast %250 : vector<1x32xf32> to vector<8x32xf32>
    %272 = arith.addf %270, %271 : vector<8x32xf32>
    %c1 = arith.constant 1 : index
    %c0_124 = arith.constant 0 : index
    %c0_125 = arith.constant 0 : index
    %273 = vector.load %arg4[%c1, %c0_124, %c0_125] : memref<2x32x96xf32, #tpu.memory_space<vmem>>, vector<1x32x96xf32>
    %274 = vector.shape_cast %273 : vector<1x32x96xf32> to vector<32x96xf32>
    %cst_126 = arith.constant dense<0.000000e+00> : vector<8x96xf32>
    %275 = tpu.matmul %272, %274, %cst_126 {dimension_numbers = #tpu.dot_dimension_numbers<[1], [0], [0], [1], [0, 0, 1, 1], [], []>} : vector<8x32xf32>, vector<32x96xf32>, vector<8x96xf32> -> vector<8x96xf32>
    %c1_127 = arith.constant 1 : index
    %c0_128 = arith.constant 0 : index
    %c0_129 = arith.constant 0 : index
    %276 = vector.load %arg5[%c1_127, %c0_128, %c0_129] : memref<2x1x96xf32, #tpu.memory_space<vmem>>, vector<1x1x96xf32>
    %277 = vector.shape_cast %276 : vector<1x1x96xf32> to vector<1x96xf32>
    %278 = vector.broadcast %277 : vector<1x96xf32> to vector<8x96xf32>
    %279 = arith.addf %275, %278 : vector<8x96xf32>
    %280 = vector.extract_strided_slice %279 {offsets = [0, 0], sizes = [8, 32], strides = [1, 1]} : vector<8x96xf32> to vector<8x32xf32>
    %281 = vector.extract_strided_slice %279 {offsets = [0, 32], sizes = [8, 32], strides = [1, 1]} : vector<8x96xf32> to vector<8x32xf32>
    %282 = vector.extract_strided_slice %279 {offsets = [0, 64], sizes = [8, 32], strides = [1, 1]} : vector<8x96xf32> to vector<8x32xf32>
    %cst_130 = arith.constant 0.353553385 : f32
    %283 = vector.broadcast %cst_130 : f32 to vector<8x32xf32>
    %284 = arith.mulf %280, %283 : vector<8x32xf32>
    %285 = vector.extract_strided_slice %284 {offsets = [0, 0], sizes = [8, 8], strides = [1, 1]} : vector<8x32xf32> to vector<8x8xf32>
    %286 = vector.extract_strided_slice %281 {offsets = [0, 0], sizes = [8, 8], strides = [1, 1]} : vector<8x32xf32> to vector<8x8xf32>
    "tpu.trace_start"() <{level = 10 : i32, message = "qd,kd->qk"}> : () -> ()
    %cst_131 = arith.constant dense<0.000000e+00> : vector<8x8xf32>
    %287 = tpu.matmul %285, %286, %cst_131 {dimension_numbers = #tpu.dot_dimension_numbers<[1], [1], [0], [0], [0, 0, 1, 0], [], []>} : vector<8x8xf32>, vector<8x8xf32>, vector<8x8xf32> -> vector<8x8xf32>
    "tpu.trace_stop"() : () -> ()
    %288 = arith.addf %287, %5 : vector<8x8xf32>
    %cst_132 = arith.constant dense<0xFF800000> : vector<8xf32>
    %289 = vector.multi_reduction <maximumf>, %288, %cst_132 [1] : vector<8x8xf32> to vector<8xf32>
    %290 = vector.shape_cast %289 : vector<8xf32> to vector<8x1xf32>
    %291 = vector.broadcast %290 : vector<8x1xf32> to vector<8x8xf32>
    %292 = arith.subf %288, %291 : vector<8x8xf32>
    %293 = math.exp %292 : vector<8x8xf32>
    %cst_133 = arith.constant dense<0.000000e+00> : vector<8xf32>
    %294 = vector.multi_reduction <add>, %293, %cst_133 [1] : vector<8x8xf32> to vector<8xf32>
    %295 = vector.shape_cast %294 : vector<8xf32> to vector<8x1xf32>
    %296 = tpu.reciprocal %295 : vector<8x1xf32> -> vector<8x1xf32>
    %297 = vector.broadcast %296 : vector<8x1xf32> to vector<8x8xf32>
    %298 = arith.mulf %293, %297 : vector<8x8xf32>
    %299 = vector.extract_strided_slice %282 {offsets = [0, 0], sizes = [8, 8], strides = [1, 1]} : vector<8x32xf32> to vector<8x8xf32>
    %cst_134 = arith.constant dense<0.000000e+00> : vector<8x8xf32>
    %300 = tpu.matmul %298, %299, %cst_134 {dimension_numbers = #tpu.dot_dimension_numbers<[1], [0], [0], [1], [0, 0, 1, 1], [], []>} : vector<8x8xf32>, vector<8x8xf32>, vector<8x8xf32> -> vector<8x8xf32>
    %301 = vector.extract_strided_slice %284 {offsets = [0, 8], sizes = [8, 8], strides = [1, 1]} : vector<8x32xf32> to vector<8x8xf32>
    %302 = vector.extract_strided_slice %281 {offsets = [0, 8], sizes = [8, 8], strides = [1, 1]} : vector<8x32xf32> to vector<8x8xf32>
    "tpu.trace_start"() <{level = 10 : i32, message = "qd,kd->qk"}> : () -> ()
    %cst_135 = arith.constant dense<0.000000e+00> : vector<8x8xf32>
    %303 = tpu.matmul %301, %302, %cst_135 {dimension_numbers = #tpu.dot_dimension_numbers<[1], [1], [0], [0], [0, 0, 1, 0], [], []>} : vector<8x8xf32>, vector<8x8xf32>, vector<8x8xf32> -> vector<8x8xf32>
    "tpu.trace_stop"() : () -> ()
    %304 = arith.addf %303, %5 : vector<8x8xf32>
    %cst_136 = arith.constant dense<0xFF800000> : vector<8xf32>
    %305 = vector.multi_reduction <maximumf>, %304, %cst_136 [1] : vector<8x8xf32> to vector<8xf32>
    %306 = vector.shape_cast %305 : vector<8xf32> to vector<8x1xf32>
    %307 = vector.broadcast %306 : vector<8x1xf32> to vector<8x8xf32>
    %308 = arith.subf %304, %307 : vector<8x8xf32>
    %309 = math.exp %308 : vector<8x8xf32>
    %cst_137 = arith.constant dense<0.000000e+00> : vector<8xf32>
    %310 = vector.multi_reduction <add>, %309, %cst_137 [1] : vector<8x8xf32> to vector<8xf32>
    %311 = vector.shape_cast %310 : vector<8xf32> to vector<8x1xf32>
    %312 = tpu.reciprocal %311 : vector<8x1xf32> -> vector<8x1xf32>
    %313 = vector.broadcast %312 : vector<8x1xf32> to vector<8x8xf32>
    %314 = arith.mulf %309, %313 : vector<8x8xf32>
    %315 = vector.extract_strided_slice %282 {offsets = [0, 8], sizes = [8, 8], strides = [1, 1]} : vector<8x32xf32> to vector<8x8xf32>
    %cst_138 = arith.constant dense<0.000000e+00> : vector<8x8xf32>
    %316 = tpu.matmul %314, %315, %cst_138 {dimension_numbers = #tpu.dot_dimension_numbers<[1], [0], [0], [1], [0, 0, 1, 1], [], []>} : vector<8x8xf32>, vector<8x8xf32>, vector<8x8xf32> -> vector<8x8xf32>
    %317 = vector.extract_strided_slice %284 {offsets = [0, 16], sizes = [8, 8], strides = [1, 1]} : vector<8x32xf32> to vector<8x8xf32>
    %318 = vector.extract_strided_slice %281 {offsets = [0, 16], sizes = [8, 8], strides = [1, 1]} : vector<8x32xf32> to vector<8x8xf32>
    "tpu.trace_start"() <{level = 10 : i32, message = "qd,kd->qk"}> : () -> ()
    %cst_139 = arith.constant dense<0.000000e+00> : vector<8x8xf32>
    %319 = tpu.matmul %317, %318, %cst_139 {dimension_numbers = #tpu.dot_dimension_numbers<[1], [1], [0], [0], [0, 0, 1, 0], [], []>} : vector<8x8xf32>, vector<8x8xf32>, vector<8x8xf32> -> vector<8x8xf32>
    "tpu.trace_stop"() : () -> ()
    %320 = arith.addf %319, %5 : vector<8x8xf32>
    %cst_140 = arith.constant dense<0xFF800000> : vector<8xf32>
    %321 = vector.multi_reduction <maximumf>, %320, %cst_140 [1] : vector<8x8xf32> to vector<8xf32>
    %322 = vector.shape_cast %321 : vector<8xf32> to vector<8x1xf32>
    %323 = vector.broadcast %322 : vector<8x1xf32> to vector<8x8xf32>
    %324 = arith.subf %320, %323 : vector<8x8xf32>
    %325 = math.exp %324 : vector<8x8xf32>
    %cst_141 = arith.constant dense<0.000000e+00> : vector<8xf32>
    %326 = vector.multi_reduction <add>, %325, %cst_141 [1] : vector<8x8xf32> to vector<8xf32>
    %327 = vector.shape_cast %326 : vector<8xf32> to vector<8x1xf32>
    %328 = tpu.reciprocal %327 : vector<8x1xf32> -> vector<8x1xf32>
    %329 = vector.broadcast %328 : vector<8x1xf32> to vector<8x8xf32>
    %330 = arith.mulf %325, %329 : vector<8x8xf32>
    %331 = vector.extract_strided_slice %282 {offsets = [0, 16], sizes = [8, 8], strides = [1, 1]} : vector<8x32xf32> to vector<8x8xf32>
    %cst_142 = arith.constant dense<0.000000e+00> : vector<8x8xf32>
    %332 = tpu.matmul %330, %331, %cst_142 {dimension_numbers = #tpu.dot_dimension_numbers<[1], [0], [0], [1], [0, 0, 1, 1], [], []>} : vector<8x8xf32>, vector<8x8xf32>, vector<8x8xf32> -> vector<8x8xf32>
    %333 = vector.extract_strided_slice %284 {offsets = [0, 24], sizes = [8, 8], strides = [1, 1]} : vector<8x32xf32> to vector<8x8xf32>
    %334 = vector.extract_strided_slice %281 {offsets = [0, 24], sizes = [8, 8], strides = [1, 1]} : vector<8x32xf32> to vector<8x8xf32>
    "tpu.trace_start"() <{level = 10 : i32, message = "qd,kd->qk"}> : () -> ()
    %cst_143 = arith.constant dense<0.000000e+00> : vector<8x8xf32>
    %335 = tpu.matmul %333, %334, %cst_143 {dimension_numbers = #tpu.dot_dimension_numbers<[1], [1], [0], [0], [0, 0, 1, 0], [], []>} : vector<8x8xf32>, vector<8x8xf32>, vector<8x8xf32> -> vector<8x8xf32>
    "tpu.trace_stop"() : () -> ()
    %336 = arith.addf %335, %5 : vector<8x8xf32>
    %cst_144 = arith.constant dense<0xFF800000> : vector<8xf32>
    %337 = vector.multi_reduction <maximumf>, %336, %cst_144 [1] : vector<8x8xf32> to vector<8xf32>
    %338 = vector.shape_cast %337 : vector<8xf32> to vector<8x1xf32>
    %339 = vector.broadcast %338 : vector<8x1xf32> to vector<8x8xf32>
    %340 = arith.subf %336, %339 : vector<8x8xf32>
    %341 = math.exp %340 : vector<8x8xf32>
    %cst_145 = arith.constant dense<0.000000e+00> : vector<8xf32>
    %342 = vector.multi_reduction <add>, %341, %cst_145 [1] : vector<8x8xf32> to vector<8xf32>
    %343 = vector.shape_cast %342 : vector<8xf32> to vector<8x1xf32>
    %344 = tpu.reciprocal %343 : vector<8x1xf32> -> vector<8x1xf32>
    %345 = vector.broadcast %344 : vector<8x1xf32> to vector<8x8xf32>
    %346 = arith.mulf %341, %345 : vector<8x8xf32>
    %347 = vector.extract_strided_slice %282 {offsets = [0, 24], sizes = [8, 8], strides = [1, 1]} : vector<8x32xf32> to vector<8x8xf32>
    %cst_146 = arith.constant dense<0.000000e+00> : vector<8x8xf32>
    %348 = tpu.matmul %346, %347, %cst_146 {dimension_numbers = #tpu.dot_dimension_numbers<[1], [0], [0], [1], [0, 0, 1, 1], [], []>} : vector<8x8xf32>, vector<8x8xf32>, vector<8x8xf32> -> vector<8x8xf32>
    %349 = tpu.concatenate %300, %316, %332, %348 in 1 : vector<8x8xf32>, vector<8x8xf32>, vector<8x8xf32>, vector<8x8xf32> -> vector<8x32xf32>
    %c1_147 = arith.constant 1 : index
    %c0_148 = arith.constant 0 : index
    %c0_149 = arith.constant 0 : index
    %350 = vector.load %arg6[%c1_147, %c0_148, %c0_149] : memref<2x32x32xf32, #tpu.memory_space<vmem>>, vector<1x32x32xf32>
    %351 = vector.shape_cast %350 : vector<1x32x32xf32> to vector<32x32xf32>
    %cst_150 = arith.constant dense<0.000000e+00> : vector<8x32xf32>
    %352 = tpu.matmul %349, %351, %cst_150 {dimension_numbers = #tpu.dot_dimension_numbers<[1], [0], [0], [1], [0, 0, 1, 1], [], []>} : vector<8x32xf32>, vector<32x32xf32>, vector<8x32xf32> -> vector<8x32xf32>
    %c1_151 = arith.constant 1 : index
    %c0_152 = arith.constant 0 : index
    %c0_153 = arith.constant 0 : index
    %353 = vector.load %arg7[%c1_151, %c0_152, %c0_153] : memref<2x1x32xf32, #tpu.memory_space<vmem>>, vector<1x1x32xf32>
    %354 = vector.shape_cast %353 : vector<1x1x32xf32> to vector<1x32xf32>
    %355 = vector.broadcast %354 : vector<1x32xf32> to vector<8x32xf32>
    %356 = arith.addf %352, %355 : vector<8x32xf32>
    %357 = arith.addf %272, %356 : vector<8x32xf32>
    %c1_154 = arith.constant 1 : index
    %c0_155 = arith.constant 0 : index
    %c0_156 = arith.constant 0 : index
    %358 = vector.load %arg18[%c1_154, %c0_155, %c0_156] : memref<2x1x32xf32, #tpu.memory_space<vmem>>, vector<1x1x32xf32>
    %359 = vector.shape_cast %358 : vector<1x1x32xf32> to vector<1x32xf32>
    %c1_157 = arith.constant 1 : index
    %c0_158 = arith.constant 0 : index
    %c0_159 = arith.constant 0 : index
    %360 = vector.load %arg19[%c1_157, %c0_158, %c0_159] : memref<2x1x32xf32, #tpu.memory_space<vmem>>, vector<1x1x32xf32>
    %361 = vector.shape_cast %360 : vector<1x1x32xf32> to vector<1x32xf32>
    %cst_160 = arith.constant dense<0.000000e+00> : vector<8xf32>
    %362 = vector.multi_reduction <add>, %357, %cst_160 [1] : vector<8x32xf32> to vector<8xf32>
    %363 = vector.shape_cast %362 : vector<8xf32> to vector<8x1xf32>
    %cst_161 = arith.constant 3.200000e+01 : f32
    %364 = vector.broadcast %cst_161 : f32 to vector<8x1xf32>
    %365 = arith.divf %363, %364 : vector<8x1xf32>
    %366 = vector.broadcast %365 : vector<8x1xf32> to vector<8x32xf32>
    %367 = arith.subf %357, %366 : vector<8x32xf32>
    %368 = arith.mulf %367, %367 : vector<8x32xf32>
    %cst_162 = arith.constant dense<0.000000e+00> : vector<8xf32>
    %369 = vector.multi_reduction <add>, %368, %cst_162 [1] : vector<8x32xf32> to vector<8xf32>
    %370 = vector.shape_cast %369 : vector<8xf32> to vector<8x1xf32>
    %cst_163 = arith.constant 3.200000e+01 : f32
    %371 = vector.broadcast %cst_163 : f32 to vector<8x1xf32>
    %372 = arith.divf %370, %371 : vector<8x1xf32>
    %373 = vector.broadcast %365 : vector<8x1xf32> to vector<8x32xf32>
    %374 = arith.subf %357, %373 : vector<8x32xf32>
    %cst_164 = arith.constant 9.99999974E-6 : f32
    %375 = vector.broadcast %cst_164 : f32 to vector<8x1xf32>
    %376 = arith.addf %372, %375 : vector<8x1xf32>
    %377 = math.rsqrt %376 : vector<8x1xf32>
    %378 = vector.broadcast %377 : vector<8x1xf32> to vector<8x32xf32>
    %379 = arith.mulf %374, %378 : vector<8x32xf32>
    %380 = vector.broadcast %359 : vector<1x32xf32> to vector<8x32xf32>
    %381 = arith.mulf %379, %380 : vector<8x32xf32>
    %382 = vector.broadcast %361 : vector<1x32xf32> to vector<8x32xf32>
    %383 = arith.addf %381, %382 : vector<8x32xf32>
    %c1_165 = arith.constant 1 : index
    %c0_166 = arith.constant 0 : index
    %c0_167 = arith.constant 0 : index
    %384 = vector.load %arg8[%c1_165, %c0_166, %c0_167] : memref<2x32x32xf32, #tpu.memory_space<vmem>>, vector<1x32x32xf32>
    %385 = vector.shape_cast %384 : vector<1x32x32xf32> to vector<32x32xf32>
    %cst_168 = arith.constant dense<0.000000e+00> : vector<8x32xf32>
    %386 = tpu.matmul %383, %385, %cst_168 {dimension_numbers = #tpu.dot_dimension_numbers<[1], [0], [0], [1], [0, 0, 1, 1], [], []>} : vector<8x32xf32>, vector<32x32xf32>, vector<8x32xf32> -> vector<8x32xf32>
    %c1_169 = arith.constant 1 : index
    %c0_170 = arith.constant 0 : index
    %c0_171 = arith.constant 0 : index
    %387 = vector.load %arg9[%c1_169, %c0_170, %c0_171] : memref<2x1x32xf32, #tpu.memory_space<vmem>>, vector<1x1x32xf32>
    %388 = vector.shape_cast %387 : vector<1x1x32xf32> to vector<1x32xf32>
    %389 = vector.broadcast %388 : vector<1x32xf32> to vector<8x32xf32>
    %390 = arith.addf %386, %389 : vector<8x32xf32>
    %c1_172 = arith.constant 1 : index
    %c0_173 = arith.constant 0 : index
    %c0_174 = arith.constant 0 : index
    %391 = vector.load %arg10[%c1_172, %c0_173, %c0_174] : memref<2x32x64xf32, #tpu.memory_space<vmem>>, vector<1x32x64xf32>
    %392 = vector.shape_cast %391 : vector<1x32x64xf32> to vector<32x64xf32>
    %cst_175 = arith.constant dense<0.000000e+00> : vector<16x64xf32>
    %393 = tpu.matmul %3, %392, %cst_175 {dimension_numbers = #tpu.dot_dimension_numbers<[1], [0], [0], [1], [0, 0, 1, 1], [], []>} : vector<16x32xf32>, vector<32x64xf32>, vector<16x64xf32> -> vector<16x64xf32>
    %c1_176 = arith.constant 1 : index
    %c0_177 = arith.constant 0 : index
    %c0_178 = arith.constant 0 : index
    %394 = vector.load %arg11[%c1_176, %c0_177, %c0_178] : memref<2x1x64xf32, #tpu.memory_space<vmem>>, vector<1x1x64xf32>
    %395 = vector.shape_cast %394 : vector<1x1x64xf32> to vector<1x64xf32>
    %396 = vector.broadcast %395 : vector<1x64xf32> to vector<16x64xf32>
    %397 = arith.addf %393, %396 : vector<16x64xf32>
    %398 = vector.extract_strided_slice %397 {offsets = [0, 0], sizes = [16, 32], strides = [1, 1]} : vector<16x64xf32> to vector<16x32xf32>
    %399 = vector.extract_strided_slice %397 {offsets = [0, 32], sizes = [16, 32], strides = [1, 1]} : vector<16x64xf32> to vector<16x32xf32>
    %cst_179 = arith.constant 0.353553385 : f32
    %400 = vector.broadcast %cst_179 : f32 to vector<8x32xf32>
    %401 = arith.mulf %390, %400 : vector<8x32xf32>
    %402 = vector.extract_strided_slice %401 {offsets = [0, 0], sizes = [8, 8], strides = [1, 1]} : vector<8x32xf32> to vector<8x8xf32>
    %403 = vector.extract_strided_slice %398 {offsets = [0, 0], sizes = [16, 8], strides = [1, 1]} : vector<16x32xf32> to vector<16x8xf32>
    "tpu.trace_start"() <{level = 10 : i32, message = "qd,kd->qk"}> : () -> ()
    %cst_180 = arith.constant dense<0.000000e+00> : vector<8x16xf32>
    %404 = tpu.matmul %402, %403, %cst_180 {dimension_numbers = #tpu.dot_dimension_numbers<[1], [1], [0], [0], [0, 0, 1, 0], [], []>} : vector<8x8xf32>, vector<16x8xf32>, vector<8x16xf32> -> vector<8x16xf32>
    "tpu.trace_stop"() : () -> ()
    %cst_181 = arith.constant dense<0xFF800000> : vector<8xf32>
    %405 = vector.multi_reduction <maximumf>, %404, %cst_181 [1] : vector<8x16xf32> to vector<8xf32>
    %406 = vector.shape_cast %405 : vector<8xf32> to vector<8x1xf32>
    %407 = vector.broadcast %406 : vector<8x1xf32> to vector<8x16xf32>
    %408 = arith.subf %404, %407 : vector<8x16xf32>
    %409 = math.exp %408 : vector<8x16xf32>
    %cst_182 = arith.constant dense<0.000000e+00> : vector<8xf32>
    %410 = vector.multi_reduction <add>, %409, %cst_182 [1] : vector<8x16xf32> to vector<8xf32>
    %411 = vector.shape_cast %410 : vector<8xf32> to vector<8x1xf32>
    %412 = tpu.reciprocal %411 : vector<8x1xf32> -> vector<8x1xf32>
    %413 = vector.broadcast %412 : vector<8x1xf32> to vector<8x16xf32>
    %414 = arith.mulf %409, %413 : vector<8x16xf32>
    %415 = vector.extract_strided_slice %399 {offsets = [0, 0], sizes = [16, 8], strides = [1, 1]} : vector<16x32xf32> to vector<16x8xf32>
    %cst_183 = arith.constant dense<0.000000e+00> : vector<8x8xf32>
    %416 = tpu.matmul %414, %415, %cst_183 {dimension_numbers = #tpu.dot_dimension_numbers<[1], [0], [0], [1], [0, 0, 1, 1], [], []>} : vector<8x16xf32>, vector<16x8xf32>, vector<8x8xf32> -> vector<8x8xf32>
    %417 = vector.extract_strided_slice %401 {offsets = [0, 8], sizes = [8, 8], strides = [1, 1]} : vector<8x32xf32> to vector<8x8xf32>
    %418 = vector.extract_strided_slice %398 {offsets = [0, 8], sizes = [16, 8], strides = [1, 1]} : vector<16x32xf32> to vector<16x8xf32>
    "tpu.trace_start"() <{level = 10 : i32, message = "qd,kd->qk"}> : () -> ()
    %cst_184 = arith.constant dense<0.000000e+00> : vector<8x16xf32>
    %419 = tpu.matmul %417, %418, %cst_184 {dimension_numbers = #tpu.dot_dimension_numbers<[1], [1], [0], [0], [0, 0, 1, 0], [], []>} : vector<8x8xf32>, vector<16x8xf32>, vector<8x16xf32> -> vector<8x16xf32>
    "tpu.trace_stop"() : () -> ()
    %cst_185 = arith.constant dense<0xFF800000> : vector<8xf32>
    %420 = vector.multi_reduction <maximumf>, %419, %cst_185 [1] : vector<8x16xf32> to vector<8xf32>
    %421 = vector.shape_cast %420 : vector<8xf32> to vector<8x1xf32>
    %422 = vector.broadcast %421 : vector<8x1xf32> to vector<8x16xf32>
    %423 = arith.subf %419, %422 : vector<8x16xf32>
    %424 = math.exp %423 : vector<8x16xf32>
    %cst_186 = arith.constant dense<0.000000e+00> : vector<8xf32>
    %425 = vector.multi_reduction <add>, %424, %cst_186 [1] : vector<8x16xf32> to vector<8xf32>
    %426 = vector.shape_cast %425 : vector<8xf32> to vector<8x1xf32>
    %427 = tpu.reciprocal %426 : vector<8x1xf32> -> vector<8x1xf32>
    %428 = vector.broadcast %427 : vector<8x1xf32> to vector<8x16xf32>
    %429 = arith.mulf %424, %428 : vector<8x16xf32>
    %430 = vector.extract_strided_slice %399 {offsets = [0, 8], sizes = [16, 8], strides = [1, 1]} : vector<16x32xf32> to vector<16x8xf32>
    %cst_187 = arith.constant dense<0.000000e+00> : vector<8x8xf32>
    %431 = tpu.matmul %429, %430, %cst_187 {dimension_numbers = #tpu.dot_dimension_numbers<[1], [0], [0], [1], [0, 0, 1, 1], [], []>} : vector<8x16xf32>, vector<16x8xf32>, vector<8x8xf32> -> vector<8x8xf32>
    %432 = vector.extract_strided_slice %401 {offsets = [0, 16], sizes = [8, 8], strides = [1, 1]} : vector<8x32xf32> to vector<8x8xf32>
    %433 = vector.extract_strided_slice %398 {offsets = [0, 16], sizes = [16, 8], strides = [1, 1]} : vector<16x32xf32> to vector<16x8xf32>
    "tpu.trace_start"() <{level = 10 : i32, message = "qd,kd->qk"}> : () -> ()
    %cst_188 = arith.constant dense<0.000000e+00> : vector<8x16xf32>
    %434 = tpu.matmul %432, %433, %cst_188 {dimension_numbers = #tpu.dot_dimension_numbers<[1], [1], [0], [0], [0, 0, 1, 0], [], []>} : vector<8x8xf32>, vector<16x8xf32>, vector<8x16xf32> -> vector<8x16xf32>
    "tpu.trace_stop"() : () -> ()
    %cst_189 = arith.constant dense<0xFF800000> : vector<8xf32>
    %435 = vector.multi_reduction <maximumf>, %434, %cst_189 [1] : vector<8x16xf32> to vector<8xf32>
    %436 = vector.shape_cast %435 : vector<8xf32> to vector<8x1xf32>
    %437 = vector.broadcast %436 : vector<8x1xf32> to vector<8x16xf32>
    %438 = arith.subf %434, %437 : vector<8x16xf32>
    %439 = math.exp %438 : vector<8x16xf32>
    %cst_190 = arith.constant dense<0.000000e+00> : vector<8xf32>
    %440 = vector.multi_reduction <add>, %439, %cst_190 [1] : vector<8x16xf32> to vector<8xf32>
    %441 = vector.shape_cast %440 : vector<8xf32> to vector<8x1xf32>
    %442 = tpu.reciprocal %441 : vector<8x1xf32> -> vector<8x1xf32>
    %443 = vector.broadcast %442 : vector<8x1xf32> to vector<8x16xf32>
    %444 = arith.mulf %439, %443 : vector<8x16xf32>
    %445 = vector.extract_strided_slice %399 {offsets = [0, 16], sizes = [16, 8], strides = [1, 1]} : vector<16x32xf32> to vector<16x8xf32>
    %cst_191 = arith.constant dense<0.000000e+00> : vector<8x8xf32>
    %446 = tpu.matmul %444, %445, %cst_191 {dimension_numbers = #tpu.dot_dimension_numbers<[1], [0], [0], [1], [0, 0, 1, 1], [], []>} : vector<8x16xf32>, vector<16x8xf32>, vector<8x8xf32> -> vector<8x8xf32>
    %447 = vector.extract_strided_slice %401 {offsets = [0, 24], sizes = [8, 8], strides = [1, 1]} : vector<8x32xf32> to vector<8x8xf32>
    %448 = vector.extract_strided_slice %398 {offsets = [0, 24], sizes = [16, 8], strides = [1, 1]} : vector<16x32xf32> to vector<16x8xf32>
    "tpu.trace_start"() <{level = 10 : i32, message = "qd,kd->qk"}> : () -> ()
    %cst_192 = arith.constant dense<0.000000e+00> : vector<8x16xf32>
    %449 = tpu.matmul %447, %448, %cst_192 {dimension_numbers = #tpu.dot_dimension_numbers<[1], [1], [0], [0], [0, 0, 1, 0], [], []>} : vector<8x8xf32>, vector<16x8xf32>, vector<8x16xf32> -> vector<8x16xf32>
    "tpu.trace_stop"() : () -> ()
    %cst_193 = arith.constant dense<0xFF800000> : vector<8xf32>
    %450 = vector.multi_reduction <maximumf>, %449, %cst_193 [1] : vector<8x16xf32> to vector<8xf32>
    %451 = vector.shape_cast %450 : vector<8xf32> to vector<8x1xf32>
    %452 = vector.broadcast %451 : vector<8x1xf32> to vector<8x16xf32>
    %453 = arith.subf %449, %452 : vector<8x16xf32>
    %454 = math.exp %453 : vector<8x16xf32>
    %cst_194 = arith.constant dense<0.000000e+00> : vector<8xf32>
    %455 = vector.multi_reduction <add>, %454, %cst_194 [1] : vector<8x16xf32> to vector<8xf32>
    %456 = vector.shape_cast %455 : vector<8xf32> to vector<8x1xf32>
    %457 = tpu.reciprocal %456 : vector<8x1xf32> -> vector<8x1xf32>
    %458 = vector.broadcast %457 : vector<8x1xf32> to vector<8x16xf32>
    %459 = arith.mulf %454, %458 : vector<8x16xf32>
    %460 = vector.extract_strided_slice %399 {offsets = [0, 24], sizes = [16, 8], strides = [1, 1]} : vector<16x32xf32> to vector<16x8xf32>
    %cst_195 = arith.constant dense<0.000000e+00> : vector<8x8xf32>
    %461 = tpu.matmul %459, %460, %cst_195 {dimension_numbers = #tpu.dot_dimension_numbers<[1], [0], [0], [1], [0, 0, 1, 1], [], []>} : vector<8x16xf32>, vector<16x8xf32>, vector<8x8xf32> -> vector<8x8xf32>
    %462 = tpu.concatenate %416, %431, %446, %461 in 1 : vector<8x8xf32>, vector<8x8xf32>, vector<8x8xf32>, vector<8x8xf32> -> vector<8x32xf32>
    %c1_196 = arith.constant 1 : index
    %c0_197 = arith.constant 0 : index
    %c0_198 = arith.constant 0 : index
    %463 = vector.load %arg12[%c1_196, %c0_197, %c0_198] : memref<2x32x32xf32, #tpu.memory_space<vmem>>, vector<1x32x32xf32>
    %464 = vector.shape_cast %463 : vector<1x32x32xf32> to vector<32x32xf32>
    %cst_199 = arith.constant dense<0.000000e+00> : vector<8x32xf32>
    %465 = tpu.matmul %462, %464, %cst_199 {dimension_numbers = #tpu.dot_dimension_numbers<[1], [0], [0], [1], [0, 0, 1, 1], [], []>} : vector<8x32xf32>, vector<32x32xf32>, vector<8x32xf32> -> vector<8x32xf32>
    %c1_200 = arith.constant 1 : index
    %c0_201 = arith.constant 0 : index
    %c0_202 = arith.constant 0 : index
    %466 = vector.load %arg13[%c1_200, %c0_201, %c0_202] : memref<2x1x32xf32, #tpu.memory_space<vmem>>, vector<1x1x32xf32>
    %467 = vector.shape_cast %466 : vector<1x1x32xf32> to vector<1x32xf32>
    %468 = vector.broadcast %467 : vector<1x32xf32> to vector<8x32xf32>
    %469 = arith.addf %465, %468 : vector<8x32xf32>
    %470 = arith.addf %383, %469 : vector<8x32xf32>
    %c1_203 = arith.constant 1 : index
    %c0_204 = arith.constant 0 : index
    %c0_205 = arith.constant 0 : index
    %471 = vector.load %arg20[%c1_203, %c0_204, %c0_205] : memref<2x1x32xf32, #tpu.memory_space<vmem>>, vector<1x1x32xf32>
    %472 = vector.shape_cast %471 : vector<1x1x32xf32> to vector<1x32xf32>
    %c1_206 = arith.constant 1 : index
    %c0_207 = arith.constant 0 : index
    %c0_208 = arith.constant 0 : index
    %473 = vector.load %arg21[%c1_206, %c0_207, %c0_208] : memref<2x1x32xf32, #tpu.memory_space<vmem>>, vector<1x1x32xf32>
    %474 = vector.shape_cast %473 : vector<1x1x32xf32> to vector<1x32xf32>
    %cst_209 = arith.constant dense<0.000000e+00> : vector<8xf32>
    %475 = vector.multi_reduction <add>, %470, %cst_209 [1] : vector<8x32xf32> to vector<8xf32>
    %476 = vector.shape_cast %475 : vector<8xf32> to vector<8x1xf32>
    %cst_210 = arith.constant 3.200000e+01 : f32
    %477 = vector.broadcast %cst_210 : f32 to vector<8x1xf32>
    %478 = arith.divf %476, %477 : vector<8x1xf32>
    %479 = vector.broadcast %478 : vector<8x1xf32> to vector<8x32xf32>
    %480 = arith.subf %470, %479 : vector<8x32xf32>
    %481 = arith.mulf %480, %480 : vector<8x32xf32>
    %cst_211 = arith.constant dense<0.000000e+00> : vector<8xf32>
    %482 = vector.multi_reduction <add>, %481, %cst_211 [1] : vector<8x32xf32> to vector<8xf32>
    %483 = vector.shape_cast %482 : vector<8xf32> to vector<8x1xf32>
    %cst_212 = arith.constant 3.200000e+01 : f32
    %484 = vector.broadcast %cst_212 : f32 to vector<8x1xf32>
    %485 = arith.divf %483, %484 : vector<8x1xf32>
    %486 = vector.broadcast %478 : vector<8x1xf32> to vector<8x32xf32>
    %487 = arith.subf %470, %486 : vector<8x32xf32>
    %cst_213 = arith.constant 9.99999974E-6 : f32
    %488 = vector.broadcast %cst_213 : f32 to vector<8x1xf32>
    %489 = arith.addf %485, %488 : vector<8x1xf32>
    %490 = math.rsqrt %489 : vector<8x1xf32>
    %491 = vector.broadcast %490 : vector<8x1xf32> to vector<8x32xf32>
    %492 = arith.mulf %487, %491 : vector<8x32xf32>
    %493 = vector.broadcast %472 : vector<1x32xf32> to vector<8x32xf32>
    %494 = arith.mulf %492, %493 : vector<8x32xf32>
    %495 = vector.broadcast %474 : vector<1x32xf32> to vector<8x32xf32>
    %496 = arith.addf %494, %495 : vector<8x32xf32>
    %c1_214 = arith.constant 1 : index
    %c0_215 = arith.constant 0 : index
    %c0_216 = arith.constant 0 : index
    %497 = vector.load %arg14[%c1_214, %c0_215, %c0_216] : memref<2x32x64xf32, #tpu.memory_space<vmem>>, vector<1x32x64xf32>
    %498 = vector.shape_cast %497 : vector<1x32x64xf32> to vector<32x64xf32>
    %cst_217 = arith.constant dense<0.000000e+00> : vector<8x64xf32>
    %499 = tpu.matmul %496, %498, %cst_217 {dimension_numbers = #tpu.dot_dimension_numbers<[1], [0], [0], [1], [0, 0, 1, 1], [], []>} : vector<8x32xf32>, vector<32x64xf32>, vector<8x64xf32> -> vector<8x64xf32>
    %c1_218 = arith.constant 1 : index
    %c0_219 = arith.constant 0 : index
    %c0_220 = arith.constant 0 : index
    %500 = vector.load %arg15[%c1_218, %c0_219, %c0_220] : memref<2x1x64xf32, #tpu.memory_space<vmem>>, vector<1x1x64xf32>
    %501 = vector.shape_cast %500 : vector<1x1x64xf32> to vector<1x64xf32>
    %502 = vector.broadcast %501 : vector<1x64xf32> to vector<8x64xf32>
    %503 = arith.addf %499, %502 : vector<8x64xf32>
    %cst_221 = arith.constant 0.000000e+00 : f32
    %504 = vector.broadcast %cst_221 : f32 to vector<8x64xf32>
    %505 = arith.maximumf %503, %504 : vector<8x64xf32>
    %c1_222 = arith.constant 1 : index
    %c0_223 = arith.constant 0 : index
    %c0_224 = arith.constant 0 : index
    %506 = vector.load %arg16[%c1_222, %c0_223, %c0_224] : memref<2x64x32xf32, #tpu.memory_space<vmem>>, vector<1x64x32xf32>
    %507 = vector.shape_cast %506 : vector<1x64x32xf32> to vector<64x32xf32>
    %cst_225 = arith.constant dense<0.000000e+00> : vector<8x32xf32>
    %508 = tpu.matmul %505, %507, %cst_225 {dimension_numbers = #tpu.dot_dimension_numbers<[1], [0], [0], [1], [0, 0, 1, 1], [], []>} : vector<8x64xf32>, vector<64x32xf32>, vector<8x32xf32> -> vector<8x32xf32>
    %c1_226 = arith.constant 1 : index
    %c0_227 = arith.constant 0 : index
    %c0_228 = arith.constant 0 : index
    %509 = vector.load %arg17[%c1_226, %c0_227, %c0_228] : memref<2x1x32xf32, #tpu.memory_space<vmem>>, vector<1x1x32xf32>
    %510 = vector.shape_cast %509 : vector<1x1x32xf32> to vector<1x32xf32>
    %511 = vector.broadcast %510 : vector<1x32xf32> to vector<8x32xf32>
    %512 = arith.addf %508, %511 : vector<8x32xf32>
    %513 = arith.addf %496, %512 : vector<8x32xf32>
    %c1_229 = arith.constant 1 : index
    %c0_230 = arith.constant 0 : index
    %c0_231 = arith.constant 0 : index
    %514 = vector.load %arg22[%c1_229, %c0_230, %c0_231] : memref<2x1x32xf32, #tpu.memory_space<vmem>>, vector<1x1x32xf32>
    %515 = vector.shape_cast %514 : vector<1x1x32xf32> to vector<1x32xf32>
    %c1_232 = arith.constant 1 : index
    %c0_233 = arith.constant 0 : index
    %c0_234 = arith.constant 0 : index
    %516 = vector.load %arg23[%c1_232, %c0_233, %c0_234] : memref<2x1x32xf32, #tpu.memory_space<vmem>>, vector<1x1x32xf32>
    %517 = vector.shape_cast %516 : vector<1x1x32xf32> to vector<1x32xf32>
    %cst_235 = arith.constant dense<0.000000e+00> : vector<8xf32>
    %518 = vector.multi_reduction <add>, %513, %cst_235 [1] : vector<8x32xf32> to vector<8xf32>
    %519 = vector.shape_cast %518 : vector<8xf32> to vector<8x1xf32>
    %cst_236 = arith.constant 3.200000e+01 : f32
    %520 = vector.broadcast %cst_236 : f32 to vector<8x1xf32>
    %521 = arith.divf %519, %520 : vector<8x1xf32>
    %522 = vector.broadcast %521 : vector<8x1xf32> to vector<8x32xf32>
    %523 = arith.subf %513, %522 : vector<8x32xf32>
    %524 = arith.mulf %523, %523 : vector<8x32xf32>
    %cst_237 = arith.constant dense<0.000000e+00> : vector<8xf32>
    %525 = vector.multi_reduction <add>, %524, %cst_237 [1] : vector<8x32xf32> to vector<8xf32>
    %526 = vector.shape_cast %525 : vector<8xf32> to vector<8x1xf32>
    %cst_238 = arith.constant 3.200000e+01 : f32
    %527 = vector.broadcast %cst_238 : f32 to vector<8x1xf32>
    %528 = arith.divf %526, %527 : vector<8x1xf32>
    %529 = vector.broadcast %521 : vector<8x1xf32> to vector<8x32xf32>
    %530 = arith.subf %513, %529 : vector<8x32xf32>
    %cst_239 = arith.constant 9.99999974E-6 : f32
    %531 = vector.broadcast %cst_239 : f32 to vector<8x1xf32>
    %532 = arith.addf %528, %531 : vector<8x1xf32>
    %533 = math.rsqrt %532 : vector<8x1xf32>
    %534 = vector.broadcast %533 : vector<8x1xf32> to vector<8x32xf32>
    %535 = arith.mulf %530, %534 : vector<8x32xf32>
    %536 = vector.broadcast %515 : vector<1x32xf32> to vector<8x32xf32>
    %537 = arith.mulf %535, %536 : vector<8x32xf32>
    %538 = vector.broadcast %517 : vector<1x32xf32> to vector<8x32xf32>
    %539 = arith.addf %537, %538 : vector<8x32xf32>
    %c0_240 = arith.constant 0 : index
    %c0_241 = arith.constant 0 : index
    %540 = vector.load %arg24[%c0_240, %c0_241] : memref<32x128xf32, #tpu.memory_space<vmem>>, vector<32x128xf32>
    %cst_242 = arith.constant dense<0.000000e+00> : vector<8x128xf32>
    %541 = tpu.matmul %539, %540, %cst_242 {dimension_numbers = #tpu.dot_dimension_numbers<[1], [0], [0], [1], [0, 0, 1, 1], [], []>} : vector<8x32xf32>, vector<32x128xf32>, vector<8x128xf32> -> vector<8x128xf32>
    %c0_243 = arith.constant 0 : index
    %c0_244 = arith.constant 0 : index
    %542 = vector.load %arg25[%c0_243, %c0_244] : memref<1x128xf32, #tpu.memory_space<vmem>>, vector<1x128xf32>
    %543 = vector.broadcast %542 : vector<1x128xf32> to vector<8x128xf32>
    %544 = arith.addf %541, %543 : vector<8x128xf32>
    %c0_245 = arith.constant 0 : index
    %c0_246 = arith.constant 0 : index
    %c0_247 = arith.constant 0 : index
    %545 = vector.load %arg26[%c0_245, %c0_246, %c0_247] : memref<1x8x128xf32, #tpu.memory_space<vmem>>, vector<1x8x128xf32>
    %546 = vector.shape_cast %545 : vector<1x8x128xf32> to vector<8x128xf32>
    %547 = vector.shape_cast %544 : vector<8x128xf32> to vector<1x8x128xf32>
    tpu.vector_store %arg26[%c0_245, %c0_246, %c0_247], %547 {strides = array<i32>} : memref<1x8x128xf32, #tpu.memory_space<vmem>>, vector<1x8x128xf32>,
    return
  }
  func.func @transform_0(%arg0: i32) -> (i32, i32, i32) {
    %c0_i32 = arith.constant 0 : i32
    %c0_i32_0 = arith.constant 0 : i32
    %c0_i32_1 = arith.constant 0 : i32
    return %arg0, %c0_i32, %c0_i32_0 : i32, i32, i32
  }
  func.func @transform_1(%arg0: i32) -> (i32, i32, i32) {
    %c0_i32 = arith.constant 0 : i32
    %c0_i32_0 = arith.constant 0 : i32
    %c0_i32_1 = arith.constant 0 : i32
    return %arg0, %c0_i32, %c0_i32_0 : i32, i32, i32
  }
  func.func @transform_2(%arg0: i32) -> (i32, i32, i32) {
    %c0_i32 = arith.constant 0 : i32
    %c0_i32_0 = arith.constant 0 : i32
    %c0_i32_1 = arith.constant 0 : i32
    return %arg0, %c0_i32, %c0_i32_0 : i32, i32, i32
  }
  func.func @transform_3(%arg0: i32) -> (i32, i32, i32) {
    %c0_i32 = arith.constant 0 : i32
    %c0_i32_0 = arith.constant 0 : i32
    %c0_i32_1 = arith.constant 0 : i32
    %c0_i32_2 = arith.constant 0 : i32
    return %c0_i32, %c0_i32_0, %c0_i32_1 : i32, i32, i32
  }
  func.func @transform_4(%arg0: i32) -> (i32, i32, i32) {
    %c0_i32 = arith.constant 0 : i32
    %c0_i32_0 = arith.constant 0 : i32
    %c0_i32_1 = arith.constant 0 : i32
    %c0_i32_2 = arith.constant 0 : i32
    return %c0_i32, %c0_i32_0, %c0_i32_1 : i32, i32, i32
  }
  func.func @transform_5(%arg0: i32) -> (i32, i32, i32) {
    %c0_i32 = arith.constant 0 : i32
    %c0_i32_0 = arith.constant 0 : i32
    %c0_i32_1 = arith.constant 0 : i32
    %c0_i32_2 = arith.constant 0 : i32
    return %c0_i32, %c0_i32_0, %c0_i32_1 : i32, i32, i32
  }
  func.func @transform_6(%arg0: i32) -> (i32, i32, i32) {
    %c0_i32 = arith.constant 0 : i32
    %c0_i32_0 = arith.constant 0 : i32
    %c0_i32_1 = arith.constant 0 : i32
    %c0_i32_2 = arith.constant 0 : i32
    return %c0_i32, %c0_i32_0, %c0_i32_1 : i32, i32, i32
  }
  func.func @transform_7(%arg0: i32) -> (i32, i32, i32) {
    %c0_i32 = arith.constant 0 : i32
    %c0_i32_0 = arith.constant 0 : i32
    %c0_i32_1 = arith.constant 0 : i32
    %c0_i32_2 = arith.constant 0 : i32
    return %c0_i32, %c0_i32_0, %c0_i32_1 : i32, i32, i32
  }
  func.func @transform_8(%arg0: i32) -> (i32, i32, i32) {
    %c0_i32 = arith.constant 0 : i32
    %c0_i32_0 = arith.constant 0 : i32
    %c0_i32_1 = arith.constant 0 : i32
    %c0_i32_2 = arith.constant 0 : i32
    return %c0_i32, %c0_i32_0, %c0_i32_1 : i32, i32, i32
  }
  func.func @transform_9(%arg0: i32) -> (i32, i32, i32) {
    %c0_i32 = arith.constant 0 : i32
    %c0_i32_0 = arith.constant 0 : i32
    %c0_i32_1 = arith.constant 0 : i32
    %c0_i32_2 = arith.constant 0 : i32
    return %c0_i32, %c0_i32_0, %c0_i32_1 : i32, i32, i32
  }
  func.func @transform_10(%arg0: i32) -> (i32, i32, i32) {
    %c0_i32 = arith.constant 0 : i32
    %c0_i32_0 = arith.constant 0 : i32
    %c0_i32_1 = arith.constant 0 : i32
    %c0_i32_2 = arith.constant 0 : i32
    return %c0_i32, %c0_i32_0, %c0_i32_1 : i32, i32, i32
  }
  func.func @transform_11(%arg0: i32) -> (i32, i32, i32) {
    %c0_i32 = arith.constant 0 : i32
    %c0_i32_0 = arith.constant 0 : i32
    %c0_i32_1 = arith.constant 0 : i32
    %c0_i32_2 = arith.constant 0 : i32
    return %c0_i32, %c0_i32_0, %c0_i32_1 : i32, i32, i32
  }
  func.func @transform_12(%arg0: i32) -> (i32, i32, i32) {
    %c0_i32 = arith.constant 0 : i32
    %c0_i32_0 = arith.constant 0 : i32
    %c0_i32_1 = arith.constant 0 : i32
    %c0_i32_2 = arith.constant 0 : i32
    return %c0_i32, %c0_i32_0, %c0_i32_1 : i32, i32, i32
  }
  func.func @transform_13(%arg0: i32) -> (i32, i32, i32) {
    %c0_i32 = arith.constant 0 : i32
    %c0_i32_0 = arith.constant 0 : i32
    %c0_i32_1 = arith.constant 0 : i32
    %c0_i32_2 = arith.constant 0 : i32
    return %c0_i32, %c0_i32_0, %c0_i32_1 : i32, i32, i32
  }
  func.func @transform_14(%arg0: i32) -> (i32, i32, i32) {
    %c0_i32 = arith.constant 0 : i32
    %c0_i32_0 = arith.constant 0 : i32
    %c0_i32_1 = arith.constant 0 : i32
    %c0_i32_2 = arith.constant 0 : i32
    return %c0_i32, %c0_i32_0, %c0_i32_1 : i32, i32, i32
  }
  func.func @transform_15(%arg0: i32) -> (i32, i32, i32) {
    %c0_i32 = arith.constant 0 : i32
    %c0_i32_0 = arith.constant 0 : i32
    %c0_i32_1 = arith.constant 0 : i32
    %c0_i32_2 = arith.constant 0 : i32
    return %c0_i32, %c0_i32_0, %c0_i32_1 : i32, i32, i32
  }
  func.func @transform_16(%arg0: i32) -> (i32, i32, i32) {
    %c0_i32 = arith.constant 0 : i32
    %c0_i32_0 = arith.constant 0 : i32
    %c0_i32_1 = arith.constant 0 : i32
    %c0_i32_2 = arith.constant 0 : i32
    return %c0_i32, %c0_i32_0, %c0_i32_1 : i32, i32, i32
  }
  func.func @transform_17(%arg0: i32) -> (i32, i32, i32) {
    %c0_i32 = arith.constant 0 : i32
    %c0_i32_0 = arith.constant 0 : i32
    %c0_i32_1 = arith.constant 0 : i32
    %c0_i32_2 = arith.constant 0 : i32
    return %c0_i32, %c0_i32_0, %c0_i32_1 : i32, i32, i32
  }
  func.func @transform_18(%arg0: i32) -> (i32, i32, i32) {
    %c0_i32 = arith.constant 0 : i32
    %c0_i32_0 = arith.constant 0 : i32
    %c0_i32_1 = arith.constant 0 : i32
    %c0_i32_2 = arith.constant 0 : i32
    return %c0_i32, %c0_i32_0, %c0_i32_1 : i32, i32, i32
  }
  func.func @transform_19(%arg0: i32) -> (i32, i32, i32) {
    %c0_i32 = arith.constant 0 : i32
    %c0_i32_0 = arith.constant 0 : i32
    %c0_i32_1 = arith.constant 0 : i32
    %c0_i32_2 = arith.constant 0 : i32
    return %c0_i32, %c0_i32_0, %c0_i32_1 : i32, i32, i32
  }
  func.func @transform_20(%arg0: i32) -> (i32, i32, i32) {
    %c0_i32 = arith.constant 0 : i32
    %c0_i32_0 = arith.constant 0 : i32
    %c0_i32_1 = arith.constant 0 : i32
    %c0_i32_2 = arith.constant 0 : i32
    return %c0_i32, %c0_i32_0, %c0_i32_1 : i32, i32, i32
  }
  func.func @transform_21(%arg0: i32) -> (i32, i32, i32) {
    %c0_i32 = arith.constant 0 : i32
    %c0_i32_0 = arith.constant 0 : i32
    %c0_i32_1 = arith.constant 0 : i32
    %c0_i32_2 = arith.constant 0 : i32
    return %c0_i32, %c0_i32_0, %c0_i32_1 : i32, i32, i32
  }
  func.func @transform_22(%arg0: i32) -> (i32, i32, i32) {
    %c0_i32 = arith.constant 0 : i32
    %c0_i32_0 = arith.constant 0 : i32
    %c0_i32_1 = arith.constant 0 : i32
    %c0_i32_2 = arith.constant 0 : i32
    return %c0_i32, %c0_i32_0, %c0_i32_1 : i32, i32, i32
  }
  func.func @transform_23(%arg0: i32) -> (i32, i32) {
    %c0_i32 = arith.constant 0 : i32
    %c0_i32_0 = arith.constant 0 : i32
    %c0_i32_1 = arith.constant 0 : i32
    return %c0_i32, %c0_i32_0 : i32, i32
  }
  func.func @transform_24(%arg0: i32) -> (i32, i32) {
    %c0_i32 = arith.constant 0 : i32
    %c0_i32_0 = arith.constant 0 : i32
    %c0_i32_1 = arith.constant 0 : i32
    return %c0_i32, %c0_i32_0 : i32, i32
  }
  func.func @transform_25(%arg0: i32) -> (i32, i32, i32) {
    %c0_i32 = arith.constant 0 : i32
    %c0_i32_0 = arith.constant 0 : i32
    %c0_i32_1 = arith.constant 0 : i32
    return %arg0, %c0_i32, %c0_i32_0 : i32, i32, i32
  }
}

</mosaic_0001>

<llo_original>
// kernel: decoder_forward_pallas.1
$region0: #{decoder_forward_pallas.1}
  #allocation0 [shape = 'u32[]', space=smem, size = 0x4, offset = 0x4, fixed_abs, tag = 'smem constant byte address 0x4 - core index']
  #allocation1 [shape = 'u32[144,128]{1,0:T(1,128)}', space=vmem, size = 0x12000, scoped, tag = 'internal scratch']
  %s0 = inlined_call_operand.vmem [shape: f32[2,8,32], index: 0, kind: input, shape index: {}]
  %s1 = inlined_call_operand.vmem [shape: f32[2,16,32], index: 1, kind: input, shape index: {}]
  %s2 = inlined_call_operand.vmem [shape: f32[2,8,8], index: 2, kind: input, shape index: {}]
  %s3 = inlined_call_operand.vmem [shape: f32[2,32,96], index: 3, kind: input, shape index: {}]
  %s4 = inlined_call_operand.vmem [shape: f32[2,1,96], index: 4, kind: input, shape index: {}]
  %s5 = inlined_call_operand.vmem [shape: f32[2,32,32], index: 5, kind: input, shape index: {}]
  %s6 = inlined_call_operand.vmem [shape: f32[2,1,32], index: 6, kind: input, shape index: {}]
  %s7 = inlined_call_operand.vmem [shape: f32[2,32,32], index: 7, kind: input, shape index: {}]
  %s8 = inlined_call_operand.vmem [shape: f32[2,1,32], index: 8, kind: input, shape index: {}]
  %s9 = inlined_call_operand.vmem [shape: f32[2,32,64], index: 9, kind: input, shape index: {}]
  %s10 = inlined_call_operand.vmem [shape: f32[2,1,64], index: 10, kind: input, shape index: {}]
  %s11 = inlined_call_operand.vmem [shape: f32[2,32,32], index: 11, kind: input, shape index: {}]
  %s12 = inlined_call_operand.vmem [shape: f32[2,1,32], index: 12, kind: input, shape index: {}]
  %s13 = inlined_call_operand.vmem [shape: f32[2,32,64], index: 13, kind: input, shape index: {}]
  %s14 = inlined_call_operand.vmem [shape: f32[2,1,64], index: 14, kind: input, shape index: {}]
  %s15 = inlined_call_operand.vmem [shape: f32[2,64,32], index: 15, kind: input, shape index: {}]
  %s16 = inlined_call_operand.vmem [shape: f32[2,1,32], index: 16, kind: input, shape index: {}]
  %s17 = inlined_call_operand.vmem [shape: f32[2,1,32], index: 17, kind: input, shape index: {}]
  %s18 = inlined_call_operand.vmem [shape: f32[2,1,32], index: 18, kind: input, shape index: {}]
  %s19 = inlined_call_operand.vmem [shape: f32[2,1,32], index: 19, kind: input, shape index: {}]
  %s20 = inlined_call_operand.vmem [shape: f32[2,1,32], index: 20, kind: input, shape index: {}]
  %s21 = inlined_call_operand.vmem [shape: f32[2,1,32], index: 21, kind: input, shape index: {}]
  %s22 = inlined_call_operand.vmem [shape: f32[2,1,32], index: 22, kind: input, shape index: {}]
  %s23 = inlined_call_operand.vmem [shape: f32[32,128], index: 23, kind: input, shape index: {}]
  %s24 = inlined_call_operand.vmem [shape: f32[1,128], index: 24, kind: input, shape index: {}]
  %s25 = inlined_call_operand.hbm [shape: f32[2,8,128], index: 25, kind: output, shape index: {}]
  %s26 = sld [smem:[#allocation0]]
  $region133: #{decoder_forward_pallas.1} parent=0
    _
  %s28 = ssub.s32 1, %s26
  %s29 = scalar_select 0, %s28, %s26
  $region1: #{decoder_forward_pallas.1} parent=0
    #allocation2 [shape = 'u8[8192]{0}', space=vmem, size = 0x2000, scoped, tag = 'output window, operand 0']
    #allocation3 [shape = 's32[2]{0}', space=sflag, size = 0x8, scoped, tag = 'scoped memory for decoder_forward_pallas.1']
    %30 = vsyncpa [#allocation3], 0
    %s31 = scalar_lea.sflag [#allocation3], 1
    %32 = vsyncpa %s31, 0
    loop: start=0, step=1, limit=4
    $region2: #{decoder_forward_pallas.1} parent=1 // loop_pre_header
      _
    $region3: #{decoder_forward_pallas.1} parent=1 // loop_header
      %s34 = sphi 0, %s38
      %p35 = scmp.ge.s32.totalorder %s34, 4
      %s44 = sphi 0, %s46
      %s47 = sphi 0, %s44
      %s48 = sphi 0, %s47
      %s64 = sphi 0, %s48
      %s70 = sphi 0, %s72
      %s73 = sphi 0, %s70
      %s74 = sphi 0, %s73
      %s90 = sphi 0, %s74
      %s96 = sphi 0, %s98
      %s99 = sphi 0, %s96
      %s100 = sphi 0, %s99
      %s116 = sphi 0, %s100
      %s120 = sphi 0, %s120
      %s122 = sphi 0, %s120
      %s123 = sphi 0, %s122
      %s137 = sphi 0, %s123
      %s141 = sphi 0, %s141
      %s143 = sphi 0, %s141
      %s144 = sphi 0, %s143
      %s158 = sphi 0, %s144
      %s162 = sphi 0, %s162
      %s164 = sphi 0, %s162
      %s165 = sphi 0, %s164
      %s179 = sphi 0, %s165
      %s183 = sphi 0, %s183
      %s185 = sphi 0, %s183
      %s186 = sphi 0, %s185
      %s200 = sphi 0, %s186
      %s204 = sphi 0, %s204
      %s206 = sphi 0, %s204
      %s207 = sphi 0, %s206
      %s221 = sphi 0, %s207
      %s225 = sphi 0, %s225
      %s227 = sphi 0, %s225
      %s228 = sphi 0, %s227
      %s242 = sphi 0, %s228
      %s246 = sphi 0, %s246
      %s248 = sphi 0, %s246
      %s249 = sphi 0, %s248
      %s263 = sphi 0, %s249
      %s267 = sphi 0, %s267
      %s269 = sphi 0, %s267
      %s270 = sphi 0, %s269
      %s284 = sphi 0, %s270
      %s288 = sphi 0, %s288
      %s290 = sphi 0, %s288
      %s291 = sphi 0, %s290
      %s305 = sphi 0, %s291
      %s309 = sphi 0, %s309
      %s311 = sphi 0, %s309
      %s312 = sphi 0, %s311
      %s326 = sphi 0, %s312
      %s330 = sphi 0, %s330
      %s332 = sphi 0, %s330
      %s333 = sphi 0, %s332
      %s347 = sphi 0, %s333
      %s351 = sphi 0, %s351
      %s353 = sphi 0, %s351
      %s354 = sphi 0, %s353
      %s368 = sphi 0, %s354
      %s372 = sphi 0, %s372
      %s374 = sphi 0, %s372
      %s375 = sphi 0, %s374
      %s389 = sphi 0, %s375
      %s393 = sphi 0, %s393
      %s395 = sphi 0, %s393
      %s396 = sphi 0, %s395
      %s410 = sphi 0, %s396
      %s414 = sphi 0, %s414
      %s416 = sphi 0, %s414
      %s417 = sphi 0, %s416
      %s431 = sphi 0, %s417
      %s435 = sphi 0, %s435
      %s437 = sphi 0, %s435
      %s438 = sphi 0, %s437
      %s452 = sphi 0, %s438
      %s456 = sphi 0, %s456
      %s458 = sphi 0, %s456
      %s459 = sphi 0, %s458
      %s473 = sphi 0, %s459
      %s477 = sphi 0, %s477
      %s479 = sphi 0, %s477
      %s480 = sphi 0, %s479
      %s494 = sphi 0, %s480
      %s498 = sphi 0, %s498
      %s500 = sphi 0, %s498
      %s501 = sphi 0, %s500
      %s515 = sphi 0, %s501
      %s519 = sphi 0, %s519
      %s521 = sphi 0, %s519
      %s522 = sphi 0, %s521
      %s536 = sphi 0, %s522
      %s540 = sphi 0, %s540
      %s542 = sphi 0, %s540
      %s543 = sphi 0, %s542
      %s557 = sphi 0, %s543
      %s561 = sphi 0, %s561
      %s563 = sphi 0, %s561
      %s564 = sphi 0, %s563
      %s578 = sphi 0, %s564
      %s584 = sphi 0, %s586
      %s587 = sphi 0, %s584
      %s588 = sphi 0, %s587
      %s604 = sphi 0, %s588
    $region4: #{decoder_forward_pallas.1} parent=1 // loop_header_branch
      %37 = sbr.rel (%p35) target = $region8
    $region5: #{decoder_forward_pallas.1} parent=1 // loop_body
      %s39 = ssub.s32 %s34, 1
      %s40 = ssub.s32 %s34, 2
      %s41 = sadd.s32 %s34, 1
      %s42 = ssub.s32 %s34, %s41
      %p43 = scmp.eq.s32.totalorder %s42, 0
      %s45 = sadd.s32 %s44, 1
      %s46 = scalar_select %p43, %s44, %s45
      %p49 = pneg %p43
      %p50 = scmp.eq.s32.totalorder %s34, 1
      %p51 = por %p49, %p50
      %p52 = scmp.ne.s32.totalorder %s44, %s47
      %p53 = scmp.eq.s32.totalorder %s34, 0
      %p54 = por %p52, %p53
      %p55 = scmp.ne.s32.totalorder %s44, %s47
      %p56 = scmp.eq.s32.totalorder %s39, 1
      %p57 = por %p55, %p56
      %p58 = scmp.ne.s32.totalorder %s47, %s48
      %p59 = scmp.eq.s32.totalorder %s39, 0
      %p60 = por %p58, %p59
      %p61 = scmp.ne.s32.totalorder %s47, %s48
      %p62 = scmp.eq.s32.totalorder %s40, 1
      %p63 = por %p61, %p62
      %p65 = scmp.ne.s32.totalorder %s48, %s64
      %p66 = scmp.eq.s32.totalorder %s40, 0
      %p67 = por %p65, %p66
      %s68 = ssub.s32 %s34, %s41
      %p69 = scmp.eq.s32.totalorder %s68, 0
      %s71 = sadd.s32 %s70, 1
      %s72 = scalar_select %p69, %s70, %s71
      %p75 = pneg %p69
      %p76 = scmp.eq.s32.totalorder %s34, 1
      %p77 = por %p75, %p76
      %p78 = scmp.ne.s32.totalorder %s70, %s73
      %p79 = scmp.eq.s32.totalorder %s34, 0
      %p80 = por %p78, %p79
      %p81 = scmp.ne.s32.totalorder %s70, %s73
      %p82 = scmp.eq.s32.totalorder %s39, 1
      %p83 = por %p81, %p82
      %p84 = scmp.ne.s32.totalorder %s73, %s74
      %p85 = scmp.eq.s32.totalorder %s39, 0
      %p86 = por %p84, %p85
      %p87 = scmp.ne.s32.totalorder %s73, %s74
      %p88 = scmp.eq.s32.totalorder %s40, 1
      %p89 = por %p87, %p88
      %p91 = scmp.ne.s32.totalorder %s74, %s90
      %p92 = scmp.eq.s32.totalorder %s40, 0
      %p93 = por %p91, %p92
      %s94 = ssub.s32 %s34, %s41
      %p95 = scmp.eq.s32.totalorder %s94, 0
      %s97 = sadd.s32 %s96, 1
      %s98 = scalar_select %p95, %s96, %s97
      %p101 = pneg %p95
      %p102 = scmp.eq.s32.totalorder %s34, 1
      %p103 = por %p101, %p102
      %p104 = scmp.ne.s32.totalorder %s96, %s99
      %p105 = scmp.eq.s32.totalorder %s34, 0
      %p106 = por %p104, %p105
      %p107 = scmp.ne.s32.totalorder %s96, %s99
      %p108 = scmp.eq.s32.totalorder %s39, 1
      %p109 = por %p107, %p108
      %p110 = scmp.ne.s32.totalorder %s99, %s100
      %p111 = scmp.eq.s32.totalorder %s39, 0
      %p112 = por %p110, %p111
      %p113 = scmp.ne.s32.totalorder %s99, %s100
      %p114 = scmp.eq.s32.totalorder %s40, 1
      %p115 = por %p113, %p114
      %p117 = scmp.ne.s32.totalorder %s100, %s116
      %p118 = scmp.eq.s32.totalorder %s40, 0
      %p119 = por %p117, %p118
      %s121 = sadd.s32 %s120, 1
      %p124 = scmp.eq.s32.totalorder %s34, 1
      %p125 = scmp.ne.s32.totalorder %s120, %s122
      %p126 = scmp.eq.s32.totalorder %s34, 0
      %p127 = por %p125, %p126
      %p128 = scmp.ne.s32.totalorder %s120, %s122
      %p129 = scmp.eq.s32.totalorder %s39, 1
      %p130 = por %p128, %p129
      %p131 = scmp.ne.s32.totalorder %s122, %s123
      %p132 = scmp.eq.s32.totalorder %s39, 0
      %p133 = por %p131, %p132
      %p134 = scmp.ne.s32.totalorder %s122, %s123
      %p135 = scmp.eq.s32.totalorder %s40, 1
      %p136 = por %p134, %p135
      %p138 = scmp.ne.s32.totalorder %s123, %s137
      %p139 = scmp.eq.s32.totalorder %s40, 0
      %p140 = por %p138, %p139
      %s142 = sadd.s32 %s141, 1
      %p145 = scmp.eq.s32.totalorder %s34, 1
      %p146 = scmp.ne.s32.totalorder %s141, %s143
      %p147 = scmp.eq.s32.totalorder %s34, 0
      %p148 = por %p146, %p147
      %p149 = scmp.ne.s32.totalorder %s141, %s143
      %p150 = scmp.eq.s32.totalorder %s39, 1
      %p151 = por %p149, %p150
      %p152 = scmp.ne.s32.totalorder %s143, %s144
      %p153 = scmp.eq.s32.totalorder %s39, 0
      %p154 = por %p152, %p153
      %p155 = scmp.ne.s32.totalorder %s143, %s144
      %p156 = scmp.eq.s32.totalorder %s40, 1
      %p157 = por %p155, %p156
      %p159 = scmp.ne.s32.totalorder %s144, %s158
      %p160 = scmp.eq.s32.totalorder %s40, 0
      %p161 = por %p159, %p160
      %s163 = sadd.s32 %s162, 1
      %p166 = scmp.eq.s32.totalorder %s34, 1
      %p167 = scmp.ne.s32.totalorder %s162, %s164
      %p168 = scmp.eq.s32.totalorder %s34, 0
      %p169 = por %p167, %p168
      %p170 = scmp.ne.s32.totalorder %s162, %s164
      %p171 = scmp.eq.s32.totalorder %s39, 1
      %p172 = por %p170, %p171
      %p173 = scmp.ne.s32.totalorder %s164, %s165
      %p174 = scmp.eq.s32.totalorder %s39, 0
      %p175 = por %p173, %p174
      %p176 = scmp.ne.s32.totalorder %s164, %s165
      %p177 = scmp.eq.s32.totalorder %s40, 1
      %p178 = por %p176, %p177
      %p180 = scmp.ne.s32.totalorder %s165, %s179
      %p181 = scmp.eq.s32.totalorder %s40, 0
      %p182 = por %p180, %p181
      %s184 = sadd.s32 %s183, 1
      %p187 = scmp.eq.s32.totalorder %s34, 1
      %p188 = scmp.ne.s32.totalorder %s183, %s185
      %p189 = scmp.eq.s32.totalorder %s34, 0
      %p190 = por %p188, %p189
      %p191 = scmp.ne.s32.totalorder %s183, %s185
      %p192 = scmp.eq.s32.totalorder %s39, 1
      %p193 = por %p191, %p192
      %p194 = scmp.ne.s32.totalorder %s185, %s186
      %p195 = scmp.eq.s32.totalorder %s39, 0
      %p196 = por %p194, %p195
      %p197 = scmp.ne.s32.totalorder %s185, %s186
      %p198 = scmp.eq.s32.totalorder %s40, 1
      %p199 = por %p197, %p198
      %p201 = scmp.ne.s32.totalorder %s186, %s200
      %p202 = scmp.eq.s32.totalorder %s40, 0
      %p203 = por %p201, %p202
      %s205 = sadd.s32 %s204, 1
      %p208 = scmp.eq.s32.totalorder %s34, 1
      %p209 = scmp.ne.s32.totalorder %s204, %s206
      %p210 = scmp.eq.s32.totalorder %s34, 0
      %p211 = por %p209, %p210
      %p212 = scmp.ne.s32.totalorder %s204, %s206
      %p213 = scmp.eq.s32.totalorder %s39, 1
      %p214 = por %p212, %p213
      %p215 = scmp.ne.s32.totalorder %s206, %s207
      %p216 = scmp.eq.s32.totalorder %s39, 0
      %p217 = por %p215, %p216
      %p218 = scmp.ne.s32.totalorder %s206, %s207
      %p219 = scmp.eq.s32.totalorder %s40, 1
      %p220 = por %p218, %p219
      %p222 = scmp.ne.s32.totalorder %s207, %s221
      %p223 = scmp.eq.s32.totalorder %s40, 0
      %p224 = por %p222, %p223
      %s226 = sadd.s32 %s225, 1
      %p229 = scmp.eq.s32.totalorder %s34, 1
      %p230 = scmp.ne.s32.totalorder %s225, %s227
      %p231 = scmp.eq.s32.totalorder %s34, 0
      %p232 = por %p230, %p231
      %p233 = scmp.ne.s32.totalorder %s225, %s227
      %p234 = scmp.eq.s32.totalorder %s39, 1
      %p235 = por %p233, %p234
      %p236 = scmp.ne.s32.totalorder %s227, %s228
      %p237 = scmp.eq.s32.totalorder %s39, 0
      %p238 = por %p236, %p237
      %p239 = scmp.ne.s32.totalorder %s227, %s228
      %p240 = scmp.eq.s32.totalorder %s40, 1
      %p241 = por %p239, %p240
      %p243 = scmp.ne.s32.totalorder %s228, %s242
      %p244 = scmp.eq.s32.totalorder %s40, 0
      %p245 = por %p243, %p244
      %s247 = sadd.s32 %s246, 1
      %p250 = scmp.eq.s32.totalorder %s34, 1
      %p251 = scmp.ne.s32.totalorder %s246, %s248
      %p252 = scmp.eq.s32.totalorder %s34, 0
      %p253 = por %p251, %p252
      %p254 = scmp.ne.s32.totalorder %s246, %s248
      %p255 = scmp.eq.s32.totalorder %s39, 1
      %p256 = por %p254, %p255
      %p257 = scmp.ne.s32.totalorder %s248, %s249
      %p258 = scmp.eq.s32.totalorder %s39, 0
      %p259 = por %p257, %p258
      %p260 = scmp.ne.s32.totalorder %s248, %s249
      %p261 = scmp.eq.s32.totalorder %s40, 1
      %p262 = por %p260, %p261
      %p264 = scmp.ne.s32.totalorder %s249, %s263
      %p265 = scmp.eq.s32.totalorder %s40, 0
      %p266 = por %p264, %p265
      %s268 = sadd.s32 %s267, 1
      %p271 = scmp.eq.s32.totalorder %s34, 1
      %p272 = scmp.ne.s32.totalorder %s267, %s269
      %p273 = scmp.eq.s32.totalorder %s34, 0
      %p274 = por %p272, %p273
      %p275 = scmp.ne.s32.totalorder %s267, %s269
      %p276 = scmp.eq.s32.totalorder %s39, 1
      %p277 = por %p275, %p276
      %p278 = scmp.ne.s32.totalorder %s269, %s270
      %p279 = scmp.eq.s32.totalorder %s39, 0
      %p280 = por %p278, %p279
      %p281 = scmp.ne.s32.totalorder %s269, %s270
      %p282 = scmp.eq.s32.totalorder %s40, 1
      %p283 = por %p281, %p282
      %p285 = scmp.ne.s32.totalorder %s270, %s284
      %p286 = scmp.eq.s32.totalorder %s40, 0
      %p287 = por %p285, %p286
      %s289 = sadd.s32 %s288, 1
      %p292 = scmp.eq.s32.totalorder %s34, 1
      %p293 = scmp.ne.s32.totalorder %s288, %s290
      %p294 = scmp.eq.s32.totalorder %s34, 0
      %p295 = por %p293, %p294
      %p296 = scmp.ne.s32.totalorder %s288, %s290
      %p297 = scmp.eq.s32.totalorder %s39, 1
      %p298 = por %p296, %p297
      %p299 = scmp.ne.s32.totalorder %s290, %s291
      %p300 = scmp.eq.s32.totalorder %s39, 0
      %p301 = por %p299, %p300
      %p302 = scmp.ne.s32.totalorder %s290, %s291
      %p303 = scmp.eq.s32.totalorder %s40, 1
      %p304 = por %p302, %p303
      %p306 = scmp.ne.s32.totalorder %s291, %s305
      %p307 = scmp.eq.s32.totalorder %s40, 0
      %p308 = por %p306, %p307
      %s310 = sadd.s32 %s309, 1
      %p313 = scmp.eq.s32.totalorder %s34, 1
      %p314 = scmp.ne.s32.totalorder %s309, %s311
      %p315 = scmp.eq.s32.totalorder %s34, 0
      %p316 = por %p314, %p315
      %p317 = scmp.ne.s32.totalorder %s309, %s311
      %p318 = scmp.eq.s32.totalorder %s39, 1
      %p319 = por %p317, %p318
      %p320 = scmp.ne.s32.totalorder %s311, %s312
      %p321 = scmp.eq.s32.totalorder %s39, 0
      %p322 = por %p320, %p321
      %p323 = scmp.ne.s32.totalorder %s311, %s312
      %p324 = scmp.eq.s32.totalorder %s40, 1
      %p325 = por %p323, %p324
      %p327 = scmp.ne.s32.totalorder %s312, %s326
      %p328 = scmp.eq.s32.totalorder %s40, 0
      %p329 = por %p327, %p328
      %s331 = sadd.s32 %s330, 1
      %p334 = scmp.eq.s32.totalorder %s34, 1
      %p335 = scmp.ne.s32.totalorder %s330, %s332
      %p336 = scmp.eq.s32.totalorder %s34, 0
      %p337 = por %p335, %p336
      %p338 = scmp.ne.s32.totalorder %s330, %s332
      %p339 = scmp.eq.s32.totalorder %s39, 1
      %p340 = por %p338, %p339
      %p341 = scmp.ne.s32.totalorder %s332, %s333
      %p342 = scmp.eq.s32.totalorder %s39, 0
      %p343 = por %p341, %p342
      %p344 = scmp.ne.s32.totalorder %s332, %s333
      %p345 = scmp.eq.s32.totalorder %s40, 1
      %p346 = por %p344, %p345
      %p348 = scmp.ne.s32.totalorder %s333, %s347
      %p349 = scmp.eq.s32.totalorder %s40, 0
      %p350 = por %p348, %p349
      %s352 = sadd.s32 %s351, 1
      %p355 = scmp.eq.s32.totalorder %s34, 1
      %p356 = scmp.ne.s32.totalorder %s351, %s353
      %p357 = scmp.eq.s32.totalorder %s34, 0
      %p358 = por %p356, %p357
      %p359 = scmp.ne.s32.totalorder %s351, %s353
      %p360 = scmp.eq.s32.totalorder %s39, 1
      %p361 = por %p359, %p360
      %p362 = scmp.ne.s32.totalorder %s353, %s354
      %p363 = scmp.eq.s32.totalorder %s39, 0
      %p364 = por %p362, %p363
      %p365 = scmp.ne.s32.totalorder %s353, %s354
      %p366 = scmp.eq.s32.totalorder %s40, 1
      %p367 = por %p365, %p366
      %p369 = scmp.ne.s32.totalorder %s354, %s368
      %p370 = scmp.eq.s32.totalorder %s40, 0
      %p371 = por %p369, %p370
      %s373 = sadd.s32 %s372, 1
      %p376 = scmp.eq.s32.totalorder %s34, 1
      %p377 = scmp.ne.s32.totalorder %s372, %s374
      %p378 = scmp.eq.s32.totalorder %s34, 0
      %p379 = por %p377, %p378
      %p380 = scmp.ne.s32.totalorder %s372, %s374
      %p381 = scmp.eq.s32.totalorder %s39, 1
      %p382 = por %p380, %p381
      %p383 = scmp.ne.s32.totalorder %s374, %s375
      %p384 = scmp.eq.s32.totalorder %s39, 0
      %p385 = por %p383, %p384
      %p386 = scmp.ne.s32.totalorder %s374, %s375
      %p387 = scmp.eq.s32.totalorder %s40, 1
      %p388 = por %p386, %p387
      %p390 = scmp.ne.s32.totalorder %s375, %s389
      %p391 = scmp.eq.s32.totalorder %s40, 0
      %p392 = por %p390, %p391
      %s394 = sadd.s32 %s393, 1
      %p397 = scmp.eq.s32.totalorder %s34, 1
      %p398 = scmp.ne.s32.totalorder %s393, %s395
      %p399 = scmp.eq.s32.totalorder %s34, 0
      %p400 = por %p398, %p399
      %p401 = scmp.ne.s32.totalorder %s393, %s395
      %p402 = scmp.eq.s32.totalorder %s39, 1
      %p403 = por %p401, %p402
      %p404 = scmp.ne.s32.totalorder %s395, %s396
      %p405 = scmp.eq.s32.totalorder %s39, 0
      %p406 = por %p404, %p405
      %p407 = scmp.ne.s32.totalorder %s395, %s396
      %p408 = scmp.eq.s32.totalorder %s40, 1
      %p409 = por %p407, %p408
      %p411 = scmp.ne.s32.totalorder %s396, %s410
      %p412 = scmp.eq.s32.totalorder %s40, 0
      %p413 = por %p411, %p412
      %s415 = sadd.s32 %s414, 1
      %p418 = scmp.eq.s32.totalorder %s34, 1
      %p419 = scmp.ne.s32.totalorder %s414, %s416
      %p420 = scmp.eq.s32.totalorder %s34, 0
      %p421 = por %p419, %p420
      %p422 = scmp.ne.s32.totalorder %s414, %s416
      %p423 = scmp.eq.s32.totalorder %s39, 1
      %p424 = por %p422, %p423
      %p425 = scmp.ne.s32.totalorder %s416, %s417
      %p426 = scmp.eq.s32.totalorder %s39, 0
      %p427 = por %p425, %p426
      %p428 = scmp.ne.s32.totalorder %s416, %s417
      %p429 = scmp.eq.s32.totalorder %s40, 1
      %p430 = por %p428, %p429
      %p432 = scmp.ne.s32.totalorder %s417, %s431
      %p433 = scmp.eq.s32.totalorder %s40, 0
      %p434 = por %p432, %p433
      %s436 = sadd.s32 %s435, 1
      %p439 = scmp.eq.s32.totalorder %s34, 1
      %p440 = scmp.ne.s32.totalorder %s435, %s437
      %p441 = scmp.eq.s32.totalorder %s34, 0
      %p442 = por %p440, %p441
      %p443 = scmp.ne.s32.totalorder %s435, %s437
      %p444 = scmp.eq.s32.totalorder %s39, 1
      %p445 = por %p443, %p444
      %p446 = scmp.ne.s32.totalorder %s437, %s438
      %p447 = scmp.eq.s32.totalorder %s39, 0
      %p448 = por %p446, %p447
      %p449 = scmp.ne.s32.totalorder %s437, %s438
      %p450 = scmp.eq.s32.totalorder %s40, 1
      %p451 = por %p449, %p450
      %p453 = scmp.ne.s32.totalorder %s438, %s452
      %p454 = scmp.eq.s32.totalorder %s40, 0
      %p455 = por %p453, %p454
      %s457 = sadd.s32 %s456, 1
      %p460 = scmp.eq.s32.totalorder %s34, 1
      %p461 = scmp.ne.s32.totalorder %s456, %s458
      %p462 = scmp.eq.s32.totalorder %s34, 0
      %p463 = por %p461, %p462
      %p464 = scmp.ne.s32.totalorder %s456, %s458
      %p465 = scmp.eq.s32.totalorder %s39, 1
      %p466 = por %p464, %p465
      %p467 = scmp.ne.s32.totalorder %s458, %s459
      %p468 = scmp.eq.s32.totalorder %s39, 0
      %p469 = por %p467, %p468
      %p470 = scmp.ne.s32.totalorder %s458, %s459
      %p471 = scmp.eq.s32.totalorder %s40, 1
      %p472 = por %p470, %p471
      %p474 = scmp.ne.s32.totalorder %s459, %s473
      %p475 = scmp.eq.s32.totalorder %s40, 0
      %p476 = por %p474, %p475
      %s478 = sadd.s32 %s477, 1
      %p481 = scmp.eq.s32.totalorder %s34, 1
      %p482 = scmp.ne.s32.totalorder %s477, %s479
      %p483 = scmp.eq.s32.totalorder %s34, 0
      %p484 = por %p482, %p483
      %p485 = scmp.ne.s32.totalorder %s477, %s479
      %p486 = scmp.eq.s32.totalorder %s39, 1
      %p487 = por %p485, %p486
      %p488 = scmp.ne.s32.totalorder %s479, %s480
      %p489 = scmp.eq.s32.totalorder %s39, 0
      %p490 = por %p488, %p489
      %p491 = scmp.ne.s32.totalorder %s479, %s480
      %p492 = scmp.eq.s32.totalorder %s40, 1
      %p493 = por %p491, %p492
      %p495 = scmp.ne.s32.totalorder %s480, %s494
      %p496 = scmp.eq.s32.totalorder %s40, 0
      %p497 = por %p495, %p496
      %s499 = sadd.s32 %s498, 1
      %p502 = scmp.eq.s32.totalorder %s34, 1
      %p503 = scmp.ne.s32.totalorder %s498, %s500
      %p504 = scmp.eq.s32.totalorder %s34, 0
      %p505 = por %p503, %p504
      %p506 = scmp.ne.s32.totalorder %s498, %s500
      %p507 = scmp.eq.s32.totalorder %s39, 1
      %p508 = por %p506, %p507
      %p509 = scmp.ne.s32.totalorder %s500, %s501
      %p510 = scmp.eq.s32.totalorder %s39, 0
      %p511 = por %p509, %p510
      %p512 = scmp.ne.s32.totalorder %s500, %s501
      %p513 = scmp.eq.s32.totalorder %s40, 1
      %p514 = por %p512, %p513
      %p516 = scmp.ne.s32.totalorder %s501, %s515
      %p517 = scmp.eq.s32.totalorder %s40, 0
      %p518 = por %p516, %p517
      %s520 = sadd.s32 %s519, 1
      %p523 = scmp.eq.s32.totalorder %s34, 1
      %p524 = scmp.ne.s32.totalorder %s519, %s521
      %p525 = scmp.eq.s32.totalorder %s34, 0
      %p526 = por %p524, %p525
      %p527 = scmp.ne.s32.totalorder %s519, %s521
      %p528 = scmp.eq.s32.totalorder %s39, 1
      %p529 = por %p527, %p528
      %p530 = scmp.ne.s32.totalorder %s521, %s522
      %p531 = scmp.eq.s32.totalorder %s39, 0
      %p532 = por %p530, %p531
      %p533 = scmp.ne.s32.totalorder %s521, %s522
      %p534 = scmp.eq.s32.totalorder %s40, 1
      %p535 = por %p533, %p534
      %p537 = scmp.ne.s32.totalorder %s522, %s536
      %p538 = scmp.eq.s32.totalorder %s40, 0
      %p539 = por %p537, %p538
      %s541 = sadd.s32 %s540, 1
      %p544 = scmp.eq.s32.totalorder %s34, 1
      %p545 = scmp.ne.s32.totalorder %s540, %s542
      %p546 = scmp.eq.s32.totalorder %s34, 0
      %p547 = por %p545, %p546
      %p548 = scmp.ne.s32.totalorder %s540, %s542
      %p549 = scmp.eq.s32.totalorder %s39, 1
      %p550 = por %p548, %p549
      %p551 = scmp.ne.s32.totalorder %s542, %s543
      %p552 = scmp.eq.s32.totalorder %s39, 0
      %p553 = por %p551, %p552
      %p554 = scmp.ne.s32.totalorder %s542, %s543
      %p555 = scmp.eq.s32.totalorder %s40, 1
      %p556 = por %p554, %p555
      %p558 = scmp.ne.s32.totalorder %s543, %s557
      %p559 = scmp.eq.s32.totalorder %s40, 0
      %p560 = por %p558, %p559
      %s562 = sadd.s32 %s561, 1
      %p565 = scmp.eq.s32.totalorder %s34, 1
      %p566 = scmp.ne.s32.totalorder %s561, %s563
      %p567 = scmp.eq.s32.totalorder %s34, 0
      %p568 = por %p566, %p567
      %p569 = scmp.ne.s32.totalorder %s561, %s563
      %p570 = scmp.eq.s32.totalorder %s39, 1
      %p571 = por %p569, %p570
      %p572 = scmp.ne.s32.totalorder %s563, %s564
      %p573 = scmp.eq.s32.totalorder %s39, 0
      %p574 = por %p572, %p573
      %p575 = scmp.ne.s32.totalorder %s563, %s564
      %p576 = scmp.eq.s32.totalorder %s40, 1
      %p577 = por %p575, %p576
      %p579 = scmp.ne.s32.totalorder %s564, %s578
      %p580 = scmp.eq.s32.totalorder %s40, 0
      %p581 = por %p579, %p580
      %s582 = ssub.s32 %s34, %s41
      %p583 = scmp.eq.s32.totalorder %s582, 0
      %s585 = sadd.s32 %s584, 1
      %s586 = scalar_select %p583, %s584, %s585
      %p589 = pneg %p583
      %p590 = scmp.eq.s32.totalorder %s34, 1
      %p591 = por %p589, %p590
      %p592 = scmp.ne.s32.totalorder %s584, %s587
      %p593 = scmp.eq.s32.totalorder %s34, 0
      %p594 = por %p592, %p593
      %p595 = scmp.ne.s32.totalorder %s584, %s587
      %p596 = scmp.eq.s32.totalorder %s39, 1
      %p597 = por %p595, %p596
      %p598 = scmp.ne.s32.totalorder %s587, %s588
      %p599 = scmp.eq.s32.totalorder %s39, 0
      %p600 = por %p598, %p599
      %p601 = scmp.ne.s32.totalorder %s587, %s588
      %p602 = scmp.eq.s32.totalorder %s40, 1
      %p603 = por %p601, %p602
      %p605 = scmp.ne.s32.totalorder %s588, %s604
      %p606 = scmp.eq.s32.totalorder %s40, 0
      %p607 = por %p605, %p606
      %p608 = scmp.le.s32.totalorder 1, %s34
      %p609 = scmp.lt.s32.totalorder %s34, 3
      %p610 = pnand %p608, %p609
      %p611 = pneg %p610
      // Predicated region
      $region9: #{decoder_forward_pallas.1} parent=5 // pred_check
        _
      $region10: #{decoder_forward_pallas.1} parent=5 // pred_check_branch
        %613 = sbr.rel (%p610) target = $region12
      $region11: #{decoder_forward_pallas.1} parent=5 // pred_region
        %s614 = ssub.s32 %s34, 1
        // Predicated region
        $region13: #{decoder_forward_pallas.1} parent=11 // pred_check
          %p615 = pneg %p133
        $region14: #{decoder_forward_pallas.1} parent=11 // pred_check_branch
          %617 = sbr.rel (%p615) target = $region16
        $region15: #{decoder_forward_pallas.1} parent=11 // pred_region
          _
        $region16: #{decoder_forward_pallas.1} parent=11 // pred_fallthru
          _
        // Predicated region
        $region17: #{decoder_forward_pallas.1} parent=11 // pred_check
          %p618 = pneg %p154
        $region18: #{decoder_forward_pallas.1} parent=11 // pred_check_branch
          %620 = sbr.rel (%p618) target = $region20
        $region19: #{decoder_forward_pallas.1} parent=11 // pred_region
          _
        $region20: #{decoder_forward_pallas.1} parent=11 // pred_fallthru
          _
        // Predicated region
        $region21: #{decoder_forward_pallas.1} parent=11 // pred_check
          %p621 = pneg %p175
        $region22: #{decoder_forward_pallas.1} parent=11 // pred_check_branch
          %623 = sbr.rel (%p621) target = $region24
        $region23: #{decoder_forward_pallas.1} parent=11 // pred_region
          _
        $region24: #{decoder_forward_pallas.1} parent=11 // pred_fallthru
          _
        // Predicated region
        $region25: #{decoder_forward_pallas.1} parent=11 // pred_check
          %p624 = pneg %p196
        $region26: #{decoder_forward_pallas.1} parent=11 // pred_check_branch
          %626 = sbr.rel (%p624) target = $region28
        $region27: #{decoder_forward_pallas.1} parent=11 // pred_region
          _
        $region28: #{decoder_forward_pallas.1} parent=11 // pred_fallthru
          _
        // Predicated region
        $region29: #{decoder_forward_pallas.1} parent=11 // pred_check
          %p627 = pneg %p217
        $region30: #{decoder_forward_pallas.1} parent=11 // pred_check_branch
          %629 = sbr.rel (%p627) target = $region32
        $region31: #{decoder_forward_pallas.1} parent=11 // pred_region
          _
        $region32: #{decoder_forward_pallas.1} parent=11 // pred_fallthru
          _
        // Predicated region
        $region33: #{decoder_forward_pallas.1} parent=11 // pred_check
          %p630 = pneg %p238
        $region34: #{decoder_forward_pallas.1} parent=11 // pred_check_branch
          %632 = sbr.rel (%p630) target = $region36
        $region35: #{decoder_forward_pallas.1} parent=11 // pred_region
          _
        $region36: #{decoder_forward_pallas.1} parent=11 // pred_fallthru
          _
        // Predicated region
        $region37: #{decoder_forward_pallas.1} parent=11 // pred_check
          %p633 = pneg %p259
        $region38: #{decoder_forward_pallas.1} parent=11 // pred_check_branch
          %635 = sbr.rel (%p633) target = $region40
        $region39: #{decoder_forward_pallas.1} parent=11 // pred_region
          _
        $region40: #{decoder_forward_pallas.1} parent=11 // pred_fallthru
          _
        // Predicated region
        $region41: #{decoder_forward_pallas.1} parent=11 // pred_check
          %p636 = pneg %p280
        $region42: #{decoder_forward_pallas.1} parent=11 // pred_check_branch
          %638 = sbr.rel (%p636) target = $region44
        $region43: #{decoder_forward_pallas.1} parent=11 // pred_region
          _
        $region44: #{decoder_forward_pallas.1} parent=11 // pred_fallthru
          _
        // Predicated region
        $region45: #{decoder_forward_pallas.1} parent=11 // pred_check
          %p639 = pneg %p301
        $region46: #{decoder_forward_pallas.1} parent=11 // pred_check_branch
          %641 = sbr.rel (%p639) target = $region48
        $region47: #{decoder_forward_pallas.1} parent=11 // pred_region
          _
        $region48: #{decoder_forward_pallas.1} parent=11 // pred_fallthru
          _
        // Predicated region
        $region49: #{decoder_forward_pallas.1} parent=11 // pred_check
          %p642 = pneg %p322
        $region50: #{decoder_forward_pallas.1} parent=11 // pred_check_branch
          %644 = sbr.rel (%p642) target = $region52
        $region51: #{decoder_forward_pallas.1} parent=11 // pred_region
          _
        $region52: #{decoder_forward_pallas.1} parent=11 // pred_fallthru
          _
        // Predicated region
        $region53: #{decoder_forward_pallas.1} parent=11 // pred_check
          %p645 = pneg %p343
        $region54: #{decoder_forward_pallas.1} parent=11 // pred_check_branch
          %647 = sbr.rel (%p645) target = $region56
        $region55: #{decoder_forward_pallas.1} parent=11 // pred_region
          _
        $region56: #{decoder_forward_pallas.1} parent=11 // pred_fallthru
          _
        // Predicated region
        $region57: #{decoder_forward_pallas.1} parent=11 // pred_check
          %p648 = pneg %p364
        $region58: #{decoder_forward_pallas.1} parent=11 // pred_check_branch
          %650 = sbr.rel (%p648) target = $region60
        $region59: #{decoder_forward_pallas.1} parent=11 // pred_region
          _
        $region60: #{decoder_forward_pallas.1} parent=11 // pred_fallthru
          _
        // Predicated region
        $region61: #{decoder_forward_pallas.1} parent=11 // pred_check
          %p651 = pneg %p385
        $region62: #{decoder_forward_pallas.1} parent=11 // pred_check_branch
          %653 = sbr.rel (%p651) target = $region64
        $region63: #{decoder_forward_pallas.1} parent=11 // pred_region
          _
        $region64: #{decoder_forward_pallas.1} parent=11 // pred_fallthru
          _
        // Predicated region
        $region65: #{decoder_forward_pallas.1} parent=11 // pred_check
          %p654 = pneg %p406
        $region66: #{decoder_forward_pallas.1} parent=11 // pred_check_branch
          %656 = sbr.rel (%p654) target = $region68
        $region67: #{decoder_forward_pallas.1} parent=11 // pred_region
          _
        $region68: #{decoder_forward_pallas.1} parent=11 // pred_fallthru
          _
        // Predicated region
        $region69: #{decoder_forward_pallas.1} parent=11 // pred_check
          %p657 = pneg %p427
        $region70: #{decoder_forward_pallas.1} parent=11 // pred_check_branch
          %659 = sbr.rel (%p657) target = $region72
        $region71: #{decoder_forward_pallas.1} parent=11 // pred_region
          _
        $region72: #{decoder_forward_pallas.1} parent=11 // pred_fallthru
          _
        // Predicated region
        $region73: #{decoder_forward_pallas.1} parent=11 // pred_check
          %p660 = pneg %p448
        $region74: #{decoder_forward_pallas.1} parent=11 // pred_check_branch
          %662 = sbr.rel (%p660) target = $region76
        $region75: #{decoder_forward_pallas.1} parent=11 // pred_region
          _
        $region76: #{decoder_forward_pallas.1} parent=11 // pred_fallthru
          _
        // Predicated region
        $region77: #{decoder_forward_pallas.1} parent=11 // pred_check
          %p663 = pneg %p469
        $region78: #{decoder_forward_pallas.1} parent=11 // pred_check_branch
          %665 = sbr.rel (%p663) target = $region80
        $region79: #{decoder_forward_pallas.1} parent=11 // pred_region
          _
        $region80: #{decoder_forward_pallas.1} parent=11 // pred_fallthru
          _
        // Predicated region
        $region81: #{decoder_forward_pallas.1} parent=11 // pred_check
          %p666 = pneg %p490
        $region82: #{decoder_forward_pallas.1} parent=11 // pred_check_branch
          %668 = sbr.rel (%p666) target = $region84
        $region83: #{decoder_forward_pallas.1} parent=11 // pred_region
          _
        $region84: #{decoder_forward_pallas.1} parent=11 // pred_fallthru
          _
        // Predicated region
        $region85: #{decoder_forward_pallas.1} parent=11 // pred_check
          %p669 = pneg %p511
        $region86: #{decoder_forward_pallas.1} parent=11 // pred_check_branch
          %671 = sbr.rel (%p669) target = $region88
        $region87: #{decoder_forward_pallas.1} parent=11 // pred_region
          _
        $region88: #{decoder_forward_pallas.1} parent=11 // pred_fallthru
          _
        // Predicated region
        $region89: #{decoder_forward_pallas.1} parent=11 // pred_check
          %p672 = pneg %p532
        $region90: #{decoder_forward_pallas.1} parent=11 // pred_check_branch
          %674 = sbr.rel (%p672) target = $region92
        $region91: #{decoder_forward_pallas.1} parent=11 // pred_region
          _
        $region92: #{decoder_forward_pallas.1} parent=11 // pred_fallthru
          _
        // Predicated region
        $region93: #{decoder_forward_pallas.1} parent=11 // pred_check
          %p675 = pneg %p553
        $region94: #{decoder_forward_pallas.1} parent=11 // pred_check_branch
          %677 = sbr.rel (%p675) target = $region96
        $region95: #{decoder_forward_pallas.1} parent=11 // pred_region
          _
        $region96: #{decoder_forward_pallas.1} parent=11 // pred_fallthru
          _
        // Predicated region
        $region97: #{decoder_forward_pallas.1} parent=11 // pred_check
          %p678 = pneg %p574
        $region98: #{decoder_forward_pallas.1} parent=11 // pred_check_branch
          %680 = sbr.rel (%p678) target = $region100
        $region99: #{decoder_forward_pallas.1} parent=11 // pred_region
          _
        $region100: #{decoder_forward_pallas.1} parent=11 // pred_fallthru
          _
      $region12: #{decoder_forward_pallas.1} parent=5 // pred_fallthru
        _
      %p681 = scmp.lt.s32.totalorder %s34, 2
      // Predicated region
      $region101: #{decoder_forward_pallas.1} parent=5 // pred_check
        %p682 = pneg %p681
      $region102: #{decoder_forward_pallas.1} parent=5 // pred_check_branch
        %684 = sbr.rel (%p682) target = $region104
      $region103: #{decoder_forward_pallas.1} parent=5 // pred_region
        // Predicated region
        $region105: #{decoder_forward_pallas.1} parent=103 // pred_check
          %p685 = pneg %p54
        $region106: #{decoder_forward_pallas.1} parent=103 // pred_check_branch
          %687 = sbr.rel (%p685) target = $region108
        $region107: #{decoder_forward_pallas.1} parent=103 // pred_region
          %p688 = scmp.lt.s32.totalorder %s34, 1
          %s689 = scalar_select %p688, %s34, 1
          %s690 = smul.addr %s689, 8
          %s691 = scalar_lea.vmem %s0, %s690
        $region108: #{decoder_forward_pallas.1} parent=103 // pred_fallthru
          _
        // Predicated region
        $region109: #{decoder_forward_pallas.1} parent=103 // pred_check
          %p692 = pneg %p80
        $region110: #{decoder_forward_pallas.1} parent=103 // pred_check_branch
          %694 = sbr.rel (%p692) target = $region112
        $region111: #{decoder_forward_pallas.1} parent=103 // pred_region
          %p695 = scmp.lt.s32.totalorder %s34, 1
          %s696 = scalar_select %p695, %s34, 1
          %s697 = smul.addr %s696, 2
          %s698 = smul.addr %s697, 8
          %s699 = scalar_lea.vmem %s1, %s698
        $region112: #{decoder_forward_pallas.1} parent=103 // pred_fallthru
          _
        // Predicated region
        $region113: #{decoder_forward_pallas.1} parent=103 // pred_check
          %p700 = pneg %p106
        $region114: #{decoder_forward_pallas.1} parent=103 // pred_check_branch
          %702 = sbr.rel (%p700) target = $region116
        $region115: #{decoder_forward_pallas.1} parent=103 // pred_region
          %p703 = scmp.lt.s32.totalorder %s34, 1
          %s704 = scalar_select %p703, %s34, 1
          %s705 = smul.addr %s704, 8
          %s706 = scalar_lea.vmem %s2, %s705
        $region116: #{decoder_forward_pallas.1} parent=103 // pred_fallthru
          _
      $region104: #{decoder_forward_pallas.1} parent=5 // pred_fallthru
        _
      %p707 = scmp.le.s32.totalorder 1, %s34
      %p708 = scmp.lt.s32.totalorder %s34, 3
      %p709 = pnand %p707, %p708
      %p710 = pneg %p709
      // Predicated region
      $region117: #{decoder_forward_pallas.1} parent=5 // pred_check
        _
      $region118: #{decoder_forward_pallas.1} parent=5 // pred_check_branch
        %712 = sbr.rel (%p709) target = $region120
      $region119: #{decoder_forward_pallas.1} parent=5 // pred_region
        %s713 = ssub.s32 %s34, 1
        %p714 = scmp.lt.s32.totalorder %s39, 1
        %s715 = scalar_select %p714, %s39, 1
        %s716 = smul.addr %s715, 8
        %s717 = scalar_lea.vmem %s0, %s716
        %p718 = pneg %p60
        %p719 = pneg %p57
        %p720 = scmp.lt.s32.totalorder %s39, 1
        %s721 = scalar_select %p720, %s39, 1
        %s722 = smul.addr %s721, 2
        %s723 = smul.addr %s722, 8
        %s724 = scalar_lea.vmem %s1, %s723
        %p725 = pneg %p86
        %p726 = pneg %p83
        %p727 = scmp.lt.s32.totalorder %s39, 1
        %s728 = scalar_select %p727, %s39, 1
        %s729 = smul.addr %s728, 8
        %s730 = scalar_lea.vmem %s2, %s729
        %p731 = pneg %p112
        %p732 = pneg %p109
        %p733 = pneg %p133
        %p734 = pneg %p130
        %p735 = pneg %p154
        %p736 = pneg %p151
        %p737 = pneg %p175
        %p738 = pneg %p172
        %p739 = pneg %p196
        %p740 = pneg %p193
        %p741 = pneg %p217
        %p742 = pneg %p214
        %p743 = pneg %p238
        %p744 = pneg %p235
        %p745 = pneg %p259
        %p746 = pneg %p256
        %p747 = pneg %p280
        %p748 = pneg %p277
        %p749 = pneg %p301
        %p750 = pneg %p298
        %p751 = pneg %p322
        %p752 = pneg %p319
        %p753 = pneg %p343
        %p754 = pneg %p340
        %p755 = pneg %p364
        %p756 = pneg %p361
        %p757 = pneg %p385
        %p758 = pneg %p382
        %p759 = pneg %p406
        %p760 = pneg %p403
        %p761 = pneg %p427
        %p762 = pneg %p424
        %p763 = pneg %p448
        %p764 = pneg %p445
        %p765 = pneg %p469
        %p766 = pneg %p466
        %p767 = pneg %p490
        %p768 = pneg %p487
        %p769 = pneg %p511
        %p770 = pneg %p508
        %p771 = pneg %p532
        %p772 = pneg %p529
        %p773 = pneg %p553
        %p774 = pneg %p550
        %p775 = pneg %p574
        %p776 = pneg %p571
        %p777 = pneg %p600
        %p778 = pneg %p597
        %s779 = sand.u32 %s587, 1
        %s780 = scalar_lea.sflag [#allocation3], %s779
        %s781 = sand.u32 %s587, 1
        %s782 = smul.addr %s781, 8
        %s783 = scalar_lea.vmem [#allocation2], %s782
        %p784 = scmp.lt.s32.totalorder %s39, 1
        %s785 = scalar_select %p784, %s39, 1
        %s786 = smul.addr %s785, 8
        %s787 = scalar_lea.vmem %s0, %s786
        %p788 = scmp.lt.s32.totalorder %s39, 1
        %s789 = scalar_select %p788, %s39, 1
        %s790 = smul.addr %s789, 2
        %s791 = smul.addr %s790, 8
        %s792 = scalar_lea.vmem %s1, %s791
        %p793 = scmp.lt.s32.totalorder %s39, 1
        %s794 = scalar_select %p793, %s39, 1
        %s795 = smul.addr %s794, 8
        %s796 = scalar_lea.vmem %s2, %s795
        %v797 = vld [vmem:[%s787] sm:$0xff]
        %v798 = vld [vmem:[%s792] sm:$0xff]
        %v799 = vld [vmem:[%s792 + $0x8] sm:$0xff]
        %v800 = vld [vmem:[%s796] sm:$0xff]
        %v801 = vld [vmem:[%s3] sm:$0xff]
        %v802 = vld [vmem:[%s3 + $0x8] sm:$0xff]
        %v803 = vld [vmem:[%s3 + $0x10] sm:$0xff]
        %v804 = vld [vmem:[%s3 + $0x18] sm:$0xff]
        %v805 = vld [vmem:[%s4] sm:$0x1]
        %v807 = vlaneseq
        %v808 = vshrl.u32 %v807, 7
        %v809 = vsub.s32 0, %v808
        %v810 = vrot.slane %v805, %v809
        %vm812 = vcmask 261120
        %v814 = vsel %vm812, %v797, 0
        %816 = vmatprep.subr.mxu0 0.0
        %817 = vmatpush1.msra.mxu0 %v801
        %818 = vmatprep.subr.mxu0 0.0
        %819 = vmatpush1.msra.mxu0 %v802
        %820 = vmatprep.subr.mxu0 0.0
        %821 = vmatpush1.msra.mxu0 %v803
        %822 = vmatprep.subr.mxu0 0.0
        %823 = vmatpush1.msra.mxu0 %v804
        %824 = vmatprep.subr.mxu0 0.0
        %825 = vmatpush1.msra.mxu0 0.0
        %826 = vmatprep.subr.mxu0 0.0
        %827 = vmatpush1.msra.mxu0 0.0
        %828 = vmatprep.subr.mxu0 0.0
        %829 = vmatpush1.msra.mxu0 0.0
        %830 = vmatprep.subr.mxu0 0.0
        %831 = vmatpush1.msra.mxu0 0.0
        %832 = vmatprep.subr.mxu0 0.0
        %833 = vmatpush1.msra.mxu0 0.0
        %834 = vmatprep.subr.mxu0 0.0
        %835 = vmatpush1.msra.mxu0 0.0
        %836 = vmatprep.subr.mxu0 0.0
        %837 = vmatpush1.msra.mxu0 0.0
        %838 = vmatprep.subr.mxu0 0.0
        %839 = vmatpush1.msra.mxu0 0.0
        %840 = vmatprep.subr.mxu0 0.0
        %841 = vmatpush1.msra.mxu0 0.0
        %842 = vmatprep.subr.mxu0 0.0
        %843 = vmatpush1.msra.mxu0 0.0
        %844 = vmatprep.subr.mxu0 0.0
        %845 = vmatpush1.msra.mxu0 0.0
        %846 = vmatprep.subr.mxu0 0.0
        %847 = vmatpush1.msra.mxu0 0.0
        %848 = vmatprep.subr.mxu0 0.0
        %849 = vmatpush1.msra.mxu0 0.0
        %850 = vmatprep.subr.mxu0 0.0
        %851 = vmatpush1.msra.mxu0 0.0
        %852 = vmatprep.subr.mxu0 0.0
        %853 = vmatpush1.msra.mxu0 0.0
        %854 = vmatprep.subr.mxu0 0.0
        %855 = vmatpush1.msra.mxu0 0.0
        %856 = vmatprep.subr.mxu0 0.0
        %857 = vmatpush1.msra.mxu0 0.0
        %858 = vmatprep.subr.mxu0 0.0
        %859 = vmatpush1.msra.mxu0 0.0
        %860 = vmatprep.subr.mxu0 0.0
        %861 = vmatpush1.msra.mxu0 0.0
        %862 = vmatprep.subr.mxu0 0.0
        %863 = vmatpush1.msra.mxu0 0.0
        %864 = vmatprep.subr.mxu0 0.0
        %865 = vmatpush1.msra.mxu0 0.0
        %866 = vmatprep.subr.mxu0 0.0
        %867 = vmatpush1.msra.mxu0 0.0
        %868 = vmatprep.subr.mxu0 0.0
        %869 = vmatpush1.msra.mxu0 0.0
        %870 = vmatprep.subr.mxu0 0.0
        %871 = vmatpush1.msra.mxu0 0.0
        %872 = vmatprep.subr.mxu0 0.0
        %873 = vmatpush1.msra.mxu0 0.0
        %874 = vmatprep.subr.mxu0 0.0
        %875 = vmatpush1.msra.mxu0 0.0
        %876 = vmatprep.subr.mxu0 0.0
        %877 = vmatpush1.msra.mxu0 0.0
        %878 = vmatprep.subr.mxu0 0.0
        %879 = vmatpush1.msra.mxu0 0.0
        %880 = vmatprep.mubr.f32.mxu0 0.0
        %881 = vmatmul.mubr.f32.gmra.mrb[0].mxu0 %v814
        %v882 = vpop.f32.mrb[0].mxu0
        %v883 = vadd.f32 %v810, %v882
        %v884 = vpop.f32.mrb[0].mxu0
        %885 = vdwg.mxu0
        %v886 = vmul.f32 %v883, 0.35355338
        %888 = vrot.lane.b32.xlu0 %v883, 96
        %v889 = vpop.permute.xlu0 %888
        %vm890 = vcmask 64512
        %v892 = vsel %vm890, %v886, 0
        %v894 = vsel %vm890, %v889, 0
        %896 = vmatprep.subr.mxu0 0.0
        %897 = vmatpush1.xpose.msra.mxu0 %v894
        %898 = vmatprep.subr.mxu0 0.0
        %899 = vmatpush1.xpose.msra.mxu0 0.0
        %900 = vmatprep.subr.mxu0 0.0
        %901 = vmatpush1.xpose.msra.mxu0 0.0
        %902 = vmatprep.subr.mxu0 0.0
        %903 = vmatpush1.xpose.msra.mxu0 0.0
        %904 = vmatprep.subr.mxu0 0.0
        %905 = vmatpush1.xpose.msra.mxu0 0.0
        %906 = vmatprep.subr.mxu0 0.0
        %907 = vmatpush1.xpose.msra.mxu0 0.0
        %908 = vmatprep.subr.mxu0 0.0
        %909 = vmatpush1.xpose.msra.mxu0 0.0
        %910 = vmatprep.subr.mxu0 0.0
        %911 = vmatpush1.xpose.msra.mxu0 0.0
        %912 = vmatprep.subr.mxu0 0.0
        %913 = vmatpush1.xpose.msra.mxu0 0.0
        %914 = vmatprep.subr.mxu0 0.0
        %915 = vmatpush1.xpose.msra.mxu0 0.0
        %916 = vmatprep.subr.mxu0 0.0
        %917 = vmatpush1.xpose.msra.mxu0 0.0
        %918 = vmatprep.subr.mxu0 0.0
        %919 = vmatpush1.xpose.msra.mxu0 0.0
        %920 = vmatprep.subr.mxu0 0.0
        %921 = vmatpush1.xpose.msra.mxu0 0.0
        %922 = vmatprep.subr.mxu0 0.0
        %923 = vmatpush1.xpose.msra.mxu0 0.0
        %924 = vmatprep.subr.mxu0 0.0
        %925 = vmatpush1.xpose.msra.mxu0 0.0
        %926 = vmatprep.subr.mxu0 0.0
        %927 = vmatpush1.xpose.msra.mxu0 0.0
        %928 = vmatprep.subr.mxu0 0.0
        %929 = vmatpush1.xpose.msra.mxu0 0.0
        %930 = vmatprep.subr.mxu0 0.0
        %931 = vmatpush1.xpose.msra.mxu0 0.0
        %932 = vmatprep.subr.mxu0 0.0
        %933 = vmatpush1.xpose.msra.mxu0 0.0
        %934 = vmatprep.subr.mxu0 0.0
        %935 = vmatpush1.xpose.msra.mxu0 0.0
        %936 = vmatprep.subr.mxu0 0.0
        %937 = vmatpush1.xpose.msra.mxu0 0.0
        %938 = vmatprep.subr.mxu0 0.0
        %939 = vmatpush1.xpose.msra.mxu0 0.0
        %940 = vmatprep.subr.mxu0 0.0
        %941 = vmatpush1.xpose.msra.mxu0 0.0
        %942 = vmatprep.subr.mxu0 0.0
        %943 = vmatpush1.xpose.msra.mxu0 0.0
        %944 = vmatprep.subr.mxu0 0.0
        %945 = vmatpush1.xpose.msra.mxu0 0.0
        %946 = vmatprep.subr.mxu0 0.0
        %947 = vmatpush1.xpose.msra.mxu0 0.0
        %948 = vmatprep.subr.mxu0 0.0
        %949 = vmatpush1.xpose.msra.mxu0 0.0
        %950 = vmatprep.subr.mxu0 0.0
        %951 = vmatpush1.xpose.msra.mxu0 0.0
        %952 = vmatprep.subr.mxu0 0.0
        %953 = vmatpush1.xpose.msra.mxu0 0.0
        %954 = vmatprep.subr.mxu0 0.0
        %955 = vmatpush1.xpose.msra.mxu0 0.0
        %956 = vmatprep.subr.mxu0 0.0
        %957 = vmatpush1.xpose.msra.mxu0 0.0
        %958 = vmatprep.subr.mxu0 0.0
        %959 = vmatpush1.xpose.msra.mxu0 0.0
        %960 = vmatprep.mubr.f32.mxu0 0.0
        %961 = vmatmul.mubr.f32.gmra.mrb[0].mxu0 %v892
        %v962 = vpop.f32.mrb[0].mxu0
        %v963 = vadd.f32 %v800, %v962
        %v964 = vpop.f32.mrb[0].mxu0
        %965 = vdwg.mxu0
        %v966 = vsel %vm890, %v963, -inf
        %967 = vmax.xlane.f32.xlu0 %v966
        %v968 = vpop.xlane.xlu0 %967
        %v969 = vsub.f32 %v963, %v968
        %v970 = vmul.f32 %v969, 1.442695
        %v971 = vpow.pop %v970
        %v972 = vsel %vm890, %v971, 0.0
        %973 = vadd.xlane.f32.xlu0 %v972
        %v974 = vpop.xlane.xlu0 %973
        %v975 = vrcp.pop %v974
        %v976 = vmul.f32 %v971, %v975
        %977 = vrot.lane.b32.xlu0 %v883, 64
        %v978 = vpop.permute.xlu0 %977
        %v981 = vsel %vm890, %v976, 0
        %983 = vmatprep.subr.mxu0 0.0
        %984 = vmatpush1.msra.mxu0 %v978
        %985 = vmatprep.subr.mxu0 0.0
        %986 = vmatpush1.msra.mxu0 0.0
        %987 = vmatprep.subr.mxu0 0.0
        %988 = vmatpush1.msra.mxu0 0.0
        %989 = vmatprep.subr.mxu0 0.0
        %990 = vmatpush1.msra.mxu0 0.0
        %991 = vmatprep.subr.mxu0 0.0
        %992 = vmatpush1.msra.mxu0 0.0
        %993 = vmatprep.subr.mxu0 0.0
        %994 = vmatpush1.msra.mxu0 0.0
        %995 = vmatprep.subr.mxu0 0.0
        %996 = vmatpush1.msra.mxu0 0.0
        %997 = vmatprep.subr.mxu0 0.0
        %998 = vmatpush1.msra.mxu0 0.0
        %999 = vmatprep.subr.mxu0 0.0
        %1000 = vmatpush1.msra.mxu0 0.0
        %1001 = vmatprep.subr.mxu0 0.0
        %1002 = vmatpush1.msra.mxu0 0.0
        %1003 = vmatprep.subr.mxu0 0.0
        %1004 = vmatpush1.msra.mxu0 0.0
        %1005 = vmatprep.subr.mxu0 0.0
        %1006 = vmatpush1.msra.mxu0 0.0
        %1007 = vmatprep.subr.mxu0 0.0
        %1008 = vmatpush1.msra.mxu0 0.0
        %1009 = vmatprep.subr.mxu0 0.0
        %1010 = vmatpush1.msra.mxu0 0.0
        %1011 = vmatprep.subr.mxu0 0.0
        %1012 = vmatpush1.msra.mxu0 0.0
        %1013 = vmatprep.subr.mxu0 0.0
        %1014 = vmatpush1.msra.mxu0 0.0
        %1015 = vmatprep.subr.mxu0 0.0
        %1016 = vmatpush1.msra.mxu0 0.0
        %1017 = vmatprep.subr.mxu0 0.0
        %1018 = vmatpush1.msra.mxu0 0.0
        %1019 = vmatprep.subr.mxu0 0.0
        %1020 = vmatpush1.msra.mxu0 0.0
        %1021 = vmatprep.subr.mxu0 0.0
        %1022 = vmatpush1.msra.mxu0 0.0
        %1023 = vmatprep.subr.mxu0 0.0
        %1024 = vmatpush1.msra.mxu0 0.0
        %1025 = vmatprep.subr.mxu0 0.0
        %1026 = vmatpush1.msra.mxu0 0.0
        %1027 = vmatprep.subr.mxu0 0.0
        %1028 = vmatpush1.msra.mxu0 0.0
        %1029 = vmatprep.subr.mxu0 0.0
        %1030 = vmatpush1.msra.mxu0 0.0
        %1031 = vmatprep.subr.mxu0 0.0
        %1032 = vmatpush1.msra.mxu0 0.0
        %1033 = vmatprep.subr.mxu0 0.0
        %1034 = vmatpush1.msra.mxu0 0.0
        %1035 = vmatprep.subr.mxu0 0.0
        %1036 = vmatpush1.msra.mxu0 0.0
        %1037 = vmatprep.subr.mxu0 0.0
        %1038 = vmatpush1.msra.mxu0 0.0
        %1039 = vmatprep.subr.mxu0 0.0
        %1040 = vmatpush1.msra.mxu0 0.0
        %1041 = vmatprep.subr.mxu0 0.0
        %1042 = vmatpush1.msra.mxu0 0.0
        %1043 = vmatprep.subr.mxu0 0.0
        %1044 = vmatpush1.msra.mxu0 0.0
        %1045 = vmatprep.subr.mxu0 0.0
        %1046 = vmatpush1.msra.mxu0 0.0
        %1047 = vmatprep.mubr.f32.mxu0 0.0
        %1048 = vmatmul.mubr.f32.gmra.mrb[0].mxu0 %v981
        %v1049 = vpop.f32.mrb[0].mxu0
        %v1050 = vadd.f32 0.0, %v1049
        %v1051 = vpop.f32.mrb[0].mxu0
        %1052 = vdwg.mxu0
        %1053 = vrot.lane.b32.xlu0 %v886, 120
        %v1054 = vpop.permute.xlu0 %1053
        %1055 = vrot.lane.b32.xlu0 %v883, 88
        %v1056 = vpop.permute.xlu0 %1055
        %v1057 = vsel %vm890, %v1054, 0
        %v1059 = vsel %vm890, %v1056, 0
        %1061 = vmatprep.subr.mxu0 0.0
        %1062 = vmatpush1.xpose.msra.mxu0 %v1059
        %1063 = vmatprep.subr.mxu0 0.0
        %1064 = vmatpush1.xpose.msra.mxu0 0.0
        %1065 = vmatprep.subr.mxu0 0.0
        %1066 = vmatpush1.xpose.msra.mxu0 0.0
        %1067 = vmatprep.subr.mxu0 0.0
        %1068 = vmatpush1.xpose.msra.mxu0 0.0
        %1069 = vmatprep.subr.mxu0 0.0
        %1070 = vmatpush1.xpose.msra.mxu0 0.0
        %1071 = vmatprep.subr.mxu0 0.0
        %1072 = vmatpush1.xpose.msra.mxu0 0.0
        %1073 = vmatprep.subr.mxu0 0.0
        %1074 = vmatpush1.xpose.msra.mxu0 0.0
        %1075 = vmatprep.subr.mxu0 0.0
        %1076 = vmatpush1.xpose.msra.mxu0 0.0
        %1077 = vmatprep.subr.mxu0 0.0
        %1078 = vmatpush1.xpose.msra.mxu0 0.0
        %1079 = vmatprep.subr.mxu0 0.0
        %1080 = vmatpush1.xpose.msra.mxu0 0.0
        %1081 = vmatprep.subr.mxu0 0.0
        %1082 = vmatpush1.xpose.msra.mxu0 0.0
        %1083 = vmatprep.subr.mxu0 0.0
        %1084 = vmatpush1.xpose.msra.mxu0 0.0
        %1085 = vmatprep.subr.mxu0 0.0
        %1086 = vmatpush1.xpose.msra.mxu0 0.0
        %1087 = vmatprep.subr.mxu0 0.0
        %1088 = vmatpush1.xpose.msra.mxu0 0.0
        %1089 = vmatprep.subr.mxu0 0.0
        %1090 = vmatpush1.xpose.msra.mxu0 0.0
        %1091 = vmatprep.subr.mxu0 0.0
        %1092 = vmatpush1.xpose.msra.mxu0 0.0
        %1093 = vmatprep.subr.mxu0 0.0
        %1094 = vmatpush1.xpose.msra.mxu0 0.0
        %1095 = vmatprep.subr.mxu0 0.0
        %1096 = vmatpush1.xpose.msra.mxu0 0.0
        %1097 = vmatprep.subr.mxu0 0.0
        %1098 = vmatpush1.xpose.msra.mxu0 0.0
        %1099 = vmatprep.subr.mxu0 0.0
        %1100 = vmatpush1.xpose.msra.mxu0 0.0
        %1101 = vmatprep.subr.mxu0 0.0
        %1102 = vmatpush1.xpose.msra.mxu0 0.0
        %1103 = vmatprep.subr.mxu0 0.0
        %1104 = vmatpush1.xpose.msra.mxu0 0.0
        %1105 = vmatprep.subr.mxu0 0.0
        %1106 = vmatpush1.xpose.msra.mxu0 0.0
        %1107 = vmatprep.subr.mxu0 0.0
        %1108 = vmatpush1.xpose.msra.mxu0 0.0
        %1109 = vmatprep.subr.mxu0 0.0
        %1110 = vmatpush1.xpose.msra.mxu0 0.0
        %1111 = vmatprep.subr.mxu0 0.0
        %1112 = vmatpush1.xpose.msra.mxu0 0.0
        %1113 = vmatprep.subr.mxu0 0.0
        %1114 = vmatpush1.xpose.msra.mxu0 0.0
        %1115 = vmatprep.subr.mxu0 0.0
        %1116 = vmatpush1.xpose.msra.mxu0 0.0
        %1117 = vmatprep.subr.mxu0 0.0
        %1118 = vmatpush1.xpose.msra.mxu0 0.0
        %1119 = vmatprep.subr.mxu0 0.0
        %1120 = vmatpush1.xpose.msra.mxu0 0.0
        %1121 = vmatprep.subr.mxu0 0.0
        %1122 = vmatpush1.xpose.msra.mxu0 0.0
        %1123 = vmatprep.subr.mxu0 0.0
        %1124 = vmatpush1.xpose.msra.mxu0 0.0
        %1125 = vmatprep.mubr.f32.mxu0 0.0
        %1126 = vmatmul.mubr.f32.gmra.mrb[0].mxu0 %v1057
        %v1127 = vpop.f32.mrb[0].mxu0
        %v1128 = vadd.f32 %v800, %v1127
        %v1129 = vpop.f32.mrb[0].mxu0
        %1130 = vdwg.mxu0
        %v1131 = vsel %vm890, %v1128, -inf
        %1132 = vmax.xlane.f32.xlu0 %v1131
        %v1133 = vpop.xlane.xlu0 %1132
        %v1134 = vsub.f32 %v1128, %v1133
        %v1135 = vmul.f32 %v1134, 1.442695
        %v1136 = vpow.pop %v1135
        %v1137 = vsel %vm890, %v1136, 0.0
        %1138 = vadd.xlane.f32.xlu0 %v1137
        %v1139 = vpop.xlane.xlu0 %1138
        %v1140 = vrcp.pop %v1139
        %v1141 = vmul.f32 %v1136, %v1140
        %1142 = vrot.lane.b32.xlu0 %v883, 56
        %v1143 = vpop.permute.xlu0 %1142
        %v1146 = vsel %vm890, %v1141, 0
        %1148 = vmatprep.subr.mxu0 0.0
        %1149 = vmatpush1.msra.mxu0 %v1143
        %1150 = vmatprep.subr.mxu0 0.0
        %1151 = vmatpush1.msra.mxu0 0.0
        %1152 = vmatprep.subr.mxu0 0.0
        %1153 = vmatpush1.msra.mxu0 0.0
        %1154 = vmatprep.subr.mxu0 0.0
        %1155 = vmatpush1.msra.mxu0 0.0
        %1156 = vmatprep.subr.mxu0 0.0
        %1157 = vmatpush1.msra.mxu0 0.0
        %1158 = vmatprep.subr.mxu0 0.0
        %1159 = vmatpush1.msra.mxu0 0.0
        %1160 = vmatprep.subr.mxu0 0.0
        %1161 = vmatpush1.msra.mxu0 0.0
        %1162 = vmatprep.subr.mxu0 0.0
        %1163 = vmatpush1.msra.mxu0 0.0
        %1164 = vmatprep.subr.mxu0 0.0
        %1165 = vmatpush1.msra.mxu0 0.0
        %1166 = vmatprep.subr.mxu0 0.0
        %1167 = vmatpush1.msra.mxu0 0.0
        %1168 = vmatprep.subr.mxu0 0.0
        %1169 = vmatpush1.msra.mxu0 0.0
        %1170 = vmatprep.subr.mxu0 0.0
        %1171 = vmatpush1.msra.mxu0 0.0
        %1172 = vmatprep.subr.mxu0 0.0
        %1173 = vmatpush1.msra.mxu0 0.0
        %1174 = vmatprep.subr.mxu0 0.0
        %1175 = vmatpush1.msra.mxu0 0.0
        %1176 = vmatprep.subr.mxu0 0.0
        %1177 = vmatpush1.msra.mxu0 0.0
        %1178 = vmatprep.subr.mxu0 0.0
        %1179 = vmatpush1.msra.mxu0 0.0
        %1180 = vmatprep.subr.mxu0 0.0
        %1181 = vmatpush1.msra.mxu0 0.0
        %1182 = vmatprep.subr.mxu0 0.0
        %1183 = vmatpush1.msra.mxu0 0.0
        %1184 = vmatprep.subr.mxu0 0.0
        %1185 = vmatpush1.msra.mxu0 0.0
        %1186 = vmatprep.subr.mxu0 0.0
        %1187 = vmatpush1.msra.mxu0 0.0
        %1188 = vmatprep.subr.mxu0 0.0
        %1189 = vmatpush1.msra.mxu0 0.0
        %1190 = vmatprep.subr.mxu0 0.0
        %1191 = vmatpush1.msra.mxu0 0.0
        %1192 = vmatprep.subr.mxu0 0.0
        %1193 = vmatpush1.msra.mxu0 0.0
        %1194 = vmatprep.subr.mxu0 0.0
        %1195 = vmatpush1.msra.mxu0 0.0
        %1196 = vmatprep.subr.mxu0 0.0
        %1197 = vmatpush1.msra.mxu0 0.0
        %1198 = vmatprep.subr.mxu0 0.0
        %1199 = vmatpush1.msra.mxu0 0.0
        %1200 = vmatprep.subr.mxu0 0.0
        %1201 = vmatpush1.msra.mxu0 0.0
        %1202 = vmatprep.subr.mxu0 0.0
        %1203 = vmatpush1.msra.mxu0 0.0
        %1204 = vmatprep.subr.mxu0 0.0
        %1205 = vmatpush1.msra.mxu0 0.0
        %1206 = vmatprep.subr.mxu0 0.0
        %1207 = vmatpush1.msra.mxu0 0.0
        %1208 = vmatprep.subr.mxu0 0.0
        %1209 = vmatpush1.msra.mxu0 0.0
        %1210 = vmatprep.subr.mxu0 0.0
        %1211 = vmatpush1.msra.mxu0 0.0
        %1212 = vmatprep.mubr.f32.mxu0 0.0
        %1213 = vmatmul.mubr.f32.gmra.mrb[0].mxu0 %v1146
        %v1214 = vpop.f32.mrb[0].mxu0
        %v1215 = vadd.f32 0.0, %v1214
        %v1216 = vpop.f32.mrb[0].mxu0
        %1217 = vdwg.mxu0
        %1218 = vrot.lane.b32.xlu0 %v886, 112
        %v1219 = vpop.permute.xlu0 %1218
        %1220 = vrot.lane.b32.xlu0 %v883, 80
        %v1221 = vpop.permute.xlu0 %1220
        %v1222 = vsel %vm890, %v1219, 0
        %v1224 = vsel %vm890, %v1221, 0
        %1226 = vmatprep.subr.mxu0 0.0
        %1227 = vmatpush1.xpose.msra.mxu0 %v1224
        %1228 = vmatprep.subr.mxu0 0.0
        %1229 = vmatpush1.xpose.msra.mxu0 0.0
        %1230 = vmatprep.subr.mxu0 0.0
        %1231 = vmatpush1.xpose.msra.mxu0 0.0
        %1232 = vmatprep.subr.mxu0 0.0
        %1233 = vmatpush1.xpose.msra.mxu0 0.0
        %1234 = vmatprep.subr.mxu0 0.0
        %1235 = vmatpush1.xpose.msra.mxu0 0.0
        %1236 = vmatprep.subr.mxu0 0.0
        %1237 = vmatpush1.xpose.msra.mxu0 0.0
        %1238 = vmatprep.subr.mxu0 0.0
        %1239 = vmatpush1.xpose.msra.mxu0 0.0
        %1240 = vmatprep.subr.mxu0 0.0
        %1241 = vmatpush1.xpose.msra.mxu0 0.0
        %1242 = vmatprep.subr.mxu0 0.0
        %1243 = vmatpush1.xpose.msra.mxu0 0.0
        %1244 = vmatprep.subr.mxu0 0.0
        %1245 = vmatpush1.xpose.msra.mxu0 0.0
        %1246 = vmatprep.subr.mxu0 0.0
        %1247 = vmatpush1.xpose.msra.mxu0 0.0
        %1248 = vmatprep.subr.mxu0 0.0
        %1249 = vmatpush1.xpose.msra.mxu0 0.0
        %1250 = vmatprep.subr.mxu0 0.0
        %1251 = vmatpush1.xpose.msra.mxu0 0.0
        %1252 = vmatprep.subr.mxu0 0.0
        %1253 = vmatpush1.xpose.msra.mxu0 0.0
        %1254 = vmatprep.subr.mxu0 0.0
        %1255 = vmatpush1.xpose.msra.mxu0 0.0
        %1256 = vmatprep.subr.mxu0 0.0
        %1257 = vmatpush1.xpose.msra.mxu0 0.0
        %1258 = vmatprep.subr.mxu0 0.0
        %1259 = vmatpush1.xpose.msra.mxu0 0.0
        %1260 = vmatprep.subr.mxu0 0.0
        %1261 = vmatpush1.xpose.msra.mxu0 0.0
        %1262 = vmatprep.subr.mxu0 0.0
        %1263 = vmatpush1.xpose.msra.mxu0 0.0
        %1264 = vmatprep.subr.mxu0 0.0
        %1265 = vmatpush1.xpose.msra.mxu0 0.0
        %1266 = vmatprep.subr.mxu0 0.0
        %1267 = vmatpush1.xpose.msra.mxu0 0.0
        %1268 = vmatprep.subr.mxu0 0.0
        %1269 = vmatpush1.xpose.msra.mxu0 0.0
        %1270 = vmatprep.subr.mxu0 0.0
        %1271 = vmatpush1.xpose.msra.mxu0 0.0
        %1272 = vmatprep.subr.mxu0 0.0
        %1273 = vmatpush1.xpose.msra.mxu0 0.0
        %1274 = vmatprep.subr.mxu0 0.0
        %1275 = vmatpush1.xpose.msra.mxu0 0.0
        %1276 = vmatprep.subr.mxu0 0.0
        %1277 = vmatpush1.xpose.msra.mxu0 0.0
        %1278 = vmatprep.subr.mxu0 0.0
        %1279 = vmatpush1.xpose.msra.mxu0 0.0
        %1280 = vmatprep.subr.mxu0 0.0
        %1281 = vmatpush1.xpose.msra.mxu0 0.0
        %1282 = vmatprep.subr.mxu0 0.0
        %1283 = vmatpush1.xpose.msra.mxu0 0.0
        %1284 = vmatprep.subr.mxu0 0.0
        %1285 = vmatpush1.xpose.msra.mxu0 0.0
        %1286 = vmatprep.subr.mxu0 0.0
        %1287 = vmatpush1.xpose.msra.mxu0 0.0
        %1288 = vmatprep.subr.mxu0 0.0
        %1289 = vmatpush1.xpose.msra.mxu0 0.0
        %1290 = vmatprep.mubr.f32.mxu0 0.0
        %1291 = vmatmul.mubr.f32.gmra.mrb[0].mxu0 %v1222
        %v1292 = vpop.f32.mrb[0].mxu0
        %v1293 = vadd.f32 %v800, %v1292
        %v1294 = vpop.f32.mrb[0].mxu0
        %1295 = vdwg.mxu0
        %v1296 = vsel %vm890, %v1293, -inf
        %1297 = vmax.xlane.f32.xlu0 %v1296
        %v1298 = vpop.xlane.xlu0 %1297
        %v1299 = vsub.f32 %v1293, %v1298
        %v1300 = vmul.f32 %v1299, 1.442695
        %v1301 = vpow.pop %v1300
        %v1302 = vsel %vm890, %v1301, 0.0
        %1303 = vadd.xlane.f32.xlu0 %v1302
        %v1304 = vpop.xlane.xlu0 %1303
        %v1305 = vrcp.pop %v1304
        %v1306 = vmul.f32 %v1301, %v1305
        %1307 = vrot.lane.b32.xlu0 %v883, 48
        %v1308 = vpop.permute.xlu0 %1307
        %v1311 = vsel %vm890, %v1306, 0
        %1313 = vmatprep.subr.mxu0 0.0
        %1314 = vmatpush1.msra.mxu0 %v1308
        %1315 = vmatprep.subr.mxu0 0.0
        %1316 = vmatpush1.msra.mxu0 0.0
        %1317 = vmatprep.subr.mxu0 0.0
        %1318 = vmatpush1.msra.mxu0 0.0
        %1319 = vmatprep.subr.mxu0 0.0
        %1320 = vmatpush1.msra.mxu0 0.0
        %1321 = vmatprep.subr.mxu0 0.0
        %1322 = vmatpush1.msra.mxu0 0.0
        %1323 = vmatprep.subr.mxu0 0.0
        %1324 = vmatpush1.msra.mxu0 0.0
        %1325 = vmatprep.subr.mxu0 0.0
        %1326 = vmatpush1.msra.mxu0 0.0
        %1327 = vmatprep.subr.mxu0 0.0
        %1328 = vmatpush1.msra.mxu0 0.0
        %1329 = vmatprep.subr.mxu0 0.0
        %1330 = vmatpush1.msra.mxu0 0.0
        %1331 = vmatprep.subr.mxu0 0.0
        %1332 = vmatpush1.msra.mxu0 0.0
        %1333 = vmatprep.subr.mxu0 0.0
        %1334 = vmatpush1.msra.mxu0 0.0
        %1335 = vmatprep.subr.mxu0 0.0
        %1336 = vmatpush1.msra.mxu0 0.0
        %1337 = vmatprep.subr.mxu0 0.0
        %1338 = vmatpush1.msra.mxu0 0.0
        %1339 = vmatprep.subr.mxu0 0.0
        %1340 = vmatpush1.msra.mxu0 0.0
        %1341 = vmatprep.subr.mxu0 0.0
        %1342 = vmatpush1.msra.mxu0 0.0
        %1343 = vmatprep.subr.mxu0 0.0
        %1344 = vmatpush1.msra.mxu0 0.0
        %1345 = vmatprep.subr.mxu0 0.0
        %1346 = vmatpush1.msra.mxu0 0.0
        %1347 = vmatprep.subr.mxu0 0.0
        %1348 = vmatpush1.msra.mxu0 0.0
        %1349 = vmatprep.subr.mxu0 0.0
        %1350 = vmatpush1.msra.mxu0 0.0
        %1351 = vmatprep.subr.mxu0 0.0
        %1352 = vmatpush1.msra.mxu0 0.0
        %1353 = vmatprep.subr.mxu0 0.0
        %1354 = vmatpush1.msra.mxu0 0.0
        %1355 = vmatprep.subr.mxu0 0.0
        %1356 = vmatpush1.msra.mxu0 0.0
        %1357 = vmatprep.subr.mxu0 0.0
        %1358 = vmatpush1.msra.mxu0 0.0
        %1359 = vmatprep.subr.mxu0 0.0
        %1360 = vmatpush1.msra.mxu0 0.0
        %1361 = vmatprep.subr.mxu0 0.0
        %1362 = vmatpush1.msra.mxu0 0.0
        %1363 = vmatprep.subr.mxu0 0.0
        %1364 = vmatpush1.msra.mxu0 0.0
        %1365 = vmatprep.subr.mxu0 0.0
        %1366 = vmatpush1.msra.mxu0 0.0
        %1367 = vmatprep.subr.mxu0 0.0
        %1368 = vmatpush1.msra.mxu0 0.0
        %1369 = vmatprep.subr.mxu0 0.0
        %1370 = vmatpush1.msra.mxu0 0.0
        %1371 = vmatprep.subr.mxu0 0.0
        %1372 = vmatpush1.msra.mxu0 0.0
        %1373 = vmatprep.subr.mxu0 0.0
        %1374 = vmatpush1.msra.mxu0 0.0
        %1375 = vmatprep.subr.mxu0 0.0
        %1376 = vmatpush1.msra.mxu0 0.0
        %1377 = vmatprep.mubr.f32.mxu0 0.0
        %1378 = vmatmul.mubr.f32.gmra.mrb[0].mxu0 %v1311
        %v1379 = vpop.f32.mrb[0].mxu0
        %v1380 = vadd.f32 0.0, %v1379
        %v1381 = vpop.f32.mrb[0].mxu0
        %1382 = vdwg.mxu0
        %1383 = vrot.lane.b32.xlu0 %v886, 104
        %v1384 = vpop.permute.xlu0 %1383
        %1385 = vrot.lane.b32.xlu0 %v883, 72
        %v1386 = vpop.permute.xlu0 %1385
        %v1387 = vsel %vm890, %v1384, 0
        %v1389 = vsel %vm890, %v1386, 0
        %1391 = vmatprep.subr.mxu0 0.0
        %1392 = vmatpush1.xpose.msra.mxu0 %v1389
        %1393 = vmatprep.subr.mxu0 0.0
        %1394 = vmatpush1.xpose.msra.mxu0 0.0
        %1395 = vmatprep.subr.mxu0 0.0
        %1396 = vmatpush1.xpose.msra.mxu0 0.0
        %1397 = vmatprep.subr.mxu0 0.0
        %1398 = vmatpush1.xpose.msra.mxu0 0.0
        %1399 = vmatprep.subr.mxu0 0.0
        %1400 = vmatpush1.xpose.msra.mxu0 0.0
        %1401 = vmatprep.subr.mxu0 0.0
        %1402 = vmatpush1.xpose.msra.mxu0 0.0
        %1403 = vmatprep.subr.mxu0 0.0
        %1404 = vmatpush1.xpose.msra.mxu0 0.0
        %1405 = vmatprep.subr.mxu0 0.0
        %1406 = vmatpush1.xpose.msra.mxu0 0.0
        %1407 = vmatprep.subr.mxu0 0.0
        %1408 = vmatpush1.xpose.msra.mxu0 0.0
        %1409 = vmatprep.subr.mxu0 0.0
        %1410 = vmatpush1.xpose.msra.mxu0 0.0
        %1411 = vmatprep.subr.mxu0 0.0
        %1412 = vmatpush1.xpose.msra.mxu0 0.0
        %1413 = vmatprep.subr.mxu0 0.0
        %1414 = vmatpush1.xpose.msra.mxu0 0.0
        %1415 = vmatprep.subr.mxu0 0.0
        %1416 = vmatpush1.xpose.msra.mxu0 0.0
        %1417 = vmatprep.subr.mxu0 0.0
        %1418 = vmatpush1.xpose.msra.mxu0 0.0
        %1419 = vmatprep.subr.mxu0 0.0
        %1420 = vmatpush1.xpose.msra.mxu0 0.0
        %1421 = vmatprep.subr.mxu0 0.0
        %1422 = vmatpush1.xpose.msra.mxu0 0.0
        %1423 = vmatprep.subr.mxu0 0.0
        %1424 = vmatpush1.xpose.msra.mxu0 0.0
        %1425 = vmatprep.subr.mxu0 0.0
        %1426 = vmatpush1.xpose.msra.mxu0 0.0
        %1427 = vmatprep.subr.mxu0 0.0
        %1428 = vmatpush1.xpose.msra.mxu0 0.0
        %1429 = vmatprep.subr.mxu0 0.0
        %1430 = vmatpush1.xpose.msra.mxu0 0.0
        %1431 = vmatprep.subr.mxu0 0.0
        %1432 = vmatpush1.xpose.msra.mxu0 0.0
        %1433 = vmatprep.subr.mxu0 0.0
        %1434 = vmatpush1.xpose.msra.mxu0 0.0
        %1435 = vmatprep.subr.mxu0 0.0
        %1436 = vmatpush1.xpose.msra.mxu0 0.0
        %1437 = vmatprep.subr.mxu0 0.0
        %1438 = vmatpush1.xpose.msra.mxu0 0.0
        %1439 = vmatprep.subr.mxu0 0.0
        %1440 = vmatpush1.xpose.msra.mxu0 0.0
        %1441 = vmatprep.subr.mxu0 0.0
        %1442 = vmatpush1.xpose.msra.mxu0 0.0
        %1443 = vmatprep.subr.mxu0 0.0
        %1444 = vmatpush1.xpose.msra.mxu0 0.0
        %1445 = vmatprep.subr.mxu0 0.0
        %1446 = vmatpush1.xpose.msra.mxu0 0.0
        %1447 = vmatprep.subr.mxu0 0.0
        %1448 = vmatpush1.xpose.msra.mxu0 0.0
        %1449 = vmatprep.subr.mxu0 0.0
        %1450 = vmatpush1.xpose.msra.mxu0 0.0
        %1451 = vmatprep.subr.mxu0 0.0
        %1452 = vmatpush1.xpose.msra.mxu0 0.0
        %1453 = vmatprep.subr.mxu0 0.0
        %1454 = vmatpush1.xpose.msra.mxu0 0.0
        %1455 = vmatprep.mubr.f32.mxu0 0.0
        %1456 = vmatmul.mubr.f32.gmra.mrb[0].mxu0 %v1387
        %v1457 = vpop.f32.mrb[0].mxu0
        %v1458 = vadd.f32 %v800, %v1457
        %v1459 = vpop.f32.mrb[0].mxu0
        %1460 = vdwg.mxu0
        %v1461 = vsel %vm890, %v1458, -inf
        %1462 = vmax.xlane.f32.xlu0 %v1461
        %v1463 = vpop.xlane.xlu0 %1462
        %v1464 = vsub.f32 %v1458, %v1463
        %v1465 = vmul.f32 %v1464, 1.442695
        %v1466 = vpow.pop %v1465
        %v1467 = vsel %vm890, %v1466, 0.0
        %1468 = vadd.xlane.f32.xlu0 %v1467
        %v1469 = vpop.xlane.xlu0 %1468
        %v1470 = vrcp.pop %v1469
        %v1471 = vmul.f32 %v1466, %v1470
        %1472 = vrot.lane.b32.xlu0 %v883, 40
        %v1473 = vpop.permute.xlu0 %1472
        %v1476 = vsel %vm890, %v1471, 0
        %1478 = vmatprep.subr.mxu0 0.0
        %1479 = vmatpush1.msra.mxu0 %v1473
        %1480 = vmatprep.subr.mxu0 0.0
        %1481 = vmatpush1.msra.mxu0 0.0
        %1482 = vmatprep.subr.mxu0 0.0
        %1483 = vmatpush1.msra.mxu0 0.0
        %1484 = vmatprep.subr.mxu0 0.0
        %1485 = vmatpush1.msra.mxu0 0.0
        %1486 = vmatprep.subr.mxu0 0.0
        %1487 = vmatpush1.msra.mxu0 0.0
        %1488 = vmatprep.subr.mxu0 0.0
        %1489 = vmatpush1.msra.mxu0 0.0
        %1490 = vmatprep.subr.mxu0 0.0
        %1491 = vmatpush1.msra.mxu0 0.0
        %1492 = vmatprep.subr.mxu0 0.0
        %1493 = vmatpush1.msra.mxu0 0.0
        %1494 = vmatprep.subr.mxu0 0.0
        %1495 = vmatpush1.msra.mxu0 0.0
        %1496 = vmatprep.subr.mxu0 0.0
        %1497 = vmatpush1.msra.mxu0 0.0
        %1498 = vmatprep.subr.mxu0 0.0
        %1499 = vmatpush1.msra.mxu0 0.0
        %1500 = vmatprep.subr.mxu0 0.0
        %1501 = vmatpush1.msra.mxu0 0.0
        %1502 = vmatprep.subr.mxu0 0.0
        %1503 = vmatpush1.msra.mxu0 0.0
        %1504 = vmatprep.subr.mxu0 0.0
        %1505 = vmatpush1.msra.mxu0 0.0
        %1506 = vmatprep.subr.mxu0 0.0
        %1507 = vmatpush1.msra.mxu0 0.0
        %1508 = vmatprep.subr.mxu0 0.0
        %1509 = vmatpush1.msra.mxu0 0.0
        %1510 = vmatprep.subr.mxu0 0.0
        %1511 = vmatpush1.msra.mxu0 0.0
        %1512 = vmatprep.subr.mxu0 0.0
        %1513 = vmatpush1.msra.mxu0 0.0
        %1514 = vmatprep.subr.mxu0 0.0
        %1515 = vmatpush1.msra.mxu0 0.0
        %1516 = vmatprep.subr.mxu0 0.0
        %1517 = vmatpush1.msra.mxu0 0.0
        %1518 = vmatprep.subr.mxu0 0.0
        %1519 = vmatpush1.msra.mxu0 0.0
        %1520 = vmatprep.subr.mxu0 0.0
        %1521 = vmatpush1.msra.mxu0 0.0
        %1522 = vmatprep.subr.mxu0 0.0
        %1523 = vmatpush1.msra.mxu0 0.0
        %1524 = vmatprep.subr.mxu0 0.0
        %1525 = vmatpush1.msra.mxu0 0.0
        %1526 = vmatprep.subr.mxu0 0.0
        %1527 = vmatpush1.msra.mxu0 0.0
        %1528 = vmatprep.subr.mxu0 0.0
        %1529 = vmatpush1.msra.mxu0 0.0
        %1530 = vmatprep.subr.mxu0 0.0
        %1531 = vmatpush1.msra.mxu0 0.0
        %1532 = vmatprep.subr.mxu0 0.0
        %1533 = vmatpush1.msra.mxu0 0.0
        %1534 = vmatprep.subr.mxu0 0.0
        %1535 = vmatpush1.msra.mxu0 0.0
        %1536 = vmatprep.subr.mxu0 0.0
        %1537 = vmatpush1.msra.mxu0 0.0
        %1538 = vmatprep.subr.mxu0 0.0
        %1539 = vmatpush1.msra.mxu0 0.0
        %1540 = vmatprep.subr.mxu0 0.0
        %1541 = vmatpush1.msra.mxu0 0.0
        %1542 = vmatprep.mubr.f32.mxu0 0.0
        %1543 = vmatmul.mubr.f32.gmra.mrb[0].mxu0 %v1476
        %v1544 = vpop.f32.mrb[0].mxu0
        %v1545 = vadd.f32 0.0, %v1544
        %v1546 = vpop.f32.mrb[0].mxu0
        %1547 = vdwg.mxu0
        %1549 = vrot.lane.b32.xlu0 %v1215, 8
        %v1550 = vpop.permute.xlu0 %1549
        %1553 = vrot.lane.b32.xlu0 %v1380, 16
        %v1554 = vpop.permute.xlu0 %1553
        %1557 = vrot.lane.b32.xlu0 %v1545, 24
        %v1558 = vpop.permute.xlu0 %1557
        %v1560 = vsel %vm890, %v1050, %v1550
        %vm1561 = vcmask 130048
        %v1562 = vsel %vm1561, %v1560, %v1554
        %vm1563 = vcmask 195584
        %v1564 = vsel %vm1563, %v1562, %v1558
        %v1565 = vld [vmem:[%s5] sm:$0xff]
        %v1566 = vld [vmem:[%s5 + $0x8] sm:$0xff]
        %v1567 = vld [vmem:[%s5 + $0x10] sm:$0xff]
        %v1568 = vld [vmem:[%s5 + $0x18] sm:$0xff]
        %v1569 = vld [vmem:[%s6] sm:$0x1]
        %v1571 = vlaneseq
        %v1572 = vshrl.u32 %v1571, 7
        %v1573 = vsub.s32 0, %v1572
        %v1574 = vrot.slane %v1569, %v1573
        %v1577 = vsel %vm812, %v1564, 0
        %1579 = vmatprep.subr.mxu0 0.0
        %1580 = vmatpush1.msra.mxu0 %v1565
        %1581 = vmatprep.subr.mxu0 0.0
        %1582 = vmatpush1.msra.mxu0 %v1566
        %1583 = vmatprep.subr.mxu0 0.0
        %1584 = vmatpush1.msra.mxu0 %v1567
        %1585 = vmatprep.subr.mxu0 0.0
        %1586 = vmatpush1.msra.mxu0 %v1568
        %1587 = vmatprep.subr.mxu0 0.0
        %1588 = vmatpush1.msra.mxu0 0.0
        %1589 = vmatprep.subr.mxu0 0.0
        %1590 = vmatpush1.msra.mxu0 0.0
        %1591 = vmatprep.subr.mxu0 0.0
        %1592 = vmatpush1.msra.mxu0 0.0
        %1593 = vmatprep.subr.mxu0 0.0
        %1594 = vmatpush1.msra.mxu0 0.0
        %1595 = vmatprep.subr.mxu0 0.0
        %1596 = vmatpush1.msra.mxu0 0.0
        %1597 = vmatprep.subr.mxu0 0.0
        %1598 = vmatpush1.msra.mxu0 0.0
        %1599 = vmatprep.subr.mxu0 0.0
        %1600 = vmatpush1.msra.mxu0 0.0
        %1601 = vmatprep.subr.mxu0 0.0
        %1602 = vmatpush1.msra.mxu0 0.0
        %1603 = vmatprep.subr.mxu0 0.0
        %1604 = vmatpush1.msra.mxu0 0.0
        %1605 = vmatprep.subr.mxu0 0.0
        %1606 = vmatpush1.msra.mxu0 0.0
        %1607 = vmatprep.subr.mxu0 0.0
        %1608 = vmatpush1.msra.mxu0 0.0
        %1609 = vmatprep.subr.mxu0 0.0
        %1610 = vmatpush1.msra.mxu0 0.0
        %1611 = vmatprep.subr.mxu0 0.0
        %1612 = vmatpush1.msra.mxu0 0.0
        %1613 = vmatprep.subr.mxu0 0.0
        %1614 = vmatpush1.msra.mxu0 0.0
        %1615 = vmatprep.subr.mxu0 0.0
        %1616 = vmatpush1.msra.mxu0 0.0
        %1617 = vmatprep.subr.mxu0 0.0
        %1618 = vmatpush1.msra.mxu0 0.0
        %1619 = vmatprep.subr.mxu0 0.0
        %1620 = vmatpush1.msra.mxu0 0.0
        %1621 = vmatprep.subr.mxu0 0.0
        %1622 = vmatpush1.msra.mxu0 0.0
        %1623 = vmatprep.subr.mxu0 0.0
        %1624 = vmatpush1.msra.mxu0 0.0
        %1625 = vmatprep.subr.mxu0 0.0
        %1626 = vmatpush1.msra.mxu0 0.0
        %1627 = vmatprep.subr.mxu0 0.0
        %1628 = vmatpush1.msra.mxu0 0.0
        %1629 = vmatprep.subr.mxu0 0.0
        %1630 = vmatpush1.msra.mxu0 0.0
        %1631 = vmatprep.subr.mxu0 0.0
        %1632 = vmatpush1.msra.mxu0 0.0
        %1633 = vmatprep.subr.mxu0 0.0
        %1634 = vmatpush1.msra.mxu0 0.0
        %1635 = vmatprep.subr.mxu0 0.0
        %1636 = vmatpush1.msra.mxu0 0.0
        %1637 = vmatprep.subr.mxu0 0.0
        %1638 = vmatpush1.msra.mxu0 0.0
        %1639 = vmatprep.subr.mxu0 0.0
        %1640 = vmatpush1.msra.mxu0 0.0
        %1641 = vmatprep.subr.mxu0 0.0
        %1642 = vmatpush1.msra.mxu0 0.0
        %1643 = vmatprep.mubr.f32.mxu0 0.0
        %1644 = vmatmul.mubr.f32.gmra.mrb[0].mxu0 %v1577
        %v1645 = vpop.f32.mrb[0].mxu0
        %v1646 = vadd.f32 %v1574, %v1645
        %v1647 = vpop.f32.mrb[0].mxu0
        %1648 = vdwg.mxu0
        %v1649 = vadd.f32 %v797, %v1646
        %v1650 = vld [vmem:[%s17] sm:$0x1]
        %v1651 = vld [vmem:[%s18] sm:$0x1]
        %v1652 = vsel %vm812, %v1649, 0.0
        %1653 = vadd.xlane.f32.xlu0 %v1652
        %v1654 = vpop.xlane.xlu0 %1653
        %v1655 = vrcp.pop 32.0
        %v1656 = vmul.f32 %v1654, %v1655
        %v1657 = vsub.f32 %v1649, %v1656
        %v1658 = vmul.f32 %v1657, %v1657
        %v1659 = vsel %vm812, %v1658, 0.0
        %1660 = vadd.xlane.f32.xlu0 %v1659
        %v1661 = vpop.xlane.xlu0 %1660
        %v1662 = vmul.f32 %v1661, %v1655
        %v1663 = vadd.f32 %v1662, 1e-05
        %v1664 = vrsqrt.pop %v1663
        %v1665 = vmul.f32 %v1657, %v1664
        %v1667 = vlaneseq
        %v1668 = vshrl.u32 %v1667, 7
        %v1669 = vsub.s32 0, %v1668
        %v1670 = vrot.slane %v1650, %v1669
        %v1672 = vmul.f32 %v1665, %v1670
        %v1674 = vlaneseq
        %v1675 = vshrl.u32 %v1674, 7
        %v1676 = vsub.s32 0, %v1675
        %v1677 = vrot.slane %v1651, %v1676
        %v1679 = vadd.f32 %v1672, %v1677
        %v1680 = vld [vmem:[%s7] sm:$0xff]
        %v1681 = vld [vmem:[%s7 + $0x8] sm:$0xff]
        %v1682 = vld [vmem:[%s7 + $0x10] sm:$0xff]
        %v1683 = vld [vmem:[%s7 + $0x18] sm:$0xff]
        %v1684 = vld [vmem:[%s8] sm:$0x1]
        %v1686 = vlaneseq
        %v1687 = vshrl.u32 %v1686, 7
        %v1688 = vsub.s32 0, %v1687
        %v1689 = vrot.slane %v1684, %v1688
        %v1692 = vsel %vm812, %v1679, 0
        %1694 = vmatprep.subr.mxu0 0.0
        %1695 = vmatpush1.msra.mxu0 %v1680
        %1696 = vmatprep.subr.mxu0 0.0
        %1697 = vmatpush1.msra.mxu0 %v1681
        %1698 = vmatprep.subr.mxu0 0.0
        %1699 = vmatpush1.msra.mxu0 %v1682
        %1700 = vmatprep.subr.mxu0 0.0
        %1701 = vmatpush1.msra.mxu0 %v1683
        %1702 = vmatprep.subr.mxu0 0.0
        %1703 = vmatpush1.msra.mxu0 0.0
        %1704 = vmatprep.subr.mxu0 0.0
        %1705 = vmatpush1.msra.mxu0 0.0
        %1706 = vmatprep.subr.mxu0 0.0
        %1707 = vmatpush1.msra.mxu0 0.0
        %1708 = vmatprep.subr.mxu0 0.0
        %1709 = vmatpush1.msra.mxu0 0.0
        %1710 = vmatprep.subr.mxu0 0.0
        %1711 = vmatpush1.msra.mxu0 0.0
        %1712 = vmatprep.subr.mxu0 0.0
        %1713 = vmatpush1.msra.mxu0 0.0
        %1714 = vmatprep.subr.mxu0 0.0
        %1715 = vmatpush1.msra.mxu0 0.0
        %1716 = vmatprep.subr.mxu0 0.0
        %1717 = vmatpush1.msra.mxu0 0.0
        %1718 = vmatprep.subr.mxu0 0.0
        %1719 = vmatpush1.msra.mxu0 0.0
        %1720 = vmatprep.subr.mxu0 0.0
        %1721 = vmatpush1.msra.mxu0 0.0
        %1722 = vmatprep.subr.mxu0 0.0
        %1723 = vmatpush1.msra.mxu0 0.0
        %1724 = vmatprep.subr.mxu0 0.0
        %1725 = vmatpush1.msra.mxu0 0.0
        %1726 = vmatprep.subr.mxu0 0.0
        %1727 = vmatpush1.msra.mxu0 0.0
        %1728 = vmatprep.subr.mxu0 0.0
        %1729 = vmatpush1.msra.mxu0 0.0
        %1730 = vmatprep.subr.mxu0 0.0
        %1731 = vmatpush1.msra.mxu0 0.0
        %1732 = vmatprep.subr.mxu0 0.0
        %1733 = vmatpush1.msra.mxu0 0.0
        %1734 = vmatprep.subr.mxu0 0.0
        %1735 = vmatpush1.msra.mxu0 0.0
        %1736 = vmatprep.subr.mxu0 0.0
        %1737 = vmatpush1.msra.mxu0 0.0
        %1738 = vmatprep.subr.mxu0 0.0
        %1739 = vmatpush1.msra.mxu0 0.0
        %1740 = vmatprep.subr.mxu0 0.0
        %1741 = vmatpush1.msra.mxu0 0.0
        %1742 = vmatprep.subr.mxu0 0.0
        %1743 = vmatpush1.msra.mxu0 0.0
        %1744 = vmatprep.subr.mxu0 0.0
        %1745 = vmatpush1.msra.mxu0 0.0
        %1746 = vmatprep.subr.mxu0 0.0
        %1747 = vmatpush1.msra.mxu0 0.0
        %1748 = vmatprep.subr.mxu0 0.0
        %1749 = vmatpush1.msra.mxu0 0.0
        %1750 = vmatprep.subr.mxu0 0.0
        %1751 = vmatpush1.msra.mxu0 0.0
        %1752 = vmatprep.subr.mxu0 0.0
        %1753 = vmatpush1.msra.mxu0 0.0
        %1754 = vmatprep.subr.mxu0 0.0
        %1755 = vmatpush1.msra.mxu0 0.0
        %1756 = vmatprep.subr.mxu0 0.0
        %1757 = vmatpush1.msra.mxu0 0.0
        %1758 = vmatprep.mubr.f32.mxu0 0.0
        %1759 = vmatmul.mubr.f32.gmra.mrb[0].mxu0 %v1692
        %v1760 = vpop.f32.mrb[0].mxu0
        %v1761 = vadd.f32 %v1689, %v1760
        %v1762 = vpop.f32.mrb[0].mxu0
        %1763 = vdwg.mxu0
        %v1764 = vld [vmem:[%s9] sm:$0xff]
        %v1765 = vld [vmem:[%s9 + $0x8] sm:$0xff]
        %v1766 = vld [vmem:[%s9 + $0x10] sm:$0xff]
        %v1767 = vld [vmem:[%s9 + $0x18] sm:$0xff]
        %v1768 = vld [vmem:[%s10] sm:$0x1]
        %v1770 = vlaneseq
        %v1771 = vshrl.u32 %v1770, 7
        %v1772 = vsub.s32 0, %v1771
        %v1773 = vrot.slane %v1768, %v1772
        %v1776 = vsel %vm812, %v798, 0
        %v1779 = vsel %vm812, %v799, 0
        %1781 = vmatprep.subr.mxu0 0.0
        %1782 = vmatpush1.msra.mxu0 %v1764
        %1783 = vmatprep.subr.mxu0 0.0
        %1784 = vmatpush1.msra.mxu0 %v1765
        %1785 = vmatprep.subr.mxu0 0.0
        %1786 = vmatpush1.msra.mxu0 %v1766
        %1787 = vmatprep.subr.mxu0 0.0
        %1788 = vmatpush1.msra.mxu0 %v1767
        %1789 = vmatprep.subr.mxu0 0.0
        %1790 = vmatpush1.msra.mxu0 0.0
        %1791 = vmatprep.subr.mxu0 0.0
        %1792 = vmatpush1.msra.mxu0 0.0
        %1793 = vmatprep.subr.mxu0 0.0
        %1794 = vmatpush1.msra.mxu0 0.0
        %1795 = vmatprep.subr.mxu0 0.0
        %1796 = vmatpush1.msra.mxu0 0.0
        %1797 = vmatprep.subr.mxu0 0.0
        %1798 = vmatpush1.msra.mxu0 0.0
        %1799 = vmatprep.subr.mxu0 0.0
        %1800 = vmatpush1.msra.mxu0 0.0
        %1801 = vmatprep.subr.mxu0 0.0
        %1802 = vmatpush1.msra.mxu0 0.0
        %1803 = vmatprep.subr.mxu0 0.0
        %1804 = vmatpush1.msra.mxu0 0.0
        %1805 = vmatprep.subr.mxu0 0.0
        %1806 = vmatpush1.msra.mxu0 0.0
        %1807 = vmatprep.subr.mxu0 0.0
        %1808 = vmatpush1.msra.mxu0 0.0
        %1809 = vmatprep.subr.mxu0 0.0
        %1810 = vmatpush1.msra.mxu0 0.0
        %1811 = vmatprep.subr.mxu0 0.0
        %1812 = vmatpush1.msra.mxu0 0.0
        %1813 = vmatprep.subr.mxu0 0.0
        %1814 = vmatpush1.msra.mxu0 0.0
        %1815 = vmatprep.subr.mxu0 0.0
        %1816 = vmatpush1.msra.mxu0 0.0
        %1817 = vmatprep.subr.mxu0 0.0
        %1818 = vmatpush1.msra.mxu0 0.0
        %1819 = vmatprep.subr.mxu0 0.0
        %1820 = vmatpush1.msra.mxu0 0.0
        %1821 = vmatprep.subr.mxu0 0.0
        %1822 = vmatpush1.msra.mxu0 0.0
        %1823 = vmatprep.subr.mxu0 0.0
        %1824 = vmatpush1.msra.mxu0 0.0
        %1825 = vmatprep.subr.mxu0 0.0
        %1826 = vmatpush1.msra.mxu0 0.0
        %1827 = vmatprep.subr.mxu0 0.0
        %1828 = vmatpush1.msra.mxu0 0.0
        %1829 = vmatprep.subr.mxu0 0.0
        %1830 = vmatpush1.msra.mxu0 0.0
        %1831 = vmatprep.subr.mxu0 0.0
        %1832 = vmatpush1.msra.mxu0 0.0
        %1833 = vmatprep.subr.mxu0 0.0
        %1834 = vmatpush1.msra.mxu0 0.0
        %1835 = vmatprep.subr.mxu0 0.0
        %1836 = vmatpush1.msra.mxu0 0.0
        %1837 = vmatprep.subr.mxu0 0.0
        %1838 = vmatpush1.msra.mxu0 0.0
        %1839 = vmatprep.subr.mxu0 0.0
        %1840 = vmatpush1.msra.mxu0 0.0
        %1841 = vmatprep.subr.mxu0 0.0
        %1842 = vmatpush1.msra.mxu0 0.0
        %1843 = vmatprep.subr.mxu0 0.0
        %1844 = vmatpush1.msra.mxu0 0.0
        %1845 = vmatprep.mubr.f32.mxu0 0.0
        %1846 = vmatmul.mubr.f32.gmra.mrb[0].mxu0 %v1776
        %v1847 = vpop.f32.mrb[0].mxu0
        %v1848 = vadd.f32 %v1773, %v1847
        %v1849 = vpop.f32.mrb[0].mxu0
        %1850 = vmatprep.mubr.f32.mxu0 0.0
        %1851 = vmatmul.mubr.f32.gmra.mrb[0].mxu0 %v1779
        %v1852 = vpop.f32.mrb[0].mxu0
        %v1853 = vadd.f32 %v1773, %v1852
        %v1854 = vpop.f32.mrb[0].mxu0
        %1855 = vdwg.mxu0
        %v1856 = vmul.f32 %v1761, 0.35355338
        %v1858 = vsel %vm890, %v1856, 0
        %v1861 = vsel %vm890, %v1848, 0
        %v1864 = vsel %vm890, %v1853, 0
        %1866 = vmatprep.subr.mxu0 0.0
        %1867 = vmatpush1.xpose.msra.mxu0 %v1861
        %1868 = vmatprep.subr.mxu0 0.0
        %1869 = vmatpush1.xpose.msra.mxu0 %v1864
        %1870 = vmatprep.subr.mxu0 0.0
        %1871 = vmatpush1.xpose.msra.mxu0 0.0
        %1872 = vmatprep.subr.mxu0 0.0
        %1873 = vmatpush1.xpose.msra.mxu0 0.0
        %1874 = vmatprep.subr.mxu0 0.0
        %1875 = vmatpush1.xpose.msra.mxu0 0.0
        %1876 = vmatprep.subr.mxu0 0.0
        %1877 = vmatpush1.xpose.msra.mxu0 0.0
        %1878 = vmatprep.subr.mxu0 0.0
        %1879 = vmatpush1.xpose.msra.mxu0 0.0
        %1880 = vmatprep.subr.mxu0 0.0
        %1881 = vmatpush1.xpose.msra.mxu0 0.0
        %1882 = vmatprep.subr.mxu0 0.0
        %1883 = vmatpush1.xpose.msra.mxu0 0.0
        %1884 = vmatprep.subr.mxu0 0.0
        %1885 = vmatpush1.xpose.msra.mxu0 0.0
        %1886 = vmatprep.subr.mxu0 0.0
        %1887 = vmatpush1.xpose.msra.mxu0 0.0
        %1888 = vmatprep.subr.mxu0 0.0
        %1889 = vmatpush1.xpose.msra.mxu0 0.0
        %1890 = vmatprep.subr.mxu0 0.0
        %1891 = vmatpush1.xpose.msra.mxu0 0.0
        %1892 = vmatprep.subr.mxu0 0.0
        %1893 = vmatpush1.xpose.msra.mxu0 0.0
        %1894 = vmatprep.subr.mxu0 0.0
        %1895 = vmatpush1.xpose.msra.mxu0 0.0
        %1896 = vmatprep.subr.mxu0 0.0
        %1897 = vmatpush1.xpose.msra.mxu0 0.0
        %1898 = vmatprep.subr.mxu0 0.0
        %1899 = vmatpush1.xpose.msra.mxu0 0.0
        %1900 = vmatprep.subr.mxu0 0.0
        %1901 = vmatpush1.xpose.msra.mxu0 0.0
        %1902 = vmatprep.subr.mxu0 0.0
        %1903 = vmatpush1.xpose.msra.mxu0 0.0
        %1904 = vmatprep.subr.mxu0 0.0
        %1905 = vmatpush1.xpose.msra.mxu0 0.0
        %1906 = vmatprep.subr.mxu0 0.0
        %1907 = vmatpush1.xpose.msra.mxu0 0.0
        %1908 = vmatprep.subr.mxu0 0.0
        %1909 = vmatpush1.xpose.msra.mxu0 0.0
        %1910 = vmatprep.subr.mxu0 0.0
        %1911 = vmatpush1.xpose.msra.mxu0 0.0
        %1912 = vmatprep.subr.mxu0 0.0
        %1913 = vmatpush1.xpose.msra.mxu0 0.0
        %1914 = vmatprep.subr.mxu0 0.0
        %1915 = vmatpush1.xpose.msra.mxu0 0.0
        %1916 = vmatprep.subr.mxu0 0.0
        %1917 = vmatpush1.xpose.msra.mxu0 0.0
        %1918 = vmatprep.subr.mxu0 0.0
        %1919 = vmatpush1.xpose.msra.mxu0 0.0
        %1920 = vmatprep.subr.mxu0 0.0
        %1921 = vmatpush1.xpose.msra.mxu0 0.0
        %1922 = vmatprep.subr.mxu0 0.0
        %1923 = vmatpush1.xpose.msra.mxu0 0.0
        %1924 = vmatprep.subr.mxu0 0.0
        %1925 = vmatpush1.xpose.msra.mxu0 0.0
        %1926 = vmatprep.subr.mxu0 0.0
        %1927 = vmatpush1.xpose.msra.mxu0 0.0
        %1928 = vmatprep.subr.mxu0 0.0
        %1929 = vmatpush1.xpose.msra.mxu0 0.0
        %1930 = vmatprep.mubr.f32.mxu0 0.0
        %1931 = vmatmul.mubr.f32.gmra.mrb[0].mxu0 %v1858
        %v1932 = vpop.f32.mrb[0].mxu0
        %v1933 = vadd.f32 0.0, %v1932
        %v1934 = vpop.f32.mrb[0].mxu0
        %1935 = vdwg.mxu0
        %v1936 = vsel %vm1561, %v1933, -inf
        %1937 = vmax.xlane.f32.xlu0 %v1936
        %v1938 = vpop.xlane.xlu0 %1937
        %v1939 = vsub.f32 %v1933, %v1938
        %v1940 = vmul.f32 %v1939, 1.442695
        %v1941 = vpow.pop %v1940
        %v1942 = vsel %vm1561, %v1941, 0.0
        %1943 = vadd.xlane.f32.xlu0 %v1942
        %v1944 = vpop.xlane.xlu0 %1943
        %v1945 = vrcp.pop %v1944
        %v1946 = vmul.f32 %v1941, %v1945
        %1947 = vrot.lane.b32.xlu0 %v1848, 96
        %v1948 = vpop.permute.xlu0 %1947
        %1949 = vrot.lane.b32.xlu0 %v1853, 96
        %v1950 = vpop.permute.xlu0 %1949
        %v1954 = vsel %vm1561, %v1946, 0
        %1956 = vmatprep.subr.mxu0 0.0
        %1957 = vmatpush1.msra.mxu0 %v1948
        %1958 = vmatprep.subr.mxu0 0.0
        %1959 = vmatpush1.msra.mxu0 %v1950
        %1960 = vmatprep.subr.mxu0 0.0
        %1961 = vmatpush1.msra.mxu0 0.0
        %1962 = vmatprep.subr.mxu0 0.0
        %1963 = vmatpush1.msra.mxu0 0.0
        %1964 = vmatprep.subr.mxu0 0.0
        %1965 = vmatpush1.msra.mxu0 0.0
        %1966 = vmatprep.subr.mxu0 0.0
        %1967 = vmatpush1.msra.mxu0 0.0
        %1968 = vmatprep.subr.mxu0 0.0
        %1969 = vmatpush1.msra.mxu0 0.0
        %1970 = vmatprep.subr.mxu0 0.0
        %1971 = vmatpush1.msra.mxu0 0.0
        %1972 = vmatprep.subr.mxu0 0.0
        %1973 = vmatpush1.msra.mxu0 0.0
        %1974 = vmatprep.subr.mxu0 0.0
        %1975 = vmatpush1.msra.mxu0 0.0
        %1976 = vmatprep.subr.mxu0 0.0
        %1977 = vmatpush1.msra.mxu0 0.0
        %1978 = vmatprep.subr.mxu0 0.0
        %1979 = vmatpush1.msra.mxu0 0.0
        %1980 = vmatprep.subr.mxu0 0.0
        %1981 = vmatpush1.msra.mxu0 0.0
        %1982 = vmatprep.subr.mxu0 0.0
        %1983 = vmatpush1.msra.mxu0 0.0
        %1984 = vmatprep.subr.mxu0 0.0
        %1985 = vmatpush1.msra.mxu0 0.0
        %1986 = vmatprep.subr.mxu0 0.0
        %1987 = vmatpush1.msra.mxu0 0.0
        %1988 = vmatprep.subr.mxu0 0.0
        %1989 = vmatpush1.msra.mxu0 0.0
        %1990 = vmatprep.subr.mxu0 0.0
        %1991 = vmatpush1.msra.mxu0 0.0
        %1992 = vmatprep.subr.mxu0 0.0
        %1993 = vmatpush1.msra.mxu0 0.0
        %1994 = vmatprep.subr.mxu0 0.0
        %1995 = vmatpush1.msra.mxu0 0.0
        %1996 = vmatprep.subr.mxu0 0.0
        %1997 = vmatpush1.msra.mxu0 0.0
        %1998 = vmatprep.subr.mxu0 0.0
        %1999 = vmatpush1.msra.mxu0 0.0
        %2000 = vmatprep.subr.mxu0 0.0
        %2001 = vmatpush1.msra.mxu0 0.0
        %2002 = vmatprep.subr.mxu0 0.0
        %2003 = vmatpush1.msra.mxu0 0.0
        %2004 = vmatprep.subr.mxu0 0.0
        %2005 = vmatpush1.msra.mxu0 0.0
        %2006 = vmatprep.subr.mxu0 0.0
        %2007 = vmatpush1.msra.mxu0 0.0
        %2008 = vmatprep.subr.mxu0 0.0
        %2009 = vmatpush1.msra.mxu0 0.0
        %2010 = vmatprep.subr.mxu0 0.0
        %2011 = vmatpush1.msra.mxu0 0.0
        %2012 = vmatprep.subr.mxu0 0.0
        %2013 = vmatpush1.msra.mxu0 0.0
        %2014 = vmatprep.subr.mxu0 0.0
        %2015 = vmatpush1.msra.mxu0 0.0
        %2016 = vmatprep.subr.mxu0 0.0
        %2017 = vmatpush1.msra.mxu0 0.0
        %2018 = vmatprep.subr.mxu0 0.0
        %2019 = vmatpush1.msra.mxu0 0.0
        %2020 = vmatprep.mubr.f32.mxu0 0.0
        %2021 = vmatmul.mubr.f32.gmra.mrb[0].mxu0 %v1954
        %v2022 = vpop.f32.mrb[0].mxu0
        %v2023 = vadd.f32 0.0, %v2022
        %v2024 = vpop.f32.mrb[0].mxu0
        %2025 = vdwg.mxu0
        %2026 = vrot.lane.b32.xlu0 %v1856, 120
        %v2027 = vpop.permute.xlu0 %2026
        %2028 = vrot.lane.b32.xlu0 %v1848, 120
        %v2029 = vpop.permute.xlu0 %2028
        %2030 = vrot.lane.b32.xlu0 %v1853, 120
        %v2031 = vpop.permute.xlu0 %2030
        %v2032 = vsel %vm890, %v2027, 0
        %v2034 = vsel %vm890, %v2029, 0
        %v2036 = vsel %vm890, %v2031, 0
        %2038 = vmatprep.subr.mxu0 0.0
        %2039 = vmatpush1.xpose.msra.mxu0 %v2034
        %2040 = vmatprep.subr.mxu0 0.0
        %2041 = vmatpush1.xpose.msra.mxu0 %v2036
        %2042 = vmatprep.subr.mxu0 0.0
        %2043 = vmatpush1.xpose.msra.mxu0 0.0
        %2044 = vmatprep.subr.mxu0 0.0
        %2045 = vmatpush1.xpose.msra.mxu0 0.0
        %2046 = vmatprep.subr.mxu0 0.0
        %2047 = vmatpush1.xpose.msra.mxu0 0.0
        %2048 = vmatprep.subr.mxu0 0.0
        %2049 = vmatpush1.xpose.msra.mxu0 0.0
        %2050 = vmatprep.subr.mxu0 0.0
        %2051 = vmatpush1.xpose.msra.mxu0 0.0
        %2052 = vmatprep.subr.mxu0 0.0
        %2053 = vmatpush1.xpose.msra.mxu0 0.0
        %2054 = vmatprep.subr.mxu0 0.0
        %2055 = vmatpush1.xpose.msra.mxu0 0.0
        %2056 = vmatprep.subr.mxu0 0.0
        %2057 = vmatpush1.xpose.msra.mxu0 0.0
        %2058 = vmatprep.subr.mxu0 0.0
        %2059 = vmatpush1.xpose.msra.mxu0 0.0
        %2060 = vmatprep.subr.mxu0 0.0
        %2061 = vmatpush1.xpose.msra.mxu0 0.0
        %2062 = vmatprep.subr.mxu0 0.0
        %2063 = vmatpush1.xpose.msra.mxu0 0.0
        %2064 = vmatprep.subr.mxu0 0.0
        %2065 = vmatpush1.xpose.msra.mxu0 0.0
        %2066 = vmatprep.subr.mxu0 0.0
        %2067 = vmatpush1.xpose.msra.mxu0 0.0
        %2068 = vmatprep.subr.mxu0 0.0
        %2069 = vmatpush1.xpose.msra.mxu0 0.0
        %2070 = vmatprep.subr.mxu0 0.0
        %2071 = vmatpush1.xpose.msra.mxu0 0.0
        %2072 = vmatprep.subr.mxu0 0.0
        %2073 = vmatpush1.xpose.msra.mxu0 0.0
        %2074 = vmatprep.subr.mxu0 0.0
        %2075 = vmatpush1.xpose.msra.mxu0 0.0
        %2076 = vmatprep.subr.mxu0 0.0
        %2077 = vmatpush1.xpose.msra.mxu0 0.0
        %2078 = vmatprep.subr.mxu0 0.0
        %2079 = vmatpush1.xpose.msra.mxu0 0.0
        %2080 = vmatprep.subr.mxu0 0.0
        %2081 = vmatpush1.xpose.msra.mxu0 0.0
        %2082 = vmatprep.subr.mxu0 0.0
        %2083 = vmatpush1.xpose.msra.mxu0 0.0
        %2084 = vmatprep.subr.mxu0 0.0
        %2085 = vmatpush1.xpose.msra.mxu0 0.0
        %2086 = vmatprep.subr.mxu0 0.0
        %2087 = vmatpush1.xpose.msra.mxu0 0.0
        %2088 = vmatprep.subr.mxu0 0.0
        %2089 = vmatpush1.xpose.msra.mxu0 0.0
        %2090 = vmatprep.subr.mxu0 0.0
        %2091 = vmatpush1.xpose.msra.mxu0 0.0
        %2092 = vmatprep.subr.mxu0 0.0
        %2093 = vmatpush1.xpose.msra.mxu0 0.0
        %2094 = vmatprep.subr.mxu0 0.0
        %2095 = vmatpush1.xpose.msra.mxu0 0.0
        %2096 = vmatprep.subr.mxu0 0.0
        %2097 = vmatpush1.xpose.msra.mxu0 0.0
        %2098 = vmatprep.subr.mxu0 0.0
        %2099 = vmatpush1.xpose.msra.mxu0 0.0
        %2100 = vmatprep.subr.mxu0 0.0
        %2101 = vmatpush1.xpose.msra.mxu0 0.0
        %2102 = vmatprep.mubr.f32.mxu0 0.0
        %2103 = vmatmul.mubr.f32.gmra.mrb[0].mxu0 %v2032
        %v2104 = vpop.f32.mrb[0].mxu0
        %v2105 = vadd.f32 0.0, %v2104
        %v2106 = vpop.f32.mrb[0].mxu0
        %2107 = vdwg.mxu0
        %v2108 = vsel %vm1561, %v2105, -inf
        %2109 = vmax.xlane.f32.xlu0 %v2108
        %v2110 = vpop.xlane.xlu0 %2109
        %v2111 = vsub.f32 %v2105, %v2110
        %v2112 = vmul.f32 %v2111, 1.442695
        %v2113 = vpow.pop %v2112
        %v2114 = vsel %vm1561, %v2113, 0.0
        %2115 = vadd.xlane.f32.xlu0 %v2114
        %v2116 = vpop.xlane.xlu0 %2115
        %v2117 = vrcp.pop %v2116
        %v2118 = vmul.f32 %v2113, %v2117
        %2119 = vrot.lane.b32.xlu0 %v1848, 88
        %v2120 = vpop.permute.xlu0 %2119
        %2121 = vrot.lane.b32.xlu0 %v1853, 88
        %v2122 = vpop.permute.xlu0 %2121
        %v2126 = vsel %vm1561, %v2118, 0
        %2128 = vmatprep.subr.mxu0 0.0
        %2129 = vmatpush1.msra.mxu0 %v2120
        %2130 = vmatprep.subr.mxu0 0.0
        %2131 = vmatpush1.msra.mxu0 %v2122
        %2132 = vmatprep.subr.mxu0 0.0
        %2133 = vmatpush1.msra.mxu0 0.0
        %2134 = vmatprep.subr.mxu0 0.0
        %2135 = vmatpush1.msra.mxu0 0.0
        %2136 = vmatprep.subr.mxu0 0.0
        %2137 = vmatpush1.msra.mxu0 0.0
        %2138 = vmatprep.subr.mxu0 0.0
        %2139 = vmatpush1.msra.mxu0 0.0
        %2140 = vmatprep.subr.mxu0 0.0
        %2141 = vmatpush1.msra.mxu0 0.0
        %2142 = vmatprep.subr.mxu0 0.0
        %2143 = vmatpush1.msra.mxu0 0.0
        %2144 = vmatprep.subr.mxu0 0.0
        %2145 = vmatpush1.msra.mxu0 0.0
        %2146 = vmatprep.subr.mxu0 0.0
        %2147 = vmatpush1.msra.mxu0 0.0
        %2148 = vmatprep.subr.mxu0 0.0
        %2149 = vmatpush1.msra.mxu0 0.0
        %2150 = vmatprep.subr.mxu0 0.0
        %2151 = vmatpush1.msra.mxu0 0.0
        %2152 = vmatprep.subr.mxu0 0.0
        %2153 = vmatpush1.msra.mxu0 0.0
        %2154 = vmatprep.subr.mxu0 0.0
        %2155 = vmatpush1.msra.mxu0 0.0
        %2156 = vmatprep.subr.mxu0 0.0
        %2157 = vmatpush1.msra.mxu0 0.0
        %2158 = vmatprep.subr.mxu0 0.0
        %2159 = vmatpush1.msra.mxu0 0.0
        %2160 = vmatprep.subr.mxu0 0.0
        %2161 = vmatpush1.msra.mxu0 0.0
        %2162 = vmatprep.subr.mxu0 0.0
        %2163 = vmatpush1.msra.mxu0 0.0
        %2164 = vmatprep.subr.mxu0 0.0
        %2165 = vmatpush1.msra.mxu0 0.0
        %2166 = vmatprep.subr.mxu0 0.0
        %2167 = vmatpush1.msra.mxu0 0.0
        %2168 = vmatprep.subr.mxu0 0.0
        %2169 = vmatpush1.msra.mxu0 0.0
        %2170 = vmatprep.subr.mxu0 0.0
        %2171 = vmatpush1.msra.mxu0 0.0
        %2172 = vmatprep.subr.mxu0 0.0
        %2173 = vmatpush1.msra.mxu0 0.0
        %2174 = vmatprep.subr.mxu0 0.0
        %2175 = vmatpush1.msra.mxu0 0.0
        %2176 = vmatprep.subr.mxu0 0.0
        %2177 = vmatpush1.msra.mxu0 0.0
        %2178 = vmatprep.subr.mxu0 0.0
        %2179 = vmatpush1.msra.mxu0 0.0
        %2180 = vmatprep.subr.mxu0 0.0
        %2181 = vmatpush1.msra.mxu0 0.0
        %2182 = vmatprep.subr.mxu0 0.0
        %2183 = vmatpush1.msra.mxu0 0.0
        %2184 = vmatprep.subr.mxu0 0.0
        %2185 = vmatpush1.msra.mxu0 0.0
        %2186 = vmatprep.subr.mxu0 0.0
        %2187 = vmatpush1.msra.mxu0 0.0
        %2188 = vmatprep.subr.mxu0 0.0
        %2189 = vmatpush1.msra.mxu0 0.0
        %2190 = vmatprep.subr.mxu0 0.0
        %2191 = vmatpush1.msra.mxu0 0.0
        %2192 = vmatprep.mubr.f32.mxu0 0.0
        %2193 = vmatmul.mubr.f32.gmra.mrb[0].mxu0 %v2126
        %v2194 = vpop.f32.mrb[0].mxu0
        %v2195 = vadd.f32 0.0, %v2194
        %v2196 = vpop.f32.mrb[0].mxu0
        %2197 = vdwg.mxu0
        %2198 = vrot.lane.b32.xlu0 %v1856, 112
        %v2199 = vpop.permute.xlu0 %2198
        %2200 = vrot.lane.b32.xlu0 %v1848, 112
        %v2201 = vpop.permute.xlu0 %2200
        %2202 = vrot.lane.b32.xlu0 %v1853, 112
        %v2203 = vpop.permute.xlu0 %2202
        %v2204 = vsel %vm890, %v2199, 0
        %v2206 = vsel %vm890, %v2201, 0
        %v2208 = vsel %vm890, %v2203, 0
        %2210 = vmatprep.subr.mxu0 0.0
        %2211 = vmatpush1.xpose.msra.mxu0 %v2206
        %2212 = vmatprep.subr.mxu0 0.0
        %2213 = vmatpush1.xpose.msra.mxu0 %v2208
        %2214 = vmatprep.subr.mxu0 0.0
        %2215 = vmatpush1.xpose.msra.mxu0 0.0
        %2216 = vmatprep.subr.mxu0 0.0
        %2217 = vmatpush1.xpose.msra.mxu0 0.0
        %2218 = vmatprep.subr.mxu0 0.0
        %2219 = vmatpush1.xpose.msra.mxu0 0.0
        %2220 = vmatprep.subr.mxu0 0.0
        %2221 = vmatpush1.xpose.msra.mxu0 0.0
        %2222 = vmatprep.subr.mxu0 0.0
        %2223 = vmatpush1.xpose.msra.mxu0 0.0
        %2224 = vmatprep.subr.mxu0 0.0
        %2225 = vmatpush1.xpose.msra.mxu0 0.0
        %2226 = vmatprep.subr.mxu0 0.0
        %2227 = vmatpush1.xpose.msra.mxu0 0.0
        %2228 = vmatprep.subr.mxu0 0.0
        %2229 = vmatpush1.xpose.msra.mxu0 0.0
        %2230 = vmatprep.subr.mxu0 0.0
        %2231 = vmatpush1.xpose.msra.mxu0 0.0
        %2232 = vmatprep.subr.mxu0 0.0
        %2233 = vmatpush1.xpose.msra.mxu0 0.0
        %2234 = vmatprep.subr.mxu0 0.0
        %2235 = vmatpush1.xpose.msra.mxu0 0.0
        %2236 = vmatprep.subr.mxu0 0.0
        %2237 = vmatpush1.xpose.msra.mxu0 0.0
        %2238 = vmatprep.subr.mxu0 0.0
        %2239 = vmatpush1.xpose.msra.mxu0 0.0
        %2240 = vmatprep.subr.mxu0 0.0
        %2241 = vmatpush1.xpose.msra.mxu0 0.0
        %2242 = vmatprep.subr.mxu0 0.0
        %2243 = vmatpush1.xpose.msra.mxu0 0.0
        %2244 = vmatprep.subr.mxu0 0.0
        %2245 = vmatpush1.xpose.msra.mxu0 0.0
        %2246 = vmatprep.subr.mxu0 0.0
        %2247 = vmatpush1.xpose.msra.mxu0 0.0
        %2248 = vmatprep.subr.mxu0 0.0
        %2249 = vmatpush1.xpose.msra.mxu0 0.0
        %2250 = vmatprep.subr.mxu0 0.0
        %2251 = vmatpush1.xpose.msra.mxu0 0.0
        %2252 = vmatprep.subr.mxu0 0.0
        %2253 = vmatpush1.xpose.msra.mxu0 0.0
        %2254 = vmatprep.subr.mxu0 0.0
        %2255 = vmatpush1.xpose.msra.mxu0 0.0
        %2256 = vmatprep.subr.mxu0 0.0
        %2257 = vmatpush1.xpose.msra.mxu0 0.0
        %2258 = vmatprep.subr.mxu0 0.0
        %2259 = vmatpush1.xpose.msra.mxu0 0.0
        %2260 = vmatprep.subr.mxu0 0.0
        %2261 = vmatpush1.xpose.msra.mxu0 0.0
        %2262 = vmatprep.subr.mxu0 0.0
        %2263 = vmatpush1.xpose.msra.mxu0 0.0
        %2264 = vmatprep.subr.mxu0 0.0
        %2265 = vmatpush1.xpose.msra.mxu0 0.0
        %2266 = vmatprep.subr.mxu0 0.0
        %2267 = vmatpush1.xpose.msra.mxu0 0.0
        %2268 = vmatprep.subr.mxu0 0.0
        %2269 = vmatpush1.xpose.msra.mxu0 0.0
        %2270 = vmatprep.subr.mxu0 0.0
        %2271 = vmatpush1.xpose.msra.mxu0 0.0
        %2272 = vmatprep.subr.mxu0 0.0
        %2273 = vmatpush1.xpose.msra.mxu0 0.0
        %2274 = vmatprep.mubr.f32.mxu0 0.0
        %2275 = vmatmul.mubr.f32.gmra.mrb[0].mxu0 %v2204
        %v2276 = vpop.f32.mrb[0].mxu0
        %v2277 = vadd.f32 0.0, %v2276
        %v2278 = vpop.f32.mrb[0].mxu0
        %2279 = vdwg.mxu0
        %v2280 = vsel %vm1561, %v2277, -inf
        %2281 = vmax.xlane.f32.xlu0 %v2280
        %v2282 = vpop.xlane.xlu0 %2281
        %v2283 = vsub.f32 %v2277, %v2282
        %v2284 = vmul.f32 %v2283, 1.442695
        %v2285 = vpow.pop %v2284
        %v2286 = vsel %vm1561, %v2285, 0.0
        %2287 = vadd.xlane.f32.xlu0 %v2286
        %v2288 = vpop.xlane.xlu0 %2287
        %v2289 = vrcp.pop %v2288
        %v2290 = vmul.f32 %v2285, %v2289
        %2291 = vrot.lane.b32.xlu0 %v1848, 80
        %v2292 = vpop.permute.xlu0 %2291
        %2293 = vrot.lane.b32.xlu0 %v1853, 80
        %v2294 = vpop.permute.xlu0 %2293
        %v2298 = vsel %vm1561, %v2290, 0
        %2300 = vmatprep.subr.mxu0 0.0
        %2301 = vmatpush1.msra.mxu0 %v2292
        %2302 = vmatprep.subr.mxu0 0.0
        %2303 = vmatpush1.msra.mxu0 %v2294
        %2304 = vmatprep.subr.mxu0 0.0
        %2305 = vmatpush1.msra.mxu0 0.0
        %2306 = vmatprep.subr.mxu0 0.0
        %2307 = vmatpush1.msra.mxu0 0.0
        %2308 = vmatprep.subr.mxu0 0.0
        %2309 = vmatpush1.msra.mxu0 0.0
        %2310 = vmatprep.subr.mxu0 0.0
        %2311 = vmatpush1.msra.mxu0 0.0
        %2312 = vmatprep.subr.mxu0 0.0
        %2313 = vmatpush1.msra.mxu0 0.0
        %2314 = vmatprep.subr.mxu0 0.0
        %2315 = vmatpush1.msra.mxu0 0.0
        %2316 = vmatprep.subr.mxu0 0.0
        %2317 = vmatpush1.msra.mxu0 0.0
        %2318 = vmatprep.subr.mxu0 0.0
        %2319 = vmatpush1.msra.mxu0 0.0
        %2320 = vmatprep.subr.mxu0 0.0
        %2321 = vmatpush1.msra.mxu0 0.0
        %2322 = vmatprep.subr.mxu0 0.0
        %2323 = vmatpush1.msra.mxu0 0.0
        %2324 = vmatprep.subr.mxu0 0.0
        %2325 = vmatpush1.msra.mxu0 0.0
        %2326 = vmatprep.subr.mxu0 0.0
        %2327 = vmatpush1.msra.mxu0 0.0
        %2328 = vmatprep.subr.mxu0 0.0
        %2329 = vmatpush1.msra.mxu0 0.0
        %2330 = vmatprep.subr.mxu0 0.0
        %2331 = vmatpush1.msra.mxu0 0.0
        %2332 = vmatprep.subr.mxu0 0.0
        %2333 = vmatpush1.msra.mxu0 0.0
        %2334 = vmatprep.subr.mxu0 0.0
        %2335 = vmatpush1.msra.mxu0 0.0
        %2336 = vmatprep.subr.mxu0 0.0
        %2337 = vmatpush1.msra.mxu0 0.0
        %2338 = vmatprep.subr.mxu0 0.0
        %2339 = vmatpush1.msra.mxu0 0.0
        %2340 = vmatprep.subr.mxu0 0.0
        %2341 = vmatpush1.msra.mxu0 0.0
        %2342 = vmatprep.subr.mxu0 0.0
        %2343 = vmatpush1.msra.mxu0 0.0
        %2344 = vmatprep.subr.mxu0 0.0
        %2345 = vmatpush1.msra.mxu0 0.0
        %2346 = vmatprep.subr.mxu0 0.0
        %2347 = vmatpush1.msra.mxu0 0.0
        %2348 = vmatprep.subr.mxu0 0.0
        %2349 = vmatpush1.msra.mxu0 0.0
        %2350 = vmatprep.subr.mxu0 0.0
        %2351 = vmatpush1.msra.mxu0 0.0
        %2352 = vmatprep.subr.mxu0 0.0
        %2353 = vmatpush1.msra.mxu0 0.0
        %2354 = vmatprep.subr.mxu0 0.0
        %2355 = vmatpush1.msra.mxu0 0.0
        %2356 = vmatprep.subr.mxu0 0.0
        %2357 = vmatpush1.msra.mxu0 0.0
        %2358 = vmatprep.subr.mxu0 0.0
        %2359 = vmatpush1.msra.mxu0 0.0
        %2360 = vmatprep.subr.mxu0 0.0
        %2361 = vmatpush1.msra.mxu0 0.0
        %2362 = vmatprep.subr.mxu0 0.0
        %2363 = vmatpush1.msra.mxu0 0.0
        %2364 = vmatprep.mubr.f32.mxu0 0.0
        %2365 = vmatmul.mubr.f32.gmra.mrb[0].mxu0 %v2298
        %v2366 = vpop.f32.mrb[0].mxu0
        %v2367 = vadd.f32 0.0, %v2366
        %v2368 = vpop.f32.mrb[0].mxu0
        %2369 = vdwg.mxu0
        %2370 = vrot.lane.b32.xlu0 %v1856, 104
        %v2371 = vpop.permute.xlu0 %2370
        %2372 = vrot.lane.b32.xlu0 %v1848, 104
        %v2373 = vpop.permute.xlu0 %2372
        %2374 = vrot.lane.b32.xlu0 %v1853, 104
        %v2375 = vpop.permute.xlu0 %2374
        %v2376 = vsel %vm890, %v2371, 0
        %v2378 = vsel %vm890, %v2373, 0
        %v2380 = vsel %vm890, %v2375, 0
        %2382 = vmatprep.subr.mxu0 0.0
        %2383 = vmatpush1.xpose.msra.mxu0 %v2378
        %2384 = vmatprep.subr.mxu0 0.0
        %2385 = vmatpush1.xpose.msra.mxu0 %v2380
        %2386 = vmatprep.subr.mxu0 0.0
        %2387 = vmatpush1.xpose.msra.mxu0 0.0
        %2388 = vmatprep.subr.mxu0 0.0
        %2389 = vmatpush1.xpose.msra.mxu0 0.0
        %2390 = vmatprep.subr.mxu0 0.0
        %2391 = vmatpush1.xpose.msra.mxu0 0.0
        %2392 = vmatprep.subr.mxu0 0.0
        %2393 = vmatpush1.xpose.msra.mxu0 0.0
        %2394 = vmatprep.subr.mxu0 0.0
        %2395 = vmatpush1.xpose.msra.mxu0 0.0
        %2396 = vmatprep.subr.mxu0 0.0
        %2397 = vmatpush1.xpose.msra.mxu0 0.0
        %2398 = vmatprep.subr.mxu0 0.0
        %2399 = vmatpush1.xpose.msra.mxu0 0.0
        %2400 = vmatprep.subr.mxu0 0.0
        %2401 = vmatpush1.xpose.msra.mxu0 0.0
        %2402 = vmatprep.subr.mxu0 0.0
        %2403 = vmatpush1.xpose.msra.mxu0 0.0
        %2404 = vmatprep.subr.mxu0 0.0
        %2405 = vmatpush1.xpose.msra.mxu0 0.0
        %2406 = vmatprep.subr.mxu0 0.0
        %2407 = vmatpush1.xpose.msra.mxu0 0.0
        %2408 = vmatprep.subr.mxu0 0.0
        %2409 = vmatpush1.xpose.msra.mxu0 0.0
        %2410 = vmatprep.subr.mxu0 0.0
        %2411 = vmatpush1.xpose.msra.mxu0 0.0
        %2412 = vmatprep.subr.mxu0 0.0
        %2413 = vmatpush1.xpose.msra.mxu0 0.0
        %2414 = vmatprep.subr.mxu0 0.0
        %2415 = vmatpush1.xpose.msra.mxu0 0.0
        %2416 = vmatprep.subr.mxu0 0.0
        %2417 = vmatpush1.xpose.msra.mxu0 0.0
        %2418 = vmatprep.subr.mxu0 0.0
        %2419 = vmatpush1.xpose.msra.mxu0 0.0
        %2420 = vmatprep.subr.mxu0 0.0
        %2421 = vmatpush1.xpose.msra.mxu0 0.0
        %2422 = vmatprep.subr.mxu0 0.0
        %2423 = vmatpush1.xpose.msra.mxu0 0.0
        %2424 = vmatprep.subr.mxu0 0.0
        %2425 = vmatpush1.xpose.msra.mxu0 0.0
        %2426 = vmatprep.subr.mxu0 0.0
        %2427 = vmatpush1.xpose.msra.mxu0 0.0
        %2428 = vmatprep.subr.mxu0 0.0
        %2429 = vmatpush1.xpose.msra.mxu0 0.0
        %2430 = vmatprep.subr.mxu0 0.0
        %2431 = vmatpush1.xpose.msra.mxu0 0.0
        %2432 = vmatprep.subr.mxu0 0.0
        %2433 = vmatpush1.xpose.msra.mxu0 0.0
        %2434 = vmatprep.subr.mxu0 0.0
        %2435 = vmatpush1.xpose.msra.mxu0 0.0
        %2436 = vmatprep.subr.mxu0 0.0
        %2437 = vmatpush1.xpose.msra.mxu0 0.0
        %2438 = vmatprep.subr.mxu0 0.0
        %2439 = vmatpush1.xpose.msra.mxu0 0.0
        %2440 = vmatprep.subr.mxu0 0.0
        %2441 = vmatpush1.xpose.msra.mxu0 0.0
        %2442 = vmatprep.subr.mxu0 0.0
        %2443 = vmatpush1.xpose.msra.mxu0 0.0
        %2444 = vmatprep.subr.mxu0 0.0
        %2445 = vmatpush1.xpose.msra.mxu0 0.0
        %2446 = vmatprep.mubr.f32.mxu0 0.0
        %2447 = vmatmul.mubr.f32.gmra.mrb[0].mxu0 %v2376
        %v2448 = vpop.f32.mrb[0].mxu0
        %v2449 = vadd.f32 0.0, %v2448
        %v2450 = vpop.f32.mrb[0].mxu0
        %2451 = vdwg.mxu0
        %v2452 = vsel %vm1561, %v2449, -inf
        %2453 = vmax.xlane.f32.xlu0 %v2452
        %v2454 = vpop.xlane.xlu0 %2453
        %v2455 = vsub.f32 %v2449, %v2454
        %v2456 = vmul.f32 %v2455, 1.442695
        %v2457 = vpow.pop %v2456
        %v2458 = vsel %vm1561, %v2457, 0.0
        %2459 = vadd.xlane.f32.xlu0 %v2458
        %v2460 = vpop.xlane.xlu0 %2459
        %v2461 = vrcp.pop %v2460
        %v2462 = vmul.f32 %v2457, %v2461
        %2463 = vrot.lane.b32.xlu0 %v1848, 72
        %v2464 = vpop.permute.xlu0 %2463
        %2465 = vrot.lane.b32.xlu0 %v1853, 72
        %v2466 = vpop.permute.xlu0 %2465
        %v2470 = vsel %vm1561, %v2462, 0
        %2472 = vmatprep.subr.mxu0 0.0
        %2473 = vmatpush1.msra.mxu0 %v2464
        %2474 = vmatprep.subr.mxu0 0.0
        %2475 = vmatpush1.msra.mxu0 %v2466
        %2476 = vmatprep.subr.mxu0 0.0
        %2477 = vmatpush1.msra.mxu0 0.0
        %2478 = vmatprep.subr.mxu0 0.0
        %2479 = vmatpush1.msra.mxu0 0.0
        %2480 = vmatprep.subr.mxu0 0.0
        %2481 = vmatpush1.msra.mxu0 0.0
        %2482 = vmatprep.subr.mxu0 0.0
        %2483 = vmatpush1.msra.mxu0 0.0
        %2484 = vmatprep.subr.mxu0 0.0
        %2485 = vmatpush1.msra.mxu0 0.0
        %2486 = vmatprep.subr.mxu0 0.0
        %2487 = vmatpush1.msra.mxu0 0.0
        %2488 = vmatprep.subr.mxu0 0.0
        %2489 = vmatpush1.msra.mxu0 0.0
        %2490 = vmatprep.subr.mxu0 0.0
        %2491 = vmatpush1.msra.mxu0 0.0
        %2492 = vmatprep.subr.mxu0 0.0
        %2493 = vmatpush1.msra.mxu0 0.0
        %2494 = vmatprep.subr.mxu0 0.0
        %2495 = vmatpush1.msra.mxu0 0.0
        %2496 = vmatprep.subr.mxu0 0.0
        %2497 = vmatpush1.msra.mxu0 0.0
        %2498 = vmatprep.subr.mxu0 0.0
        %2499 = vmatpush1.msra.mxu0 0.0
        %2500 = vmatprep.subr.mxu0 0.0
        %2501 = vmatpush1.msra.mxu0 0.0
        %2502 = vmatprep.subr.mxu0 0.0
        %2503 = vmatpush1.msra.mxu0 0.0
        %2504 = vmatprep.subr.mxu0 0.0
        %2505 = vmatpush1.msra.mxu0 0.0
        %2506 = vmatprep.subr.mxu0 0.0
        %2507 = vmatpush1.msra.mxu0 0.0
        %2508 = vmatprep.subr.mxu0 0.0
        %2509 = vmatpush1.msra.mxu0 0.0
        %2510 = vmatprep.subr.mxu0 0.0
        %2511 = vmatpush1.msra.mxu0 0.0
        %2512 = vmatprep.subr.mxu0 0.0
        %2513 = vmatpush1.msra.mxu0 0.0
        %2514 = vmatprep.subr.mxu0 0.0
        %2515 = vmatpush1.msra.mxu0 0.0
        %2516 = vmatprep.subr.mxu0 0.0
        %2517 = vmatpush1.msra.mxu0 0.0
        %2518 = vmatprep.subr.mxu0 0.0
        %2519 = vmatpush1.msra.mxu0 0.0
        %2520 = vmatprep.subr.mxu0 0.0
        %2521 = vmatpush1.msra.mxu0 0.0
        %2522 = vmatprep.subr.mxu0 0.0
        %2523 = vmatpush1.msra.mxu0 0.0
        %2524 = vmatprep.subr.mxu0 0.0
        %2525 = vmatpush1.msra.mxu0 0.0
        %2526 = vmatprep.subr.mxu0 0.0
        %2527 = vmatpush1.msra.mxu0 0.0
        %2528 = vmatprep.subr.mxu0 0.0
        %2529 = vmatpush1.msra.mxu0 0.0
        %2530 = vmatprep.subr.mxu0 0.0
        %2531 = vmatpush1.msra.mxu0 0.0
        %2532 = vmatprep.subr.mxu0 0.0
        %2533 = vmatpush1.msra.mxu0 0.0
        %2534 = vmatprep.subr.mxu0 0.0
        %2535 = vmatpush1.msra.mxu0 0.0
        %2536 = vmatprep.mubr.f32.mxu0 0.0
        %2537 = vmatmul.mubr.f32.gmra.mrb[0].mxu0 %v2470
        %v2538 = vpop.f32.mrb[0].mxu0
        %v2539 = vadd.f32 0.0, %v2538
        %v2540 = vpop.f32.mrb[0].mxu0
        %2541 = vdwg.mxu0
        %2543 = vrot.lane.b32.xlu0 %v2195, 8
        %v2544 = vpop.permute.xlu0 %2543
        %2547 = vrot.lane.b32.xlu0 %v2367, 16
        %v2548 = vpop.permute.xlu0 %2547
        %2551 = vrot.lane.b32.xlu0 %v2539, 24
        %v2552 = vpop.permute.xlu0 %2551
        %v2554 = vsel %vm890, %v2023, %v2544
        %v2555 = vsel %vm1561, %v2554, %v2548
        %v2556 = vsel %vm1563, %v2555, %v2552
        %v2557 = vld [vmem:[%s11] sm:$0xff]
        %v2558 = vld [vmem:[%s11 + $0x8] sm:$0xff]
        %v2559 = vld [vmem:[%s11 + $0x10] sm:$0xff]
        %v2560 = vld [vmem:[%s11 + $0x18] sm:$0xff]
        %v2561 = vld [vmem:[%s12] sm:$0x1]
        %v2563 = vlaneseq
        %v2564 = vshrl.u32 %v2563, 7
        %v2565 = vsub.s32 0, %v2564
        %v2566 = vrot.slane %v2561, %v2565
        %v2569 = vsel %vm812, %v2556, 0
        %2571 = vmatprep.subr.mxu0 0.0
        %2572 = vmatpush1.msra.mxu0 %v2557
        %2573 = vmatprep.subr.mxu0 0.0
        %2574 = vmatpush1.msra.mxu0 %v2558
        %2575 = vmatprep.subr.mxu0 0.0
        %2576 = vmatpush1.msra.mxu0 %v2559
        %2577 = vmatprep.subr.mxu0 0.0
        %2578 = vmatpush1.msra.mxu0 %v2560
        %2579 = vmatprep.subr.mxu0 0.0
        %2580 = vmatpush1.msra.mxu0 0.0
        %2581 = vmatprep.subr.mxu0 0.0
        %2582 = vmatpush1.msra.mxu0 0.0
        %2583 = vmatprep.subr.mxu0 0.0
        %2584 = vmatpush1.msra.mxu0 0.0
        %2585 = vmatprep.subr.mxu0 0.0
        %2586 = vmatpush1.msra.mxu0 0.0
        %2587 = vmatprep.subr.mxu0 0.0
        %2588 = vmatpush1.msra.mxu0 0.0
        %2589 = vmatprep.subr.mxu0 0.0
        %2590 = vmatpush1.msra.mxu0 0.0
        %2591 = vmatprep.subr.mxu0 0.0
        %2592 = vmatpush1.msra.mxu0 0.0
        %2593 = vmatprep.subr.mxu0 0.0
        %2594 = vmatpush1.msra.mxu0 0.0
        %2595 = vmatprep.subr.mxu0 0.0
        %2596 = vmatpush1.msra.mxu0 0.0
        %2597 = vmatprep.subr.mxu0 0.0
        %2598 = vmatpush1.msra.mxu0 0.0
        %2599 = vmatprep.subr.mxu0 0.0
        %2600 = vmatpush1.msra.mxu0 0.0
        %2601 = vmatprep.subr.mxu0 0.0
        %2602 = vmatpush1.msra.mxu0 0.0
        %2603 = vmatprep.subr.mxu0 0.0
        %2604 = vmatpush1.msra.mxu0 0.0
        %2605 = vmatprep.subr.mxu0 0.0
        %2606 = vmatpush1.msra.mxu0 0.0
        %2607 = vmatprep.subr.mxu0 0.0
        %2608 = vmatpush1.msra.mxu0 0.0
        %2609 = vmatprep.subr.mxu0 0.0
        %2610 = vmatpush1.msra.mxu0 0.0
        %2611 = vmatprep.subr.mxu0 0.0
        %2612 = vmatpush1.msra.mxu0 0.0
        %2613 = vmatprep.subr.mxu0 0.0
        %2614 = vmatpush1.msra.mxu0 0.0
        %2615 = vmatprep.subr.mxu0 0.0
        %2616 = vmatpush1.msra.mxu0 0.0
        %2617 = vmatprep.subr.mxu0 0.0
        %2618 = vmatpush1.msra.mxu0 0.0
        %2619 = vmatprep.subr.mxu0 0.0
        %2620 = vmatpush1.msra.mxu0 0.0
        %2621 = vmatprep.subr.mxu0 0.0
        %2622 = vmatpush1.msra.mxu0 0.0
        %2623 = vmatprep.subr.mxu0 0.0
        %2624 = vmatpush1.msra.mxu0 0.0
        %2625 = vmatprep.subr.mxu0 0.0
        %2626 = vmatpush1.msra.mxu0 0.0
        %2627 = vmatprep.subr.mxu0 0.0
        %2628 = vmatpush1.msra.mxu0 0.0
        %2629 = vmatprep.subr.mxu0 0.0
        %2630 = vmatpush1.msra.mxu0 0.0
        %2631 = vmatprep.subr.mxu0 0.0
        %2632 = vmatpush1.msra.mxu0 0.0
        %2633 = vmatprep.subr.mxu0 0.0
        %2634 = vmatpush1.msra.mxu0 0.0
        %2635 = vmatprep.mubr.f32.mxu0 0.0
        %2636 = vmatmul.mubr.f32.gmra.mrb[0].mxu0 %v2569
        %v2637 = vpop.f32.mrb[0].mxu0
        %v2638 = vadd.f32 %v2566, %v2637
        %v2639 = vpop.f32.mrb[0].mxu0
        %2640 = vdwg.mxu0
        %v2641 = vadd.f32 %v1679, %v2638
        %v2642 = vld [vmem:[%s19] sm:$0x1]
        %v2643 = vld [vmem:[%s20] sm:$0x1]
        %v2644 = vsel %vm812, %v2641, 0.0
        %2645 = vadd.xlane.f32.xlu0 %v2644
        %v2646 = vpop.xlane.xlu0 %2645
        %v2647 = vmul.f32 %v2646, %v1655
        %v2648 = vsub.f32 %v2641, %v2647
        %v2649 = vmul.f32 %v2648, %v2648
        %v2650 = vsel %vm812, %v2649, 0.0
        %2651 = vadd.xlane.f32.xlu0 %v2650
        %v2652 = vpop.xlane.xlu0 %2651
        %v2653 = vmul.f32 %v2652, %v1655
        %v2654 = vadd.f32 %v2653, 1e-05
        %v2655 = vrsqrt.pop %v2654
        %v2656 = vmul.f32 %v2648, %v2655
        %v2658 = vlaneseq
        %v2659 = vshrl.u32 %v2658, 7
        %v2660 = vsub.s32 0, %v2659
        %v2661 = vrot.slane %v2642, %v2660
        %v2663 = vmul.f32 %v2656, %v2661
        %v2665 = vlaneseq
        %v2666 = vshrl.u32 %v2665, 7
        %v2667 = vsub.s32 0, %v2666
        %v2668 = vrot.slane %v2643, %v2667
        %v2670 = vadd.f32 %v2663, %v2668
        %v2671 = vld [vmem:[%s13] sm:$0xff]
        %v2672 = vld [vmem:[%s13 + $0x8] sm:$0xff]
        %v2673 = vld [vmem:[%s13 + $0x10] sm:$0xff]
        %v2674 = vld [vmem:[%s13 + $0x18] sm:$0xff]
        %v2675 = vld [vmem:[%s14] sm:$0x1]
        %v2677 = vlaneseq
        %v2678 = vshrl.u32 %v2677, 7
        %v2679 = vsub.s32 0, %v2678
        %v2680 = vrot.slane %v2675, %v2679
        %v2683 = vsel %vm812, %v2670, 0
        %2685 = vmatprep.subr.mxu0 0.0
        %2686 = vmatpush1.msra.mxu0 %v2671
        %2687 = vmatprep.subr.mxu0 0.0
        %2688 = vmatpush1.msra.mxu0 %v2672
        %2689 = vmatprep.subr.mxu0 0.0
        %2690 = vmatpush1.msra.mxu0 %v2673
        %2691 = vmatprep.subr.mxu0 0.0
        %2692 = vmatpush1.msra.mxu0 %v2674
        %2693 = vmatprep.subr.mxu0 0.0
        %2694 = vmatpush1.msra.mxu0 0.0
        %2695 = vmatprep.subr.mxu0 0.0
        %2696 = vmatpush1.msra.mxu0 0.0
        %2697 = vmatprep.subr.mxu0 0.0
        %2698 = vmatpush1.msra.mxu0 0.0
        %2699 = vmatprep.subr.mxu0 0.0
        %2700 = vmatpush1.msra.mxu0 0.0
        %2701 = vmatprep.subr.mxu0 0.0
        %2702 = vmatpush1.msra.mxu0 0.0
        %2703 = vmatprep.subr.mxu0 0.0
        %2704 = vmatpush1.msra.mxu0 0.0
        %2705 = vmatprep.subr.mxu0 0.0
        %2706 = vmatpush1.msra.mxu0 0.0
        %2707 = vmatprep.subr.mxu0 0.0
        %2708 = vmatpush1.msra.mxu0 0.0
        %2709 = vmatprep.subr.mxu0 0.0
        %2710 = vmatpush1.msra.mxu0 0.0
        %2711 = vmatprep.subr.mxu0 0.0
        %2712 = vmatpush1.msra.mxu0 0.0
        %2713 = vmatprep.subr.mxu0 0.0
        %2714 = vmatpush1.msra.mxu0 0.0
        %2715 = vmatprep.subr.mxu0 0.0
        %2716 = vmatpush1.msra.mxu0 0.0
        %2717 = vmatprep.subr.mxu0 0.0
        %2718 = vmatpush1.msra.mxu0 0.0
        %2719 = vmatprep.subr.mxu0 0.0
        %2720 = vmatpush1.msra.mxu0 0.0
        %2721 = vmatprep.subr.mxu0 0.0
        %2722 = vmatpush1.msra.mxu0 0.0
        %2723 = vmatprep.subr.mxu0 0.0
        %2724 = vmatpush1.msra.mxu0 0.0
        %2725 = vmatprep.subr.mxu0 0.0
        %2726 = vmatpush1.msra.mxu0 0.0
        %2727 = vmatprep.subr.mxu0 0.0
        %2728 = vmatpush1.msra.mxu0 0.0
        %2729 = vmatprep.subr.mxu0 0.0
        %2730 = vmatpush1.msra.mxu0 0.0
        %2731 = vmatprep.subr.mxu0 0.0
        %2732 = vmatpush1.msra.mxu0 0.0
        %2733 = vmatprep.subr.mxu0 0.0
        %2734 = vmatpush1.msra.mxu0 0.0
        %2735 = vmatprep.subr.mxu0 0.0
        %2736 = vmatpush1.msra.mxu0 0.0
        %2737 = vmatprep.subr.mxu0 0.0
        %2738 = vmatpush1.msra.mxu0 0.0
        %2739 = vmatprep.subr.mxu0 0.0
        %2740 = vmatpush1.msra.mxu0 0.0
        %2741 = vmatprep.subr.mxu0 0.0
        %2742 = vmatpush1.msra.mxu0 0.0
        %2743 = vmatprep.subr.mxu0 0.0
        %2744 = vmatpush1.msra.mxu0 0.0
        %2745 = vmatprep.subr.mxu0 0.0
        %2746 = vmatpush1.msra.mxu0 0.0
        %2747 = vmatprep.subr.mxu0 0.0
        %2748 = vmatpush1.msra.mxu0 0.0
        %2749 = vmatprep.mubr.f32.mxu0 0.0
        %2750 = vmatmul.mubr.f32.gmra.mrb[0].mxu0 %v2683
        %v2751 = vpop.f32.mrb[0].mxu0
        %v2752 = vadd.f32 %v2680, %v2751
        %v2753 = vpop.f32.mrb[0].mxu0
        %2754 = vdwg.mxu0
        %v2755 = vmax.f32 %v2752, 0.0
        %v2756 = vld [vmem:[%s15] sm:$0xff]
        %v2757 = vld [vmem:[%s15 + $0x8] sm:$0xff]
        %v2758 = vld [vmem:[%s15 + $0x10] sm:$0xff]
        %v2759 = vld [vmem:[%s15 + $0x18] sm:$0xff]
        %v2760 = vld [vmem:[%s15 + $0x20] sm:$0xff]
        %v2761 = vld [vmem:[%s15 + $0x28] sm:$0xff]
        %v2762 = vld [vmem:[%s15 + $0x30] sm:$0xff]
        %v2763 = vld [vmem:[%s15 + $0x38] sm:$0xff]
        %v2764 = vld [vmem:[%s16] sm:$0x1]
        %v2766 = vlaneseq
        %v2767 = vshrl.u32 %v2766, 7
        %v2768 = vsub.s32 0, %v2767
        %v2769 = vrot.slane %v2764, %v2768
        %vm2771 = vcmask 523264
        %v2773 = vsel %vm2771, %v2755, 0
        %2775 = vmatprep.subr.mxu0 0.0
        %2776 = vmatpush1.msra.mxu0 %v2756
        %2777 = vmatprep.subr.mxu0 0.0
        %2778 = vmatpush1.msra.mxu0 %v2757
        %2779 = vmatprep.subr.mxu0 0.0
        %2780 = vmatpush1.msra.mxu0 %v2758
        %2781 = vmatprep.subr.mxu0 0.0
        %2782 = vmatpush1.msra.mxu0 %v2759
        %2783 = vmatprep.subr.mxu0 0.0
        %2784 = vmatpush1.msra.mxu0 %v2760
        %2785 = vmatprep.subr.mxu0 0.0
        %2786 = vmatpush1.msra.mxu0 %v2761
        %2787 = vmatprep.subr.mxu0 0.0
        %2788 = vmatpush1.msra.mxu0 %v2762
        %2789 = vmatprep.subr.mxu0 0.0
        %2790 = vmatpush1.msra.mxu0 %v2763
        %2791 = vmatprep.subr.mxu0 0.0
        %2792 = vmatpush1.msra.mxu0 0.0
        %2793 = vmatprep.subr.mxu0 0.0
        %2794 = vmatpush1.msra.mxu0 0.0
        %2795 = vmatprep.subr.mxu0 0.0
        %2796 = vmatpush1.msra.mxu0 0.0
        %2797 = vmatprep.subr.mxu0 0.0
        %2798 = vmatpush1.msra.mxu0 0.0
        %2799 = vmatprep.subr.mxu0 0.0
        %2800 = vmatpush1.msra.mxu0 0.0
        %2801 = vmatprep.subr.mxu0 0.0
        %2802 = vmatpush1.msra.mxu0 0.0
        %2803 = vmatprep.subr.mxu0 0.0
        %2804 = vmatpush1.msra.mxu0 0.0
        %2805 = vmatprep.subr.mxu0 0.0
        %2806 = vmatpush1.msra.mxu0 0.0
        %2807 = vmatprep.subr.mxu0 0.0
        %2808 = vmatpush1.msra.mxu0 0.0
        %2809 = vmatprep.subr.mxu0 0.0
        %2810 = vmatpush1.msra.mxu0 0.0
        %2811 = vmatprep.subr.mxu0 0.0
        %2812 = vmatpush1.msra.mxu0 0.0
        %2813 = vmatprep.subr.mxu0 0.0
        %2814 = vmatpush1.msra.mxu0 0.0
        %2815 = vmatprep.subr.mxu0 0.0
        %2816 = vmatpush1.msra.mxu0 0.0
        %2817 = vmatprep.subr.mxu0 0.0
        %2818 = vmatpush1.msra.mxu0 0.0
        %2819 = vmatprep.subr.mxu0 0.0
        %2820 = vmatpush1.msra.mxu0 0.0
        %2821 = vmatprep.subr.mxu0 0.0
        %2822 = vmatpush1.msra.mxu0 0.0
        %2823 = vmatprep.subr.mxu0 0.0
        %2824 = vmatpush1.msra.mxu0 0.0
        %2825 = vmatprep.subr.mxu0 0.0
        %2826 = vmatpush1.msra.mxu0 0.0
        %2827 = vmatprep.subr.mxu0 0.0
        %2828 = vmatpush1.msra.mxu0 0.0
        %2829 = vmatprep.subr.mxu0 0.0
        %2830 = vmatpush1.msra.mxu0 0.0
        %2831 = vmatprep.subr.mxu0 0.0
        %2832 = vmatpush1.msra.mxu0 0.0
        %2833 = vmatprep.subr.mxu0 0.0
        %2834 = vmatpush1.msra.mxu0 0.0
        %2835 = vmatprep.subr.mxu0 0.0
        %2836 = vmatpush1.msra.mxu0 0.0
        %2837 = vmatprep.subr.mxu0 0.0
        %2838 = vmatpush1.msra.mxu0 0.0
        %2839 = vmatprep.mubr.f32.mxu0 0.0
        %2840 = vmatmul.mubr.f32.gmra.mrb[0].mxu0 %v2773
        %v2841 = vpop.f32.mrb[0].mxu0
        %v2842 = vadd.f32 %v2769, %v2841
        %v2843 = vpop.f32.mrb[0].mxu0
        %2844 = vdwg.mxu0
        %v2845 = vadd.f32 %v2670, %v2842
        %v2846 = vld [vmem:[%s21] sm:$0x1]
        %v2847 = vld [vmem:[%s22] sm:$0x1]
        %v2848 = vsel %vm812, %v2845, 0.0
        %2849 = vadd.xlane.f32.xlu0 %v2848
        %v2850 = vpop.xlane.xlu0 %2849
        %v2851 = vmul.f32 %v2850, %v1655
        %v2852 = vsub.f32 %v2845, %v2851
        %v2853 = vmul.f32 %v2852, %v2852
        %v2854 = vsel %vm812, %v2853, 0.0
        %2855 = vadd.xlane.f32.xlu0 %v2854
        %v2856 = vpop.xlane.xlu0 %2855
        %v2857 = vmul.f32 %v2856, %v1655
        %v2858 = vadd.f32 %v2857, 1e-05
        %v2859 = vrsqrt.pop %v2858
        %v2860 = vmul.f32 %v2852, %v2859
        %v2862 = vlaneseq
        %v2863 = vshrl.u32 %v2862, 7
        %v2864 = vsub.s32 0, %v2863
        %v2865 = vrot.slane %v2846, %v2864
        %v2867 = vmul.f32 %v2860, %v2865
        %v2869 = vlaneseq
        %v2870 = vshrl.u32 %v2869, 7
        %v2871 = vsub.s32 0, %v2870
        %v2872 = vrot.slane %v2847, %v2871
        %v2874 = vadd.f32 %v2867, %v2872
        %s2875 = scalar_lea.vmem %s3, 32
        %v2876 = vld [vmem:[%s2875] sm:$0xff]
        %v2877 = vld [vmem:[%s2875 + $0x8] sm:$0xff]
        %v2878 = vld [vmem:[%s2875 + $0x10] sm:$0xff]
        %v2879 = vld [vmem:[%s2875 + $0x18] sm:$0xff]
        %s2880 = scalar_lea.vmem %s4, 1
        %v2881 = vld [vmem:[%s2880] sm:$0x1]
        %v2883 = vlaneseq
        %v2884 = vshrl.u32 %v2883, 7
        %v2885 = vsub.s32 0, %v2884
        %v2886 = vrot.slane %v2881, %v2885
        %v2889 = vsel %vm812, %v2874, 0
        %2891 = vmatprep.subr.mxu0 0.0
        %2892 = vmatpush1.msra.mxu0 %v2876
        %2893 = vmatprep.subr.mxu0 0.0
        %2894 = vmatpush1.msra.mxu0 %v2877
        %2895 = vmatprep.subr.mxu0 0.0
        %2896 = vmatpush1.msra.mxu0 %v2878
        %2897 = vmatprep.subr.mxu0 0.0
        %2898 = vmatpush1.msra.mxu0 %v2879
        %2899 = vmatprep.subr.mxu0 0.0
        %2900 = vmatpush1.msra.mxu0 0.0
        %2901 = vmatprep.subr.mxu0 0.0
        %2902 = vmatpush1.msra.mxu0 0.0
        %2903 = vmatprep.subr.mxu0 0.0
        %2904 = vmatpush1.msra.mxu0 0.0
        %2905 = vmatprep.subr.mxu0 0.0
        %2906 = vmatpush1.msra.mxu0 0.0
        %2907 = vmatprep.subr.mxu0 0.0
        %2908 = vmatpush1.msra.mxu0 0.0
        %2909 = vmatprep.subr.mxu0 0.0
        %2910 = vmatpush1.msra.mxu0 0.0
        %2911 = vmatprep.subr.mxu0 0.0
        %2912 = vmatpush1.msra.mxu0 0.0
        %2913 = vmatprep.subr.mxu0 0.0
        %2914 = vmatpush1.msra.mxu0 0.0
        %2915 = vmatprep.subr.mxu0 0.0
        %2916 = vmatpush1.msra.mxu0 0.0
        %2917 = vmatprep.subr.mxu0 0.0
        %2918 = vmatpush1.msra.mxu0 0.0
        %2919 = vmatprep.subr.mxu0 0.0
        %2920 = vmatpush1.msra.mxu0 0.0
        %2921 = vmatprep.subr.mxu0 0.0
        %2922 = vmatpush1.msra.mxu0 0.0
        %2923 = vmatprep.subr.mxu0 0.0
        %2924 = vmatpush1.msra.mxu0 0.0
        %2925 = vmatprep.subr.mxu0 0.0
        %2926 = vmatpush1.msra.mxu0 0.0
        %2927 = vmatprep.subr.mxu0 0.0
        %2928 = vmatpush1.msra.mxu0 0.0
        %2929 = vmatprep.subr.mxu0 0.0
        %2930 = vmatpush1.msra.mxu0 0.0
        %2931 = vmatprep.subr.mxu0 0.0
        %2932 = vmatpush1.msra.mxu0 0.0
        %2933 = vmatprep.subr.mxu0 0.0
        %2934 = vmatpush1.msra.mxu0 0.0
        %2935 = vmatprep.subr.mxu0 0.0
        %2936 = vmatpush1.msra.mxu0 0.0
        %2937 = vmatprep.subr.mxu0 0.0
        %2938 = vmatpush1.msra.mxu0 0.0
        %2939 = vmatprep.subr.mxu0 0.0
        %2940 = vmatpush1.msra.mxu0 0.0
        %2941 = vmatprep.subr.mxu0 0.0
        %2942 = vmatpush1.msra.mxu0 0.0
        %2943 = vmatprep.subr.mxu0 0.0
        %2944 = vmatpush1.msra.mxu0 0.0
        %2945 = vmatprep.subr.mxu0 0.0
        %2946 = vmatpush1.msra.mxu0 0.0
        %2947 = vmatprep.subr.mxu0 0.0
        %2948 = vmatpush1.msra.mxu0 0.0
        %2949 = vmatprep.subr.mxu0 0.0
        %2950 = vmatpush1.msra.mxu0 0.0
        %2951 = vmatprep.subr.mxu0 0.0
        %2952 = vmatpush1.msra.mxu0 0.0
        %2953 = vmatprep.subr.mxu0 0.0
        %2954 = vmatpush1.msra.mxu0 0.0
        %2955 = vmatprep.mubr.f32.mxu0 0.0
        %2956 = vmatmul.mubr.f32.gmra.mrb[0].mxu0 %v2889
        %v2957 = vpop.f32.mrb[0].mxu0
        %v2958 = vadd.f32 %v2886, %v2957
        %v2959 = vpop.f32.mrb[0].mxu0
        %2960 = vdwg.mxu0
        %v2961 = vmul.f32 %v2958, 0.35355338
        %2963 = vrot.lane.b32.xlu0 %v2958, 96
        %v2964 = vpop.permute.xlu0 %2963
        %v2966 = vsel %vm890, %v2961, 0
        %v2968 = vsel %vm890, %v2964, 0
        %2970 = vmatprep.subr.mxu0 0.0
        %2971 = vmatpush1.xpose.msra.mxu0 %v2968
        %2972 = vmatprep.subr.mxu0 0.0
        %2973 = vmatpush1.xpose.msra.mxu0 0.0
        %2974 = vmatprep.subr.mxu0 0.0
        %2975 = vmatpush1.xpose.msra.mxu0 0.0
        %2976 = vmatprep.subr.mxu0 0.0
        %2977 = vmatpush1.xpose.msra.mxu0 0.0
        %2978 = vmatprep.subr.mxu0 0.0
        %2979 = vmatpush1.xpose.msra.mxu0 0.0
        %2980 = vmatprep.subr.mxu0 0.0
        %2981 = vmatpush1.xpose.msra.mxu0 0.0
        %2982 = vmatprep.subr.mxu0 0.0
        %2983 = vmatpush1.xpose.msra.mxu0 0.0
        %2984 = vmatprep.subr.mxu0 0.0
        %2985 = vmatpush1.xpose.msra.mxu0 0.0
        %2986 = vmatprep.subr.mxu0 0.0
        %2987 = vmatpush1.xpose.msra.mxu0 0.0
        %2988 = vmatprep.subr.mxu0 0.0
        %2989 = vmatpush1.xpose.msra.mxu0 0.0
        %2990 = vmatprep.subr.mxu0 0.0
        %2991 = vmatpush1.xpose.msra.mxu0 0.0
        %2992 = vmatprep.subr.mxu0 0.0
        %2993 = vmatpush1.xpose.msra.mxu0 0.0
        %2994 = vmatprep.subr.mxu0 0.0
        %2995 = vmatpush1.xpose.msra.mxu0 0.0
        %2996 = vmatprep.subr.mxu0 0.0
        %2997 = vmatpush1.xpose.msra.mxu0 0.0
        %2998 = vmatprep.subr.mxu0 0.0
        %2999 = vmatpush1.xpose.msra.mxu0 0.0
        %3000 = vmatprep.subr.mxu0 0.0
        %3001 = vmatpush1.xpose.msra.mxu0 0.0
        %3002 = vmatprep.subr.mxu0 0.0
        %3003 = vmatpush1.xpose.msra.mxu0 0.0
        %3004 = vmatprep.subr.mxu0 0.0
        %3005 = vmatpush1.xpose.msra.mxu0 0.0
        %3006 = vmatprep.subr.mxu0 0.0
        %3007 = vmatpush1.xpose.msra.mxu0 0.0
        %3008 = vmatprep.subr.mxu0 0.0
        %3009 = vmatpush1.xpose.msra.mxu0 0.0
        %3010 = vmatprep.subr.mxu0 0.0
        %3011 = vmatpush1.xpose.msra.mxu0 0.0
        %3012 = vmatprep.subr.mxu0 0.0
        %3013 = vmatpush1.xpose.msra.mxu0 0.0
        %3014 = vmatprep.subr.mxu0 0.0
        %3015 = vmatpush1.xpose.msra.mxu0 0.0
        %3016 = vmatprep.subr.mxu0 0.0
        %3017 = vmatpush1.xpose.msra.mxu0 0.0
        %3018 = vmatprep.subr.mxu0 0.0
        %3019 = vmatpush1.xpose.msra.mxu0 0.0
        %3020 = vmatprep.subr.mxu0 0.0
        %3021 = vmatpush1.xpose.msra.mxu0 0.0
        %3022 = vmatprep.subr.mxu0 0.0
        %3023 = vmatpush1.xpose.msra.mxu0 0.0
        %3024 = vmatprep.subr.mxu0 0.0
        %3025 = vmatpush1.xpose.msra.mxu0 0.0
        %3026 = vmatprep.subr.mxu0 0.0
        %3027 = vmatpush1.xpose.msra.mxu0 0.0
        %3028 = vmatprep.subr.mxu0 0.0
        %3029 = vmatpush1.xpose.msra.mxu0 0.0
        %3030 = vmatprep.subr.mxu0 0.0
        %3031 = vmatpush1.xpose.msra.mxu0 0.0
        %3032 = vmatprep.subr.mxu0 0.0
        %3033 = vmatpush1.xpose.msra.mxu0 0.0
        %3034 = vmatprep.mubr.f32.mxu0 0.0
        %3035 = vmatmul.mubr.f32.gmra.mrb[0].mxu0 %v2966
        %v3036 = vpop.f32.mrb[0].mxu0
        %v3037 = vadd.f32 %v800, %v3036
        %v3038 = vpop.f32.mrb[0].mxu0
        %3039 = vdwg.mxu0
        %v3040 = vsel %vm890, %v3037, -inf
        %3041 = vmax.xlane.f32.xlu0 %v3040
        %v3042 = vpop.xlane.xlu0 %3041
        %v3043 = vsub.f32 %v3037, %v3042
        %v3044 = vmul.f32 %v3043, 1.442695
        %v3045 = vpow.pop %v3044
        %v3046 = vsel %vm890, %v3045, 0.0
        %3047 = vadd.xlane.f32.xlu0 %v3046
        %v3048 = vpop.xlane.xlu0 %3047
        %v3049 = vrcp.pop %v3048
        %v3050 = vmul.f32 %v3045, %v3049
        %3051 = vrot.lane.b32.xlu0 %v2958, 64
        %v3052 = vpop.permute.xlu0 %3051
        %v3055 = vsel %vm890, %v3050, 0
        %3057 = vmatprep.subr.mxu0 0.0
        %3058 = vmatpush1.msra.mxu0 %v3052
        %3059 = vmatprep.subr.mxu0 0.0
        %3060 = vmatpush1.msra.mxu0 0.0
        %3061 = vmatprep.subr.mxu0 0.0
        %3062 = vmatpush1.msra.mxu0 0.0
        %3063 = vmatprep.subr.mxu0 0.0
        %3064 = vmatpush1.msra.mxu0 0.0
        %3065 = vmatprep.subr.mxu0 0.0
        %3066 = vmatpush1.msra.mxu0 0.0
        %3067 = vmatprep.subr.mxu0 0.0
        %3068 = vmatpush1.msra.mxu0 0.0
        %3069 = vmatprep.subr.mxu0 0.0
        %3070 = vmatpush1.msra.mxu0 0.0
        %3071 = vmatprep.subr.mxu0 0.0
        %3072 = vmatpush1.msra.mxu0 0.0
        %3073 = vmatprep.subr.mxu0 0.0
        %3074 = vmatpush1.msra.mxu0 0.0
        %3075 = vmatprep.subr.mxu0 0.0
        %3076 = vmatpush1.msra.mxu0 0.0
        %3077 = vmatprep.subr.mxu0 0.0
        %3078 = vmatpush1.msra.mxu0 0.0
        %3079 = vmatprep.subr.mxu0 0.0
        %3080 = vmatpush1.msra.mxu0 0.0
        %3081 = vmatprep.subr.mxu0 0.0
        %3082 = vmatpush1.msra.mxu0 0.0
        %3083 = vmatprep.subr.mxu0 0.0
        %3084 = vmatpush1.msra.mxu0 0.0
        %3085 = vmatprep.subr.mxu0 0.0
        %3086 = vmatpush1.msra.mxu0 0.0
        %3087 = vmatprep.subr.mxu0 0.0
        %3088 = vmatpush1.msra.mxu0 0.0
        %3089 = vmatprep.subr.mxu0 0.0
        %3090 = vmatpush1.msra.mxu0 0.0
        %3091 = vmatprep.subr.mxu0 0.0
        %3092 = vmatpush1.msra.mxu0 0.0
        %3093 = vmatprep.subr.mxu0 0.0
        %3094 = vmatpush1.msra.mxu0 0.0
        %3095 = vmatprep.subr.mxu0 0.0
        %3096 = vmatpush1.msra.mxu0 0.0
        %3097 = vmatprep.subr.mxu0 0.0
        %3098 = vmatpush1.msra.mxu0 0.0
        %3099 = vmatprep.subr.mxu0 0.0
        %3100 = vmatpush1.msra.mxu0 0.0
        %3101 = vmatprep.subr.mxu0 0.0
        %3102 = vmatpush1.msra.mxu0 0.0
        %3103 = vmatprep.subr.mxu0 0.0
        %3104 = vmatpush1.msra.mxu0 0.0
        %3105 = vmatprep.subr.mxu0 0.0
        %3106 = vmatpush1.msra.mxu0 0.0
        %3107 = vmatprep.subr.mxu0 0.0
        %3108 = vmatpush1.msra.mxu0 0.0
        %3109 = vmatprep.subr.mxu0 0.0
        %3110 = vmatpush1.msra.mxu0 0.0
        %3111 = vmatprep.subr.mxu0 0.0
        %3112 = vmatpush1.msra.mxu0 0.0
        %3113 = vmatprep.subr.mxu0 0.0
        %3114 = vmatpush1.msra.mxu0 0.0
        %3115 = vmatprep.subr.mxu0 0.0
        %3116 = vmatpush1.msra.mxu0 0.0
        %3117 = vmatprep.subr.mxu0 0.0
        %3118 = vmatpush1.msra.mxu0 0.0
        %3119 = vmatprep.subr.mxu0 0.0
        %3120 = vmatpush1.msra.mxu0 0.0
        %3121 = vmatprep.mubr.f32.mxu0 0.0
        %3122 = vmatmul.mubr.f32.gmra.mrb[0].mxu0 %v3055
        %v3123 = vpop.f32.mrb[0].mxu0
        %v3124 = vadd.f32 0.0, %v3123
        %v3125 = vpop.f32.mrb[0].mxu0
        %3126 = vdwg.mxu0
        %3127 = vrot.lane.b32.xlu0 %v2961, 120
        %v3128 = vpop.permute.xlu0 %3127
        %3129 = vrot.lane.b32.xlu0 %v2958, 88
        %v3130 = vpop.permute.xlu0 %3129
        %v3131 = vsel %vm890, %v3128, 0
        %v3133 = vsel %vm890, %v3130, 0
        %3135 = vmatprep.subr.mxu0 0.0
        %3136 = vmatpush1.xpose.msra.mxu0 %v3133
        %3137 = vmatprep.subr.mxu0 0.0
        %3138 = vmatpush1.xpose.msra.mxu0 0.0
        %3139 = vmatprep.subr.mxu0 0.0
        %3140 = vmatpush1.xpose.msra.mxu0 0.0
        %3141 = vmatprep.subr.mxu0 0.0
        %3142 = vmatpush1.xpose.msra.mxu0 0.0
        %3143 = vmatprep.subr.mxu0 0.0
        %3144 = vmatpush1.xpose.msra.mxu0 0.0
        %3145 = vmatprep.subr.mxu0 0.0
        %3146 = vmatpush1.xpose.msra.mxu0 0.0
        %3147 = vmatprep.subr.mxu0 0.0
        %3148 = vmatpush1.xpose.msra.mxu0 0.0
        %3149 = vmatprep.subr.mxu0 0.0
        %3150 = vmatpush1.xpose.msra.mxu0 0.0
        %3151 = vmatprep.subr.mxu0 0.0
        %3152 = vmatpush1.xpose.msra.mxu0 0.0
        %3153 = vmatprep.subr.mxu0 0.0
        %3154 = vmatpush1.xpose.msra.mxu0 0.0
        %3155 = vmatprep.subr.mxu0 0.0
        %3156 = vmatpush1.xpose.msra.mxu0 0.0
        %3157 = vmatprep.subr.mxu0 0.0
        %3158 = vmatpush1.xpose.msra.mxu0 0.0
        %3159 = vmatprep.subr.mxu0 0.0
        %3160 = vmatpush1.xpose.msra.mxu0 0.0
        %3161 = vmatprep.subr.mxu0 0.0
        %3162 = vmatpush1.xpose.msra.mxu0 0.0
        %3163 = vmatprep.subr.mxu0 0.0
        %3164 = vmatpush1.xpose.msra.mxu0 0.0
        %3165 = vmatprep.subr.mxu0 0.0
        %3166 = vmatpush1.xpose.msra.mxu0 0.0
        %3167 = vmatprep.subr.mxu0 0.0
        %3168 = vmatpush1.xpose.msra.mxu0 0.0
        %3169 = vmatprep.subr.mxu0 0.0
        %3170 = vmatpush1.xpose.msra.mxu0 0.0
        %3171 = vmatprep.subr.mxu0 0.0
        %3172 = vmatpush1.xpose.msra.mxu0 0.0
        %3173 = vmatprep.subr.mxu0 0.0
        %3174 = vmatpush1.xpose.msra.mxu0 0.0
        %3175 = vmatprep.subr.mxu0 0.0
        %3176 = vmatpush1.xpose.msra.mxu0 0.0
        %3177 = vmatprep.subr.mxu0 0.0
        %3178 = vmatpush1.xpose.msra.mxu0 0.0
        %3179 = vmatprep.subr.mxu0 0.0
        %3180 = vmatpush1.xpose.msra.mxu0 0.0
        %3181 = vmatprep.subr.mxu0 0.0
        %3182 = vmatpush1.xpose.msra.mxu0 0.0
        %3183 = vmatprep.subr.mxu0 0.0
        %3184 = vmatpush1.xpose.msra.mxu0 0.0
        %3185 = vmatprep.subr.mxu0 0.0
        %3186 = vmatpush1.xpose.msra.mxu0 0.0
        %3187 = vmatprep.subr.mxu0 0.0
        %3188 = vmatpush1.xpose.msra.mxu0 0.0
        %3189 = vmatprep.subr.mxu0 0.0
        %3190 = vmatpush1.xpose.msra.mxu0 0.0
        %3191 = vmatprep.subr.mxu0 0.0
        %3192 = vmatpush1.xpose.msra.mxu0 0.0
        %3193 = vmatprep.subr.mxu0 0.0
        %3194 = vmatpush1.xpose.msra.mxu0 0.0
        %3195 = vmatprep.subr.mxu0 0.0
        %3196 = vmatpush1.xpose.msra.mxu0 0.0
        %3197 = vmatprep.subr.mxu0 0.0
        %3198 = vmatpush1.xpose.msra.mxu0 0.0
        %3199 = vmatprep.mubr.f32.mxu0 0.0
        %3200 = vmatmul.mubr.f32.gmra.mrb[0].mxu0 %v3131
        %v3201 = vpop.f32.mrb[0].mxu0
        %v3202 = vadd.f32 %v800, %v3201
        %v3203 = vpop.f32.mrb[0].mxu0
        %3204 = vdwg.mxu0
        %v3205 = vsel %vm890, %v3202, -inf
        %3206 = vmax.xlane.f32.xlu0 %v3205
        %v3207 = vpop.xlane.xlu0 %3206
        %v3208 = vsub.f32 %v3202, %v3207
        %v3209 = vmul.f32 %v3208, 1.442695
        %v3210 = vpow.pop %v3209
        %v3211 = vsel %vm890, %v3210, 0.0
        %3212 = vadd.xlane.f32.xlu0 %v3211
        %v3213 = vpop.xlane.xlu0 %3212
        %v3214 = vrcp.pop %v3213
        %v3215 = vmul.f32 %v3210, %v3214
        %3216 = vrot.lane.b32.xlu0 %v2958, 56
        %v3217 = vpop.permute.xlu0 %3216
        %v3220 = vsel %vm890, %v3215, 0
        %3222 = vmatprep.subr.mxu0 0.0
        %3223 = vmatpush1.msra.mxu0 %v3217
        %3224 = vmatprep.subr.mxu0 0.0
        %3225 = vmatpush1.msra.mxu0 0.0
        %3226 = vmatprep.subr.mxu0 0.0
        %3227 = vmatpush1.msra.mxu0 0.0
        %3228 = vmatprep.subr.mxu0 0.0
        %3229 = vmatpush1.msra.mxu0 0.0
        %3230 = vmatprep.subr.mxu0 0.0
        %3231 = vmatpush1.msra.mxu0 0.0
        %3232 = vmatprep.subr.mxu0 0.0
        %3233 = vmatpush1.msra.mxu0 0.0
        %3234 = vmatprep.subr.mxu0 0.0
        %3235 = vmatpush1.msra.mxu0 0.0
        %3236 = vmatprep.subr.mxu0 0.0
        %3237 = vmatpush1.msra.mxu0 0.0
        %3238 = vmatprep.subr.mxu0 0.0
        %3239 = vmatpush1.msra.mxu0 0.0
        %3240 = vmatprep.subr.mxu0 0.0
        %3241 = vmatpush1.msra.mxu0 0.0
        %3242 = vmatprep.subr.mxu0 0.0
        %3243 = vmatpush1.msra.mxu0 0.0
        %3244 = vmatprep.subr.mxu0 0.0
        %3245 = vmatpush1.msra.mxu0 0.0
        %3246 = vmatprep.subr.mxu0 0.0
        %3247 = vmatpush1.msra.mxu0 0.0
        %3248 = vmatprep.subr.mxu0 0.0
        %3249 = vmatpush1.msra.mxu0 0.0
        %3250 = vmatprep.subr.mxu0 0.0
        %3251 = vmatpush1.msra.mxu0 0.0
        %3252 = vmatprep.subr.mxu0 0.0
        %3253 = vmatpush1.msra.mxu0 0.0
        %3254 = vmatprep.subr.mxu0 0.0
        %3255 = vmatpush1.msra.mxu0 0.0
        %3256 = vmatprep.subr.mxu0 0.0
        %3257 = vmatpush1.msra.mxu0 0.0
        %3258 = vmatprep.subr.mxu0 0.0
        %3259 = vmatpush1.msra.mxu0 0.0
        %3260 = vmatprep.subr.mxu0 0.0
        %3261 = vmatpush1.msra.mxu0 0.0
        %3262 = vmatprep.subr.mxu0 0.0
        %3263 = vmatpush1.msra.mxu0 0.0
        %3264 = vmatprep.subr.mxu0 0.0
        %3265 = vmatpush1.msra.mxu0 0.0
        %3266 = vmatprep.subr.mxu0 0.0
        %3267 = vmatpush1.msra.mxu0 0.0
        %3268 = vmatprep.subr.mxu0 0.0
        %3269 = vmatpush1.msra.mxu0 0.0
        %3270 = vmatprep.subr.mxu0 0.0
        %3271 = vmatpush1.msra.mxu0 0.0
        %3272 = vmatprep.subr.mxu0 0.0
        %3273 = vmatpush1.msra.mxu0 0.0
        %3274 = vmatprep.subr.mxu0 0.0
        %3275 = vmatpush1.msra.mxu0 0.0
        %3276 = vmatprep.subr.mxu0 0.0
        %3277 = vmatpush1.msra.mxu0 0.0
        %3278 = vmatprep.subr.mxu0 0.0
        %3279 = vmatpush1.msra.mxu0 0.0
        %3280 = vmatprep.subr.mxu0 0.0
        %3281 = vmatpush1.msra.mxu0 0.0
        %3282 = vmatprep.subr.mxu0 0.0
        %3283 = vmatpush1.msra.mxu0 0.0
        %3284 = vmatprep.subr.mxu0 0.0
        %3285 = vmatpush1.msra.mxu0 0.0
        %3286 = vmatprep.mubr.f32.mxu0 0.0
        %3287 = vmatmul.mubr.f32.gmra.mrb[0].mxu0 %v3220
        %v3288 = vpop.f32.mrb[0].mxu0
        %v3289 = vadd.f32 0.0, %v3288
        %v3290 = vpop.f32.mrb[0].mxu0
        %3291 = vdwg.mxu0
        %3292 = vrot.lane.b32.xlu0 %v2961, 112
        %v3293 = vpop.permute.xlu0 %3292
        %3294 = vrot.lane.b32.xlu0 %v2958, 80
        %v3295 = vpop.permute.xlu0 %3294
        %v3296 = vsel %vm890, %v3293, 0
        %v3298 = vsel %vm890, %v3295, 0
        %3300 = vmatprep.subr.mxu0 0.0
        %3301 = vmatpush1.xpose.msra.mxu0 %v3298
        %3302 = vmatprep.subr.mxu0 0.0
        %3303 = vmatpush1.xpose.msra.mxu0 0.0
        %3304 = vmatprep.subr.mxu0 0.0
        %3305 = vmatpush1.xpose.msra.mxu0 0.0
        %3306 = vmatprep.subr.mxu0 0.0
        %3307 = vmatpush1.xpose.msra.mxu0 0.0
        %3308 = vmatprep.subr.mxu0 0.0
        %3309 = vmatpush1.xpose.msra.mxu0 0.0
        %3310 = vmatprep.subr.mxu0 0.0
        %3311 = vmatpush1.xpose.msra.mxu0 0.0
        %3312 = vmatprep.subr.mxu0 0.0
        %3313 = vmatpush1.xpose.msra.mxu0 0.0
        %3314 = vmatprep.subr.mxu0 0.0
        %3315 = vmatpush1.xpose.msra.mxu0 0.0
        %3316 = vmatprep.subr.mxu0 0.0
        %3317 = vmatpush1.xpose.msra.mxu0 0.0
        %3318 = vmatprep.subr.mxu0 0.0
        %3319 = vmatpush1.xpose.msra.mxu0 0.0
        %3320 = vmatprep.subr.mxu0 0.0
        %3321 = vmatpush1.xpose.msra.mxu0 0.0
        %3322 = vmatprep.subr.mxu0 0.0
        %3323 = vmatpush1.xpose.msra.mxu0 0.0
        %3324 = vmatprep.subr.mxu0 0.0
        %3325 = vmatpush1.xpose.msra.mxu0 0.0
        %3326 = vmatprep.subr.mxu0 0.0
        %3327 = vmatpush1.xpose.msra.mxu0 0.0
        %3328 = vmatprep.subr.mxu0 0.0
        %3329 = vmatpush1.xpose.msra.mxu0 0.0
        %3330 = vmatprep.subr.mxu0 0.0
        %3331 = vmatpush1.xpose.msra.mxu0 0.0
        %3332 = vmatprep.subr.mxu0 0.0
        %3333 = vmatpush1.xpose.msra.mxu0 0.0
        %3334 = vmatprep.subr.mxu0 0.0
        %3335 = vmatpush1.xpose.msra.mxu0 0.0
        %3336 = vmatprep.subr.mxu0 0.0
        %3337 = vmatpush1.xpose.msra.mxu0 0.0
        %3338 = vmatprep.subr.mxu0 0.0
        %3339 = vmatpush1.xpose.msra.mxu0 0.0
        %3340 = vmatprep.subr.mxu0 0.0
        %3341 = vmatpush1.xpose.msra.mxu0 0.0
        %3342 = vmatprep.subr.mxu0 0.0
        %3343 = vmatpush1.xpose.msra.mxu0 0.0
        %3344 = vmatprep.subr.mxu0 0.0
        %3345 = vmatpush1.xpose.msra.mxu0 0.0
        %3346 = vmatprep.subr.mxu0 0.0
        %3347 = vmatpush1.xpose.msra.mxu0 0.0
        %3348 = vmatprep.subr.mxu0 0.0
        %3349 = vmatpush1.xpose.msra.mxu0 0.0
        %3350 = vmatprep.subr.mxu0 0.0
        %3351 = vmatpush1.xpose.msra.mxu0 0.0
        %3352 = vmatprep.subr.mxu0 0.0
        %3353 = vmatpush1.xpose.msra.mxu0 0.0
        %3354 = vmatprep.subr.mxu0 0.0
        %3355 = vmatpush1.xpose.msra.mxu0 0.0
        %3356 = vmatprep.subr.mxu0 0.0
        %3357 = vmatpush1.xpose.msra.mxu0 0.0
        %3358 = vmatprep.subr.mxu0 0.0
        %3359 = vmatpush1.xpose.msra.mxu0 0.0
        %3360 = vmatprep.subr.mxu0 0.0
        %3361 = vmatpush1.xpose.msra.mxu0 0.0
        %3362 = vmatprep.subr.mxu0 0.0
        %3363 = vmatpush1.xpose.msra.mxu0 0.0
        %3364 = vmatprep.mubr.f32.mxu0 0.0
        %3365 = vmatmul.mubr.f32.gmra.mrb[0].mxu0 %v3296
        %v3366 = vpop.f32.mrb[0].mxu0
        %v3367 = vadd.f32 %v800, %v3366
        %v3368 = vpop.f32.mrb[0].mxu0
        %3369 = vdwg.mxu0
        %v3370 = vsel %vm890, %v3367, -inf
        %3371 = vmax.xlane.f32.xlu0 %v3370
        %v3372 = vpop.xlane.xlu0 %3371
        %v3373 = vsub.f32 %v3367, %v3372
        %v3374 = vmul.f32 %v3373, 1.442695
        %v3375 = vpow.pop %v3374
        %v3376 = vsel %vm890, %v3375, 0.0
        %3377 = vadd.xlane.f32.xlu0 %v3376
        %v3378 = vpop.xlane.xlu0 %3377
        %v3379 = vrcp.pop %v3378
        %v3380 = vmul.f32 %v3375, %v3379
        %3381 = vrot.lane.b32.xlu0 %v2958, 48
        %v3382 = vpop.permute.xlu0 %3381
        %v3385 = vsel %vm890, %v3380, 0
        %3387 = vmatprep.subr.mxu0 0.0
        %3388 = vmatpush1.msra.mxu0 %v3382
        %3389 = vmatprep.subr.mxu0 0.0
        %3390 = vmatpush1.msra.mxu0 0.0
        %3391 = vmatprep.subr.mxu0 0.0
        %3392 = vmatpush1.msra.mxu0 0.0
        %3393 = vmatprep.subr.mxu0 0.0
        %3394 = vmatpush1.msra.mxu0 0.0
        %3395 = vmatprep.subr.mxu0 0.0
        %3396 = vmatpush1.msra.mxu0 0.0
        %3397 = vmatprep.subr.mxu0 0.0
        %3398 = vmatpush1.msra.mxu0 0.0
        %3399 = vmatprep.subr.mxu0 0.0
        %3400 = vmatpush1.msra.mxu0 0.0
        %3401 = vmatprep.subr.mxu0 0.0
        %3402 = vmatpush1.msra.mxu0 0.0
        %3403 = vmatprep.subr.mxu0 0.0
        %3404 = vmatpush1.msra.mxu0 0.0
        %3405 = vmatprep.subr.mxu0 0.0
        %3406 = vmatpush1.msra.mxu0 0.0
        %3407 = vmatprep.subr.mxu0 0.0
        %3408 = vmatpush1.msra.mxu0 0.0
        %3409 = vmatprep.subr.mxu0 0.0
        %3410 = vmatpush1.msra.mxu0 0.0
        %3411 = vmatprep.subr.mxu0 0.0
        %3412 = vmatpush1.msra.mxu0 0.0
        %3413 = vmatprep.subr.mxu0 0.0
        %3414 = vmatpush1.msra.mxu0 0.0
        %3415 = vmatprep.subr.mxu0 0.0
        %3416 = vmatpush1.msra.mxu0 0.0
        %3417 = vmatprep.subr.mxu0 0.0
        %3418 = vmatpush1.msra.mxu0 0.0
        %3419 = vmatprep.subr.mxu0 0.0
        %3420 = vmatpush1.msra.mxu0 0.0
        %3421 = vmatprep.subr.mxu0 0.0
        %3422 = vmatpush1.msra.mxu0 0.0
        %3423 = vmatprep.subr.mxu0 0.0
        %3424 = vmatpush1.msra.mxu0 0.0
        %3425 = vmatprep.subr.mxu0 0.0
        %3426 = vmatpush1.msra.mxu0 0.0
        %3427 = vmatprep.subr.mxu0 0.0
        %3428 = vmatpush1.msra.mxu0 0.0
        %3429 = vmatprep.subr.mxu0 0.0
        %3430 = vmatpush1.msra.mxu0 0.0
        %3431 = vmatprep.subr.mxu0 0.0
        %3432 = vmatpush1.msra.mxu0 0.0
        %3433 = vmatprep.subr.mxu0 0.0
        %3434 = vmatpush1.msra.mxu0 0.0
        %3435 = vmatprep.subr.mxu0 0.0
        %3436 = vmatpush1.msra.mxu0 0.0
        %3437 = vmatprep.subr.mxu0 0.0
        %3438 = vmatpush1.msra.mxu0 0.0
        %3439 = vmatprep.subr.mxu0 0.0
        %3440 = vmatpush1.msra.mxu0 0.0
        %3441 = vmatprep.subr.mxu0 0.0
        %3442 = vmatpush1.msra.mxu0 0.0
        %3443 = vmatprep.subr.mxu0 0.0
        %3444 = vmatpush1.msra.mxu0 0.0
        %3445 = vmatprep.subr.mxu0 0.0
        %3446 = vmatpush1.msra.mxu0 0.0
        %3447 = vmatprep.subr.mxu0 0.0
        %3448 = vmatpush1.msra.mxu0 0.0
        %3449 = vmatprep.subr.mxu0 0.0
        %3450 = vmatpush1.msra.mxu0 0.0
        %3451 = vmatprep.mubr.f32.mxu0 0.0
        %3452 = vmatmul.mubr.f32.gmra.mrb[0].mxu0 %v3385
        %v3453 = vpop.f32.mrb[0].mxu0
        %v3454 = vadd.f32 0.0, %v3453
        %v3455 = vpop.f32.mrb[0].mxu0
        %3456 = vdwg.mxu0
        %3457 = vrot.lane.b32.xlu0 %v2961, 104
        %v3458 = vpop.permute.xlu0 %3457
        %3459 = vrot.lane.b32.xlu0 %v2958, 72
        %v3460 = vpop.permute.xlu0 %3459
        %v3461 = vsel %vm890, %v3458, 0
        %v3463 = vsel %vm890, %v3460, 0
        %3465 = vmatprep.subr.mxu0 0.0
        %3466 = vmatpush1.xpose.msra.mxu0 %v3463
        %3467 = vmatprep.subr.mxu0 0.0
        %3468 = vmatpush1.xpose.msra.mxu0 0.0
        %3469 = vmatprep.subr.mxu0 0.0
        %3470 = vmatpush1.xpose.msra.mxu0 0.0
        %3471 = vmatprep.subr.mxu0 0.0
        %3472 = vmatpush1.xpose.msra.mxu0 0.0
        %3473 = vmatprep.subr.mxu0 0.0
        %3474 = vmatpush1.xpose.msra.mxu0 0.0
        %3475 = vmatprep.subr.mxu0 0.0
        %3476 = vmatpush1.xpose.msra.mxu0 0.0
        %3477 = vmatprep.subr.mxu0 0.0
        %3478 = vmatpush1.xpose.msra.mxu0 0.0
        %3479 = vmatprep.subr.mxu0 0.0
        %3480 = vmatpush1.xpose.msra.mxu0 0.0
        %3481 = vmatprep.subr.mxu0 0.0
        %3482 = vmatpush1.xpose.msra.mxu0 0.0
        %3483 = vmatprep.subr.mxu0 0.0
        %3484 = vmatpush1.xpose.msra.mxu0 0.0
        %3485 = vmatprep.subr.mxu0 0.0
        %3486 = vmatpush1.xpose.msra.mxu0 0.0
        %3487 = vmatprep.subr.mxu0 0.0
        %3488 = vmatpush1.xpose.msra.mxu0 0.0
        %3489 = vmatprep.subr.mxu0 0.0
        %3490 = vmatpush1.xpose.msra.mxu0 0.0
        %3491 = vmatprep.subr.mxu0 0.0
        %3492 = vmatpush1.xpose.msra.mxu0 0.0
        %3493 = vmatprep.subr.mxu0 0.0
        %3494 = vmatpush1.xpose.msra.mxu0 0.0
        %3495 = vmatprep.subr.mxu0 0.0
        %3496 = vmatpush1.xpose.msra.mxu0 0.0
        %3497 = vmatprep.subr.mxu0 0.0
        %3498 = vmatpush1.xpose.msra.mxu0 0.0
        %3499 = vmatprep.subr.mxu0 0.0
        %3500 = vmatpush1.xpose.msra.mxu0 0.0
        %3501 = vmatprep.subr.mxu0 0.0
        %3502 = vmatpush1.xpose.msra.mxu0 0.0
        %3503 = vmatprep.subr.mxu0 0.0
        %3504 = vmatpush1.xpose.msra.mxu0 0.0
        %3505 = vmatprep.subr.mxu0 0.0
        %3506 = vmatpush1.xpose.msra.mxu0 0.0
        %3507 = vmatprep.subr.mxu0 0.0
        %3508 = vmatpush1.xpose.msra.mxu0 0.0
        %3509 = vmatprep.subr.mxu0 0.0
        %3510 = vmatpush1.xpose.msra.mxu0 0.0
        %3511 = vmatprep.subr.mxu0 0.0
        %3512 = vmatpush1.xpose.msra.mxu0 0.0
        %3513 = vmatprep.subr.mxu0 0.0
        %3514 = vmatpush1.xpose.msra.mxu0 0.0
        %3515 = vmatprep.subr.mxu0 0.0
        %3516 = vmatpush1.xpose.msra.mxu0 0.0
        %3517 = vmatprep.subr.mxu0 0.0
        %3518 = vmatpush1.xpose.msra.mxu0 0.0
        %3519 = vmatprep.subr.mxu0 0.0
        %3520 = vmatpush1.xpose.msra.mxu0 0.0
        %3521 = vmatprep.subr.mxu0 0.0
        %3522 = vmatpush1.xpose.msra.mxu0 0.0
        %3523 = vmatprep.subr.mxu0 0.0
        %3524 = vmatpush1.xpose.msra.mxu0 0.0
        %3525 = vmatprep.subr.mxu0 0.0
        %3526 = vmatpush1.xpose.msra.mxu0 0.0
        %3527 = vmatprep.subr.mxu0 0.0
        %3528 = vmatpush1.xpose.msra.mxu0 0.0
        %3529 = vmatprep.mubr.f32.mxu0 0.0
        %3530 = vmatmul.mubr.f32.gmra.mrb[0].mxu0 %v3461
        %v3531 = vpop.f32.mrb[0].mxu0
        %v3532 = vadd.f32 %v800, %v3531
        %v3533 = vpop.f32.mrb[0].mxu0
        %3534 = vdwg.mxu0
        %v3535 = vsel %vm890, %v3532, -inf
        %3536 = vmax.xlane.f32.xlu0 %v3535
        %v3537 = vpop.xlane.xlu0 %3536
        %v3538 = vsub.f32 %v3532, %v3537
        %v3539 = vmul.f32 %v3538, 1.442695
        %v3540 = vpow.pop %v3539
        %v3541 = vsel %vm890, %v3540, 0.0
        %3542 = vadd.xlane.f32.xlu0 %v3541
        %v3543 = vpop.xlane.xlu0 %3542
        %v3544 = vrcp.pop %v3543
        %v3545 = vmul.f32 %v3540, %v3544
        %3546 = vrot.lane.b32.xlu0 %v2958, 40
        %v3547 = vpop.permute.xlu0 %3546
        %v3550 = vsel %vm890, %v3545, 0
        %3552 = vmatprep.subr.mxu0 0.0
        %3553 = vmatpush1.msra.mxu0 %v3547
        %3554 = vmatprep.subr.mxu0 0.0
        %3555 = vmatpush1.msra.mxu0 0.0
        %3556 = vmatprep.subr.mxu0 0.0
        %3557 = vmatpush1.msra.mxu0 0.0
        %3558 = vmatprep.subr.mxu0 0.0
        %3559 = vmatpush1.msra.mxu0 0.0
        %3560 = vmatprep.subr.mxu0 0.0
        %3561 = vmatpush1.msra.mxu0 0.0
        %3562 = vmatprep.subr.mxu0 0.0
        %3563 = vmatpush1.msra.mxu0 0.0
        %3564 = vmatprep.subr.mxu0 0.0
        %3565 = vmatpush1.msra.mxu0 0.0
        %3566 = vmatprep.subr.mxu0 0.0
        %3567 = vmatpush1.msra.mxu0 0.0
        %3568 = vmatprep.subr.mxu0 0.0
        %3569 = vmatpush1.msra.mxu0 0.0
        %3570 = vmatprep.subr.mxu0 0.0
        %3571 = vmatpush1.msra.mxu0 0.0
        %3572 = vmatprep.subr.mxu0 0.0
        %3573 = vmatpush1.msra.mxu0 0.0
        %3574 = vmatprep.subr.mxu0 0.0
        %3575 = vmatpush1.msra.mxu0 0.0
        %3576 = vmatprep.subr.mxu0 0.0
        %3577 = vmatpush1.msra.mxu0 0.0
        %3578 = vmatprep.subr.mxu0 0.0
        %3579 = vmatpush1.msra.mxu0 0.0
        %3580 = vmatprep.subr.mxu0 0.0
        %3581 = vmatpush1.msra.mxu0 0.0
        %3582 = vmatprep.subr.mxu0 0.0
        %3583 = vmatpush1.msra.mxu0 0.0
        %3584 = vmatprep.subr.mxu0 0.0
        %3585 = vmatpush1.msra.mxu0 0.0
        %3586 = vmatprep.subr.mxu0 0.0
        %3587 = vmatpush1.msra.mxu0 0.0
        %3588 = vmatprep.subr.mxu0 0.0
        %3589 = vmatpush1.msra.mxu0 0.0
        %3590 = vmatprep.subr.mxu0 0.0
        %3591 = vmatpush1.msra.mxu0 0.0
        %3592 = vmatprep.subr.mxu0 0.0
        %3593 = vmatpush1.msra.mxu0 0.0
        %3594 = vmatprep.subr.mxu0 0.0
        %3595 = vmatpush1.msra.mxu0 0.0
        %3596 = vmatprep.subr.mxu0 0.0
        %3597 = vmatpush1.msra.mxu0 0.0
        %3598 = vmatprep.subr.mxu0 0.0
        %3599 = vmatpush1.msra.mxu0 0.0
        %3600 = vmatprep.subr.mxu0 0.0
        %3601 = vmatpush1.msra.mxu0 0.0
        %3602 = vmatprep.subr.mxu0 0.0
        %3603 = vmatpush1.msra.mxu0 0.0
        %3604 = vmatprep.subr.mxu0 0.0
        %3605 = vmatpush1.msra.mxu0 0.0
        %3606 = vmatprep.subr.mxu0 0.0
        %3607 = vmatpush1.msra.mxu0 0.0
        %3608 = vmatprep.subr.mxu0 0.0
        %3609 = vmatpush1.msra.mxu0 0.0
        %3610 = vmatprep.subr.mxu0 0.0
        %3611 = vmatpush1.msra.mxu0 0.0
        %3612 = vmatprep.subr.mxu0 0.0
        %3613 = vmatpush1.msra.mxu0 0.0
        %3614 = vmatprep.subr.mxu0 0.0
        %3615 = vmatpush1.msra.mxu0 0.0
        %3616 = vmatprep.mubr.f32.mxu0 0.0
        %3617 = vmatmul.mubr.f32.gmra.mrb[0].mxu0 %v3550
        %v3618 = vpop.f32.mrb[0].mxu0
        %v3619 = vadd.f32 0.0, %v3618
        %v3620 = vpop.f32.mrb[0].mxu0
        %3621 = vdwg.mxu0
        %3623 = vrot.lane.b32.xlu0 %v3289, 8
        %v3624 = vpop.permute.xlu0 %3623
        %3627 = vrot.lane.b32.xlu0 %v3454, 16
        %v3628 = vpop.permute.xlu0 %3627
        %3631 = vrot.lane.b32.xlu0 %v3619, 24
        %v3632 = vpop.permute.xlu0 %3631
        %v3634 = vsel %vm890, %v3124, %v3624
        %v3635 = vsel %vm1561, %v3634, %v3628
        %v3636 = vsel %vm1563, %v3635, %v3632
        %s3637 = scalar_lea.vmem %s5, 32
        %v3638 = vld [vmem:[%s3637] sm:$0xff]
        %v3639 = vld [vmem:[%s3637 + $0x8] sm:$0xff]
        %v3640 = vld [vmem:[%s3637 + $0x10] sm:$0xff]
        %v3641 = vld [vmem:[%s3637 + $0x18] sm:$0xff]
        %s3642 = scalar_lea.vmem %s6, 1
        %v3643 = vld [vmem:[%s3642] sm:$0x1]
        %v3645 = vlaneseq
        %v3646 = vshrl.u32 %v3645, 7
        %v3647 = vsub.s32 0, %v3646
        %v3648 = vrot.slane %v3643, %v3647
        %v3651 = vsel %vm812, %v3636, 0
        %3653 = vmatprep.subr.mxu0 0.0
        %3654 = vmatpush1.msra.mxu0 %v3638
        %3655 = vmatprep.subr.mxu0 0.0
        %3656 = vmatpush1.msra.mxu0 %v3639
        %3657 = vmatprep.subr.mxu0 0.0
        %3658 = vmatpush1.msra.mxu0 %v3640
        %3659 = vmatprep.subr.mxu0 0.0
        %3660 = vmatpush1.msra.mxu0 %v3641
        %3661 = vmatprep.subr.mxu0 0.0
        %3662 = vmatpush1.msra.mxu0 0.0
        %3663 = vmatprep.subr.mxu0 0.0
        %3664 = vmatpush1.msra.mxu0 0.0
        %3665 = vmatprep.subr.mxu0 0.0
        %3666 = vmatpush1.msra.mxu0 0.0
        %3667 = vmatprep.subr.mxu0 0.0
        %3668 = vmatpush1.msra.mxu0 0.0
        %3669 = vmatprep.subr.mxu0 0.0
        %3670 = vmatpush1.msra.mxu0 0.0
        %3671 = vmatprep.subr.mxu0 0.0
        %3672 = vmatpush1.msra.mxu0 0.0
        %3673 = vmatprep.subr.mxu0 0.0
        %3674 = vmatpush1.msra.mxu0 0.0
        %3675 = vmatprep.subr.mxu0 0.0
        %3676 = vmatpush1.msra.mxu0 0.0
        %3677 = vmatprep.subr.mxu0 0.0
        %3678 = vmatpush1.msra.mxu0 0.0
        %3679 = vmatprep.subr.mxu0 0.0
        %3680 = vmatpush1.msra.mxu0 0.0
        %3681 = vmatprep.subr.mxu0 0.0
        %3682 = vmatpush1.msra.mxu0 0.0
        %3683 = vmatprep.subr.mxu0 0.0
        %3684 = vmatpush1.msra.mxu0 0.0
        %3685 = vmatprep.subr.mxu0 0.0
        %3686 = vmatpush1.msra.mxu0 0.0
        %3687 = vmatprep.subr.mxu0 0.0
        %3688 = vmatpush1.msra.mxu0 0.0
        %3689 = vmatprep.subr.mxu0 0.0
        %3690 = vmatpush1.msra.mxu0 0.0
        %3691 = vmatprep.subr.mxu0 0.0
        %3692 = vmatpush1.msra.mxu0 0.0
        %3693 = vmatprep.subr.mxu0 0.0
        %3694 = vmatpush1.msra.mxu0 0.0
        %3695 = vmatprep.subr.mxu0 0.0
        %3696 = vmatpush1.msra.mxu0 0.0
        %3697 = vmatprep.subr.mxu0 0.0
        %3698 = vmatpush1.msra.mxu0 0.0
        %3699 = vmatprep.subr.mxu0 0.0
        %3700 = vmatpush1.msra.mxu0 0.0
        %3701 = vmatprep.subr.mxu0 0.0
        %3702 = vmatpush1.msra.mxu0 0.0
        %3703 = vmatprep.subr.mxu0 0.0
        %3704 = vmatpush1.msra.mxu0 0.0
        %3705 = vmatprep.subr.mxu0 0.0
        %3706 = vmatpush1.msra.mxu0 0.0
        %3707 = vmatprep.subr.mxu0 0.0
        %3708 = vmatpush1.msra.mxu0 0.0
        %3709 = vmatprep.subr.mxu0 0.0
        %3710 = vmatpush1.msra.mxu0 0.0
        %3711 = vmatprep.subr.mxu0 0.0
        %3712 = vmatpush1.msra.mxu0 0.0
        %3713 = vmatprep.subr.mxu0 0.0
        %3714 = vmatpush1.msra.mxu0 0.0
        %3715 = vmatprep.subr.mxu0 0.0
        %3716 = vmatpush1.msra.mxu0 0.0
        %3717 = vmatprep.mubr.f32.mxu0 0.0
        %3718 = vmatmul.mubr.f32.gmra.mrb[0].mxu0 %v3651
        %v3719 = vpop.f32.mrb[0].mxu0
        %v3720 = vadd.f32 %v3648, %v3719
        %v3721 = vpop.f32.mrb[0].mxu0
        %3722 = vdwg.mxu0
        %v3723 = vadd.f32 %v2874, %v3720
        %s3724 = scalar_lea.vmem %s17, 1
        %v3725 = vld [vmem:[%s3724] sm:$0x1]
        %s3726 = scalar_lea.vmem %s18, 1
        %v3727 = vld [vmem:[%s3726] sm:$0x1]
        %v3728 = vsel %vm812, %v3723, 0.0
        %3729 = vadd.xlane.f32.xlu0 %v3728
        %v3730 = vpop.xlane.xlu0 %3729
        %v3731 = vmul.f32 %v3730, %v1655
        %v3732 = vsub.f32 %v3723, %v3731
        %v3733 = vmul.f32 %v3732, %v3732
        %v3734 = vsel %vm812, %v3733, 0.0
        %3735 = vadd.xlane.f32.xlu0 %v3734
        %v3736 = vpop.xlane.xlu0 %3735
        %v3737 = vmul.f32 %v3736, %v1655
        %v3738 = vadd.f32 %v3737, 1e-05
        %v3739 = vrsqrt.pop %v3738
        %v3740 = vmul.f32 %v3732, %v3739
        %v3742 = vlaneseq
        %v3743 = vshrl.u32 %v3742, 7
        %v3744 = vsub.s32 0, %v3743
        %v3745 = vrot.slane %v3725, %v3744
        %v3747 = vmul.f32 %v3740, %v3745
        %v3749 = vlaneseq
        %v3750 = vshrl.u32 %v3749, 7
        %v3751 = vsub.s32 0, %v3750
        %v3752 = vrot.slane %v3727, %v3751
        %v3754 = vadd.f32 %v3747, %v3752
        %s3755 = scalar_lea.vmem %s7, 32
        %v3756 = vld [vmem:[%s3755] sm:$0xff]
        %v3757 = vld [vmem:[%s3755 + $0x8] sm:$0xff]
        %v3758 = vld [vmem:[%s3755 + $0x10] sm:$0xff]
        %v3759 = vld [vmem:[%s3755 + $0x18] sm:$0xff]
        %s3760 = scalar_lea.vmem %s8, 1
        %v3761 = vld [vmem:[%s3760] sm:$0x1]
        %v3763 = vlaneseq
        %v3764 = vshrl.u32 %v3763, 7
        %v3765 = vsub.s32 0, %v3764
        %v3766 = vrot.slane %v3761, %v3765
        %v3769 = vsel %vm812, %v3754, 0
        %3771 = vmatprep.subr.mxu0 0.0
        %3772 = vmatpush1.msra.mxu0 %v3756
        %3773 = vmatprep.subr.mxu0 0.0
        %3774 = vmatpush1.msra.mxu0 %v3757
        %3775 = vmatprep.subr.mxu0 0.0
        %3776 = vmatpush1.msra.mxu0 %v3758
        %3777 = vmatprep.subr.mxu0 0.0
        %3778 = vmatpush1.msra.mxu0 %v3759
        %3779 = vmatprep.subr.mxu0 0.0
        %3780 = vmatpush1.msra.mxu0 0.0
        %3781 = vmatprep.subr.mxu0 0.0
        %3782 = vmatpush1.msra.mxu0 0.0
        %3783 = vmatprep.subr.mxu0 0.0
        %3784 = vmatpush1.msra.mxu0 0.0
        %3785 = vmatprep.subr.mxu0 0.0
        %3786 = vmatpush1.msra.mxu0 0.0
        %3787 = vmatprep.subr.mxu0 0.0
        %3788 = vmatpush1.msra.mxu0 0.0
        %3789 = vmatprep.subr.mxu0 0.0
        %3790 = vmatpush1.msra.mxu0 0.0
        %3791 = vmatprep.subr.mxu0 0.0
        %3792 = vmatpush1.msra.mxu0 0.0
        %3793 = vmatprep.subr.mxu0 0.0
        %3794 = vmatpush1.msra.mxu0 0.0
        %3795 = vmatprep.subr.mxu0 0.0
        %3796 = vmatpush1.msra.mxu0 0.0
        %3797 = vmatprep.subr.mxu0 0.0
        %3798 = vmatpush1.msra.mxu0 0.0
        %3799 = vmatprep.subr.mxu0 0.0
        %3800 = vmatpush1.msra.mxu0 0.0
        %3801 = vmatprep.subr.mxu0 0.0
        %3802 = vmatpush1.msra.mxu0 0.0
        %3803 = vmatprep.subr.mxu0 0.0
        %3804 = vmatpush1.msra.mxu0 0.0
        %3805 = vmatprep.subr.mxu0 0.0
        %3806 = vmatpush1.msra.mxu0 0.0
        %3807 = vmatprep.subr.mxu0 0.0
        %3808 = vmatpush1.msra.mxu0 0.0
        %3809 = vmatprep.subr.mxu0 0.0
        %3810 = vmatpush1.msra.mxu0 0.0
        %3811 = vmatprep.subr.mxu0 0.0
        %3812 = vmatpush1.msra.mxu0 0.0
        %3813 = vmatprep.subr.mxu0 0.0
        %3814 = vmatpush1.msra.mxu0 0.0
        %3815 = vmatprep.subr.mxu0 0.0
        %3816 = vmatpush1.msra.mxu0 0.0
        %3817 = vmatprep.subr.mxu0 0.0
        %3818 = vmatpush1.msra.mxu0 0.0
        %3819 = vmatprep.subr.mxu0 0.0
        %3820 = vmatpush1.msra.mxu0 0.0
        %3821 = vmatprep.subr.mxu0 0.0
        %3822 = vmatpush1.msra.mxu0 0.0
        %3823 = vmatprep.subr.mxu0 0.0
        %3824 = vmatpush1.msra.mxu0 0.0
        %3825 = vmatprep.subr.mxu0 0.0
        %3826 = vmatpush1.msra.mxu0 0.0
        %3827 = vmatprep.subr.mxu0 0.0
        %3828 = vmatpush1.msra.mxu0 0.0
        %3829 = vmatprep.subr.mxu0 0.0
        %3830 = vmatpush1.msra.mxu0 0.0
        %3831 = vmatprep.subr.mxu0 0.0
        %3832 = vmatpush1.msra.mxu0 0.0
        %3833 = vmatprep.subr.mxu0 0.0
        %3834 = vmatpush1.msra.mxu0 0.0
        %3835 = vmatprep.mubr.f32.mxu0 0.0
        %3836 = vmatmul.mubr.f32.gmra.mrb[0].mxu0 %v3769
        %v3837 = vpop.f32.mrb[0].mxu0
        %v3838 = vadd.f32 %v3766, %v3837
        %v3839 = vpop.f32.mrb[0].mxu0
        %3840 = vdwg.mxu0
        %s3841 = scalar_lea.vmem %s9, 32
        %v3842 = vld [vmem:[%s3841] sm:$0xff]
        %v3843 = vld [vmem:[%s3841 + $0x8] sm:$0xff]
        %v3844 = vld [vmem:[%s3841 + $0x10] sm:$0xff]
        %v3845 = vld [vmem:[%s3841 + $0x18] sm:$0xff]
        %s3846 = scalar_lea.vmem %s10, 1
        %v3847 = vld [vmem:[%s3846] sm:$0x1]
        %v3849 = vlaneseq
        %v3850 = vshrl.u32 %v3849, 7
        %v3851 = vsub.s32 0, %v3850
        %v3852 = vrot.slane %v3847, %v3851
        %3854 = vmatprep.subr.mxu0 0.0
        %3855 = vmatpush1.msra.mxu0 %v3842
        %3856 = vmatprep.subr.mxu0 0.0
        %3857 = vmatpush1.msra.mxu0 %v3843
        %3858 = vmatprep.subr.mxu0 0.0
        %3859 = vmatpush1.msra.mxu0 %v3844
        %3860 = vmatprep.subr.mxu0 0.0
        %3861 = vmatpush1.msra.mxu0 %v3845
        %3862 = vmatprep.subr.mxu0 0.0
        %3863 = vmatpush1.msra.mxu0 0.0
        %3864 = vmatprep.subr.mxu0 0.0
        %3865 = vmatpush1.msra.mxu0 0.0
        %3866 = vmatprep.subr.mxu0 0.0
        %3867 = vmatpush1.msra.mxu0 0.0
        %3868 = vmatprep.subr.mxu0 0.0
        %3869 = vmatpush1.msra.mxu0 0.0
        %3870 = vmatprep.subr.mxu0 0.0
        %3871 = vmatpush1.msra.mxu0 0.0
        %3872 = vmatprep.subr.mxu0 0.0
        %3873 = vmatpush1.msra.mxu0 0.0
        %3874 = vmatprep.subr.mxu0 0.0
        %3875 = vmatpush1.msra.mxu0 0.0
        %3876 = vmatprep.subr.mxu0 0.0
        %3877 = vmatpush1.msra.mxu0 0.0
        %3878 = vmatprep.subr.mxu0 0.0
        %3879 = vmatpush1.msra.mxu0 0.0
        %3880 = vmatprep.subr.mxu0 0.0
        %3881 = vmatpush1.msra.mxu0 0.0
        %3882 = vmatprep.subr.mxu0 0.0
        %3883 = vmatpush1.msra.mxu0 0.0
        %3884 = vmatprep.subr.mxu0 0.0
        %3885 = vmatpush1.msra.mxu0 0.0
        %3886 = vmatprep.subr.mxu0 0.0
        %3887 = vmatpush1.msra.mxu0 0.0
        %3888 = vmatprep.subr.mxu0 0.0
        %3889 = vmatpush1.msra.mxu0 0.0
        %3890 = vmatprep.subr.mxu0 0.0
        %3891 = vmatpush1.msra.mxu0 0.0
        %3892 = vmatprep.subr.mxu0 0.0
        %3893 = vmatpush1.msra.mxu0 0.0
        %3894 = vmatprep.subr.mxu0 0.0
        %3895 = vmatpush1.msra.mxu0 0.0
        %3896 = vmatprep.subr.mxu0 0.0
        %3897 = vmatpush1.msra.mxu0 0.0
        %3898 = vmatprep.subr.mxu0 0.0
        %3899 = vmatpush1.msra.mxu0 0.0
        %3900 = vmatprep.subr.mxu0 0.0
        %3901 = vmatpush1.msra.mxu0 0.0
        %3902 = vmatprep.subr.mxu0 0.0
        %3903 = vmatpush1.msra.mxu0 0.0
        %3904 = vmatprep.subr.mxu0 0.0
        %3905 = vmatpush1.msra.mxu0 0.0
        %3906 = vmatprep.subr.mxu0 0.0
        %3907 = vmatpush1.msra.mxu0 0.0
        %3908 = vmatprep.subr.mxu0 0.0
        %3909 = vmatpush1.msra.mxu0 0.0
        %3910 = vmatprep.subr.mxu0 0.0
        %3911 = vmatpush1.msra.mxu0 0.0
        %3912 = vmatprep.subr.mxu0 0.0
        %3913 = vmatpush1.msra.mxu0 0.0
        %3914 = vmatprep.subr.mxu0 0.0
        %3915 = vmatpush1.msra.mxu0 0.0
        %3916 = vmatprep.subr.mxu0 0.0
        %3917 = vmatpush1.msra.mxu0 0.0
        %3918 = vmatprep.mubr.f32.mxu0 0.0
        %3919 = vmatmul.mubr.f32.gmra.mrb[0].mxu0 %v1776
        %v3920 = vpop.f32.mrb[0].mxu0
        %v3921 = vadd.f32 %v3852, %v3920
        %v3922 = vpop.f32.mrb[0].mxu0
        %3923 = vmatprep.mubr.f32.mxu0 0.0
        %3924 = vmatmul.mubr.f32.gmra.mrb[0].mxu0 %v1779
        %v3925 = vpop.f32.mrb[0].mxu0
        %v3926 = vadd.f32 %v3852, %v3925
        %v3927 = vpop.f32.mrb[0].mxu0
        %3928 = vdwg.mxu0
        %v3929 = vmul.f32 %v3838, 0.35355338
        %v3931 = vsel %vm890, %v3929, 0
        %v3934 = vsel %vm890, %v3921, 0
        %v3937 = vsel %vm890, %v3926, 0
        %3939 = vmatprep.subr.mxu0 0.0
        %3940 = vmatpush1.xpose.msra.mxu0 %v3934
        %3941 = vmatprep.subr.mxu0 0.0
        %3942 = vmatpush1.xpose.msra.mxu0 %v3937
        %3943 = vmatprep.subr.mxu0 0.0
        %3944 = vmatpush1.xpose.msra.mxu0 0.0
        %3945 = vmatprep.subr.mxu0 0.0
        %3946 = vmatpush1.xpose.msra.mxu0 0.0
        %3947 = vmatprep.subr.mxu0 0.0
        %3948 = vmatpush1.xpose.msra.mxu0 0.0
        %3949 = vmatprep.subr.mxu0 0.0
        %3950 = vmatpush1.xpose.msra.mxu0 0.0
        %3951 = vmatprep.subr.mxu0 0.0
        %3952 = vmatpush1.xpose.msra.mxu0 0.0
        %3953 = vmatprep.subr.mxu0 0.0
        %3954 = vmatpush1.xpose.msra.mxu0 0.0
        %3955 = vmatprep.subr.mxu0 0.0
        %3956 = vmatpush1.xpose.msra.mxu0 0.0
        %3957 = vmatprep.subr.mxu0 0.0
        %3958 = vmatpush1.xpose.msra.mxu0 0.0
        %3959 = vmatprep.subr.mxu0 0.0
        %3960 = vmatpush1.xpose.msra.mxu0 0.0
        %3961 = vmatprep.subr.mxu0 0.0
        %3962 = vmatpush1.xpose.msra.mxu0 0.0
        %3963 = vmatprep.subr.mxu0 0.0
        %3964 = vmatpush1.xpose.msra.mxu0 0.0
        %3965 = vmatprep.subr.mxu0 0.0
        %3966 = vmatpush1.xpose.msra.mxu0 0.0
        %3967 = vmatprep.subr.mxu0 0.0
        %3968 = vmatpush1.xpose.msra.mxu0 0.0
        %3969 = vmatprep.subr.mxu0 0.0
        %3970 = vmatpush1.xpose.msra.mxu0 0.0
        %3971 = vmatprep.subr.mxu0 0.0
        %3972 = vmatpush1.xpose.msra.mxu0 0.0
        %3973 = vmatprep.subr.mxu0 0.0
        %3974 = vmatpush1.xpose.msra.mxu0 0.0
        %3975 = vmatprep.subr.mxu0 0.0
        %3976 = vmatpush1.xpose.msra.mxu0 0.0
        %3977 = vmatprep.subr.mxu0 0.0
        %3978 = vmatpush1.xpose.msra.mxu0 0.0
        %3979 = vmatprep.subr.mxu0 0.0
        %3980 = vmatpush1.xpose.msra.mxu0 0.0
        %3981 = vmatprep.subr.mxu0 0.0
        %3982 = vmatpush1.xpose.msra.mxu0 0.0
        %3983 = vmatprep.subr.mxu0 0.0
        %3984 = vmatpush1.xpose.msra.mxu0 0.0
        %3985 = vmatprep.subr.mxu0 0.0
        %3986 = vmatpush1.xpose.msra.mxu0 0.0
        %3987 = vmatprep.subr.mxu0 0.0
        %3988 = vmatpush1.xpose.msra.mxu0 0.0
        %3989 = vmatprep.subr.mxu0 0.0
        %3990 = vmatpush1.xpose.msra.mxu0 0.0
        %3991 = vmatprep.subr.mxu0 0.0
        %3992 = vmatpush1.xpose.msra.mxu0 0.0
        %3993 = vmatprep.subr.mxu0 0.0
        %3994 = vmatpush1.xpose.msra.mxu0 0.0
        %3995 = vmatprep.subr.mxu0 0.0
        %3996 = vmatpush1.xpose.msra.mxu0 0.0
        %3997 = vmatprep.subr.mxu0 0.0
        %3998 = vmatpush1.xpose.msra.mxu0 0.0
        %3999 = vmatprep.subr.mxu0 0.0
        %4000 = vmatpush1.xpose.msra.mxu0 0.0
        %4001 = vmatprep.subr.mxu0 0.0
        %4002 = vmatpush1.xpose.msra.mxu0 0.0
        %4003 = vmatprep.mubr.f32.mxu0 0.0
        %4004 = vmatmul.mubr.f32.gmra.mrb[0].mxu0 %v3931
        %v4005 = vpop.f32.mrb[0].mxu0
        %v4006 = vadd.f32 0.0, %v4005
        %v4007 = vpop.f32.mrb[0].mxu0
        %4008 = vdwg.mxu0
        %v4009 = vsel %vm1561, %v4006, -inf
        %4010 = vmax.xlane.f32.xlu0 %v4009
        %v4011 = vpop.xlane.xlu0 %4010
        %v4012 = vsub.f32 %v4006, %v4011
        %v4013 = vmul.f32 %v4012, 1.442695
        %v4014 = vpow.pop %v4013
        %v4015 = vsel %vm1561, %v4014, 0.0
        %4016 = vadd.xlane.f32.xlu0 %v4015
        %v4017 = vpop.xlane.xlu0 %4016
        %v4018 = vrcp.pop %v4017
        %v4019 = vmul.f32 %v4014, %v4018
        %4020 = vrot.lane.b32.xlu0 %v3921, 96
        %v4021 = vpop.permute.xlu0 %4020
        %4022 = vrot.lane.b32.xlu0 %v3926, 96
        %v4023 = vpop.permute.xlu0 %4022
        %v4027 = vsel %vm1561, %v4019, 0
        %4029 = vmatprep.subr.mxu0 0.0
        %4030 = vmatpush1.msra.mxu0 %v4021
        %4031 = vmatprep.subr.mxu0 0.0
        %4032 = vmatpush1.msra.mxu0 %v4023
        %4033 = vmatprep.subr.mxu0 0.0
        %4034 = vmatpush1.msra.mxu0 0.0
        %4035 = vmatprep.subr.mxu0 0.0
        %4036 = vmatpush1.msra.mxu0 0.0
        %4037 = vmatprep.subr.mxu0 0.0
        %4038 = vmatpush1.msra.mxu0 0.0
        %4039 = vmatprep.subr.mxu0 0.0
        %4040 = vmatpush1.msra.mxu0 0.0
        %4041 = vmatprep.subr.mxu0 0.0
        %4042 = vmatpush1.msra.mxu0 0.0
        %4043 = vmatprep.subr.mxu0 0.0
        %4044 = vmatpush1.msra.mxu0 0.0
        %4045 = vmatprep.subr.mxu0 0.0
        %4046 = vmatpush1.msra.mxu0 0.0
        %4047 = vmatprep.subr.mxu0 0.0
        %4048 = vmatpush1.msra.mxu0 0.0
        %4049 = vmatprep.subr.mxu0 0.0
        %4050 = vmatpush1.msra.mxu0 0.0
        %4051 = vmatprep.subr.mxu0 0.0
        %4052 = vmatpush1.msra.mxu0 0.0
        %4053 = vmatprep.subr.mxu0 0.0
        %4054 = vmatpush1.msra.mxu0 0.0
        %4055 = vmatprep.subr.mxu0 0.0
        %4056 = vmatpush1.msra.mxu0 0.0
        %4057 = vmatprep.subr.mxu0 0.0
        %4058 = vmatpush1.msra.mxu0 0.0
        %4059 = vmatprep.subr.mxu0 0.0
        %4060 = vmatpush1.msra.mxu0 0.0
        %4061 = vmatprep.subr.mxu0 0.0
        %4062 = vmatpush1.msra.mxu0 0.0
        %4063 = vmatprep.subr.mxu0 0.0
        %4064 = vmatpush1.msra.mxu0 0.0
        %4065 = vmatprep.subr.mxu0 0.0
        %4066 = vmatpush1.msra.mxu0 0.0
        %4067 = vmatprep.subr.mxu0 0.0
        %4068 = vmatpush1.msra.mxu0 0.0
        %4069 = vmatprep.subr.mxu0 0.0
        %4070 = vmatpush1.msra.mxu0 0.0
        %4071 = vmatprep.subr.mxu0 0.0
        %4072 = vmatpush1.msra.mxu0 0.0
        %4073 = vmatprep.subr.mxu0 0.0
        %4074 = vmatpush1.msra.mxu0 0.0
        %4075 = vmatprep.subr.mxu0 0.0
        %4076 = vmatpush1.msra.mxu0 0.0
        %4077 = vmatprep.subr.mxu0 0.0
        %4078 = vmatpush1.msra.mxu0 0.0
        %4079 = vmatprep.subr.mxu0 0.0
        %4080 = vmatpush1.msra.mxu0 0.0
        %4081 = vmatprep.subr.mxu0 0.0
        %4082 = vmatpush1.msra.mxu0 0.0
        %4083 = vmatprep.subr.mxu0 0.0
        %4084 = vmatpush1.msra.mxu0 0.0
        %4085 = vmatprep.subr.mxu0 0.0
        %4086 = vmatpush1.msra.mxu0 0.0
        %4087 = vmatprep.subr.mxu0 0.0
        %4088 = vmatpush1.msra.mxu0 0.0
        %4089 = vmatprep.subr.mxu0 0.0
        %4090 = vmatpush1.msra.mxu0 0.0
        %4091 = vmatprep.subr.mxu0 0.0
        %4092 = vmatpush1.msra.mxu0 0.0
        %4093 = vmatprep.mubr.f32.mxu0 0.0
        %4094 = vmatmul.mubr.f32.gmra.mrb[0].mxu0 %v4027
        %v4095 = vpop.f32.mrb[0].mxu0
        %v4096 = vadd.f32 0.0, %v4095
        %v4097 = vpop.f32.mrb[0].mxu0
        %4098 = vdwg.mxu0
        %4099 = vrot.lane.b32.xlu0 %v3929, 120
        %v4100 = vpop.permute.xlu0 %4099
        %4101 = vrot.lane.b32.xlu0 %v3921, 120
        %v4102 = vpop.permute.xlu0 %4101
        %4103 = vrot.lane.b32.xlu0 %v3926, 120
        %v4104 = vpop.permute.xlu0 %4103
        %v4105 = vsel %vm890, %v4100, 0
        %v4107 = vsel %vm890, %v4102, 0
        %v4109 = vsel %vm890, %v4104, 0
        %4111 = vmatprep.subr.mxu0 0.0
        %4112 = vmatpush1.xpose.msra.mxu0 %v4107
        %4113 = vmatprep.subr.mxu0 0.0
        %4114 = vmatpush1.xpose.msra.mxu0 %v4109
        %4115 = vmatprep.subr.mxu0 0.0
        %4116 = vmatpush1.xpose.msra.mxu0 0.0
        %4117 = vmatprep.subr.mxu0 0.0
        %4118 = vmatpush1.xpose.msra.mxu0 0.0
        %4119 = vmatprep.subr.mxu0 0.0
        %4120 = vmatpush1.xpose.msra.mxu0 0.0
        %4121 = vmatprep.subr.mxu0 0.0
        %4122 = vmatpush1.xpose.msra.mxu0 0.0
        %4123 = vmatprep.subr.mxu0 0.0
        %4124 = vmatpush1.xpose.msra.mxu0 0.0
        %4125 = vmatprep.subr.mxu0 0.0
        %4126 = vmatpush1.xpose.msra.mxu0 0.0
        %4127 = vmatprep.subr.mxu0 0.0
        %4128 = vmatpush1.xpose.msra.mxu0 0.0
        %4129 = vmatprep.subr.mxu0 0.0
        %4130 = vmatpush1.xpose.msra.mxu0 0.0
        %4131 = vmatprep.subr.mxu0 0.0
        %4132 = vmatpush1.xpose.msra.mxu0 0.0
        %4133 = vmatprep.subr.mxu0 0.0
        %4134 = vmatpush1.xpose.msra.mxu0 0.0
        %4135 = vmatprep.subr.mxu0 0.0
        %4136 = vmatpush1.xpose.msra.mxu0 0.0
        %4137 = vmatprep.subr.mxu0 0.0
        %4138 = vmatpush1.xpose.msra.mxu0 0.0
        %4139 = vmatprep.subr.mxu0 0.0
        %4140 = vmatpush1.xpose.msra.mxu0 0.0
        %4141 = vmatprep.subr.mxu0 0.0
        %4142 = vmatpush1.xpose.msra.mxu0 0.0
        %4143 = vmatprep.subr.mxu0 0.0
        %4144 = vmatpush1.xpose.msra.mxu0 0.0
        %4145 = vmatprep.subr.mxu0 0.0
        %4146 = vmatpush1.xpose.msra.mxu0 0.0
        %4147 = vmatprep.subr.mxu0 0.0
        %4148 = vmatpush1.xpose.msra.mxu0 0.0
        %4149 = vmatprep.subr.mxu0 0.0
        %4150 = vmatpush1.xpose.msra.mxu0 0.0
        %4151 = vmatprep.subr.mxu0 0.0
        %4152 = vmatpush1.xpose.msra.mxu0 0.0
        %4153 = vmatprep.subr.mxu0 0.0
        %4154 = vmatpush1.xpose.msra.mxu0 0.0
        %4155 = vmatprep.subr.mxu0 0.0
        %4156 = vmatpush1.xpose.msra.mxu0 0.0
        %4157 = vmatprep.subr.mxu0 0.0
        %4158 = vmatpush1.xpose.msra.mxu0 0.0
        %4159 = vmatprep.subr.mxu0 0.0
        %4160 = vmatpush1.xpose.msra.mxu0 0.0
        %4161 = vmatprep.subr.mxu0 0.0
        %4162 = vmatpush1.xpose.msra.mxu0 0.0
        %4163 = vmatprep.subr.mxu0 0.0
        %4164 = vmatpush1.xpose.msra.mxu0 0.0
        %4165 = vmatprep.subr.mxu0 0.0
        %4166 = vmatpush1.xpose.msra.mxu0 0.0
        %4167 = vmatprep.subr.mxu0 0.0
        %4168 = vmatpush1.xpose.msra.mxu0 0.0
        %4169 = vmatprep.subr.mxu0 0.0
        %4170 = vmatpush1.xpose.msra.mxu0 0.0
        %4171 = vmatprep.subr.mxu0 0.0
        %4172 = vmatpush1.xpose.msra.mxu0 0.0
        %4173 = vmatprep.subr.mxu0 0.0
        %4174 = vmatpush1.xpose.msra.mxu0 0.0
        %4175 = vmatprep.mubr.f32.mxu0 0.0
        %4176 = vmatmul.mubr.f32.gmra.mrb[0].mxu0 %v4105
        %v4177 = vpop.f32.mrb[0].mxu0
        %v4178 = vadd.f32 0.0, %v4177
        %v4179 = vpop.f32.mrb[0].mxu0
        %4180 = vdwg.mxu0
        %v4181 = vsel %vm1561, %v4178, -inf
        %4182 = vmax.xlane.f32.xlu0 %v4181
        %v4183 = vpop.xlane.xlu0 %4182
        %v4184 = vsub.f32 %v4178, %v4183
        %v4185 = vmul.f32 %v4184, 1.442695
        %v4186 = vpow.pop %v4185
        %v4187 = vsel %vm1561, %v4186, 0.0
        %4188 = vadd.xlane.f32.xlu0 %v4187
        %v4189 = vpop.xlane.xlu0 %4188
        %v4190 = vrcp.pop %v4189
        %v4191 = vmul.f32 %v4186, %v4190
        %4192 = vrot.lane.b32.xlu0 %v3921, 88
        %v4193 = vpop.permute.xlu0 %4192
        %4194 = vrot.lane.b32.xlu0 %v3926, 88
        %v4195 = vpop.permute.xlu0 %4194
        %v4199 = vsel %vm1561, %v4191, 0
        %4201 = vmatprep.subr.mxu0 0.0
        %4202 = vmatpush1.msra.mxu0 %v4193
        %4203 = vmatprep.subr.mxu0 0.0
        %4204 = vmatpush1.msra.mxu0 %v4195
        %4205 = vmatprep.subr.mxu0 0.0
        %4206 = vmatpush1.msra.mxu0 0.0
        %4207 = vmatprep.subr.mxu0 0.0
        %4208 = vmatpush1.msra.mxu0 0.0
        %4209 = vmatprep.subr.mxu0 0.0
        %4210 = vmatpush1.msra.mxu0 0.0
        %4211 = vmatprep.subr.mxu0 0.0
        %4212 = vmatpush1.msra.mxu0 0.0
        %4213 = vmatprep.subr.mxu0 0.0
        %4214 = vmatpush1.msra.mxu0 0.0
        %4215 = vmatprep.subr.mxu0 0.0
        %4216 = vmatpush1.msra.mxu0 0.0
        %4217 = vmatprep.subr.mxu0 0.0
        %4218 = vmatpush1.msra.mxu0 0.0
        %4219 = vmatprep.subr.mxu0 0.0
        %4220 = vmatpush1.msra.mxu0 0.0
        %4221 = vmatprep.subr.mxu0 0.0
        %4222 = vmatpush1.msra.mxu0 0.0
        %4223 = vmatprep.subr.mxu0 0.0
        %4224 = vmatpush1.msra.mxu0 0.0
        %4225 = vmatprep.subr.mxu0 0.0
        %4226 = vmatpush1.msra.mxu0 0.0
        %4227 = vmatprep.subr.mxu0 0.0
        %4228 = vmatpush1.msra.mxu0 0.0
        %4229 = vmatprep.subr.mxu0 0.0
        %4230 = vmatpush1.msra.mxu0 0.0
        %4231 = vmatprep.subr.mxu0 0.0
        %4232 = vmatpush1.msra.mxu0 0.0
        %4233 = vmatprep.subr.mxu0 0.0
        %4234 = vmatpush1.msra.mxu0 0.0
        %4235 = vmatprep.subr.mxu0 0.0
        %4236 = vmatpush1.msra.mxu0 0.0
        %4237 = vmatprep.subr.mxu0 0.0
        %4238 = vmatpush1.msra.mxu0 0.0
        %4239 = vmatprep.subr.mxu0 0.0
        %4240 = vmatpush1.msra.mxu0 0.0
        %4241 = vmatprep.subr.mxu0 0.0
        %4242 = vmatpush1.msra.mxu0 0.0
        %4243 = vmatprep.subr.mxu0 0.0
        %4244 = vmatpush1.msra.mxu0 0.0
        %4245 = vmatprep.subr.mxu0 0.0
        %4246 = vmatpush1.msra.mxu0 0.0
        %4247 = vmatprep.subr.mxu0 0.0
        %4248 = vmatpush1.msra.mxu0 0.0
        %4249 = vmatprep.subr.mxu0 0.0
        %4250 = vmatpush1.msra.mxu0 0.0
        %4251 = vmatprep.subr.mxu0 0.0
        %4252 = vmatpush1.msra.mxu0 0.0
        %4253 = vmatprep.subr.mxu0 0.0
        %4254 = vmatpush1.msra.mxu0 0.0
        %4255 = vmatprep.subr.mxu0 0.0
        %4256 = vmatpush1.msra.mxu0 0.0
        %4257 = vmatprep.subr.mxu0 0.0
        %4258 = vmatpush1.msra.mxu0 0.0
        %4259 = vmatprep.subr.mxu0 0.0
        %4260 = vmatpush1.msra.mxu0 0.0
        %4261 = vmatprep.subr.mxu0 0.0
        %4262 = vmatpush1.msra.mxu0 0.0
        %4263 = vmatprep.subr.mxu0 0.0
        %4264 = vmatpush1.msra.mxu0 0.0
        %4265 = vmatprep.mubr.f32.mxu0 0.0
        %4266 = vmatmul.mubr.f32.gmra.mrb[0].mxu0 %v4199
        %v4267 = vpop.f32.mrb[0].mxu0
        %v4268 = vadd.f32 0.0, %v4267
        %v4269 = vpop.f32.mrb[0].mxu0
        %4270 = vdwg.mxu0
        %4271 = vrot.lane.b32.xlu0 %v3929, 112
        %v4272 = vpop.permute.xlu0 %4271
        %4273 = vrot.lane.b32.xlu0 %v3921, 112
        %v4274 = vpop.permute.xlu0 %4273
        %4275 = vrot.lane.b32.xlu0 %v3926, 112
        %v4276 = vpop.permute.xlu0 %4275
        %v4277 = vsel %vm890, %v4272, 0
        %v4279 = vsel %vm890, %v4274, 0
        %v4281 = vsel %vm890, %v4276, 0
        %4283 = vmatprep.subr.mxu0 0.0
        %4284 = vmatpush1.xpose.msra.mxu0 %v4279
        %4285 = vmatprep.subr.mxu0 0.0
        %4286 = vmatpush1.xpose.msra.mxu0 %v4281
        %4287 = vmatprep.subr.mxu0 0.0
        %4288 = vmatpush1.xpose.msra.mxu0 0.0
        %4289 = vmatprep.subr.mxu0 0.0
        %4290 = vmatpush1.xpose.msra.mxu0 0.0
        %4291 = vmatprep.subr.mxu0 0.0
        %4292 = vmatpush1.xpose.msra.mxu0 0.0
        %4293 = vmatprep.subr.mxu0 0.0
        %4294 = vmatpush1.xpose.msra.mxu0 0.0
        %4295 = vmatprep.subr.mxu0 0.0
        %4296 = vmatpush1.xpose.msra.mxu0 0.0
        %4297 = vmatprep.subr.mxu0 0.0
        %4298 = vmatpush1.xpose.msra.mxu0 0.0
        %4299 = vmatprep.subr.mxu0 0.0
        %4300 = vmatpush1.xpose.msra.mxu0 0.0
        %4301 = vmatprep.subr.mxu0 0.0
        %4302 = vmatpush1.xpose.msra.mxu0 0.0
        %4303 = vmatprep.subr.mxu0 0.0
        %4304 = vmatpush1.xpose.msra.mxu0 0.0
        %4305 = vmatprep.subr.mxu0 0.0
        %4306 = vmatpush1.xpose.msra.mxu0 0.0
        %4307 = vmatprep.subr.mxu0 0.0
        %4308 = vmatpush1.xpose.msra.mxu0 0.0
        %4309 = vmatprep.subr.mxu0 0.0
        %4310 = vmatpush1.xpose.msra.mxu0 0.0
        %4311 = vmatprep.subr.mxu0 0.0
        %4312 = vmatpush1.xpose.msra.mxu0 0.0
        %4313 = vmatprep.subr.mxu0 0.0
        %4314 = vmatpush1.xpose.msra.mxu0 0.0
        %4315 = vmatprep.subr.mxu0 0.0
        %4316 = vmatpush1.xpose.msra.mxu0 0.0
        %4317 = vmatprep.subr.mxu0 0.0
        %4318 = vmatpush1.xpose.msra.mxu0 0.0
        %4319 = vmatprep.subr.mxu0 0.0
        %4320 = vmatpush1.xpose.msra.mxu0 0.0
        %4321 = vmatprep.subr.mxu0 0.0
        %4322 = vmatpush1.xpose.msra.mxu0 0.0
        %4323 = vmatprep.subr.mxu0 0.0
        %4324 = vmatpush1.xpose.msra.mxu0 0.0
        %4325 = vmatprep.subr.mxu0 0.0
        %4326 = vmatpush1.xpose.msra.mxu0 0.0
        %4327 = vmatprep.subr.mxu0 0.0
        %4328 = vmatpush1.xpose.msra.mxu0 0.0
        %4329 = vmatprep.subr.mxu0 0.0
        %4330 = vmatpush1.xpose.msra.mxu0 0.0
        %4331 = vmatprep.subr.mxu0 0.0
        %4332 = vmatpush1.xpose.msra.mxu0 0.0
        %4333 = vmatprep.subr.mxu0 0.0
        %4334 = vmatpush1.xpose.msra.mxu0 0.0
        %4335 = vmatprep.subr.mxu0 0.0
        %4336 = vmatpush1.xpose.msra.mxu0 0.0
        %4337 = vmatprep.subr.mxu0 0.0
        %4338 = vmatpush1.xpose.msra.mxu0 0.0
        %4339 = vmatprep.subr.mxu0 0.0
        %4340 = vmatpush1.xpose.msra.mxu0 0.0
        %4341 = vmatprep.subr.mxu0 0.0
        %4342 = vmatpush1.xpose.msra.mxu0 0.0
        %4343 = vmatprep.subr.mxu0 0.0
        %4344 = vmatpush1.xpose.msra.mxu0 0.0
        %4345 = vmatprep.subr.mxu0 0.0
        %4346 = vmatpush1.xpose.msra.mxu0 0.0
        %4347 = vmatprep.mubr.f32.mxu0 0.0
        %4348 = vmatmul.mubr.f32.gmra.mrb[0].mxu0 %v4277
        %v4349 = vpop.f32.mrb[0].mxu0
        %v4350 = vadd.f32 0.0, %v4349
        %v4351 = vpop.f32.mrb[0].mxu0
        %4352 = vdwg.mxu0
        %v4353 = vsel %vm1561, %v4350, -inf
        %4354 = vmax.xlane.f32.xlu0 %v4353
        %v4355 = vpop.xlane.xlu0 %4354
        %v4356 = vsub.f32 %v4350, %v4355
        %v4357 = vmul.f32 %v4356, 1.442695
        %v4358 = vpow.pop %v4357
        %v4359 = vsel %vm1561, %v4358, 0.0
        %4360 = vadd.xlane.f32.xlu0 %v4359
        %v4361 = vpop.xlane.xlu0 %4360
        %v4362 = vrcp.pop %v4361
        %v4363 = vmul.f32 %v4358, %v4362
        %4364 = vrot.lane.b32.xlu0 %v3921, 80
        %v4365 = vpop.permute.xlu0 %4364
        %4366 = vrot.lane.b32.xlu0 %v3926, 80
        %v4367 = vpop.permute.xlu0 %4366
        %v4371 = vsel %vm1561, %v4363, 0
        %4373 = vmatprep.subr.mxu0 0.0
        %4374 = vmatpush1.msra.mxu0 %v4365
        %4375 = vmatprep.subr.mxu0 0.0
        %4376 = vmatpush1.msra.mxu0 %v4367
        %4377 = vmatprep.subr.mxu0 0.0
        %4378 = vmatpush1.msra.mxu0 0.0
        %4379 = vmatprep.subr.mxu0 0.0
        %4380 = vmatpush1.msra.mxu0 0.0
        %4381 = vmatprep.subr.mxu0 0.0
        %4382 = vmatpush1.msra.mxu0 0.0
        %4383 = vmatprep.subr.mxu0 0.0
        %4384 = vmatpush1.msra.mxu0 0.0
        %4385 = vmatprep.subr.mxu0 0.0
        %4386 = vmatpush1.msra.mxu0 0.0
        %4387 = vmatprep.subr.mxu0 0.0
        %4388 = vmatpush1.msra.mxu0 0.0
        %4389 = vmatprep.subr.mxu0 0.0
        %4390 = vmatpush1.msra.mxu0 0.0
        %4391 = vmatprep.subr.mxu0 0.0
        %4392 = vmatpush1.msra.mxu0 0.0
        %4393 = vmatprep.subr.mxu0 0.0
        %4394 = vmatpush1.msra.mxu0 0.0
        %4395 = vmatprep.subr.mxu0 0.0
        %4396 = vmatpush1.msra.mxu0 0.0
        %4397 = vmatprep.subr.mxu0 0.0
        %4398 = vmatpush1.msra.mxu0 0.0
        %4399 = vmatprep.subr.mxu0 0.0
        %4400 = vmatpush1.msra.mxu0 0.0
        %4401 = vmatprep.subr.mxu0 0.0
        %4402 = vmatpush1.msra.mxu0 0.0
        %4403 = vmatprep.subr.mxu0 0.0
        %4404 = vmatpush1.msra.mxu0 0.0
        %4405 = vmatprep.subr.mxu0 0.0
        %4406 = vmatpush1.msra.mxu0 0.0
        %4407 = vmatprep.subr.mxu0 0.0
        %4408 = vmatpush1.msra.mxu0 0.0
        %4409 = vmatprep.subr.mxu0 0.0
        %4410 = vmatpush1.msra.mxu0 0.0
        %4411 = vmatprep.subr.mxu0 0.0
        %4412 = vmatpush1.msra.mxu0 0.0
        %4413 = vmatprep.subr.mxu0 0.0
        %4414 = vmatpush1.msra.mxu0 0.0
        %4415 = vmatprep.subr.mxu0 0.0
        %4416 = vmatpush1.msra.mxu0 0.0
        %4417 = vmatprep.subr.mxu0 0.0
        %4418 = vmatpush1.msra.mxu0 0.0
        %4419 = vmatprep.subr.mxu0 0.0
        %4420 = vmatpush1.msra.mxu0 0.0
        %4421 = vmatprep.subr.mxu0 0.0
        %4422 = vmatpush1.msra.mxu0 0.0
        %4423 = vmatprep.subr.mxu0 0.0
        %4424 = vmatpush1.msra.mxu0 0.0
        %4425 = vmatprep.subr.mxu0 0.0
        %4426 = vmatpush1.msra.mxu0 0.0
        %4427 = vmatprep.subr.mxu0 0.0
        %4428 = vmatpush1.msra.mxu0 0.0
        %4429 = vmatprep.subr.mxu0 0.0
        %4430 = vmatpush1.msra.mxu0 0.0
        %4431 = vmatprep.subr.mxu0 0.0
        %4432 = vmatpush1.msra.mxu0 0.0
        %4433 = vmatprep.subr.mxu0 0.0
        %4434 = vmatpush1.msra.mxu0 0.0
        %4435 = vmatprep.subr.mxu0 0.0
        %4436 = vmatpush1.msra.mxu0 0.0
        %4437 = vmatprep.mubr.f32.mxu0 0.0
        %4438 = vmatmul.mubr.f32.gmra.mrb[0].mxu0 %v4371
        %v4439 = vpop.f32.mrb[0].mxu0
        %v4440 = vadd.f32 0.0, %v4439
        %v4441 = vpop.f32.mrb[0].mxu0
        %4442 = vdwg.mxu0
        %4443 = vrot.lane.b32.xlu0 %v3929, 104
        %v4444 = vpop.permute.xlu0 %4443
        %4445 = vrot.lane.b32.xlu0 %v3921, 104
        %v4446 = vpop.permute.xlu0 %4445
        %4447 = vrot.lane.b32.xlu0 %v3926, 104
        %v4448 = vpop.permute.xlu0 %4447
        %v4449 = vsel %vm890, %v4444, 0
        %v4451 = vsel %vm890, %v4446, 0
        %v4453 = vsel %vm890, %v4448, 0
        %4455 = vmatprep.subr.mxu0 0.0
        %4456 = vmatpush1.xpose.msra.mxu0 %v4451
        %4457 = vmatprep.subr.mxu0 0.0
        %4458 = vmatpush1.xpose.msra.mxu0 %v4453
        %4459 = vmatprep.subr.mxu0 0.0
        %4460 = vmatpush1.xpose.msra.mxu0 0.0
        %4461 = vmatprep.subr.mxu0 0.0
        %4462 = vmatpush1.xpose.msra.mxu0 0.0
        %4463 = vmatprep.subr.mxu0 0.0
        %4464 = vmatpush1.xpose.msra.mxu0 0.0
        %4465 = vmatprep.subr.mxu0 0.0
        %4466 = vmatpush1.xpose.msra.mxu0 0.0
        %4467 = vmatprep.subr.mxu0 0.0
        %4468 = vmatpush1.xpose.msra.mxu0 0.0
        %4469 = vmatprep.subr.mxu0 0.0
        %4470 = vmatpush1.xpose.msra.mxu0 0.0
        %4471 = vmatprep.subr.mxu0 0.0
        %4472 = vmatpush1.xpose.msra.mxu0 0.0
        %4473 = vmatprep.subr.mxu0 0.0
        %4474 = vmatpush1.xpose.msra.mxu0 0.0
        %4475 = vmatprep.subr.mxu0 0.0
        %4476 = vmatpush1.xpose.msra.mxu0 0.0
        %4477 = vmatprep.subr.mxu0 0.0
        %4478 = vmatpush1.xpose.msra.mxu0 0.0
        %4479 = vmatprep.subr.mxu0 0.0
        %4480 = vmatpush1.xpose.msra.mxu0 0.0
        %4481 = vmatprep.subr.mxu0 0.0
        %4482 = vmatpush1.xpose.msra.mxu0 0.0
        %4483 = vmatprep.subr.mxu0 0.0
        %4484 = vmatpush1.xpose.msra.mxu0 0.0
        %4485 = vmatprep.subr.mxu0 0.0
        %4486 = vmatpush1.xpose.msra.mxu0 0.0
        %4487 = vmatprep.subr.mxu0 0.0
        %4488 = vmatpush1.xpose.msra.mxu0 0.0
        %4489 = vmatprep.subr.mxu0 0.0
        %4490 = vmatpush1.xpose.msra.mxu0 0.0
        %4491 = vmatprep.subr.mxu0 0.0
        %4492 = vmatpush1.xpose.msra.mxu0 0.0
        %4493 = vmatprep.subr.mxu0 0.0
        %4494 = vmatpush1.xpose.msra.mxu0 0.0
        %4495 = vmatprep.subr.mxu0 0.0
        %4496 = vmatpush1.xpose.msra.mxu0 0.0
        %4497 = vmatprep.subr.mxu0 0.0
        %4498 = vmatpush1.xpose.msra.mxu0 0.0
        %4499 = vmatprep.subr.mxu0 0.0
        %4500 = vmatpush1.xpose.msra.mxu0 0.0
        %4501 = vmatprep.subr.mxu0 0.0
        %4502 = vmatpush1.xpose.msra.mxu0 0.0
        %4503 = vmatprep.subr.mxu0 0.0
        %4504 = vmatpush1.xpose.msra.mxu0 0.0
        %4505 = vmatprep.subr.mxu0 0.0
        %4506 = vmatpush1.xpose.msra.mxu0 0.0
        %4507 = vmatprep.subr.mxu0 0.0
        %4508 = vmatpush1.xpose.msra.mxu0 0.0
        %4509 = vmatprep.subr.mxu0 0.0
        %4510 = vmatpush1.xpose.msra.mxu0 0.0
        %4511 = vmatprep.subr.mxu0 0.0
        %4512 = vmatpush1.xpose.msra.mxu0 0.0
        %4513 = vmatprep.subr.mxu0 0.0
        %4514 = vmatpush1.xpose.msra.mxu0 0.0
        %4515 = vmatprep.subr.mxu0 0.0
        %4516 = vmatpush1.xpose.msra.mxu0 0.0
        %4517 = vmatprep.subr.mxu0 0.0
        %4518 = vmatpush1.xpose.msra.mxu0 0.0
        %4519 = vmatprep.mubr.f32.mxu0 0.0
        %4520 = vmatmul.mubr.f32.gmra.mrb[0].mxu0 %v4449
        %v4521 = vpop.f32.mrb[0].mxu0
        %v4522 = vadd.f32 0.0, %v4521
        %v4523 = vpop.f32.mrb[0].mxu0
        %4524 = vdwg.mxu0
        %v4525 = vsel %vm1561, %v4522, -inf
        %4526 = vmax.xlane.f32.xlu0 %v4525
        %v4527 = vpop.xlane.xlu0 %4526
        %v4528 = vsub.f32 %v4522, %v4527
        %v4529 = vmul.f32 %v4528, 1.442695
        %v4530 = vpow.pop %v4529
        %v4531 = vsel %vm1561, %v4530, 0.0
        %4532 = vadd.xlane.f32.xlu0 %v4531
        %v4533 = vpop.xlane.xlu0 %4532
        %v4534 = vrcp.pop %v4533
        %v4535 = vmul.f32 %v4530, %v4534
        %4536 = vrot.lane.b32.xlu0 %v3921, 72
        %v4537 = vpop.permute.xlu0 %4536
        %4538 = vrot.lane.b32.xlu0 %v3926, 72
        %v4539 = vpop.permute.xlu0 %4538
        %v4543 = vsel %vm1561, %v4535, 0
        %4545 = vmatprep.subr.mxu0 0.0
        %4546 = vmatpush1.msra.mxu0 %v4537
        %4547 = vmatprep.subr.mxu0 0.0
        %4548 = vmatpush1.msra.mxu0 %v4539
        %4549 = vmatprep.subr.mxu0 0.0
        %4550 = vmatpush1.msra.mxu0 0.0
        %4551 = vmatprep.subr.mxu0 0.0
        %4552 = vmatpush1.msra.mxu0 0.0
        %4553 = vmatprep.subr.mxu0 0.0
        %4554 = vmatpush1.msra.mxu0 0.0
        %4555 = vmatprep.subr.mxu0 0.0
        %4556 = vmatpush1.msra.mxu0 0.0
        %4557 = vmatprep.subr.mxu0 0.0
        %4558 = vmatpush1.msra.mxu0 0.0
        %4559 = vmatprep.subr.mxu0 0.0
        %4560 = vmatpush1.msra.mxu0 0.0
        %4561 = vmatprep.subr.mxu0 0.0
        %4562 = vmatpush1.msra.mxu0 0.0
        %4563 = vmatprep.subr.mxu0 0.0
        %4564 = vmatpush1.msra.mxu0 0.0
        %4565 = vmatprep.subr.mxu0 0.0
        %4566 = vmatpush1.msra.mxu0 0.0
        %4567 = vmatprep.subr.mxu0 0.0
        %4568 = vmatpush1.msra.mxu0 0.0
        %4569 = vmatprep.subr.mxu0 0.0
        %4570 = vmatpush1.msra.mxu0 0.0
        %4571 = vmatprep.subr.mxu0 0.0
        %4572 = vmatpush1.msra.mxu0 0.0
        %4573 = vmatprep.subr.mxu0 0.0
        %4574 = vmatpush1.msra.mxu0 0.0
        %4575 = vmatprep.subr.mxu0 0.0
        %4576 = vmatpush1.msra.mxu0 0.0
        %4577 = vmatprep.subr.mxu0 0.0
        %4578 = vmatpush1.msra.mxu0 0.0
        %4579 = vmatprep.subr.mxu0 0.0
        %4580 = vmatpush1.msra.mxu0 0.0
        %4581 = vmatprep.subr.mxu0 0.0
        %4582 = vmatpush1.msra.mxu0 0.0
        %4583 = vmatprep.subr.mxu0 0.0
        %4584 = vmatpush1.msra.mxu0 0.0
        %4585 = vmatprep.subr.mxu0 0.0
        %4586 = vmatpush1.msra.mxu0 0.0
        %4587 = vmatprep.subr.mxu0 0.0
        %4588 = vmatpush1.msra.mxu0 0.0
        %4589 = vmatprep.subr.mxu0 0.0
        %4590 = vmatpush1.msra.mxu0 0.0
        %4591 = vmatprep.subr.mxu0 0.0
        %4592 = vmatpush1.msra.mxu0 0.0
        %4593 = vmatprep.subr.mxu0 0.0
        %4594 = vmatpush1.msra.mxu0 0.0
        %4595 = vmatprep.subr.mxu0 0.0
        %4596 = vmatpush1.msra.mxu0 0.0
        %4597 = vmatprep.subr.mxu0 0.0
        %4598 = vmatpush1.msra.mxu0 0.0
        %4599 = vmatprep.subr.mxu0 0.0
        %4600 = vmatpush1.msra.mxu0 0.0
        %4601 = vmatprep.subr.mxu0 0.0
        %4602 = vmatpush1.msra.mxu0 0.0
        %4603 = vmatprep.subr.mxu0 0.0
        %4604 = vmatpush1.msra.mxu0 0.0
        %4605 = vmatprep.subr.mxu0 0.0
        %4606 = vmatpush1.msra.mxu0 0.0
        %4607 = vmatprep.subr.mxu0 0.0
        %4608 = vmatpush1.msra.mxu0 0.0
        %4609 = vmatprep.mubr.f32.mxu0 0.0
        %4610 = vmatmul.mubr.f32.gmra.mrb[0].mxu0 %v4543
        %v4611 = vpop.f32.mrb[0].mxu0
        %v4612 = vadd.f32 0.0, %v4611
        %v4613 = vpop.f32.mrb[0].mxu0
        %4614 = vdwg.mxu0
        %4616 = vrot.lane.b32.xlu0 %v4268, 8
        %v4617 = vpop.permute.xlu0 %4616
        %4620 = vrot.lane.b32.xlu0 %v4440, 16
        %v4621 = vpop.permute.xlu0 %4620
        %4624 = vrot.lane.b32.xlu0 %v4612, 24
        %v4625 = vpop.permute.xlu0 %4624
        %v4627 = vsel %vm890, %v4096, %v4617
        %v4628 = vsel %vm1561, %v4627, %v4621
        %v4629 = vsel %vm1563, %v4628, %v4625
        %s4630 = scalar_lea.vmem %s11, 32
        %v4631 = vld [vmem:[%s4630] sm:$0xff]
        %v4632 = vld [vmem:[%s4630 + $0x8] sm:$0xff]
        %v4633 = vld [vmem:[%s4630 + $0x10] sm:$0xff]
        %v4634 = vld [vmem:[%s4630 + $0x18] sm:$0xff]
        %s4635 = scalar_lea.vmem %s12, 1
        %v4636 = vld [vmem:[%s4635] sm:$0x1]
        %v4638 = vlaneseq
        %v4639 = vshrl.u32 %v4638, 7
        %v4640 = vsub.s32 0, %v4639
        %v4641 = vrot.slane %v4636, %v4640
        %v4644 = vsel %vm812, %v4629, 0
        %4646 = vmatprep.subr.mxu0 0.0
        %4647 = vmatpush1.msra.mxu0 %v4631
        %4648 = vmatprep.subr.mxu0 0.0
        %4649 = vmatpush1.msra.mxu0 %v4632
        %4650 = vmatprep.subr.mxu0 0.0
        %4651 = vmatpush1.msra.mxu0 %v4633
        %4652 = vmatprep.subr.mxu0 0.0
        %4653 = vmatpush1.msra.mxu0 %v4634
        %4654 = vmatprep.subr.mxu0 0.0
        %4655 = vmatpush1.msra.mxu0 0.0
        %4656 = vmatprep.subr.mxu0 0.0
        %4657 = vmatpush1.msra.mxu0 0.0
        %4658 = vmatprep.subr.mxu0 0.0
        %4659 = vmatpush1.msra.mxu0 0.0
        %4660 = vmatprep.subr.mxu0 0.0
        %4661 = vmatpush1.msra.mxu0 0.0
        %4662 = vmatprep.subr.mxu0 0.0
        %4663 = vmatpush1.msra.mxu0 0.0
        %4664 = vmatprep.subr.mxu0 0.0
        %4665 = vmatpush1.msra.mxu0 0.0
        %4666 = vmatprep.subr.mxu0 0.0
        %4667 = vmatpush1.msra.mxu0 0.0
        %4668 = vmatprep.subr.mxu0 0.0
        %4669 = vmatpush1.msra.mxu0 0.0
        %4670 = vmatprep.subr.mxu0 0.0
        %4671 = vmatpush1.msra.mxu0 0.0
        %4672 = vmatprep.subr.mxu0 0.0
        %4673 = vmatpush1.msra.mxu0 0.0
        %4674 = vmatprep.subr.mxu0 0.0
        %4675 = vmatpush1.msra.mxu0 0.0
        %4676 = vmatprep.subr.mxu0 0.0
        %4677 = vmatpush1.msra.mxu0 0.0
        %4678 = vmatprep.subr.mxu0 0.0
        %4679 = vmatpush1.msra.mxu0 0.0
        %4680 = vmatprep.subr.mxu0 0.0
        %4681 = vmatpush1.msra.mxu0 0.0
        %4682 = vmatprep.subr.mxu0 0.0
        %4683 = vmatpush1.msra.mxu0 0.0
        %4684 = vmatprep.subr.mxu0 0.0
        %4685 = vmatpush1.msra.mxu0 0.0
        %4686 = vmatprep.subr.mxu0 0.0
        %4687 = vmatpush1.msra.mxu0 0.0
        %4688 = vmatprep.subr.mxu0 0.0
        %4689 = vmatpush1.msra.mxu0 0.0
        %4690 = vmatprep.subr.mxu0 0.0
        %4691 = vmatpush1.msra.mxu0 0.0
        %4692 = vmatprep.subr.mxu0 0.0
        %4693 = vmatpush1.msra.mxu0 0.0
        %4694 = vmatprep.subr.mxu0 0.0
        %4695 = vmatpush1.msra.mxu0 0.0
        %4696 = vmatprep.subr.mxu0 0.0
        %4697 = vmatpush1.msra.mxu0 0.0
        %4698 = vmatprep.subr.mxu0 0.0
        %4699 = vmatpush1.msra.mxu0 0.0
        %4700 = vmatprep.subr.mxu0 0.0
        %4701 = vmatpush1.msra.mxu0 0.0
        %4702 = vmatprep.subr.mxu0 0.0
        %4703 = vmatpush1.msra.mxu0 0.0
        %4704 = vmatprep.subr.mxu0 0.0
        %4705 = vmatpush1.msra.mxu0 0.0
        %4706 = vmatprep.subr.mxu0 0.0
        %4707 = vmatpush1.msra.mxu0 0.0
        %4708 = vmatprep.subr.mxu0 0.0
        %4709 = vmatpush1.msra.mxu0 0.0
        %4710 = vmatprep.mubr.f32.mxu0 0.0
        %4711 = vmatmul.mubr.f32.gmra.mrb[0].mxu0 %v4644
        %v4712 = vpop.f32.mrb[0].mxu0
        %v4713 = vadd.f32 %v4641, %v4712
        %v4714 = vpop.f32.mrb[0].mxu0
        %4715 = vdwg.mxu0
        %v4716 = vadd.f32 %v3754, %v4713
        %s4717 = scalar_lea.vmem %s19, 1
        %v4718 = vld [vmem:[%s4717] sm:$0x1]
        %s4719 = scalar_lea.vmem %s20, 1
        %v4720 = vld [vmem:[%s4719] sm:$0x1]
        %v4721 = vsel %vm812, %v4716, 0.0
        %4722 = vadd.xlane.f32.xlu0 %v4721
        %v4723 = vpop.xlane.xlu0 %4722
        %v4724 = vmul.f32 %v4723, %v1655
        %v4725 = vsub.f32 %v4716, %v4724
        %v4726 = vmul.f32 %v4725, %v4725
        %v4727 = vsel %vm812, %v4726, 0.0
        %4728 = vadd.xlane.f32.xlu0 %v4727
        %v4729 = vpop.xlane.xlu0 %4728
        %v4730 = vmul.f32 %v4729, %v1655
        %v4731 = vadd.f32 %v4730, 1e-05
        %v4732 = vrsqrt.pop %v4731
        %v4733 = vmul.f32 %v4725, %v4732
        %v4735 = vlaneseq
        %v4736 = vshrl.u32 %v4735, 7
        %v4737 = vsub.s32 0, %v4736
        %v4738 = vrot.slane %v4718, %v4737
        %v4740 = vmul.f32 %v4733, %v4738
        %v4742 = vlaneseq
        %v4743 = vshrl.u32 %v4742, 7
        %v4744 = vsub.s32 0, %v4743
        %v4745 = vrot.slane %v4720, %v4744
        %v4747 = vadd.f32 %v4740, %v4745
        %s4748 = scalar_lea.vmem %s13, 32
        %v4749 = vld [vmem:[%s4748] sm:$0xff]
        %v4750 = vld [vmem:[%s4748 + $0x8] sm:$0xff]
        %v4751 = vld [vmem:[%s4748 + $0x10] sm:$0xff]
        %v4752 = vld [vmem:[%s4748 + $0x18] sm:$0xff]
        %s4753 = scalar_lea.vmem %s14, 1
        %v4754 = vld [vmem:[%s4753] sm:$0x1]
        %v4756 = vlaneseq
        %v4757 = vshrl.u32 %v4756, 7
        %v4758 = vsub.s32 0, %v4757
        %v4759 = vrot.slane %v4754, %v4758
        %v4762 = vsel %vm812, %v4747, 0
        %4764 = vmatprep.subr.mxu0 0.0
        %4765 = vmatpush1.msra.mxu0 %v4749
        %4766 = vmatprep.subr.mxu0 0.0
        %4767 = vmatpush1.msra.mxu0 %v4750
        %4768 = vmatprep.subr.mxu0 0.0
        %4769 = vmatpush1.msra.mxu0 %v4751
        %4770 = vmatprep.subr.mxu0 0.0
        %4771 = vmatpush1.msra.mxu0 %v4752
        %4772 = vmatprep.subr.mxu0 0.0
        %4773 = vmatpush1.msra.mxu0 0.0
        %4774 = vmatprep.subr.mxu0 0.0
        %4775 = vmatpush1.msra.mxu0 0.0
        %4776 = vmatprep.subr.mxu0 0.0
        %4777 = vmatpush1.msra.mxu0 0.0
        %4778 = vmatprep.subr.mxu0 0.0
        %4779 = vmatpush1.msra.mxu0 0.0
        %4780 = vmatprep.subr.mxu0 0.0
        %4781 = vmatpush1.msra.mxu0 0.0
        %4782 = vmatprep.subr.mxu0 0.0
        %4783 = vmatpush1.msra.mxu0 0.0
        %4784 = vmatprep.subr.mxu0 0.0
        %4785 = vmatpush1.msra.mxu0 0.0
        %4786 = vmatprep.subr.mxu0 0.0
        %4787 = vmatpush1.msra.mxu0 0.0
        %4788 = vmatprep.subr.mxu0 0.0
        %4789 = vmatpush1.msra.mxu0 0.0
        %4790 = vmatprep.subr.mxu0 0.0
        %4791 = vmatpush1.msra.mxu0 0.0
        %4792 = vmatprep.subr.mxu0 0.0
        %4793 = vmatpush1.msra.mxu0 0.0
        %4794 = vmatprep.subr.mxu0 0.0
        %4795 = vmatpush1.msra.mxu0 0.0
        %4796 = vmatprep.subr.mxu0 0.0
        %4797 = vmatpush1.msra.mxu0 0.0
        %4798 = vmatprep.subr.mxu0 0.0
        %4799 = vmatpush1.msra.mxu0 0.0
        %4800 = vmatprep.subr.mxu0 0.0
        %4801 = vmatpush1.msra.mxu0 0.0
        %4802 = vmatprep.subr.mxu0 0.0
        %4803 = vmatpush1.msra.mxu0 0.0
        %4804 = vmatprep.subr.mxu0 0.0
        %4805 = vmatpush1.msra.mxu0 0.0
        %4806 = vmatprep.subr.mxu0 0.0
        %4807 = vmatpush1.msra.mxu0 0.0
        %4808 = vmatprep.subr.mxu0 0.0
        %4809 = vmatpush1.msra.mxu0 0.0
        %4810 = vmatprep.subr.mxu0 0.0
        %4811 = vmatpush1.msra.mxu0 0.0
        %4812 = vmatprep.subr.mxu0 0.0
        %4813 = vmatpush1.msra.mxu0 0.0
        %4814 = vmatprep.subr.mxu0 0.0
        %4815 = vmatpush1.msra.mxu0 0.0
        %4816 = vmatprep.subr.mxu0 0.0
        %4817 = vmatpush1.msra.mxu0 0.0
        %4818 = vmatprep.subr.mxu0 0.0
        %4819 = vmatpush1.msra.mxu0 0.0
        %4820 = vmatprep.subr.mxu0 0.0
        %4821 = vmatpush1.msra.mxu0 0.0
        %4822 = vmatprep.subr.mxu0 0.0
        %4823 = vmatpush1.msra.mxu0 0.0
        %4824 = vmatprep.subr.mxu0 0.0
        %4825 = vmatpush1.msra.mxu0 0.0
        %4826 = vmatprep.subr.mxu0 0.0
        %4827 = vmatpush1.msra.mxu0 0.0
        %4828 = vmatprep.mubr.f32.mxu0 0.0
        %4829 = vmatmul.mubr.f32.gmra.mrb[0].mxu0 %v4762
        %v4830 = vpop.f32.mrb[0].mxu0
        %v4831 = vadd.f32 %v4759, %v4830
        %v4832 = vpop.f32.mrb[0].mxu0
        %4833 = vdwg.mxu0
        %v4834 = vmax.f32 %v4831, 0.0
        %s4835 = scalar_lea.vmem %s15, 64
        %v4836 = vld [vmem:[%s4835] sm:$0xff]
        %v4837 = vld [vmem:[%s4835 + $0x8] sm:$0xff]
        %v4838 = vld [vmem:[%s4835 + $0x10] sm:$0xff]
        %v4839 = vld [vmem:[%s4835 + $0x18] sm:$0xff]
        %v4840 = vld [vmem:[%s4835 + $0x20] sm:$0xff]
        %v4841 = vld [vmem:[%s4835 + $0x28] sm:$0xff]
        %v4842 = vld [vmem:[%s4835 + $0x30] sm:$0xff]
        %v4843 = vld [vmem:[%s4835 + $0x38] sm:$0xff]
        %s4844 = scalar_lea.vmem %s16, 1
        %v4845 = vld [vmem:[%s4844] sm:$0x1]
        %v4847 = vlaneseq
        %v4848 = vshrl.u32 %v4847, 7
        %v4849 = vsub.s32 0, %v4848
        %v4850 = vrot.slane %v4845, %v4849
        %v4853 = vsel %vm2771, %v4834, 0
        %4855 = vmatprep.subr.mxu0 0.0
        %4856 = vmatpush1.msra.mxu0 %v4836
        %4857 = vmatprep.subr.mxu0 0.0
        %4858 = vmatpush1.msra.mxu0 %v4837
        %4859 = vmatprep.subr.mxu0 0.0
        %4860 = vmatpush1.msra.mxu0 %v4838
        %4861 = vmatprep.subr.mxu0 0.0
        %4862 = vmatpush1.msra.mxu0 %v4839
        %4863 = vmatprep.subr.mxu0 0.0
        %4864 = vmatpush1.msra.mxu0 %v4840
        %4865 = vmatprep.subr.mxu0 0.0
        %4866 = vmatpush1.msra.mxu0 %v4841
        %4867 = vmatprep.subr.mxu0 0.0
        %4868 = vmatpush1.msra.mxu0 %v4842
        %4869 = vmatprep.subr.mxu0 0.0
        %4870 = vmatpush1.msra.mxu0 %v4843
        %4871 = vmatprep.subr.mxu0 0.0
        %4872 = vmatpush1.msra.mxu0 0.0
        %4873 = vmatprep.subr.mxu0 0.0
        %4874 = vmatpush1.msra.mxu0 0.0
        %4875 = vmatprep.subr.mxu0 0.0
        %4876 = vmatpush1.msra.mxu0 0.0
        %4877 = vmatprep.subr.mxu0 0.0
        %4878 = vmatpush1.msra.mxu0 0.0
        %4879 = vmatprep.subr.mxu0 0.0
        %4880 = vmatpush1.msra.mxu0 0.0
        %4881 = vmatprep.subr.mxu0 0.0
        %4882 = vmatpush1.msra.mxu0 0.0
        %4883 = vmatprep.subr.mxu0 0.0
        %4884 = vmatpush1.msra.mxu0 0.0
        %4885 = vmatprep.subr.mxu0 0.0
        %4886 = vmatpush1.msra.mxu0 0.0
        %4887 = vmatprep.subr.mxu0 0.0
        %4888 = vmatpush1.msra.mxu0 0.0
        %4889 = vmatprep.subr.mxu0 0.0
        %4890 = vmatpush1.msra.mxu0 0.0
        %4891 = vmatprep.subr.mxu0 0.0
        %4892 = vmatpush1.msra.mxu0 0.0
        %4893 = vmatprep.subr.mxu0 0.0
        %4894 = vmatpush1.msra.mxu0 0.0
        %4895 = vmatprep.subr.mxu0 0.0
        %4896 = vmatpush1.msra.mxu0 0.0
        %4897 = vmatprep.subr.mxu0 0.0
        %4898 = vmatpush1.msra.mxu0 0.0
        %4899 = vmatprep.subr.mxu0 0.0
        %4900 = vmatpush1.msra.mxu0 0.0
        %4901 = vmatprep.subr.mxu0 0.0
        %4902 = vmatpush1.msra.mxu0 0.0
        %4903 = vmatprep.subr.mxu0 0.0
        %4904 = vmatpush1.msra.mxu0 0.0
        %4905 = vmatprep.subr.mxu0 0.0
        %4906 = vmatpush1.msra.mxu0 0.0
        %4907 = vmatprep.subr.mxu0 0.0
        %4908 = vmatpush1.msra.mxu0 0.0
        %4909 = vmatprep.subr.mxu0 0.0
        %4910 = vmatpush1.msra.mxu0 0.0
        %4911 = vmatprep.subr.mxu0 0.0
        %4912 = vmatpush1.msra.mxu0 0.0
        %4913 = vmatprep.subr.mxu0 0.0
        %4914 = vmatpush1.msra.mxu0 0.0
        %4915 = vmatprep.subr.mxu0 0.0
        %4916 = vmatpush1.msra.mxu0 0.0
        %4917 = vmatprep.subr.mxu0 0.0
        %4918 = vmatpush1.msra.mxu0 0.0
        %4919 = vmatprep.mubr.f32.mxu0 0.0
        %4920 = vmatmul.mubr.f32.gmra.mrb[0].mxu0 %v4853
        %v4921 = vpop.f32.mrb[0].mxu0
        %v4922 = vadd.f32 %v4850, %v4921
        %v4923 = vpop.f32.mrb[0].mxu0
        %4924 = vdwg.mxu0
        %v4925 = vadd.f32 %v4747, %v4922
        %s4926 = scalar_lea.vmem %s21, 1
        %v4927 = vld [vmem:[%s4926] sm:$0x1]
        %s4928 = scalar_lea.vmem %s22, 1
        %v4929 = vld [vmem:[%s4928] sm:$0x1]
        %v4930 = vsel %vm812, %v4925, 0.0
        %4931 = vadd.xlane.f32.xlu0 %v4930
        %v4932 = vpop.xlane.xlu0 %4931
        %v4933 = vmul.f32 %v4932, %v1655
        %v4934 = vsub.f32 %v4925, %v4933
        %v4935 = vmul.f32 %v4934, %v4934
        %v4936 = vsel %vm812, %v4935, 0.0
        %4937 = vadd.xlane.f32.xlu0 %v4936
        %v4938 = vpop.xlane.xlu0 %4937
        %v4939 = vmul.f32 %v4938, %v1655
        %v4940 = vadd.f32 %v4939, 1e-05
        %v4941 = vrsqrt.pop %v4940
        %v4942 = vmul.f32 %v4934, %v4941
        %v4944 = vlaneseq
        %v4945 = vshrl.u32 %v4944, 7
        %v4946 = vsub.s32 0, %v4945
        %v4947 = vrot.slane %v4927, %v4946
        %v4949 = vmul.f32 %v4942, %v4947
        %v4951 = vlaneseq
        %v4952 = vshrl.u32 %v4951, 7
        %v4953 = vsub.s32 0, %v4952
        %v4954 = vrot.slane %v4929, %v4953
        %v4956 = vadd.f32 %v4949, %v4954
        %v4957 = vld [vmem:[%s23] sm:$0xff]
        %v4958 = vld [vmem:[%s23 + $0x8] sm:$0xff]
        %v4959 = vld [vmem:[%s23 + $0x10] sm:$0xff]
        %v4960 = vld [vmem:[%s23 + $0x18] sm:$0xff]
        %v4961 = vld [vmem:[%s24] sm:$0x1]
        %v4963 = vlaneseq
        %v4964 = vshrl.u32 %v4963, 7
        %v4965 = vsub.s32 0, %v4964
        %v4966 = vrot.slane %v4961, %v4965
        %v4969 = vsel %vm812, %v4956, 0
        %4971 = vmatprep.subr.mxu0 0.0
        %4972 = vmatpush1.msra.mxu0 %v4957
        %4973 = vmatprep.subr.mxu0 0.0
        %4974 = vmatpush1.msra.mxu0 %v4958
        %4975 = vmatprep.subr.mxu0 0.0
        %4976 = vmatpush1.msra.mxu0 %v4959
        %4977 = vmatprep.subr.mxu0 0.0
        %4978 = vmatpush1.msra.mxu0 %v4960
        %4979 = vmatprep.subr.mxu0 0.0
        %4980 = vmatpush1.msra.mxu0 0.0
        %4981 = vmatprep.subr.mxu0 0.0
        %4982 = vmatpush1.msra.mxu0 0.0
        %4983 = vmatprep.subr.mxu0 0.0
        %4984 = vmatpush1.msra.mxu0 0.0
        %4985 = vmatprep.subr.mxu0 0.0
        %4986 = vmatpush1.msra.mxu0 0.0
        %4987 = vmatprep.subr.mxu0 0.0
        %4988 = vmatpush1.msra.mxu0 0.0
        %4989 = vmatprep.subr.mxu0 0.0
        %4990 = vmatpush1.msra.mxu0 0.0
        %4991 = vmatprep.subr.mxu0 0.0
        %4992 = vmatpush1.msra.mxu0 0.0
        %4993 = vmatprep.subr.mxu0 0.0
        %4994 = vmatpush1.msra.mxu0 0.0
        %4995 = vmatprep.subr.mxu0 0.0
        %4996 = vmatpush1.msra.mxu0 0.0
        %4997 = vmatprep.subr.mxu0 0.0
        %4998 = vmatpush1.msra.mxu0 0.0
        %4999 = vmatprep.subr.mxu0 0.0
        %5000 = vmatpush1.msra.mxu0 0.0
        %5001 = vmatprep.subr.mxu0 0.0
        %5002 = vmatpush1.msra.mxu0 0.0
        %5003 = vmatprep.subr.mxu0 0.0
        %5004 = vmatpush1.msra.mxu0 0.0
        %5005 = vmatprep.subr.mxu0 0.0
        %5006 = vmatpush1.msra.mxu0 0.0
        %5007 = vmatprep.subr.mxu0 0.0
        %5008 = vmatpush1.msra.mxu0 0.0
        %5009 = vmatprep.subr.mxu0 0.0
        %5010 = vmatpush1.msra.mxu0 0.0
        %5011 = vmatprep.subr.mxu0 0.0
        %5012 = vmatpush1.msra.mxu0 0.0
        %5013 = vmatprep.subr.mxu0 0.0
        %5014 = vmatpush1.msra.mxu0 0.0
        %5015 = vmatprep.subr.mxu0 0.0
        %5016 = vmatpush1.msra.mxu0 0.0
        %5017 = vmatprep.subr.mxu0 0.0
        %5018 = vmatpush1.msra.mxu0 0.0
        %5019 = vmatprep.subr.mxu0 0.0
        %5020 = vmatpush1.msra.mxu0 0.0
        %5021 = vmatprep.subr.mxu0 0.0
        %5022 = vmatpush1.msra.mxu0 0.0
        %5023 = vmatprep.subr.mxu0 0.0
        %5024 = vmatpush1.msra.mxu0 0.0
        %5025 = vmatprep.subr.mxu0 0.0
        %5026 = vmatpush1.msra.mxu0 0.0
        %5027 = vmatprep.subr.mxu0 0.0
        %5028 = vmatpush1.msra.mxu0 0.0
        %5029 = vmatprep.subr.mxu0 0.0
        %5030 = vmatpush1.msra.mxu0 0.0
        %5031 = vmatprep.subr.mxu0 0.0
        %5032 = vmatpush1.msra.mxu0 0.0
        %5033 = vmatprep.subr.mxu0 0.0
        %5034 = vmatpush1.msra.mxu0 0.0
        %5035 = vmatprep.mubr.f32.mxu0 0.0
        %5036 = vmatmul.mubr.f32.gmra.mrb[0].mxu0 %v4969
        %v5037 = vpop.f32.mrb[0].mxu0
        %v5038 = vadd.f32 %v4966, %v5037
        %v5039 = vpop.f32.mrb[0].mxu0
        %5040 = vdwg.mxu0
        %5041 = vst [vmem:[%s783] sm:$0xff] %v5038
        %s5042 = sand.u32 %s587, 1
        %s5043 = scalar_lea.sflag [#allocation3], %s5042
        %s5044 = sand.u32 %s587, 1
        %s5045 = smul.addr %s5044, 8
        %s5046 = scalar_lea.vmem [#allocation2], %s5045
        // Predicated region
        $region121: #{decoder_forward_pallas.1} parent=119 // pred_check
          %p5047 = pneg %p597
        $region122: #{decoder_forward_pallas.1} parent=119 // pred_check_branch
          %5049 = sbr.rel (%p5047) target = $region124
        $region123: #{decoder_forward_pallas.1} parent=119 // pred_region
          %s5051 = ssub.s32 128, 128
          %5052 = vsyncadd %s5043, %s5051
          %s5053 = smul.addr %s39, 128
          %s5054 = scalar_lea.hbm %s25, %s5053
          %s5056 = sshll.u32 %s5046, 4
          %s5057 = int_to_ptr.vmem [resolvable:$true] %s5056
          %5059 = dma.vmem_to_hbm [thread:$0]  %s5057, 128, %s5054, %s5043
        $region124: #{decoder_forward_pallas.1} parent=119 // pred_fallthru
          _
      $region120: #{decoder_forward_pallas.1} parent=5 // pred_fallthru
        _
      %p5060 = scmp.le.s32.totalorder 2, %s34
      // Predicated region
      $region125: #{decoder_forward_pallas.1} parent=5 // pred_check
        %p5061 = pneg %p5060
      $region126: #{decoder_forward_pallas.1} parent=5 // pred_check_branch
        %5063 = sbr.rel (%p5061) target = $region128
      $region127: #{decoder_forward_pallas.1} parent=5 // pred_region
        %s5064 = ssub.s32 %s34, 2
        // Predicated region
        $region129: #{decoder_forward_pallas.1} parent=127 // pred_check
          %p5065 = pneg %p603
        $region130: #{decoder_forward_pallas.1} parent=127 // pred_check_branch
          %5067 = sbr.rel (%p5065) target = $region132
        $region131: #{decoder_forward_pallas.1} parent=127 // pred_region
          %s5068 = sand.u32 %s588, 1
          %s5069 = scalar_lea.sflag [#allocation3], %s5068
          %s5070 = sand.u32 %s588, 1
          %s5071 = smul.addr %s5070, 8
          %s5072 = scalar_lea.vmem [#allocation2], %s5071
          %5073 = dma.done %s5069, 128
        $region132: #{decoder_forward_pallas.1} parent=127 // pred_fallthru
          _
      $region128: #{decoder_forward_pallas.1} parent=5 // pred_fallthru
        _
    $region6: #{decoder_forward_pallas.1} parent=1 // loop_footer
      %s38 = sadd.s32 1, %s34
    $region7: #{decoder_forward_pallas.1} parent=1 // loop_footer_branch
      %33 = sbr.rel target = $region3
    $region8: #{decoder_forward_pallas.1} parent=1 // loop_exit
      _
    %5074 = vsyncpa [#allocation3], 1
    %s5075 = scalar_lea.sflag [#allocation3], 1
    %5076 = vsyncpa %s5075, 1

</llo_original>
